<compile_context>
chip_gen: v6e
topology: v6e:2x2x1
jax: 0.10.0
libtpu: 0.0.40
codegen_flags: <defaults>
</compile_context>

<pallas_src>
import functools
import math

import jax
import jax.numpy as jnp
from jax.experimental import pallas as pl
from jax.experimental.pallas import tpu as pltpu

EPS = 1e-5

# Production setting on v5e/v6e/v7x: MXU_DTYPE = H1_DTYPE = jnp.bfloat16
# (3-4x MXU throughput, half the im2col scratch, half the inter-stage HBM
# traffic; accumulation stays f32 via preferred_element_type).  Kept f32 here
# so the strict 1e-3 check against the f32 XLA reference below holds.
MXU_DTYPE = jnp.float32     # dtype fed to the MXU (im2col scratch + weights)
H1_DTYPE = jnp.float32      # dtype of the inter-stage (conv1 output) tensor

_ITEMSIZE = {jnp.float32: 4, jnp.bfloat16: 2, jnp.float16: 2}


# --------------------------------------------------------------------------
# BN batch statistics: parallel per-sample partial (sum, sumsq) + tiny serial
# finalize.  The partials kernel is used for BN1 (over x); stage 1 emits the
# per-sample partials of conv1's output itself for BN2.
# --------------------------------------------------------------------------
def bn_partials_kernel(x_ref, part_ref):
    blk = x_ref[0]                                        # (H, W, C)
    c = blk.shape[-1]
    part_ref[0, 0:1, :] = jnp.sum(blk, axis=(0, 1),
                                  keepdims=True).reshape(1, c)
    part_ref[0, 1:2, :] = jnp.sum(blk * blk, axis=(0, 1),
                                  keepdims=True).reshape(1, c)


def bn_finalize_kernel(part_ref, out_ref, *, count):
    # Output block is revisited across the serial ("arbitrary") batch axis.
    n = pl.program_id(0)
    part = part_ref[0]                                    # (2, C)

    @pl.when(n == 0)
    def _():
        out_ref[...] = part

    @pl.when(n > 0)
    def _():
        out_ref[...] += part

    @pl.when(n == pl.num_programs(0) - 1)
    def _():
        mean = out_ref[0:1, :] * (1.0 / count)
        # E[x^2]-mean^2 in f32; clamp at 0 so cancellation can never push the
        # rsqrt argument negative.  TODO(synk): shifted sum-of-squares for
        # very large N*H*W.
        var = jnp.maximum(out_ref[1:2, :] * (1.0 / count) - mean * mean, 0.0)
        out_ref[0:1, :] = mean
        out_ref[1:2, :] = jax.lax.rsqrt(var + EPS)


# --------------------------------------------------------------------------
# Stage 1: relu(BN1(x)) -> nearest 2x upsample -> conv1 (3x3), stored as two
# column-parity phases.  Also emits per-sample BN2 partial statistics.
# --------------------------------------------------------------------------
def stage1_kernel(x_ref, s1_ref, g1_ref, be1_ref, w1c_ref, bc1_ref,
                  h1_ref, part_ref, pad_ref, col_ref):
    _, H, W, Ci = x_ref.shape
    Hu = 2 * H
    Co = bc1_ref.shape[-1]

    # BN1 + ReLU on the pre-upsample x (per-channel scale/shift folded once).
    mean1 = s1_ref[0:1, :].reshape(1, 1, Ci)
    inv1 = s1_ref[1:2, :].reshape(1, 1, Ci)
    scale = inv1 * g1_ref[...].reshape(1, 1, Ci)
    shift = be1_ref[...].reshape(1, 1, Ci) - mean1 * scale
    t = jnp.maximum(x_ref[0] * scale + shift, 0.0)        # (H, W, Ci)
    # NOTE: with Ci < 128 this elementwise block uses only Ci of 128 lanes;
    # the conv matmuls below stay lane-full thanks to the K-concatenation.

    # H-direction nearest upsample: outer-dim broadcast + reshape.
    u = jnp.broadcast_to(t[:, None], (H, 2, W, Ci)).reshape(Hu, W, Ci)

    # Zero the 1-wide halo strips every step.  (A program_id==0 "zero once"
    # guard is unsafe here: with "parallel" semantics the grid is sharded
    # across TensorCores and each core has its own scratch, so the core that
    # never runs step 0 would see garbage halos.)
    pad_ref[0, :, :] = jnp.zeros((W + 2, Ci), jnp.float32)
    pad_ref[Hu + 1, :, :] = jnp.zeros((W + 2, Ci), jnp.float32)
    pad_ref[:, 0:1, :] = jnp.zeros((Hu + 2, 1, Ci), jnp.float32)
    pad_ref[:, W + 1:W + 2, :] = jnp.zeros((Hu + 2, 1, Ci), jnp.float32)
    pad_ref[1:Hu + 1, 1:W + 1, :] = u

    # conv1: per output-column parity phase, build the 6-tap im2col buffer
    # (K = 6*Ci, tap-major) once, then K-concatenated MXU matmuls (>=384-deep
    # chunks) with register accumulation.  No VMEM accumulator round-trips.
    tpg = max(1, 384 // Ci)                               # taps per matmul
    psum = jnp.zeros((1, Co), jnp.float32)
    psq = jnp.zeros((1, Co), jnp.float32)
    for b in range(2):
        for ky in range(3):
            for tc in range(2):
                k = ky * 2 + tc
                col_ref[:, k * Ci:(k + 1) * Ci] = (
                    pad_ref[ky:ky + Hu, b + tc:b + tc + W, :]
                    .reshape(Hu * W, Ci).astype(MXU_DTYPE))
        acc = None
        for t0 in range(0, 6, tpg):
            t1 = min(t0 + tpg, 6)
            d = jnp.dot(col_ref[:, t0 * Ci:t1 * Ci],
                        w1c_ref[b, t0 * Ci:t1 * Ci, :],
                        preferred_element_type=jnp.float32)
            acc = d if acc is None else acc + d
        h1b = acc + bc1_ref[...]                          # (Hu*W, Co) f32
        h1_ref[0, b] = h1b.reshape(Hu, W, Co).astype(H1_DTYPE)
        psum = psum + jnp.sum(h1b, axis=0, keepdims=True)
        psq = psq + jnp.sum(h1b * h1b, axis=0, keepdims=True)
    part_ref[0, 0:1, :] = psum
    part_ref[0, 1:2, :] = psq


# conv2 tap table: for output column parity bp and kernel column kx, the tap
# reads input column-parity phase PHASE at half-width column offset DELTA
# (+1 maps the offset into the zero-padded scratch).
_CONV2_TAPS = (((1, -1), (0, 0), (1, 0)),                 # bp = 0
               ((0, 0), (1, 0), (0, 1)))                  # bp = 1


# --------------------------------------------------------------------------
# Stage 2: relu(BN2(h1)) -> conv2 (3x3) + upsampled 1x1 shortcut.
# --------------------------------------------------------------------------
def stage2_kernel(h1_ref, s2_ref, g2_ref, be2_ref, w2c_ref, bc2_ref,
                  x_ref, wsc_ref, bsc_ref,
                  out_ref, zpad_ref, col_ref):
    Hu, W, Co = h1_ref.shape[2], h1_ref.shape[3], h1_ref.shape[4]
    H = Hu // 2
    Ci = x_ref.shape[-1]

    mean2 = s2_ref[0:1, :].reshape(1, 1, Co)
    inv2 = s2_ref[1:2, :].reshape(1, 1, Co)
    scale = inv2 * g2_ref[...].reshape(1, 1, Co)
    shift = be2_ref[...].reshape(1, 1, Co) - mean2 * scale

    # BN2 + ReLU into zero-halo padded column-parity buffers (halos re-zeroed
    # every step; see stage1 for why "zero once" is unsafe under megacore).
    for p in range(2):
        zpad_ref[p, 0, :, :] = jnp.zeros((W + 2, Co), jnp.float32)
        zpad_ref[p, Hu + 1, :, :] = jnp.zeros((W + 2, Co), jnp.float32)
        zpad_ref[p, :, 0:1, :] = jnp.zeros((Hu + 2, 1, Co), jnp.float32)
        zpad_ref[p, :, W + 1:W + 2, :] = jnp.zeros((Hu + 2, 1, Co), jnp.float32)
        zpad_ref[p, 1:Hu + 1, 1:W + 1, :] = jnp.maximum(
            h1_ref[0, p].astype(jnp.float32) * scale + shift, 0.0)

    # Shortcut: 1x1 conv on the pre-upsample x (4x fewer MACs), H-replicate;
    # both output column parities share the same shortcut column.
    s0 = jnp.dot(x_ref[0].reshape(H * W, Ci).astype(MXU_DTYPE), wsc_ref[...],
                 preferred_element_type=jnp.float32) + bsc_ref[...]
    s0 = s0.reshape(H, W, Co)
    sc = jnp.broadcast_to(s0[:, None], (H, 2, W, Co)).reshape(Hu, W, Co)

    # conv2: per output parity, 9-tap im2col (K = 9*Co) once, then K-chunked
    # MXU matmuls with register accumulation.
    tpg = max(1, 384 // Co)
    for bp in range(2):
        for ky in range(3):
            for kx in range(3):
                ph, d = _CONV2_TAPS[bp][kx]
                k = ky * 3 + kx
                col_ref[:, k * Co:(k + 1) * Co] = (
                    zpad_ref[ph, ky:ky + Hu, d + 1:d + 1 + W, :]
                    .reshape(Hu * W, Co).astype(MXU_DTYPE))
        acc = None
        for t0 in range(0, 9, tpg):
            t1 = min(t0 + tpg, 9)
            dd = jnp.dot(col_ref[:, t0 * Co:t1 * Co],
                         w2c_ref[t0 * Co:t1 * Co, :],
                         preferred_element_type=jnp.float32)
            acc = dd if acc is None else acc + dd
        h2 = acc + bc2_ref[...]
        out_ref[0, bp] = h2.reshape(Hu, W, Co) + sc


# --------------------------------------------------------------------------
# Wrapper helpers
# --------------------------------------------------------------------------
def _combine_conv1_weights(w1):
    """Fold the W-direction nearest-2x upsample into conv1's weights.

    Returns (2, 3, 2, Ci, Co): output-column parity b, row tap ky, combined
    column tap tc.
    """
    phases = []
    for b in range(2):
        rows = []
        for ky in range(3):
            if b == 0:
                taps = [w1[ky, 0], w1[ky, 1] + w1[ky, 2]]
            else:
                taps = [w1[ky, 0] + w1[ky, 1], w1[ky, 2]]
            rows.append(jnp.stack(taps))
        phases.append(jnp.stack(rows))
    return jnp.stack(phases)


def _bytes(shape, dtype):
    return math.prod(shape) * _ITEMSIZE.get(dtype, 4)


def _vmem_cap_bytes():
    try:
        return int(pltpu.get_tpu_info().vmem_capacity_bytes)
    except Exception:
        return 64 * 1024 * 1024        # conservative (v7x per-core VMEM)


def _heavy_compiler_params(block_bytes, scratch_bytes):
    # Right-size the scoped VMEM request: double-buffered blocks + scratch,
    # ~1.5x headroom, never more than 3/4 of the core's physical VMEM (a
    # blanket 64 MiB request is the *entire* TensorCore VMEM on v7x).
    need = 2 * block_bytes + scratch_bytes
    limit = max(need + need // 2 + (4 << 20), 32 << 20)
    limit = min(limit, (_vmem_cap_bytes() * 3) // 4)
    return pltpu.CompilerParams(dimension_semantics=("parallel",),
                                vmem_limit_bytes=int(limit))


def _finalize_stats(partials, count):
    n, _, c = partials.shape
    return pl.pallas_call(
        functools.partial(bn_finalize_kernel, count=float(count)),
        out_shape=jax.ShapeDtypeStruct((2, c), jnp.float32),
        grid_spec=pltpu.PrefetchScalarGridSpec(
            num_scalar_prefetch=0, grid=(n,),
            in_specs=[pl.BlockSpec((1, 2, c), lambda i: (i, 0, 0))],
            out_specs=pl.BlockSpec((2, c), lambda i: (0, 0))),
        compiler_params=pltpu.CompilerParams(
            dimension_semantics=("arbitrary",)),
    )(partials)


def base_gen_block(x_nchw, params):
    N, Ci, H, W = x_nchw.shape
    Co = params["w1"].shape[-1]
    Hu, Wu = 2 * H, 2 * W

    x = jnp.transpose(x_nchw, (0, 2, 3, 1))               # NCHW -> NHWC
    # K-concatenated conv weights (W-upsample folded into conv1; tap-major K).
    w1c = _combine_conv1_weights(params["w1"]).reshape(
        2, 6 * Ci, Co).astype(MXU_DTYPE)
    w2c = params["w2"].reshape(9 * Co, Co).astype(MXU_DTYPE)
    wsc = params["wsc"].astype(MXU_DTYPE)

    # ---- BN1 batch statistics: parallel per-sample partials + tiny reduce --
    part1 = pl.pallas_call(
        bn_partials_kernel,
        out_shape=jax.ShapeDtypeStruct((N, 2, Ci), jnp.float32),
        grid_spec=pltpu.PrefetchScalarGridSpec(
            num_scalar_prefetch=0, grid=(N,),
            in_specs=[pl.BlockSpec((1, H, W, Ci), lambda n: (n, 0, 0, 0))],
            out_specs=pl.BlockSpec((1, 2, Ci), lambda n: (n, 0, 0))),
        compiler_params=pltpu.CompilerParams(
            dimension_semantics=("parallel",)),
    )(x)
    stats1 = _finalize_stats(part1, count=N * H * W)

    # ---- stage 1: BN1+ReLU -> up2x -> conv1 (+ BN2 partial stats) ----------
    s1_blocks = (_bytes((1, H, W, Ci), jnp.float32)
                 + _bytes((2, Ci), jnp.float32)
                 + 2 * _bytes((1, Ci), jnp.float32)
                 + _bytes((2, 6 * Ci, Co), MXU_DTYPE)
                 + _bytes((1, Co), jnp.float32)
                 + _bytes((1, 2, Hu, W, Co), H1_DTYPE)
                 + _bytes((1, 2, Co), jnp.float32))
    s1_scratch = (_bytes((Hu + 2, W + 2, Ci), jnp.float32)
                  + _bytes((Hu * W, 6 * Ci), MXU_DTYPE))
    h1p, part2 = pl.pallas_call(
        stage1_kernel,
        out_shape=(jax.ShapeDtypeStruct((N, 2, Hu, W, Co), H1_DTYPE),
                   jax.ShapeDtypeStruct((N, 2, Co), jnp.float32)),
        grid_spec=pltpu.PrefetchScalarGridSpec(
            num_scalar_prefetch=0, grid=(N,),
            in_specs=[
                pl.BlockSpec((1, H, W, Ci), lambda n: (n, 0, 0, 0)),
                pl.BlockSpec((2, Ci), lambda n: (0, 0)),
                pl.BlockSpec((1, Ci), lambda n: (0, 0)),
                pl.BlockSpec((1, Ci), lambda n: (0, 0)),
                pl.BlockSpec((2, 6 * Ci, Co), lambda n: (0, 0, 0)),
                pl.BlockSpec((1, Co), lambda n: (0, 0)),
            ],
            out_specs=[
                pl.BlockSpec((1, 2, Hu, W, Co), lambda n: (n, 0, 0, 0, 0)),
                pl.BlockSpec((1, 2, Co), lambda n: (n, 0, 0)),
            ],
            scratch_shapes=[
                pltpu.VMEM((Hu + 2, W + 2, Ci), jnp.float32),
                pltpu.VMEM((Hu * W, 6 * Ci), MXU_DTYPE),
            ]),
        compiler_params=_heavy_compiler_params(s1_blocks, s1_scratch),
    )(x, stats1, params["g1"], params["be1"], w1c, params["bc1"])

    # ---- finalize BN2 batch statistics --------------------------------------
    stats2 = _finalize_stats(part2, count=N * Hu * Wu)

    # ---- stage 2: BN2+ReLU -> conv2 + upsampled 1x1 shortcut ----------------
    s2_blocks = (_bytes((1, 2, Hu, W, Co), H1_DTYPE)
                 + _bytes((2, Co), jnp.float32)
                 + 2 * _bytes((1, Co), jnp.float32)
                 + _bytes((9 * Co, Co), MXU_DTYPE)
                 + _bytes((1, Co), jnp.float32)
                 + _bytes((1, H, W, Ci), jnp.float32)
                 + _bytes((Ci, Co), MXU_DTYPE)
                 + _bytes((1, Co), jnp.float32)
                 + _bytes((1, 2, Hu, W, Co), jnp.float32))
    s2_scratch = (_bytes((2, Hu + 2, W + 2, Co), jnp.float32)
                  + _bytes((Hu * W, 9 * Co), MXU_DTYPE))
    outp = pl.pallas_call(
        stage2_kernel,
        out_shape=jax.ShapeDtypeStruct((N, 2, Hu, W, Co), jnp.float32),
        grid_spec=pltpu.PrefetchScalarGridSpec(
            num_scalar_prefetch=0, grid=(N,),
            in_specs=[
                pl.BlockSpec((1, 2, Hu, W, Co), lambda n: (n, 0, 0, 0, 0)),
                pl.BlockSpec((2, Co), lambda n: (0, 0)),
                pl.BlockSpec((1, Co), lambda n: (0, 0)),
                pl.BlockSpec((1, Co), lambda n: (0, 0)),
                pl.BlockSpec((9 * Co, Co), lambda n: (0, 0)),
                pl.BlockSpec((1, Co), lambda n: (0, 0)),
                pl.BlockSpec((1, H, W, Ci), lambda n: (n, 0, 0, 0)),
                pl.BlockSpec((Ci, Co), lambda n: (0, 0)),
                pl.BlockSpec((1, Co), lambda n: (0, 0)),
            ],
            out_specs=pl.BlockSpec((1, 2, Hu, W, Co),
                                   lambda n: (n, 0, 0, 0, 0)),
            scratch_shapes=[
                pltpu.VMEM((2, Hu + 2, W + 2, Co), jnp.float32),
                pltpu.VMEM((Hu * W, 9 * Co), MXU_DTYPE),
            ]),
        compiler_params=_heavy_compiler_params(s2_blocks, s2_scratch),
    )(h1p, stats2, params["g2"], params["be2"], w2c, params["bc2"],
      x, wsc, params["bsc"])

    # Merge even/odd column phases and convert to NCHW in one XLA transpose.
    out = jnp.transpose(outp, (0, 4, 2, 3, 1)).reshape(N, Co, Hu, Wu)
    return out


# -------------------------------------------------- pure-JAX reference ------
def ref_forward(x_nchw, params):
    x = jnp.transpose(x_nchw, (0, 2, 3, 1))

    def bn(h, g, b):
        m = jnp.mean(h, axis=(0, 1, 2), keepdims=True)
        v = jnp.var(h, axis=(0, 1, 2), keepdims=True)
        return (h - m) / jnp.sqrt(v + EPS) * g.reshape(1, 1, 1, -1) + \
            b.reshape(1, 1, 1, -1)

    def conv(h, w, b, pad):
        o = jax.lax.conv_general_dilated(
            h, w, (1, 1), [(pad, pad), (pad, pad)],
            dimension_numbers=("NHWC", "HWIO", "NHWC"))
        return o + b.reshape(1, 1, 1, -1)

    def up2(h):
        return jnp.repeat(jnp.repeat(h, 2, axis=1), 2, axis=2)

    h = jnp.maximum(bn(x, params["g1"], params["be1"]), 0.0)
    h = up2(h)
    h = conv(h, params["w1"], params["bc1"], 1)
    h = jnp.maximum(bn(h, params["g2"], params["be2"]), 0.0)
    h = conv(h, params["w2"], params["bc2"], 1)
    sc = conv(up2(x), params["wsc"].reshape(1, 1, *params["wsc"].shape),
              params["bsc"], 0)
    return jnp.transpose(h + sc, (0, 3, 1, 2))


# ------------------------------------------------------------------ main ----
def make_params(key, ci, co):
    ks = jax.random.split(key, 9)
    gain = 2.0 ** 0.5
    w1 = jax.random.normal(ks[0], (3, 3, ci, co), jnp.float32) * gain / (9 * ci) ** 0.5
    w2 = jax.random.normal(ks[1], (3, 3, co, co), jnp.float32) * gain / (9 * co) ** 0.5
    wsc = jax.random.normal(ks[2], (ci, co), jnp.float32) / ci ** 0.5
    return dict(
        w1=w1, bc1=0.1 * jax.random.normal(ks[3], (1, co), jnp.float32),
        w2=w2, bc2=0.1 * jax.random.normal(ks[4], (1, co), jnp.float32),
        wsc=wsc, bsc=0.1 * jax.random.normal(ks[5], (1, co), jnp.float32),
        g1=1.0 + 0.1 * jax.random.normal(ks[6], (1, ci), jnp.float32),
        be1=0.1 * jax.random.normal(ks[7], (1, ci), jnp.float32),
        g2=1.0 + 0.1 * jax.random.normal(ks[8], (1, co), jnp.float32),
        be2=0.1 * jnp.ones((1, co), jnp.float32),
    )


if __name__ == "__main__":
    key = jax.random.PRNGKey(0)
    kx, kp = jax.random.split(key)

    # small demo shapes; output is (2, 128, 16, 16).  Cout=128 keeps the
    # output stores lane-dense (128-wide channel axis on lanes).
    N, Ci, Co, H, W = 2, 64, 128, 8, 8
    x = jax.random.normal(kx, (N, Ci, H, W), jnp.float32)   # NCHW, like torch
    params = make_params(kp, Ci, Co)

    out = jax.block_until_ready(jax.jit(base_gen_block)(x, params))
    ref = jax.block_until_ready(ref_forward(x, params))

    assert out.shape == (N, Co, 2 * H, 2 * W)
    max_err = jnp.max(jnp.abs(out - ref))
    assert jnp.allclose(out, ref, atol=1e-3, rtol=1e-3), \
        f"max abs err {max_err}"

    print("KERNEL_OK")
</pallas_src>

<mosaic_0001>
module attributes {stable_mosaic.version = 11 : i64} {
  func.func @bn_finalize_kernel(%arg0: i32, %arg1: memref<1x2x128xf32, #tpu.memory_space<vmem>>, %arg2: memref<2x128xf32, #tpu.memory_space<vmem>>) attributes {dimension_semantics = [#tpu.dimension_semantics<arbitrary>], iteration_bounds = array<i64: 2>, scalar_prefetch = 0 : i64, scratch_operands = 0 : i64, tpu.core_type = #tpu.core_type<tc>, window_params = [{transform_indices = @transform_0, window_bounds = array<i64: 1, 2, 128>}, {pipeline_mode = #tpu.pipeline_mode<synchronous>, transform_indices = @transform_1, window_bounds = array<i64: 2, 128>}]} {
    %c0 = arith.constant 0 : index
    %c0_0 = arith.constant 0 : index
    %c0_1 = arith.constant 0 : index
    %0 = vector.load %arg1[%c0, %c0_0, %c0_1] : memref<1x2x128xf32, #tpu.memory_space<vmem>>, vector<1x2x128xf32>
    %1 = vector.shape_cast %0 : vector<1x2x128xf32> to vector<2x128xf32>
    %c0_i32 = arith.constant 0 : i32
    %2 = arith.cmpi eq, %arg0, %c0_i32 : i32
    %3 = arith.extui %2 : i1 to i32
    %c0_i32_2 = arith.constant 0 : i32
    %4 = arith.cmpi ne, %3, %c0_i32_2 : i32
    scf.if %4 {
      %c0_6 = arith.constant 0 : index
      %c0_7 = arith.constant 0 : index
      %11 = vector.load %arg2[%c0_6, %c0_7] : memref<2x128xf32, #tpu.memory_space<vmem>>, vector<2x128xf32>
      tpu.vector_store %arg2[%c0_6, %c0_7], %1 {strides = array<i32>} : memref<2x128xf32, #tpu.memory_space<vmem>>, vector<2x128xf32>,
    } else {
    }
    %c0_i32_3 = arith.constant 0 : i32
    %5 = arith.cmpi sgt, %arg0, %c0_i32_3 : i32
    %6 = arith.extui %5 : i1 to i32
    %c0_i32_4 = arith.constant 0 : i32
    %7 = arith.cmpi ne, %6, %c0_i32_4 : i32
    scf.if %7 {
      %c0_6 = arith.constant 0 : index
      %c0_7 = arith.constant 0 : index
      %11 = vector.load %arg2[%c0_6, %c0_7] : memref<2x128xf32, #tpu.memory_space<vmem>>, vector<2x128xf32>
      %12 = arith.addf %11, %1 : vector<2x128xf32>
      %c0_8 = arith.constant 0 : index
      %c0_9 = arith.constant 0 : index
      %13 = vector.load %arg2[%c0_8, %c0_9] : memref<2x128xf32, #tpu.memory_space<vmem>>, vector<2x128xf32>
      tpu.vector_store %arg2[%c0_8, %c0_9], %12 {strides = array<i32>} : memref<2x128xf32, #tpu.memory_space<vmem>>, vector<2x128xf32>,
    } else {
    }
    %c1_i32 = arith.constant 1 : i32
    %8 = arith.cmpi eq, %arg0, %c1_i32 : i32
    %9 = arith.extui %8 : i1 to i32
    %c0_i32_5 = arith.constant 0 : i32
    %10 = arith.cmpi ne, %9, %c0_i32_5 : i32
    scf.if %10 {
      %c0_6 = arith.constant 0 : index
      %c0_7 = arith.constant 0 : index
      %11 = vector.load %arg2[%c0_6, %c0_7] : memref<2x128xf32, #tpu.memory_space<vmem>>, vector<1x128xf32>
      %cst = arith.constant 0.001953125 : f32
      %12 = vector.broadcast %cst : f32 to vector<1x128xf32>
      %13 = arith.mulf %11, %12 : vector<1x128xf32>
      %c1 = arith.constant 1 : index
      %c0_8 = arith.constant 0 : index
      %14 = vector.load %arg2[%c1, %c0_8] : memref<2x128xf32, #tpu.memory_space<vmem>>, vector<1x128xf32>
      %cst_9 = arith.constant 0.001953125 : f32
      %15 = vector.broadcast %cst_9 : f32 to vector<1x128xf32>
      %16 = arith.mulf %14, %15 : vector<1x128xf32>
      %17 = arith.mulf %13, %13 : vector<1x128xf32>
      %18 = arith.subf %16, %17 : vector<1x128xf32>
      %cst_10 = arith.constant 0.000000e+00 : f32
      %19 = vector.broadcast %cst_10 : f32 to vector<1x128xf32>
      %20 = arith.maximumf %18, %19 : vector<1x128xf32>
      %c0_11 = arith.constant 0 : index
      %c0_12 = arith.constant 0 : index
      %21 = vector.load %arg2[%c0_11, %c0_12] : memref<2x128xf32, #tpu.memory_space<vmem>>, vector<1x128xf32>
      tpu.vector_store %arg2[%c0_11, %c0_12], %13 {strides = array<i32>} : memref<2x128xf32, #tpu.memory_space<vmem>>, vector<1x128xf32>,
      %cst_13 = arith.constant 9.99999974E-6 : f32
      %22 = vector.broadcast %cst_13 : f32 to vector<1x128xf32>
      %23 = arith.addf %20, %22 : vector<1x128xf32>
      %24 = math.rsqrt %23 : vector<1x128xf32>
      %c1_14 = arith.constant 1 : index
      %c0_15 = arith.constant 0 : index
      %25 = vector.load %arg2[%c1_14, %c0_15] : memref<2x128xf32, #tpu.memory_space<vmem>>, vector<1x128xf32>
      tpu.vector_store %arg2[%c1_14, %c0_15], %24 {strides = array<i32>} : memref<2x128xf32, #tpu.memory_space<vmem>>, vector<1x128xf32>,
    } else {
    }
    return
  }
  func.func @transform_0(%arg0: i32) -> (i32, i32, i32) {
    %c0_i32 = arith.constant 0 : i32
    %c0_i32_0 = arith.constant 0 : i32
    %c0_i32_1 = arith.constant 0 : i32
    return %arg0, %c0_i32, %c0_i32_0 : i32, i32, i32
  }
  func.func @transform_1(%arg0: i32) -> (i32, i32) {
    %c0_i32 = arith.constant 0 : i32
    %c0_i32_0 = arith.constant 0 : i32
    %c0_i32_1 = arith.constant 0 : i32
    return %c0_i32, %c0_i32_0 : i32, i32
  }
}

module attributes {stable_mosaic.version = 11 : i64} {
  func.func @bn_finalize_kernel(%arg0: i32, %arg1: memref<1x2x64xf32, #tpu.memory_space<vmem>>, %arg2: memref<2x64xf32, #tpu.memory_space<vmem>>) attributes {dimension_semantics = [#tpu.dimension_semantics<arbitrary>], iteration_bounds = array<i64: 2>, scalar_prefetch = 0 : i64, scratch_operands = 0 : i64, tpu.core_type = #tpu.core_type<tc>, window_params = [{transform_indices = @transform_0, window_bounds = array<i64: 1, 2, 64>}, {pipeline_mode = #tpu.pipeline_mode<synchronous>, transform_indices = @transform_1, window_bounds = array<i64: 2, 64>}]} {
    %c0 = arith.constant 0 : index
    %c0_0 = arith.constant 0 : index
    %c0_1 = arith.constant 0 : index
    %0 = vector.load %arg1[%c0, %c0_0, %c0_1] : memref<1x2x64xf32, #tpu.memory_space<vmem>>, vector<1x2x64xf32>
    %1 = vector.shape_cast %0 : vector<1x2x64xf32> to vector<2x64xf32>
    %c0_i32 = arith.constant 0 : i32
    %2 = arith.cmpi eq, %arg0, %c0_i32 : i32
    %3 = arith.extui %2 : i1 to i32
    %c0_i32_2 = arith.constant 0 : i32
    %4 = arith.cmpi ne, %3, %c0_i32_2 : i32
    scf.if %4 {
      %c0_6 = arith.constant 0 : index
      %c0_7 = arith.constant 0 : index
      %11 = vector.load %arg2[%c0_6, %c0_7] : memref<2x64xf32, #tpu.memory_space<vmem>>, vector<2x64xf32>
      tpu.vector_store %arg2[%c0_6, %c0_7], %1 {strides = array<i32>} : memref<2x64xf32, #tpu.memory_space<vmem>>, vector<2x64xf32>,
    } else {
    }
    %c0_i32_3 = arith.constant 0 : i32
    %5 = arith.cmpi sgt, %arg0, %c0_i32_3 : i32
    %6 = arith.extui %5 : i1 to i32
    %c0_i32_4 = arith.constant 0 : i32
    %7 = arith.cmpi ne, %6, %c0_i32_4 : i32
    scf.if %7 {
      %c0_6 = arith.constant 0 : index
      %c0_7 = arith.constant 0 : index
      %11 = vector.load %arg2[%c0_6, %c0_7] : memref<2x64xf32, #tpu.memory_space<vmem>>, vector<2x64xf32>
      %12 = arith.addf %11, %1 : vector<2x64xf32>
      %c0_8 = arith.constant 0 : index
      %c0_9 = arith.constant 0 : index
      %13 = vector.load %arg2[%c0_8, %c0_9] : memref<2x64xf32, #tpu.memory_space<vmem>>, vector<2x64xf32>
      tpu.vector_store %arg2[%c0_8, %c0_9], %12 {strides = array<i32>} : memref<2x64xf32, #tpu.memory_space<vmem>>, vector<2x64xf32>,
    } else {
    }
    %c1_i32 = arith.constant 1 : i32
    %8 = arith.cmpi eq, %arg0, %c1_i32 : i32
    %9 = arith.extui %8 : i1 to i32
    %c0_i32_5 = arith.constant 0 : i32
    %10 = arith.cmpi ne, %9, %c0_i32_5 : i32
    scf.if %10 {
      %c0_6 = arith.constant 0 : index
      %c0_7 = arith.constant 0 : index
      %11 = vector.load %arg2[%c0_6, %c0_7] : memref<2x64xf32, #tpu.memory_space<vmem>>, vector<1x64xf32>
      %cst = arith.constant 7.812500e-03 : f32
      %12 = vector.broadcast %cst : f32 to vector<1x64xf32>
      %13 = arith.mulf %11, %12 : vector<1x64xf32>
      %c1 = arith.constant 1 : index
      %c0_8 = arith.constant 0 : index
      %14 = vector.load %arg2[%c1, %c0_8] : memref<2x64xf32, #tpu.memory_space<vmem>>, vector<1x64xf32>
      %cst_9 = arith.constant 7.812500e-03 : f32
      %15 = vector.broadcast %cst_9 : f32 to vector<1x64xf32>
      %16 = arith.mulf %14, %15 : vector<1x64xf32>
      %17 = arith.mulf %13, %13 : vector<1x64xf32>
      %18 = arith.subf %16, %17 : vector<1x64xf32>
      %cst_10 = arith.constant 0.000000e+00 : f32
      %19 = vector.broadcast %cst_10 : f32 to vector<1x64xf32>
      %20 = arith.maximumf %18, %19 : vector<1x64xf32>
      %c0_11 = arith.constant 0 : index
      %c0_12 = arith.constant 0 : index
      %21 = vector.load %arg2[%c0_11, %c0_12] : memref<2x64xf32, #tpu.memory_space<vmem>>, vector<1x64xf32>
      tpu.vector_store %arg2[%c0_11, %c0_12], %13 {strides = array<i32>} : memref<2x64xf32, #tpu.memory_space<vmem>>, vector<1x64xf32>,
      %cst_13 = arith.constant 9.99999974E-6 : f32
      %22 = vector.broadcast %cst_13 : f32 to vector<1x64xf32>
      %23 = arith.addf %20, %22 : vector<1x64xf32>
      %24 = math.rsqrt %23 : vector<1x64xf32>
      %c1_14 = arith.constant 1 : index
      %c0_15 = arith.constant 0 : index
      %25 = vector.load %arg2[%c1_14, %c0_15] : memref<2x64xf32, #tpu.memory_space<vmem>>, vector<1x64xf32>
      tpu.vector_store %arg2[%c1_14, %c0_15], %24 {strides = array<i32>} : memref<2x64xf32, #tpu.memory_space<vmem>>, vector<1x64xf32>,
    } else {
    }
    return
  }
  func.func @transform_0(%arg0: i32) -> (i32, i32, i32) {
    %c0_i32 = arith.constant 0 : i32
    %c0_i32_0 = arith.constant 0 : i32
    %c0_i32_1 = arith.constant 0 : i32
    return %arg0, %c0_i32, %c0_i32_0 : i32, i32, i32
  }
  func.func @transform_1(%arg0: i32) -> (i32, i32) {
    %c0_i32 = arith.constant 0 : i32
    %c0_i32_0 = arith.constant 0 : i32
    %c0_i32_1 = arith.constant 0 : i32
    return %c0_i32, %c0_i32_0 : i32, i32
  }
}

module attributes {stable_mosaic.version = 11 : i64} {
  func.func @bn_partials_kernel(%arg0: i32, %arg1: memref<1x8x8x64xf32, #tpu.memory_space<vmem>>, %arg2: memref<1x2x64xf32, #tpu.memory_space<vmem>>) attributes {dimension_semantics = [#tpu.dimension_semantics<parallel>], iteration_bounds = array<i64: 2>, scalar_prefetch = 0 : i64, scratch_operands = 0 : i64, tpu.core_type = #tpu.core_type<tc>, window_params = [{transform_indices = @transform_0, window_bounds = array<i64: 1, 8, 8, 64>}, {transform_indices = @transform_1, window_bounds = array<i64: 1, 2, 64>}]} {
    %c0 = arith.constant 0 : index
    %c0_0 = arith.constant 0 : index
    %c0_1 = arith.constant 0 : index
    %c0_2 = arith.constant 0 : index
    %0 = vector.load %arg1[%c0, %c0_0, %c0_1, %c0_2] : memref<1x8x8x64xf32, #tpu.memory_space<vmem>>, vector<1x8x8x64xf32>
    %1 = vector.shape_cast %0 : vector<1x8x8x64xf32> to vector<8x8x64xf32>
    %cst = arith.constant dense<0.000000e+00> : vector<64xf32>
    %2 = vector.multi_reduction <add>, %1, %cst [0, 1] : vector<8x8x64xf32> to vector<64xf32>
    %3 = vector.shape_cast %2 : vector<64xf32> to vector<1x1x64xf32>
    %4 = vector.shape_cast %3 : vector<1x1x64xf32> to vector<1x64xf32>
    %c0_3 = arith.constant 0 : index
    %c0_4 = arith.constant 0 : index
    %c0_5 = arith.constant 0 : index
    %5 = vector.load %arg2[%c0_3, %c0_4, %c0_5] : memref<1x2x64xf32, #tpu.memory_space<vmem>>, vector<1x1x64xf32>
    %6 = vector.shape_cast %5 : vector<1x1x64xf32> to vector<1x64xf32>
    %7 = vector.shape_cast %4 : vector<1x64xf32> to vector<1x1x64xf32>
    tpu.vector_store %arg2[%c0_3, %c0_4, %c0_5], %7 {strides = array<i32>} : memref<1x2x64xf32, #tpu.memory_space<vmem>>, vector<1x1x64xf32>,
    %8 = arith.mulf %1, %1 : vector<8x8x64xf32>
    %cst_6 = arith.constant dense<0.000000e+00> : vector<64xf32>
    %9 = vector.multi_reduction <add>, %8, %cst_6 [0, 1] : vector<8x8x64xf32> to vector<64xf32>
    %10 = vector.shape_cast %9 : vector<64xf32> to vector<1x1x64xf32>
    %11 = vector.shape_cast %10 : vector<1x1x64xf32> to vector<1x64xf32>
    %c0_7 = arith.constant 0 : index
    %c1 = arith.constant 1 : index
    %c0_8 = arith.constant 0 : index
    %12 = vector.load %arg2[%c0_7, %c1, %c0_8] : memref<1x2x64xf32, #tpu.memory_space<vmem>>, vector<1x1x64xf32>
    %13 = vector.shape_cast %12 : vector<1x1x64xf32> to vector<1x64xf32>
    %14 = vector.shape_cast %11 : vector<1x64xf32> to vector<1x1x64xf32>
    tpu.vector_store %arg2[%c0_7, %c1, %c0_8], %14 {strides = array<i32>} : memref<1x2x64xf32, #tpu.memory_space<vmem>>, vector<1x1x64xf32>,
    return
  }
  func.func @transform_0(%arg0: i32) -> (i32, i32, i32, i32) {
    %c0_i32 = arith.constant 0 : i32
    %c0_i32_0 = arith.constant 0 : i32
    %c0_i32_1 = arith.constant 0 : i32
    %c0_i32_2 = arith.constant 0 : i32
    return %arg0, %c0_i32, %c0_i32_0, %c0_i32_1 : i32, i32, i32, i32
  }
  func.func @transform_1(%arg0: i32) -> (i32, i32, i32) {
    %c0_i32 = arith.constant 0 : i32
    %c0_i32_0 = arith.constant 0 : i32
    %c0_i32_1 = arith.constant 0 : i32
    return %arg0, %c0_i32, %c0_i32_0 : i32, i32, i32
  }
}

module attributes {stable_mosaic.version = 11 : i64} {
  func.func @stage1_kernel(%arg0: i32, %arg1: memref<1x8x8x64xf32, #tpu.memory_space<vmem>>, %arg2: memref<2x64xf32, #tpu.memory_space<vmem>>, %arg3: memref<1x64xf32, #tpu.memory_space<vmem>>, %arg4: memref<1x64xf32, #tpu.memory_space<vmem>>, %arg5: memref<2x384x128xf32, #tpu.memory_space<vmem>>, %arg6: memref<1x128xf32, #tpu.memory_space<vmem>>, %arg7: memref<1x2x16x8x128xf32, #tpu.memory_space<vmem>>, %arg8: memref<1x2x128xf32, #tpu.memory_space<vmem>>, %arg9: memref<18x10x64xf32, #tpu.memory_space<vmem>>, %arg10: memref<128x384xf32, #tpu.memory_space<vmem>>) attributes {dimension_semantics = [#tpu.dimension_semantics<parallel>], iteration_bounds = array<i64: 2>, scalar_prefetch = 0 : i64, scratch_operands = 2 : i64, tpu.core_type = #tpu.core_type<tc>, window_params = [{transform_indices = @transform_0, window_bounds = array<i64: 1, 8, 8, 64>}, {pipeline_mode = #tpu.pipeline_mode<synchronous>, transform_indices = @transform_1, window_bounds = array<i64: 2, 64>}, {pipeline_mode = #tpu.pipeline_mode<synchronous>, transform_indices = @transform_2, window_bounds = array<i64: 1, 64>}, {pipeline_mode = #tpu.pipeline_mode<synchronous>, transform_indices = @transform_3, window_bounds = array<i64: 1, 64>}, {pipeline_mode = #tpu.pipeline_mode<synchronous>, transform_indices = @transform_4, window_bounds = array<i64: 2, 384, 128>}, {pipeline_mode = #tpu.pipeline_mode<synchronous>, transform_indices = @transform_5, window_bounds = array<i64: 1, 128>}, {transform_indices = @transform_6, window_bounds = array<i64: 1, 2, 16, 8, 128>}, {transform_indices = @transform_7, window_bounds = array<i64: 1, 2, 128>}]} {
    %c0 = arith.constant 0 : index
    %c0_0 = arith.constant 0 : index
    %0 = vector.load %arg2[%c0, %c0_0] : memref<2x64xf32, #tpu.memory_space<vmem>>, vector<1x64xf32>
    %1 = vector.shape_cast %0 : vector<1x64xf32> to vector<1x1x64xf32>
    %c1 = arith.constant 1 : index
    %c0_1 = arith.constant 0 : index
    %2 = vector.load %arg2[%c1, %c0_1] : memref<2x64xf32, #tpu.memory_space<vmem>>, vector<1x64xf32>
    %3 = vector.shape_cast %2 : vector<1x64xf32> to vector<1x1x64xf32>
    %c0_2 = arith.constant 0 : index
    %c0_3 = arith.constant 0 : index
    %4 = vector.load %arg3[%c0_2, %c0_3] : memref<1x64xf32, #tpu.memory_space<vmem>>, vector<1x64xf32>
    %5 = vector.shape_cast %4 : vector<1x64xf32> to vector<1x1x64xf32>
    %6 = arith.mulf %3, %5 : vector<1x1x64xf32>
    %c0_4 = arith.constant 0 : index
    %c0_5 = arith.constant 0 : index
    %7 = vector.load %arg4[%c0_4, %c0_5] : memref<1x64xf32, #tpu.memory_space<vmem>>, vector<1x64xf32>
    %8 = vector.shape_cast %7 : vector<1x64xf32> to vector<1x1x64xf32>
    %9 = arith.mulf %1, %6 : vector<1x1x64xf32>
    %10 = arith.subf %8, %9 : vector<1x1x64xf32>
    %c0_6 = arith.constant 0 : index
    %c0_7 = arith.constant 0 : index
    %c0_8 = arith.constant 0 : index
    %c0_9 = arith.constant 0 : index
    %11 = vector.load %arg1[%c0_6, %c0_7, %c0_8, %c0_9] : memref<1x8x8x64xf32, #tpu.memory_space<vmem>>, vector<1x8x8x64xf32>
    %12 = vector.shape_cast %11 : vector<1x8x8x64xf32> to vector<8x8x64xf32>
    %13 = vector.broadcast %6 : vector<1x1x64xf32> to vector<8x8x64xf32>
    %14 = arith.mulf %12, %13 : vector<8x8x64xf32>
    %15 = vector.broadcast %10 : vector<1x1x64xf32> to vector<8x8x64xf32>
    %16 = arith.addf %14, %15 : vector<8x8x64xf32>
    %cst = arith.constant 0.000000e+00 : f32
    %17 = vector.broadcast %cst : f32 to vector<8x8x64xf32>
    %18 = arith.maximumf %16, %17 : vector<8x8x64xf32>
    %19 = vector.shape_cast %18 : vector<8x8x64xf32> to vector<8x1x8x64xf32>
    %20 = vector.shape_cast %19 : vector<8x1x8x64xf32> to vector<8x1x8x64xf32>
    %21 = vector.broadcast %20 : vector<8x1x8x64xf32> to vector<8x2x8x64xf32>
    %22 = vector.shape_cast %21 : vector<8x2x8x64xf32> to vector<16x8x64xf32>
    %cst_10 = arith.constant 0.000000e+00 : f32
    %23 = vector.broadcast %cst_10 : f32 to vector<10x64xf32>
    %c0_11 = arith.constant 0 : index
    %c0_12 = arith.constant 0 : index
    %c0_13 = arith.constant 0 : index
    %24 = vector.load %arg9[%c0_11, %c0_12, %c0_13] : memref<18x10x64xf32, #tpu.memory_space<vmem>>, vector<1x10x64xf32>
    %25 = vector.shape_cast %24 : vector<1x10x64xf32> to vector<10x64xf32>
    %26 = vector.shape_cast %23 : vector<10x64xf32> to vector<1x10x64xf32>
    tpu.vector_store %arg9[%c0_11, %c0_12, %c0_13], %26 {strides = array<i32>} : memref<18x10x64xf32, #tpu.memory_space<vmem>>, vector<1x10x64xf32>,
    %cst_14 = arith.constant 0.000000e+00 : f32
    %27 = vector.broadcast %cst_14 : f32 to vector<10x64xf32>
    %c17 = arith.constant 17 : index
    %c0_15 = arith.constant 0 : index
    %c0_16 = arith.constant 0 : index
    %28 = vector.load %arg9[%c17, %c0_15, %c0_16] : memref<18x10x64xf32, #tpu.memory_space<vmem>>, vector<1x10x64xf32>
    %29 = vector.shape_cast %28 : vector<1x10x64xf32> to vector<10x64xf32>
    %30 = vector.shape_cast %27 : vector<10x64xf32> to vector<1x10x64xf32>
    tpu.vector_store %arg9[%c17, %c0_15, %c0_16], %30 {strides = array<i32>} : memref<18x10x64xf32, #tpu.memory_space<vmem>>, vector<1x10x64xf32>,
    %cst_17 = arith.constant 0.000000e+00 : f32
    %31 = vector.broadcast %cst_17 : f32 to vector<18x1x64xf32>
    %c0_18 = arith.constant 0 : index
    %c0_19 = arith.constant 0 : index
    %c0_20 = arith.constant 0 : index
    %32 = vector.load %arg9[%c0_18, %c0_19, %c0_20] : memref<18x10x64xf32, #tpu.memory_space<vmem>>, vector<18x1x64xf32>
    tpu.vector_store %arg9[%c0_18, %c0_19, %c0_20], %31 {strides = array<i32>} : memref<18x10x64xf32, #tpu.memory_space<vmem>>, vector<18x1x64xf32>,
    %cst_21 = arith.constant 0.000000e+00 : f32
    %33 = vector.broadcast %cst_21 : f32 to vector<18x1x64xf32>
    %c0_22 = arith.constant 0 : index
    %c9 = arith.constant 9 : index
    %c0_23 = arith.constant 0 : index
    %34 = vector.load %arg9[%c0_22, %c9, %c0_23] : memref<18x10x64xf32, #tpu.memory_space<vmem>>, vector<18x1x64xf32>
    tpu.vector_store %arg9[%c0_22, %c9, %c0_23], %33 {strides = array<i32>} : memref<18x10x64xf32, #tpu.memory_space<vmem>>, vector<18x1x64xf32>,
    %c1_24 = arith.constant 1 : index
    %c1_25 = arith.constant 1 : index
    %c0_26 = arith.constant 0 : index
    %35 = vector.load %arg9[%c1_24, %c1_25, %c0_26] : memref<18x10x64xf32, #tpu.memory_space<vmem>>, vector<16x8x64xf32>
    tpu.vector_store %arg9[%c1_24, %c1_25, %c0_26], %22 {strides = array<i32>} : memref<18x10x64xf32, #tpu.memory_space<vmem>>, vector<16x8x64xf32>,
    %cst_27 = arith.constant 0.000000e+00 : f32
    %36 = vector.broadcast %cst_27 : f32 to vector<1x128xf32>
    %cst_28 = arith.constant 0.000000e+00 : f32
    %37 = vector.broadcast %cst_28 : f32 to vector<1x128xf32>
    %c0_29 = arith.constant 0 : index
    %c0_30 = arith.constant 0 : index
    %c0_31 = arith.constant 0 : index
    %38 = vector.load %arg9[%c0_29, %c0_30, %c0_31] : memref<18x10x64xf32, #tpu.memory_space<vmem>>, vector<16x8x64xf32>
    %39 = vector.shape_cast %38 : vector<16x8x64xf32> to vector<128x64xf32>
    %c0_32 = arith.constant 0 : index
    %c0_33 = arith.constant 0 : index
    %40 = vector.load %arg10[%c0_32, %c0_33] : memref<128x384xf32, #tpu.memory_space<vmem>>, vector<128x64xf32>
    tpu.vector_store %arg10[%c0_32, %c0_33], %39 {strides = array<i32>} : memref<128x384xf32, #tpu.memory_space<vmem>>, vector<128x64xf32>,
    %c0_34 = arith.constant 0 : index
    %c1_35 = arith.constant 1 : index
    %c0_36 = arith.constant 0 : index
    %41 = vector.load %arg9[%c0_34, %c1_35, %c0_36] : memref<18x10x64xf32, #tpu.memory_space<vmem>>, vector<16x8x64xf32>
    %42 = vector.shape_cast %41 : vector<16x8x64xf32> to vector<128x64xf32>
    %c0_37 = arith.constant 0 : index
    %c64 = arith.constant 64 : index
    %43 = vector.load %arg10[%c0_37, %c64] : memref<128x384xf32, #tpu.memory_space<vmem>>, vector<128x64xf32>
    tpu.vector_store %arg10[%c0_37, %c64], %42 {strides = array<i32>} : memref<128x384xf32, #tpu.memory_space<vmem>>, vector<128x64xf32>,
    %c1_38 = arith.constant 1 : index
    %c0_39 = arith.constant 0 : index
    %c0_40 = arith.constant 0 : index
    %44 = vector.load %arg9[%c1_38, %c0_39, %c0_40] : memref<18x10x64xf32, #tpu.memory_space<vmem>>, vector<16x8x64xf32>
    %45 = vector.shape_cast %44 : vector<16x8x64xf32> to vector<128x64xf32>
    %c0_41 = arith.constant 0 : index
    %c128 = arith.constant 128 : index
    %46 = vector.load %arg10[%c0_41, %c128] : memref<128x384xf32, #tpu.memory_space<vmem>>, vector<128x64xf32>
    tpu.vector_store %arg10[%c0_41, %c128], %45 {strides = array<i32>} : memref<128x384xf32, #tpu.memory_space<vmem>>, vector<128x64xf32>,
    %c1_42 = arith.constant 1 : index
    %c1_43 = arith.constant 1 : index
    %c0_44 = arith.constant 0 : index
    %47 = vector.load %arg9[%c1_42, %c1_43, %c0_44] : memref<18x10x64xf32, #tpu.memory_space<vmem>>, vector<16x8x64xf32>
    %48 = vector.shape_cast %47 : vector<16x8x64xf32> to vector<128x64xf32>
    %c0_45 = arith.constant 0 : index
    %c192 = arith.constant 192 : index
    %49 = vector.load %arg10[%c0_45, %c192] : memref<128x384xf32, #tpu.memory_space<vmem>>, vector<128x64xf32>
    tpu.vector_store %arg10[%c0_45, %c192], %48 {strides = array<i32>} : memref<128x384xf32, #tpu.memory_space<vmem>>, vector<128x64xf32>,
    %c2 = arith.constant 2 : index
    %c0_46 = arith.constant 0 : index
    %c0_47 = arith.constant 0 : index
    %50 = vector.load %arg9[%c2, %c0_46, %c0_47] : memref<18x10x64xf32, #tpu.memory_space<vmem>>, vector<16x8x64xf32>
    %51 = vector.shape_cast %50 : vector<16x8x64xf32> to vector<128x64xf32>
    %c0_48 = arith.constant 0 : index
    %c256 = arith.constant 256 : index
    %52 = vector.load %arg10[%c0_48, %c256] : memref<128x384xf32, #tpu.memory_space<vmem>>, vector<128x64xf32>
    tpu.vector_store %arg10[%c0_48, %c256], %51 {strides = array<i32>} : memref<128x384xf32, #tpu.memory_space<vmem>>, vector<128x64xf32>,
    %c2_49 = arith.constant 2 : index
    %c1_50 = arith.constant 1 : index
    %c0_51 = arith.constant 0 : index
    %53 = vector.load %arg9[%c2_49, %c1_50, %c0_51] : memref<18x10x64xf32, #tpu.memory_space<vmem>>, vector<16x8x64xf32>
    %54 = vector.shape_cast %53 : vector<16x8x64xf32> to vector<128x64xf32>
    %c0_52 = arith.constant 0 : index
    %c320 = arith.constant 320 : index
    %55 = vector.load %arg10[%c0_52, %c320] : memref<128x384xf32, #tpu.memory_space<vmem>>, vector<128x64xf32>
    tpu.vector_store %arg10[%c0_52, %c320], %54 {strides = array<i32>} : memref<128x384xf32, #tpu.memory_space<vmem>>, vector<128x64xf32>,
    %c0_53 = arith.constant 0 : index
    %c0_54 = arith.constant 0 : index
    %56 = vector.load %arg10[%c0_53, %c0_54] : memref<128x384xf32, #tpu.memory_space<vmem>>, vector<128x384xf32>
    %c0_55 = arith.constant 0 : index
    %c0_56 = arith.constant 0 : index
    %c0_57 = arith.constant 0 : index
    %57 = vector.load %arg5[%c0_55, %c0_56, %c0_57] : memref<2x384x128xf32, #tpu.memory_space<vmem>>, vector<1x384x128xf32>
    %58 = vector.shape_cast %57 : vector<1x384x128xf32> to vector<384x128xf32>
    %cst_58 = arith.constant dense<0.000000e+00> : vector<128x128xf32>
    %59 = tpu.matmul %56, %58, %cst_58 {dimension_numbers = #tpu.dot_dimension_numbers<[1], [0], [0], [1], [0, 0, 1, 1], [], []>} : vector<128x384xf32>, vector<384x128xf32>, vector<128x128xf32> -> vector<128x128xf32>
    %c0_59 = arith.constant 0 : index
    %c0_60 = arith.constant 0 : index
    %60 = vector.load %arg6[%c0_59, %c0_60] : memref<1x128xf32, #tpu.memory_space<vmem>>, vector<1x128xf32>
    %61 = vector.broadcast %60 : vector<1x128xf32> to vector<128x128xf32>
    %62 = arith.addf %59, %61 : vector<128x128xf32>
    %63 = vector.shape_cast %62 : vector<128x128xf32> to vector<16x8x128xf32>
    %c0_61 = arith.constant 0 : index
    %c0_62 = arith.constant 0 : index
    %c0_63 = arith.constant 0 : index
    %c0_64 = arith.constant 0 : index
    %c0_65 = arith.constant 0 : index
    %64 = vector.load %arg7[%c0_61, %c0_62, %c0_63, %c0_64, %c0_65] : memref<1x2x16x8x128xf32, #tpu.memory_space<vmem>>, vector<1x1x16x8x128xf32>
    %65 = vector.shape_cast %64 : vector<1x1x16x8x128xf32> to vector<16x8x128xf32>
    %66 = vector.shape_cast %63 : vector<16x8x128xf32> to vector<1x1x16x8x128xf32>
    tpu.vector_store %arg7[%c0_61, %c0_62, %c0_63, %c0_64, %c0_65], %66 {strides = array<i32>} : memref<1x2x16x8x128xf32, #tpu.memory_space<vmem>>, vector<1x1x16x8x128xf32>,
    %cst_66 = arith.constant dense<0.000000e+00> : vector<128xf32>
    %67 = vector.multi_reduction <add>, %62, %cst_66 [0] : vector<128x128xf32> to vector<128xf32>
    %68 = vector.shape_cast %67 : vector<128xf32> to vector<1x128xf32>
    %69 = arith.addf %36, %68 : vector<1x128xf32>
    %70 = arith.mulf %62, %62 : vector<128x128xf32>
    %cst_67 = arith.constant dense<0.000000e+00> : vector<128xf32>
    %71 = vector.multi_reduction <add>, %70, %cst_67 [0] : vector<128x128xf32> to vector<128xf32>
    %72 = vector.shape_cast %71 : vector<128xf32> to vector<1x128xf32>
    %73 = arith.addf %37, %72 : vector<1x128xf32>
    %c0_68 = arith.constant 0 : index
    %c1_69 = arith.constant 1 : index
    %c0_70 = arith.constant 0 : index
    %74 = vector.load %arg9[%c0_68, %c1_69, %c0_70] : memref<18x10x64xf32, #tpu.memory_space<vmem>>, vector<16x8x64xf32>
    %75 = vector.shape_cast %74 : vector<16x8x64xf32> to vector<128x64xf32>
    %c0_71 = arith.constant 0 : index
    %c0_72 = arith.constant 0 : index
    %76 = vector.load %arg10[%c0_71, %c0_72] : memref<128x384xf32, #tpu.memory_space<vmem>>, vector<128x64xf32>
    tpu.vector_store %arg10[%c0_71, %c0_72], %75 {strides = array<i32>} : memref<128x384xf32, #tpu.memory_space<vmem>>, vector<128x64xf32>,
    %c0_73 = arith.constant 0 : index
    %c2_74 = arith.constant 2 : index
    %c0_75 = arith.constant 0 : index
    %77 = vector.load %arg9[%c0_73, %c2_74, %c0_75] : memref<18x10x64xf32, #tpu.memory_space<vmem>>, vector<16x8x64xf32>
    %78 = vector.shape_cast %77 : vector<16x8x64xf32> to vector<128x64xf32>
    %c0_76 = arith.constant 0 : index
    %c64_77 = arith.constant 64 : index
    %79 = vector.load %arg10[%c0_76, %c64_77] : memref<128x384xf32, #tpu.memory_space<vmem>>, vector<128x64xf32>
    tpu.vector_store %arg10[%c0_76, %c64_77], %78 {strides = array<i32>} : memref<128x384xf32, #tpu.memory_space<vmem>>, vector<128x64xf32>,
    %c1_78 = arith.constant 1 : index
    %c1_79 = arith.constant 1 : index
    %c0_80 = arith.constant 0 : index
    %80 = vector.load %arg9[%c1_78, %c1_79, %c0_80] : memref<18x10x64xf32, #tpu.memory_space<vmem>>, vector<16x8x64xf32>
    %81 = vector.shape_cast %80 : vector<16x8x64xf32> to vector<128x64xf32>
    %c0_81 = arith.constant 0 : index
    %c128_82 = arith.constant 128 : index
    %82 = vector.load %arg10[%c0_81, %c128_82] : memref<128x384xf32, #tpu.memory_space<vmem>>, vector<128x64xf32>
    tpu.vector_store %arg10[%c0_81, %c128_82], %81 {strides = array<i32>} : memref<128x384xf32, #tpu.memory_space<vmem>>, vector<128x64xf32>,
    %c1_83 = arith.constant 1 : index
    %c2_84 = arith.constant 2 : index
    %c0_85 = arith.constant 0 : index
    %83 = vector.load %arg9[%c1_83, %c2_84, %c0_85] : memref<18x10x64xf32, #tpu.memory_space<vmem>>, vector<16x8x64xf32>
    %84 = vector.shape_cast %83 : vector<16x8x64xf32> to vector<128x64xf32>
    %c0_86 = arith.constant 0 : index
    %c192_87 = arith.constant 192 : index
    %85 = vector.load %arg10[%c0_86, %c192_87] : memref<128x384xf32, #tpu.memory_space<vmem>>, vector<128x64xf32>
    tpu.vector_store %arg10[%c0_86, %c192_87], %84 {strides = array<i32>} : memref<128x384xf32, #tpu.memory_space<vmem>>, vector<128x64xf32>,
    %c2_88 = arith.constant 2 : index
    %c1_89 = arith.constant 1 : index
    %c0_90 = arith.constant 0 : index
    %86 = vector.load %arg9[%c2_88, %c1_89, %c0_90] : memref<18x10x64xf32, #tpu.memory_space<vmem>>, vector<16x8x64xf32>
    %87 = vector.shape_cast %86 : vector<16x8x64xf32> to vector<128x64xf32>
    %c0_91 = arith.constant 0 : index
    %c256_92 = arith.constant 256 : index
    %88 = vector.load %arg10[%c0_91, %c256_92] : memref<128x384xf32, #tpu.memory_space<vmem>>, vector<128x64xf32>
    tpu.vector_store %arg10[%c0_91, %c256_92], %87 {strides = array<i32>} : memref<128x384xf32, #tpu.memory_space<vmem>>, vector<128x64xf32>,
    %c2_93 = arith.constant 2 : index
    %c2_94 = arith.constant 2 : index
    %c0_95 = arith.constant 0 : index
    %89 = vector.load %arg9[%c2_93, %c2_94, %c0_95] : memref<18x10x64xf32, #tpu.memory_space<vmem>>, vector<16x8x64xf32>
    %90 = vector.shape_cast %89 : vector<16x8x64xf32> to vector<128x64xf32>
    %c0_96 = arith.constant 0 : index
    %c320_97 = arith.constant 320 : index
    %91 = vector.load %arg10[%c0_96, %c320_97] : memref<128x384xf32, #tpu.memory_space<vmem>>, vector<128x64xf32>
    tpu.vector_store %arg10[%c0_96, %c320_97], %90 {strides = array<i32>} : memref<128x384xf32, #tpu.memory_space<vmem>>, vector<128x64xf32>,
    %c0_98 = arith.constant 0 : index
    %c0_99 = arith.constant 0 : index
    %92 = vector.load %arg10[%c0_98, %c0_99] : memref<128x384xf32, #tpu.memory_space<vmem>>, vector<128x384xf32>
    %c1_100 = arith.constant 1 : index
    %c0_101 = arith.constant 0 : index
    %c0_102 = arith.constant 0 : index
    %93 = vector.load %arg5[%c1_100, %c0_101, %c0_102] : memref<2x384x128xf32, #tpu.memory_space<vmem>>, vector<1x384x128xf32>
    %94 = vector.shape_cast %93 : vector<1x384x128xf32> to vector<384x128xf32>
    %cst_103 = arith.constant dense<0.000000e+00> : vector<128x128xf32>
    %95 = tpu.matmul %92, %94, %cst_103 {dimension_numbers = #tpu.dot_dimension_numbers<[1], [0], [0], [1], [0, 0, 1, 1], [], []>} : vector<128x384xf32>, vector<384x128xf32>, vector<128x128xf32> -> vector<128x128xf32>
    %c0_104 = arith.constant 0 : index
    %c0_105 = arith.constant 0 : index
    %96 = vector.load %arg6[%c0_104, %c0_105] : memref<1x128xf32, #tpu.memory_space<vmem>>, vector<1x128xf32>
    %97 = vector.broadcast %96 : vector<1x128xf32> to vector<128x128xf32>
    %98 = arith.addf %95, %97 : vector<128x128xf32>
    %99 = vector.shape_cast %98 : vector<128x128xf32> to vector<16x8x128xf32>
    %c0_106 = arith.constant 0 : index
    %c1_107 = arith.constant 1 : index
    %c0_108 = arith.constant 0 : index
    %c0_109 = arith.constant 0 : index
    %c0_110 = arith.constant 0 : index
    %100 = vector.load %arg7[%c0_106, %c1_107, %c0_108, %c0_109, %c0_110] : memref<1x2x16x8x128xf32, #tpu.memory_space<vmem>>, vector<1x1x16x8x128xf32>
    %101 = vector.shape_cast %100 : vector<1x1x16x8x128xf32> to vector<16x8x128xf32>
    %102 = vector.shape_cast %99 : vector<16x8x128xf32> to vector<1x1x16x8x128xf32>
    tpu.vector_store %arg7[%c0_106, %c1_107, %c0_108, %c0_109, %c0_110], %102 {strides = array<i32>} : memref<1x2x16x8x128xf32, #tpu.memory_space<vmem>>, vector<1x1x16x8x128xf32>,
    %cst_111 = arith.constant dense<0.000000e+00> : vector<128xf32>
    %103 = vector.multi_reduction <add>, %98, %cst_111 [0] : vector<128x128xf32> to vector<128xf32>
    %104 = vector.shape_cast %103 : vector<128xf32> to vector<1x128xf32>
    %105 = arith.addf %69, %104 : vector<1x128xf32>
    %106 = arith.mulf %98, %98 : vector<128x128xf32>
    %cst_112 = arith.constant dense<0.000000e+00> : vector<128xf32>
    %107 = vector.multi_reduction <add>, %106, %cst_112 [0] : vector<128x128xf32> to vector<128xf32>
    %108 = vector.shape_cast %107 : vector<128xf32> to vector<1x128xf32>
    %109 = arith.addf %73, %108 : vector<1x128xf32>
    %c0_113 = arith.constant 0 : index
    %c0_114 = arith.constant 0 : index
    %c0_115 = arith.constant 0 : index
    %110 = vector.load %arg8[%c0_113, %c0_114, %c0_115] : memref<1x2x128xf32, #tpu.memory_space<vmem>>, vector<1x1x128xf32>
    %111 = vector.shape_cast %110 : vector<1x1x128xf32> to vector<1x128xf32>
    %112 = vector.shape_cast %105 : vector<1x128xf32> to vector<1x1x128xf32>
    tpu.vector_store %arg8[%c0_113, %c0_114, %c0_115], %112 {strides = array<i32>} : memref<1x2x128xf32, #tpu.memory_space<vmem>>, vector<1x1x128xf32>,
    %c0_116 = arith.constant 0 : index
    %c1_117 = arith.constant 1 : index
    %c0_118 = arith.constant 0 : index
    %113 = vector.load %arg8[%c0_116, %c1_117, %c0_118] : memref<1x2x128xf32, #tpu.memory_space<vmem>>, vector<1x1x128xf32>
    %114 = vector.shape_cast %113 : vector<1x1x128xf32> to vector<1x128xf32>
    %115 = vector.shape_cast %109 : vector<1x128xf32> to vector<1x1x128xf32>
    tpu.vector_store %arg8[%c0_116, %c1_117, %c0_118], %115 {strides = array<i32>} : memref<1x2x128xf32, #tpu.memory_space<vmem>>, vector<1x1x128xf32>,
    return
  }
  func.func @transform_0(%arg0: i32) -> (i32, i32, i32, i32) {
    %c0_i32 = arith.constant 0 : i32
    %c0_i32_0 = arith.constant 0 : i32
    %c0_i32_1 = arith.constant 0 : i32
    %c0_i32_2 = arith.constant 0 : i32
    return %arg0, %c0_i32, %c0_i32_0, %c0_i32_1 : i32, i32, i32, i32
  }
  func.func @transform_1(%arg0: i32) -> (i32, i32) {
    %c0_i32 = arith.constant 0 : i32
    %c0_i32_0 = arith.constant 0 : i32
    %c0_i32_1 = arith.constant 0 : i32
    return %c0_i32, %c0_i32_0 : i32, i32
  }
  func.func @transform_2(%arg0: i32) -> (i32, i32) {
    %c0_i32 = arith.constant 0 : i32
    %c0_i32_0 = arith.constant 0 : i32
    %c0_i32_1 = arith.constant 0 : i32
    return %c0_i32, %c0_i32_0 : i32, i32
  }
  func.func @transform_3(%arg0: i32) -> (i32, i32) {
    %c0_i32 = arith.constant 0 : i32
    %c0_i32_0 = arith.constant 0 : i32
    %c0_i32_1 = arith.constant 0 : i32
    return %c0_i32, %c0_i32_0 : i32, i32
  }
  func.func @transform_4(%arg0: i32) -> (i32, i32, i32) {
    %c0_i32 = arith.constant 0 : i32
    %c0_i32_0 = arith.constant 0 : i32
    %c0_i32_1 = arith.constant 0 : i32
    %c0_i32_2 = arith.constant 0 : i32
    return %c0_i32, %c0_i32_0, %c0_i32_1 : i32, i32, i32
  }
  func.func @transform_5(%arg0: i32) -> (i32, i32) {
    %c0_i32 = arith.constant 0 : i32
    %c0_i32_0 = arith.constant 0 : i32
    %c0_i32_1 = arith.constant 0 : i32
    return %c0_i32, %c0_i32_0 : i32, i32
  }
  func.func @transform_6(%arg0: i32) -> (i32, i32, i32, i32, i32) {
    %c0_i32 = arith.constant 0 : i32
    %c0_i32_0 = arith.constant 0 : i32
    %c0_i32_1 = arith.constant 0 : i32
    %c0_i32_2 = arith.constant 0 : i32
    %c0_i32_3 = arith.constant 0 : i32
    return %arg0, %c0_i32, %c0_i32_0, %c0_i32_1, %c0_i32_2 : i32, i32, i32, i32, i32
  }
  func.func @transform_7(%arg0: i32) -> (i32, i32, i32) {
    %c0_i32 = arith.constant 0 : i32
    %c0_i32_0 = arith.constant 0 : i32
    %c0_i32_1 = arith.constant 0 : i32
    return %arg0, %c0_i32, %c0_i32_0 : i32, i32, i32
  }
}

module attributes {stable_mosaic.version = 11 : i64} {
  func.func @stage2_kernel(%arg0: i32, %arg1: memref<1x2x16x8x128xf32, #tpu.memory_space<vmem>>, %arg2: memref<2x128xf32, #tpu.memory_space<vmem>>, %arg3: memref<1x128xf32, #tpu.memory_space<vmem>>, %arg4: memref<1x128xf32, #tpu.memory_space<vmem>>, %arg5: memref<1152x128xf32, #tpu.memory_space<vmem>>, %arg6: memref<1x128xf32, #tpu.memory_space<vmem>>, %arg7: memref<1x8x8x64xf32, #tpu.memory_space<vmem>>, %arg8: memref<64x128xf32, #tpu.memory_space<vmem>>, %arg9: memref<1x128xf32, #tpu.memory_space<vmem>>, %arg10: memref<1x2x16x8x128xf32, #tpu.memory_space<vmem>>, %arg11: memref<2x18x10x128xf32, #tpu.memory_space<vmem>>, %arg12: memref<128x1152xf32, #tpu.memory_space<vmem>>) attributes {dimension_semantics = [#tpu.dimension_semantics<parallel>], iteration_bounds = array<i64: 2>, scalar_prefetch = 0 : i64, scratch_operands = 2 : i64, tpu.core_type = #tpu.core_type<tc>, window_params = [{transform_indices = @transform_0, window_bounds = array<i64: 1, 2, 16, 8, 128>}, {pipeline_mode = #tpu.pipeline_mode<synchronous>, transform_indices = @transform_1, window_bounds = array<i64: 2, 128>}, {pipeline_mode = #tpu.pipeline_mode<synchronous>, transform_indices = @transform_2, window_bounds = array<i64: 1, 128>}, {pipeline_mode = #tpu.pipeline_mode<synchronous>, transform_indices = @transform_3, window_bounds = array<i64: 1, 128>}, {pipeline_mode = #tpu.pipeline_mode<synchronous>, transform_indices = @transform_4, window_bounds = array<i64: 1152, 128>}, {pipeline_mode = #tpu.pipeline_mode<synchronous>, transform_indices = @transform_5, window_bounds = array<i64: 1, 128>}, {transform_indices = @transform_6, window_bounds = array<i64: 1, 8, 8, 64>}, {pipeline_mode = #tpu.pipeline_mode<synchronous>, transform_indices = @transform_7, window_bounds = array<i64: 64, 128>}, {pipeline_mode = #tpu.pipeline_mode<synchronous>, transform_indices = @transform_8, window_bounds = array<i64: 1, 128>}, {transform_indices = @transform_9, window_bounds = array<i64: 1, 2, 16, 8, 128>}]} {
    %c0 = arith.constant 0 : index
    %c0_0 = arith.constant 0 : index
    %0 = vector.load %arg2[%c0, %c0_0] : memref<2x128xf32, #tpu.memory_space<vmem>>, vector<1x128xf32>
    %1 = vector.shape_cast %0 : vector<1x128xf32> to vector<1x1x128xf32>
    %c1 = arith.constant 1 : index
    %c0_1 = arith.constant 0 : index
    %2 = vector.load %arg2[%c1, %c0_1] : memref<2x128xf32, #tpu.memory_space<vmem>>, vector<1x128xf32>
    %3 = vector.shape_cast %2 : vector<1x128xf32> to vector<1x1x128xf32>
    %c0_2 = arith.constant 0 : index
    %c0_3 = arith.constant 0 : index
    %4 = vector.load %arg3[%c0_2, %c0_3] : memref<1x128xf32, #tpu.memory_space<vmem>>, vector<1x128xf32>
    %5 = vector.shape_cast %4 : vector<1x128xf32> to vector<1x1x128xf32>
    %6 = arith.mulf %3, %5 : vector<1x1x128xf32>
    %c0_4 = arith.constant 0 : index
    %c0_5 = arith.constant 0 : index
    %7 = vector.load %arg4[%c0_4, %c0_5] : memref<1x128xf32, #tpu.memory_space<vmem>>, vector<1x128xf32>
    %8 = vector.shape_cast %7 : vector<1x128xf32> to vector<1x1x128xf32>
    %9 = arith.mulf %1, %6 : vector<1x1x128xf32>
    %10 = arith.subf %8, %9 : vector<1x1x128xf32>
    %cst = arith.constant 0.000000e+00 : f32
    %11 = vector.broadcast %cst : f32 to vector<10x128xf32>
    %c0_6 = arith.constant 0 : index
    %c0_7 = arith.constant 0 : index
    %c0_8 = arith.constant 0 : index
    %c0_9 = arith.constant 0 : index
    %12 = vector.load %arg11[%c0_6, %c0_7, %c0_8, %c0_9] : memref<2x18x10x128xf32, #tpu.memory_space<vmem>>, vector<1x1x10x128xf32>
    %13 = vector.shape_cast %12 : vector<1x1x10x128xf32> to vector<10x128xf32>
    %14 = vector.shape_cast %11 : vector<10x128xf32> to vector<1x1x10x128xf32>
    tpu.vector_store %arg11[%c0_6, %c0_7, %c0_8, %c0_9], %14 {strides = array<i32>} : memref<2x18x10x128xf32, #tpu.memory_space<vmem>>, vector<1x1x10x128xf32>,
    %cst_10 = arith.constant 0.000000e+00 : f32
    %15 = vector.broadcast %cst_10 : f32 to vector<10x128xf32>
    %c0_11 = arith.constant 0 : index
    %c17 = arith.constant 17 : index
    %c0_12 = arith.constant 0 : index
    %c0_13 = arith.constant 0 : index
    %16 = vector.load %arg11[%c0_11, %c17, %c0_12, %c0_13] : memref<2x18x10x128xf32, #tpu.memory_space<vmem>>, vector<1x1x10x128xf32>
    %17 = vector.shape_cast %16 : vector<1x1x10x128xf32> to vector<10x128xf32>
    %18 = vector.shape_cast %15 : vector<10x128xf32> to vector<1x1x10x128xf32>
    tpu.vector_store %arg11[%c0_11, %c17, %c0_12, %c0_13], %18 {strides = array<i32>} : memref<2x18x10x128xf32, #tpu.memory_space<vmem>>, vector<1x1x10x128xf32>,
    %cst_14 = arith.constant 0.000000e+00 : f32
    %19 = vector.broadcast %cst_14 : f32 to vector<18x1x128xf32>
    %c0_15 = arith.constant 0 : index
    %c0_16 = arith.constant 0 : index
    %c0_17 = arith.constant 0 : index
    %c0_18 = arith.constant 0 : index
    %20 = vector.load %arg11[%c0_15, %c0_16, %c0_17, %c0_18] : memref<2x18x10x128xf32, #tpu.memory_space<vmem>>, vector<1x18x1x128xf32>
    %21 = vector.shape_cast %20 : vector<1x18x1x128xf32> to vector<18x1x128xf32>
    %22 = vector.shape_cast %19 : vector<18x1x128xf32> to vector<1x18x1x128xf32>
    tpu.vector_store %arg11[%c0_15, %c0_16, %c0_17, %c0_18], %22 {strides = array<i32>} : memref<2x18x10x128xf32, #tpu.memory_space<vmem>>, vector<1x18x1x128xf32>,
    %cst_19 = arith.constant 0.000000e+00 : f32
    %23 = vector.broadcast %cst_19 : f32 to vector<18x1x128xf32>
    %c0_20 = arith.constant 0 : index
    %c0_21 = arith.constant 0 : index
    %c9 = arith.constant 9 : index
    %c0_22 = arith.constant 0 : index
    %24 = vector.load %arg11[%c0_20, %c0_21, %c9, %c0_22] : memref<2x18x10x128xf32, #tpu.memory_space<vmem>>, vector<1x18x1x128xf32>
    %25 = vector.shape_cast %24 : vector<1x18x1x128xf32> to vector<18x1x128xf32>
    %26 = vector.shape_cast %23 : vector<18x1x128xf32> to vector<1x18x1x128xf32>
    tpu.vector_store %arg11[%c0_20, %c0_21, %c9, %c0_22], %26 {strides = array<i32>} : memref<2x18x10x128xf32, #tpu.memory_space<vmem>>, vector<1x18x1x128xf32>,
    %c0_23 = arith.constant 0 : index
    %c0_24 = arith.constant 0 : index
    %c0_25 = arith.constant 0 : index
    %c0_26 = arith.constant 0 : index
    %c0_27 = arith.constant 0 : index
    %27 = vector.load %arg1[%c0_23, %c0_24, %c0_25, %c0_26, %c0_27] : memref<1x2x16x8x128xf32, #tpu.memory_space<vmem>>, vector<1x1x16x8x128xf32>
    %28 = vector.shape_cast %27 : vector<1x1x16x8x128xf32> to vector<16x8x128xf32>
    %29 = vector.broadcast %6 : vector<1x1x128xf32> to vector<16x8x128xf32>
    %30 = arith.mulf %28, %29 : vector<16x8x128xf32>
    %31 = vector.broadcast %10 : vector<1x1x128xf32> to vector<16x8x128xf32>
    %32 = arith.addf %30, %31 : vector<16x8x128xf32>
    %cst_28 = arith.constant 0.000000e+00 : f32
    %33 = vector.broadcast %cst_28 : f32 to vector<16x8x128xf32>
    %34 = arith.maximumf %32, %33 : vector<16x8x128xf32>
    %c0_29 = arith.constant 0 : index
    %c1_30 = arith.constant 1 : index
    %c1_31 = arith.constant 1 : index
    %c0_32 = arith.constant 0 : index
    %35 = vector.load %arg11[%c0_29, %c1_30, %c1_31, %c0_32] : memref<2x18x10x128xf32, #tpu.memory_space<vmem>>, vector<1x16x8x128xf32>
    %36 = vector.shape_cast %35 : vector<1x16x8x128xf32> to vector<16x8x128xf32>
    %37 = vector.shape_cast %34 : vector<16x8x128xf32> to vector<1x16x8x128xf32>
    tpu.vector_store %arg11[%c0_29, %c1_30, %c1_31, %c0_32], %37 {strides = array<i32>} : memref<2x18x10x128xf32, #tpu.memory_space<vmem>>, vector<1x16x8x128xf32>,
    %cst_33 = arith.constant 0.000000e+00 : f32
    %38 = vector.broadcast %cst_33 : f32 to vector<10x128xf32>
    %c1_34 = arith.constant 1 : index
    %c0_35 = arith.constant 0 : index
    %c0_36 = arith.constant 0 : index
    %c0_37 = arith.constant 0 : index
    %39 = vector.load %arg11[%c1_34, %c0_35, %c0_36, %c0_37] : memref<2x18x10x128xf32, #tpu.memory_space<vmem>>, vector<1x1x10x128xf32>
    %40 = vector.shape_cast %39 : vector<1x1x10x128xf32> to vector<10x128xf32>
    %41 = vector.shape_cast %38 : vector<10x128xf32> to vector<1x1x10x128xf32>
    tpu.vector_store %arg11[%c1_34, %c0_35, %c0_36, %c0_37], %41 {strides = array<i32>} : memref<2x18x10x128xf32, #tpu.memory_space<vmem>>, vector<1x1x10x128xf32>,
    %cst_38 = arith.constant 0.000000e+00 : f32
    %42 = vector.broadcast %cst_38 : f32 to vector<10x128xf32>
    %c1_39 = arith.constant 1 : index
    %c17_40 = arith.constant 17 : index
    %c0_41 = arith.constant 0 : index
    %c0_42 = arith.constant 0 : index
    %43 = vector.load %arg11[%c1_39, %c17_40, %c0_41, %c0_42] : memref<2x18x10x128xf32, #tpu.memory_space<vmem>>, vector<1x1x10x128xf32>
    %44 = vector.shape_cast %43 : vector<1x1x10x128xf32> to vector<10x128xf32>
    %45 = vector.shape_cast %42 : vector<10x128xf32> to vector<1x1x10x128xf32>
    tpu.vector_store %arg11[%c1_39, %c17_40, %c0_41, %c0_42], %45 {strides = array<i32>} : memref<2x18x10x128xf32, #tpu.memory_space<vmem>>, vector<1x1x10x128xf32>,
    %cst_43 = arith.constant 0.000000e+00 : f32
    %46 = vector.broadcast %cst_43 : f32 to vector<18x1x128xf32>
    %c1_44 = arith.constant 1 : index
    %c0_45 = arith.constant 0 : index
    %c0_46 = arith.constant 0 : index
    %c0_47 = arith.constant 0 : index
    %47 = vector.load %arg11[%c1_44, %c0_45, %c0_46, %c0_47] : memref<2x18x10x128xf32, #tpu.memory_space<vmem>>, vector<1x18x1x128xf32>
    %48 = vector.shape_cast %47 : vector<1x18x1x128xf32> to vector<18x1x128xf32>
    %49 = vector.shape_cast %46 : vector<18x1x128xf32> to vector<1x18x1x128xf32>
    tpu.vector_store %arg11[%c1_44, %c0_45, %c0_46, %c0_47], %49 {strides = array<i32>} : memref<2x18x10x128xf32, #tpu.memory_space<vmem>>, vector<1x18x1x128xf32>,
    %cst_48 = arith.constant 0.000000e+00 : f32
    %50 = vector.broadcast %cst_48 : f32 to vector<18x1x128xf32>
    %c1_49 = arith.constant 1 : index
    %c0_50 = arith.constant 0 : index
    %c9_51 = arith.constant 9 : index
    %c0_52 = arith.constant 0 : index
    %51 = vector.load %arg11[%c1_49, %c0_50, %c9_51, %c0_52] : memref<2x18x10x128xf32, #tpu.memory_space<vmem>>, vector<1x18x1x128xf32>
    %52 = vector.shape_cast %51 : vector<1x18x1x128xf32> to vector<18x1x128xf32>
    %53 = vector.shape_cast %50 : vector<18x1x128xf32> to vector<1x18x1x128xf32>
    tpu.vector_store %arg11[%c1_49, %c0_50, %c9_51, %c0_52], %53 {strides = array<i32>} : memref<2x18x10x128xf32, #tpu.memory_space<vmem>>, vector<1x18x1x128xf32>,
    %c0_53 = arith.constant 0 : index
    %c1_54 = arith.constant 1 : index
    %c0_55 = arith.constant 0 : index
    %c0_56 = arith.constant 0 : index
    %c0_57 = arith.constant 0 : index
    %54 = vector.load %arg1[%c0_53, %c1_54, %c0_55, %c0_56, %c0_57] : memref<1x2x16x8x128xf32, #tpu.memory_space<vmem>>, vector<1x1x16x8x128xf32>
    %55 = vector.shape_cast %54 : vector<1x1x16x8x128xf32> to vector<16x8x128xf32>
    %56 = vector.broadcast %6 : vector<1x1x128xf32> to vector<16x8x128xf32>
    %57 = arith.mulf %55, %56 : vector<16x8x128xf32>
    %58 = vector.broadcast %10 : vector<1x1x128xf32> to vector<16x8x128xf32>
    %59 = arith.addf %57, %58 : vector<16x8x128xf32>
    %cst_58 = arith.constant 0.000000e+00 : f32
    %60 = vector.broadcast %cst_58 : f32 to vector<16x8x128xf32>
    %61 = arith.maximumf %59, %60 : vector<16x8x128xf32>
    %c1_59 = arith.constant 1 : index
    %c1_60 = arith.constant 1 : index
    %c1_61 = arith.constant 1 : index
    %c0_62 = arith.constant 0 : index
    %62 = vector.load %arg11[%c1_59, %c1_60, %c1_61, %c0_62] : memref<2x18x10x128xf32, #tpu.memory_space<vmem>>, vector<1x16x8x128xf32>
    %63 = vector.shape_cast %62 : vector<1x16x8x128xf32> to vector<16x8x128xf32>
    %64 = vector.shape_cast %61 : vector<16x8x128xf32> to vector<1x16x8x128xf32>
    tpu.vector_store %arg11[%c1_59, %c1_60, %c1_61, %c0_62], %64 {strides = array<i32>} : memref<2x18x10x128xf32, #tpu.memory_space<vmem>>, vector<1x16x8x128xf32>,
    %c0_63 = arith.constant 0 : index
    %c0_64 = arith.constant 0 : index
    %c0_65 = arith.constant 0 : index
    %c0_66 = arith.constant 0 : index
    %65 = vector.load %arg7[%c0_63, %c0_64, %c0_65, %c0_66] : memref<1x8x8x64xf32, #tpu.memory_space<vmem>>, vector<1x8x8x64xf32>
    %66 = vector.shape_cast %65 : vector<1x8x8x64xf32> to vector<8x8x64xf32>
    %67 = vector.shape_cast %66 : vector<8x8x64xf32> to vector<64x64xf32>
    %c0_67 = arith.constant 0 : index
    %c0_68 = arith.constant 0 : index
    %68 = vector.load %arg8[%c0_67, %c0_68] : memref<64x128xf32, #tpu.memory_space<vmem>>, vector<64x128xf32>
    %cst_69 = arith.constant dense<0.000000e+00> : vector<64x128xf32>
    %69 = tpu.matmul %67, %68, %cst_69 {dimension_numbers = #tpu.dot_dimension_numbers<[1], [0], [0], [1], [0, 0, 1, 1], [], []>} : vector<64x64xf32>, vector<64x128xf32>, vector<64x128xf32> -> vector<64x128xf32>
    %c0_70 = arith.constant 0 : index
    %c0_71 = arith.constant 0 : index
    %70 = vector.load %arg9[%c0_70, %c0_71] : memref<1x128xf32, #tpu.memory_space<vmem>>, vector<1x128xf32>
    %71 = vector.broadcast %70 : vector<1x128xf32> to vector<64x128xf32>
    %72 = arith.addf %69, %71 : vector<64x128xf32>
    %73 = vector.shape_cast %72 : vector<64x128xf32> to vector<8x8x128xf32>
    %74 = vector.shape_cast %73 : vector<8x8x128xf32> to vector<8x1x8x128xf32>
    %75 = vector.shape_cast %74 : vector<8x1x8x128xf32> to vector<8x1x8x128xf32>
    %76 = vector.broadcast %75 : vector<8x1x8x128xf32> to vector<8x2x8x128xf32>
    %77 = vector.shape_cast %76 : vector<8x2x8x128xf32> to vector<16x8x128xf32>
    %c1_72 = arith.constant 1 : index
    %c0_73 = arith.constant 0 : index
    %c0_74 = arith.constant 0 : index
    %c0_75 = arith.constant 0 : index
    %78 = vector.load %arg11[%c1_72, %c0_73, %c0_74, %c0_75] : memref<2x18x10x128xf32, #tpu.memory_space<vmem>>, vector<1x16x8x128xf32>
    %79 = vector.shape_cast %78 : vector<1x16x8x128xf32> to vector<16x8x128xf32>
    %80 = vector.shape_cast %79 : vector<16x8x128xf32> to vector<128x128xf32>
    %c0_76 = arith.constant 0 : index
    %c0_77 = arith.constant 0 : index
    %81 = vector.load %arg12[%c0_76, %c0_77] : memref<128x1152xf32, #tpu.memory_space<vmem>>, vector<128x128xf32>
    tpu.vector_store %arg12[%c0_76, %c0_77], %80 {strides = array<i32>} : memref<128x1152xf32, #tpu.memory_space<vmem>>, vector<128x128xf32>,
    %c0_78 = arith.constant 0 : index
    %c0_79 = arith.constant 0 : index
    %c1_80 = arith.constant 1 : index
    %c0_81 = arith.constant 0 : index
    %82 = vector.load %arg11[%c0_78, %c0_79, %c1_80, %c0_81] : memref<2x18x10x128xf32, #tpu.memory_space<vmem>>, vector<1x16x8x128xf32>
    %83 = vector.shape_cast %82 : vector<1x16x8x128xf32> to vector<16x8x128xf32>
    %84 = vector.shape_cast %83 : vector<16x8x128xf32> to vector<128x128xf32>
    %c0_82 = arith.constant 0 : index
    %c128 = arith.constant 128 : index
    %85 = vector.load %arg12[%c0_82, %c128] : memref<128x1152xf32, #tpu.memory_space<vmem>>, vector<128x128xf32>
    tpu.vector_store %arg12[%c0_82, %c128], %84 {strides = array<i32>} : memref<128x1152xf32, #tpu.memory_space<vmem>>, vector<128x128xf32>,
    %c1_83 = arith.constant 1 : index
    %c0_84 = arith.constant 0 : index
    %c1_85 = arith.constant 1 : index
    %c0_86 = arith.constant 0 : index
    %86 = vector.load %arg11[%c1_83, %c0_84, %c1_85, %c0_86] : memref<2x18x10x128xf32, #tpu.memory_space<vmem>>, vector<1x16x8x128xf32>
    %87 = vector.shape_cast %86 : vector<1x16x8x128xf32> to vector<16x8x128xf32>
    %88 = vector.shape_cast %87 : vector<16x8x128xf32> to vector<128x128xf32>
    %c0_87 = arith.constant 0 : index
    %c256 = arith.constant 256 : index
    %89 = vector.load %arg12[%c0_87, %c256] : memref<128x1152xf32, #tpu.memory_space<vmem>>, vector<128x128xf32>
    tpu.vector_store %arg12[%c0_87, %c256], %88 {strides = array<i32>} : memref<128x1152xf32, #tpu.memory_space<vmem>>, vector<128x128xf32>,
    %c1_88 = arith.constant 1 : index
    %c1_89 = arith.constant 1 : index
    %c0_90 = arith.constant 0 : index
    %c0_91 = arith.constant 0 : index
    %90 = vector.load %arg11[%c1_88, %c1_89, %c0_90, %c0_91] : memref<2x18x10x128xf32, #tpu.memory_space<vmem>>, vector<1x16x8x128xf32>
    %91 = vector.shape_cast %90 : vector<1x16x8x128xf32> to vector<16x8x128xf32>
    %92 = vector.shape_cast %91 : vector<16x8x128xf32> to vector<128x128xf32>
    %c0_92 = arith.constant 0 : index
    %c384 = arith.constant 384 : index
    %93 = vector.load %arg12[%c0_92, %c384] : memref<128x1152xf32, #tpu.memory_space<vmem>>, vector<128x128xf32>
    tpu.vector_store %arg12[%c0_92, %c384], %92 {strides = array<i32>} : memref<128x1152xf32, #tpu.memory_space<vmem>>, vector<128x128xf32>,
    %c0_93 = arith.constant 0 : index
    %c1_94 = arith.constant 1 : index
    %c1_95 = arith.constant 1 : index
    %c0_96 = arith.constant 0 : index
    %94 = vector.load %arg11[%c0_93, %c1_94, %c1_95, %c0_96] : memref<2x18x10x128xf32, #tpu.memory_space<vmem>>, vector<1x16x8x128xf32>
    %95 = vector.shape_cast %94 : vector<1x16x8x128xf32> to vector<16x8x128xf32>
    %96 = vector.shape_cast %95 : vector<16x8x128xf32> to vector<128x128xf32>
    %c0_97 = arith.constant 0 : index
    %c512 = arith.constant 512 : index
    %97 = vector.load %arg12[%c0_97, %c512] : memref<128x1152xf32, #tpu.memory_space<vmem>>, vector<128x128xf32>
    tpu.vector_store %arg12[%c0_97, %c512], %96 {strides = array<i32>} : memref<128x1152xf32, #tpu.memory_space<vmem>>, vector<128x128xf32>,
    %c1_98 = arith.constant 1 : index
    %c1_99 = arith.constant 1 : index
    %c1_100 = arith.constant 1 : index
    %c0_101 = arith.constant 0 : index
    %98 = vector.load %arg11[%c1_98, %c1_99, %c1_100, %c0_101] : memref<2x18x10x128xf32, #tpu.memory_space<vmem>>, vector<1x16x8x128xf32>
    %99 = vector.shape_cast %98 : vector<1x16x8x128xf32> to vector<16x8x128xf32>
    %100 = vector.shape_cast %99 : vector<16x8x128xf32> to vector<128x128xf32>
    %c0_102 = arith.constant 0 : index
    %c640 = arith.constant 640 : index
    %101 = vector.load %arg12[%c0_102, %c640] : memref<128x1152xf32, #tpu.memory_space<vmem>>, vector<128x128xf32>
    tpu.vector_store %arg12[%c0_102, %c640], %100 {strides = array<i32>} : memref<128x1152xf32, #tpu.memory_space<vmem>>, vector<128x128xf32>,
    %c1_103 = arith.constant 1 : index
    %c2 = arith.constant 2 : index
    %c0_104 = arith.constant 0 : index
    %c0_105 = arith.constant 0 : index
    %102 = vector.load %arg11[%c1_103, %c2, %c0_104, %c0_105] : memref<2x18x10x128xf32, #tpu.memory_space<vmem>>, vector<1x16x8x128xf32>
    %103 = vector.shape_cast %102 : vector<1x16x8x128xf32> to vector<16x8x128xf32>
    %104 = vector.shape_cast %103 : vector<16x8x128xf32> to vector<128x128xf32>
    %c0_106 = arith.constant 0 : index
    %c768 = arith.constant 768 : index
    %105 = vector.load %arg12[%c0_106, %c768] : memref<128x1152xf32, #tpu.memory_space<vmem>>, vector<128x128xf32>
    tpu.vector_store %arg12[%c0_106, %c768], %104 {strides = array<i32>} : memref<128x1152xf32, #tpu.memory_space<vmem>>, vector<128x128xf32>,
    %c0_107 = arith.constant 0 : index
    %c2_108 = arith.constant 2 : index
    %c1_109 = arith.constant 1 : index
    %c0_110 = arith.constant 0 : index
    %106 = vector.load %arg11[%c0_107, %c2_108, %c1_109, %c0_110] : memref<2x18x10x128xf32, #tpu.memory_space<vmem>>, vector<1x16x8x128xf32>
    %107 = vector.shape_cast %106 : vector<1x16x8x128xf32> to vector<16x8x128xf32>
    %108 = vector.shape_cast %107 : vector<16x8x128xf32> to vector<128x128xf32>
    %c0_111 = arith.constant 0 : index
    %c896 = arith.constant 896 : index
    %109 = vector.load %arg12[%c0_111, %c896] : memref<128x1152xf32, #tpu.memory_space<vmem>>, vector<128x128xf32>
    tpu.vector_store %arg12[%c0_111, %c896], %108 {strides = array<i32>} : memref<128x1152xf32, #tpu.memory_space<vmem>>, vector<128x128xf32>,
    %c1_112 = arith.constant 1 : index
    %c2_113 = arith.constant 2 : index
    %c1_114 = arith.constant 1 : index
    %c0_115 = arith.constant 0 : index
    %110 = vector.load %arg11[%c1_112, %c2_113, %c1_114, %c0_115] : memref<2x18x10x128xf32, #tpu.memory_space<vmem>>, vector<1x16x8x128xf32>
    %111 = vector.shape_cast %110 : vector<1x16x8x128xf32> to vector<16x8x128xf32>
    %112 = vector.shape_cast %111 : vector<16x8x128xf32> to vector<128x128xf32>
    %c0_116 = arith.constant 0 : index
    %c1024 = arith.constant 1024 : index
    %113 = vector.load %arg12[%c0_116, %c1024] : memref<128x1152xf32, #tpu.memory_space<vmem>>, vector<128x128xf32>
    tpu.vector_store %arg12[%c0_116, %c1024], %112 {strides = array<i32>} : memref<128x1152xf32, #tpu.memory_space<vmem>>, vector<128x128xf32>,
    %c0_117 = arith.constant 0 : index
    %c0_118 = arith.constant 0 : index
    %114 = vector.load %arg12[%c0_117, %c0_118] : memref<128x1152xf32, #tpu.memory_space<vmem>>, vector<128x384xf32>
    %c0_119 = arith.constant 0 : index
    %c0_120 = arith.constant 0 : index
    %115 = vector.load %arg5[%c0_119, %c0_120] : memref<1152x128xf32, #tpu.memory_space<vmem>>, vector<384x128xf32>
    %cst_121 = arith.constant dense<0.000000e+00> : vector<128x128xf32>
    %116 = tpu.matmul %114, %115, %cst_121 {dimension_numbers = #tpu.dot_dimension_numbers<[1], [0], [0], [1], [0, 0, 1, 1], [], []>} : vector<128x384xf32>, vector<384x128xf32>, vector<128x128xf32> -> vector<128x128xf32>
    %c0_122 = arith.constant 0 : index
    %c384_123 = arith.constant 384 : index
    %117 = vector.load %arg12[%c0_122, %c384_123] : memref<128x1152xf32, #tpu.memory_space<vmem>>, vector<128x384xf32>
    %c384_124 = arith.constant 384 : index
    %c0_125 = arith.constant 0 : index
    %118 = vector.load %arg5[%c384_124, %c0_125] : memref<1152x128xf32, #tpu.memory_space<vmem>>, vector<384x128xf32>
    %cst_126 = arith.constant dense<0.000000e+00> : vector<128x128xf32>
    %119 = tpu.matmul %117, %118, %cst_126 {dimension_numbers = #tpu.dot_dimension_numbers<[1], [0], [0], [1], [0, 0, 1, 1], [], []>} : vector<128x384xf32>, vector<384x128xf32>, vector<128x128xf32> -> vector<128x128xf32>
    %120 = arith.addf %116, %119 : vector<128x128xf32>
    %c0_127 = arith.constant 0 : index
    %c768_128 = arith.constant 768 : index
    %121 = vector.load %arg12[%c0_127, %c768_128] : memref<128x1152xf32, #tpu.memory_space<vmem>>, vector<128x384xf32>
    %c768_129 = arith.constant 768 : index
    %c0_130 = arith.constant 0 : index
    %122 = vector.load %arg5[%c768_129, %c0_130] : memref<1152x128xf32, #tpu.memory_space<vmem>>, vector<384x128xf32>
    %cst_131 = arith.constant dense<0.000000e+00> : vector<128x128xf32>
    %123 = tpu.matmul %121, %122, %cst_131 {dimension_numbers = #tpu.dot_dimension_numbers<[1], [0], [0], [1], [0, 0, 1, 1], [], []>} : vector<128x384xf32>, vector<384x128xf32>, vector<128x128xf32> -> vector<128x128xf32>
    %124 = arith.addf %120, %123 : vector<128x128xf32>
    %c0_132 = arith.constant 0 : index
    %c0_133 = arith.constant 0 : index
    %125 = vector.load %arg6[%c0_132, %c0_133] : memref<1x128xf32, #tpu.memory_space<vmem>>, vector<1x128xf32>
    %126 = vector.broadcast %125 : vector<1x128xf32> to vector<128x128xf32>
    %127 = arith.addf %124, %126 : vector<128x128xf32>
    %128 = vector.shape_cast %127 : vector<128x128xf32> to vector<16x8x128xf32>
    %129 = arith.addf %128, %77 : vector<16x8x128xf32>
    %c0_134 = arith.constant 0 : index
    %c0_135 = arith.constant 0 : index
    %c0_136 = arith.constant 0 : index
    %c0_137 = arith.constant 0 : index
    %c0_138 = arith.constant 0 : index
    %130 = vector.load %arg10[%c0_134, %c0_135, %c0_136, %c0_137, %c0_138] : memref<1x2x16x8x128xf32, #tpu.memory_space<vmem>>, vector<1x1x16x8x128xf32>
    %131 = vector.shape_cast %130 : vector<1x1x16x8x128xf32> to vector<16x8x128xf32>
    %132 = vector.shape_cast %129 : vector<16x8x128xf32> to vector<1x1x16x8x128xf32>
    tpu.vector_store %arg10[%c0_134, %c0_135, %c0_136, %c0_137, %c0_138], %132 {strides = array<i32>} : memref<1x2x16x8x128xf32, #tpu.memory_space<vmem>>, vector<1x1x16x8x128xf32>,
    %c0_139 = arith.constant 0 : index
    %c0_140 = arith.constant 0 : index
    %c1_141 = arith.constant 1 : index
    %c0_142 = arith.constant 0 : index
    %133 = vector.load %arg11[%c0_139, %c0_140, %c1_141, %c0_142] : memref<2x18x10x128xf32, #tpu.memory_space<vmem>>, vector<1x16x8x128xf32>
    %134 = vector.shape_cast %133 : vector<1x16x8x128xf32> to vector<16x8x128xf32>
    %135 = vector.shape_cast %134 : vector<16x8x128xf32> to vector<128x128xf32>
    %c0_143 = arith.constant 0 : index
    %c0_144 = arith.constant 0 : index
    %136 = vector.load %arg12[%c0_143, %c0_144] : memref<128x1152xf32, #tpu.memory_space<vmem>>, vector<128x128xf32>
    tpu.vector_store %arg12[%c0_143, %c0_144], %135 {strides = array<i32>} : memref<128x1152xf32, #tpu.memory_space<vmem>>, vector<128x128xf32>,
    %c1_145 = arith.constant 1 : index
    %c0_146 = arith.constant 0 : index
    %c1_147 = arith.constant 1 : index
    %c0_148 = arith.constant 0 : index
    %137 = vector.load %arg11[%c1_145, %c0_146, %c1_147, %c0_148] : memref<2x18x10x128xf32, #tpu.memory_space<vmem>>, vector<1x16x8x128xf32>
    %138 = vector.shape_cast %137 : vector<1x16x8x128xf32> to vector<16x8x128xf32>
    %139 = vector.shape_cast %138 : vector<16x8x128xf32> to vector<128x128xf32>
    %c0_149 = arith.constant 0 : index
    %c128_150 = arith.constant 128 : index
    %140 = vector.load %arg12[%c0_149, %c128_150] : memref<128x1152xf32, #tpu.memory_space<vmem>>, vector<128x128xf32>
    tpu.vector_store %arg12[%c0_149, %c128_150], %139 {strides = array<i32>} : memref<128x1152xf32, #tpu.memory_space<vmem>>, vector<128x128xf32>,
    %c0_151 = arith.constant 0 : index
    %c0_152 = arith.constant 0 : index
    %c2_153 = arith.constant 2 : index
    %c0_154 = arith.constant 0 : index
    %141 = vector.load %arg11[%c0_151, %c0_152, %c2_153, %c0_154] : memref<2x18x10x128xf32, #tpu.memory_space<vmem>>, vector<1x16x8x128xf32>
    %142 = vector.shape_cast %141 : vector<1x16x8x128xf32> to vector<16x8x128xf32>
    %143 = vector.shape_cast %142 : vector<16x8x128xf32> to vector<128x128xf32>
    %c0_155 = arith.constant 0 : index
    %c256_156 = arith.constant 256 : index
    %144 = vector.load %arg12[%c0_155, %c256_156] : memref<128x1152xf32, #tpu.memory_space<vmem>>, vector<128x128xf32>
    tpu.vector_store %arg12[%c0_155, %c256_156], %143 {strides = array<i32>} : memref<128x1152xf32, #tpu.memory_space<vmem>>, vector<128x128xf32>,
    %c0_157 = arith.constant 0 : index
    %c1_158 = arith.constant 1 : index
    %c1_159 = arith.constant 1 : index
    %c0_160 = arith.constant 0 : index
    %145 = vector.load %arg11[%c0_157, %c1_158, %c1_159, %c0_160] : memref<2x18x10x128xf32, #tpu.memory_space<vmem>>, vector<1x16x8x128xf32>
    %146 = vector.shape_cast %145 : vector<1x16x8x128xf32> to vector<16x8x128xf32>
    %147 = vector.shape_cast %146 : vector<16x8x128xf32> to vector<128x128xf32>
    %c0_161 = arith.constant 0 : index
    %c384_162 = arith.constant 384 : index
    %148 = vector.load %arg12[%c0_161, %c384_162] : memref<128x1152xf32, #tpu.memory_space<vmem>>, vector<128x128xf32>
    tpu.vector_store %arg12[%c0_161, %c384_162], %147 {strides = array<i32>} : memref<128x1152xf32, #tpu.memory_space<vmem>>, vector<128x128xf32>,
    %c1_163 = arith.constant 1 : index
    %c1_164 = arith.constant 1 : index
    %c1_165 = arith.constant 1 : index
    %c0_166 = arith.constant 0 : index
    %149 = vector.load %arg11[%c1_163, %c1_164, %c1_165, %c0_166] : memref<2x18x10x128xf32, #tpu.memory_space<vmem>>, vector<1x16x8x128xf32>
    %150 = vector.shape_cast %149 : vector<1x16x8x128xf32> to vector<16x8x128xf32>
    %151 = vector.shape_cast %150 : vector<16x8x128xf32> to vector<128x128xf32>
    %c0_167 = arith.constant 0 : index
    %c512_168 = arith.constant 512 : index
    %152 = vector.load %arg12[%c0_167, %c512_168] : memref<128x1152xf32, #tpu.memory_space<vmem>>, vector<128x128xf32>
    tpu.vector_store %arg12[%c0_167, %c512_168], %151 {strides = array<i32>} : memref<128x1152xf32, #tpu.memory_space<vmem>>, vector<128x128xf32>,
    %c0_169 = arith.constant 0 : index
    %c1_170 = arith.constant 1 : index
    %c2_171 = arith.constant 2 : index
    %c0_172 = arith.constant 0 : index
    %153 = vector.load %arg11[%c0_169, %c1_170, %c2_171, %c0_172] : memref<2x18x10x128xf32, #tpu.memory_space<vmem>>, vector<1x16x8x128xf32>
    %154 = vector.shape_cast %153 : vector<1x16x8x128xf32> to vector<16x8x128xf32>
    %155 = vector.shape_cast %154 : vector<16x8x128xf32> to vector<128x128xf32>
    %c0_173 = arith.constant 0 : index
    %c640_174 = arith.constant 640 : index
    %156 = vector.load %arg12[%c0_173, %c640_174] : memref<128x1152xf32, #tpu.memory_space<vmem>>, vector<128x128xf32>
    tpu.vector_store %arg12[%c0_173, %c640_174], %155 {strides = array<i32>} : memref<128x1152xf32, #tpu.memory_space<vmem>>, vector<128x128xf32>,
    %c0_175 = arith.constant 0 : index
    %c2_176 = arith.constant 2 : index
    %c1_177 = arith.constant 1 : index
    %c0_178 = arith.constant 0 : index
    %157 = vector.load %arg11[%c0_175, %c2_176, %c1_177, %c0_178] : memref<2x18x10x128xf32, #tpu.memory_space<vmem>>, vector<1x16x8x128xf32>
    %158 = vector.shape_cast %157 : vector<1x16x8x128xf32> to vector<16x8x128xf32>
    %159 = vector.shape_cast %158 : vector<16x8x128xf32> to vector<128x128xf32>
    %c0_179 = arith.constant 0 : index
    %c768_180 = arith.constant 768 : index
    %160 = vector.load %arg12[%c0_179, %c768_180] : memref<128x1152xf32, #tpu.memory_space<vmem>>, vector<128x128xf32>
    tpu.vector_store %arg12[%c0_179, %c768_180], %159 {strides = array<i32>} : memref<128x1152xf32, #tpu.memory_space<vmem>>, vector<128x128xf32>,
    %c1_181 = arith.constant 1 : index
    %c2_182 = arith.constant 2 : index
    %c1_183 = arith.constant 1 : index
    %c0_184 = arith.constant 0 : index
    %161 = vector.load %arg11[%c1_181, %c2_182, %c1_183, %c0_184] : memref<2x18x10x128xf32, #tpu.memory_space<vmem>>, vector<1x16x8x128xf32>
    %162 = vector.shape_cast %161 : vector<1x16x8x128xf32> to vector<16x8x128xf32>
    %163 = vector.shape_cast %162 : vector<16x8x128xf32> to vector<128x128xf32>
    %c0_185 = arith.constant 0 : index
    %c896_186 = arith.constant 896 : index
    %164 = vector.load %arg12[%c0_185, %c896_186] : memref<128x1152xf32, #tpu.memory_space<vmem>>, vector<128x128xf32>
    tpu.vector_store %arg12[%c0_185, %c896_186], %163 {strides = array<i32>} : memref<128x1152xf32, #tpu.memory_space<vmem>>, vector<128x128xf32>,
    %c0_187 = arith.constant 0 : index
    %c2_188 = arith.constant 2 : index
    %c2_189 = arith.constant 2 : index
    %c0_190 = arith.constant 0 : index
    %165 = vector.load %arg11[%c0_187, %c2_188, %c2_189, %c0_190] : memref<2x18x10x128xf32, #tpu.memory_space<vmem>>, vector<1x16x8x128xf32>
    %166 = vector.shape_cast %165 : vector<1x16x8x128xf32> to vector<16x8x128xf32>
    %167 = vector.shape_cast %166 : vector<16x8x128xf32> to vector<128x128xf32>
    %c0_191 = arith.constant 0 : index
    %c1024_192 = arith.constant 1024 : index
    %168 = vector.load %arg12[%c0_191, %c1024_192] : memref<128x1152xf32, #tpu.memory_space<vmem>>, vector<128x128xf32>
    tpu.vector_store %arg12[%c0_191, %c1024_192], %167 {strides = array<i32>} : memref<128x1152xf32, #tpu.memory_space<vmem>>, vector<128x128xf32>,
    %c0_193 = arith.constant 0 : index
    %c0_194 = arith.constant 0 : index
    %169 = vector.load %arg12[%c0_193, %c0_194] : memref<128x1152xf32, #tpu.memory_space<vmem>>, vector<128x384xf32>
    %c0_195 = arith.constant 0 : index
    %c0_196 = arith.constant 0 : index
    %170 = vector.load %arg5[%c0_195, %c0_196] : memref<1152x128xf32, #tpu.memory_space<vmem>>, vector<384x128xf32>
    %cst_197 = arith.constant dense<0.000000e+00> : vector<128x128xf32>
    %171 = tpu.matmul %169, %170, %cst_197 {dimension_numbers = #tpu.dot_dimension_numbers<[1], [0], [0], [1], [0, 0, 1, 1], [], []>} : vector<128x384xf32>, vector<384x128xf32>, vector<128x128xf32> -> vector<128x128xf32>
    %c0_198 = arith.constant 0 : index
    %c384_199 = arith.constant 384 : index
    %172 = vector.load %arg12[%c0_198, %c384_199] : memref<128x1152xf32, #tpu.memory_space<vmem>>, vector<128x384xf32>
    %c384_200 = arith.constant 384 : index
    %c0_201 = arith.constant 0 : index
    %173 = vector.load %arg5[%c384_200, %c0_201] : memref<1152x128xf32, #tpu.memory_space<vmem>>, vector<384x128xf32>
    %cst_202 = arith.constant dense<0.000000e+00> : vector<128x128xf32>
    %174 = tpu.matmul %172, %173, %cst_202 {dimension_numbers = #tpu.dot_dimension_numbers<[1], [0], [0], [1], [0, 0, 1, 1], [], []>} : vector<128x384xf32>, vector<384x128xf32>, vector<128x128xf32> -> vector<128x128xf32>
    %175 = arith.addf %171, %174 : vector<128x128xf32>
    %c0_203 = arith.constant 0 : index
    %c768_204 = arith.constant 768 : index
    %176 = vector.load %arg12[%c0_203, %c768_204] : memref<128x1152xf32, #tpu.memory_space<vmem>>, vector<128x384xf32>
    %c768_205 = arith.constant 768 : index
    %c0_206 = arith.constant 0 : index
    %177 = vector.load %arg5[%c768_205, %c0_206] : memref<1152x128xf32, #tpu.memory_space<vmem>>, vector<384x128xf32>
    %cst_207 = arith.constant dense<0.000000e+00> : vector<128x128xf32>
    %178 = tpu.matmul %176, %177, %cst_207 {dimension_numbers = #tpu.dot_dimension_numbers<[1], [0], [0], [1], [0, 0, 1, 1], [], []>} : vector<128x384xf32>, vector<384x128xf32>, vector<128x128xf32> -> vector<128x128xf32>
    %179 = arith.addf %175, %178 : vector<128x128xf32>
    %c0_208 = arith.constant 0 : index
    %c0_209 = arith.constant 0 : index
    %180 = vector.load %arg6[%c0_208, %c0_209] : memref<1x128xf32, #tpu.memory_space<vmem>>, vector<1x128xf32>
    %181 = vector.broadcast %180 : vector<1x128xf32> to vector<128x128xf32>
    %182 = arith.addf %179, %181 : vector<128x128xf32>
    %183 = vector.shape_cast %182 : vector<128x128xf32> to vector<16x8x128xf32>
    %184 = arith.addf %183, %77 : vector<16x8x128xf32>
    %c0_210 = arith.constant 0 : index
    %c1_211 = arith.constant 1 : index
    %c0_212 = arith.constant 0 : index
    %c0_213 = arith.constant 0 : index
    %c0_214 = arith.constant 0 : index
    %185 = vector.load %arg10[%c0_210, %c1_211, %c0_212, %c0_213, %c0_214] : memref<1x2x16x8x128xf32, #tpu.memory_space<vmem>>, vector<1x1x16x8x128xf32>
    %186 = vector.shape_cast %185 : vector<1x1x16x8x128xf32> to vector<16x8x128xf32>
    %187 = vector.shape_cast %184 : vector<16x8x128xf32> to vector<1x1x16x8x128xf32>
    tpu.vector_store %arg10[%c0_210, %c1_211, %c0_212, %c0_213, %c0_214], %187 {strides = array<i32>} : memref<1x2x16x8x128xf32, #tpu.memory_space<vmem>>, vector<1x1x16x8x128xf32>,
    return
  }
  func.func @transform_0(%arg0: i32) -> (i32, i32, i32, i32, i32) {
    %c0_i32 = arith.constant 0 : i32
    %c0_i32_0 = arith.constant 0 : i32
    %c0_i32_1 = arith.constant 0 : i32
    %c0_i32_2 = arith.constant 0 : i32
    %c0_i32_3 = arith.constant 0 : i32
    return %arg0, %c0_i32, %c0_i32_0, %c0_i32_1, %c0_i32_2 : i32, i32, i32, i32, i32
  }
  func.func @transform_1(%arg0: i32) -> (i32, i32) {
    %c0_i32 = arith.constant 0 : i32
    %c0_i32_0 = arith.constant 0 : i32
    %c0_i32_1 = arith.constant 0 : i32
    return %c0_i32, %c0_i32_0 : i32, i32
  }
  func.func @transform_2(%arg0: i32) -> (i32, i32) {
    %c0_i32 = arith.constant 0 : i32
    %c0_i32_0 = arith.constant 0 : i32
    %c0_i32_1 = arith.constant 0 : i32
    return %c0_i32, %c0_i32_0 : i32, i32
  }
  func.func @transform_3(%arg0: i32) -> (i32, i32) {
    %c0_i32 = arith.constant 0 : i32
    %c0_i32_0 = arith.constant 0 : i32
    %c0_i32_1 = arith.constant 0 : i32
    return %c0_i32, %c0_i32_0 : i32, i32
  }
  func.func @transform_4(%arg0: i32) -> (i32, i32) {
    %c0_i32 = arith.constant 0 : i32
    %c0_i32_0 = arith.constant 0 : i32
    %c0_i32_1 = arith.constant 0 : i32
    return %c0_i32, %c0_i32_0 : i32, i32
  }
  func.func @transform_5(%arg0: i32) -> (i32, i32) {
    %c0_i32 = arith.constant 0 : i32
    %c0_i32_0 = arith.constant 0 : i32
    %c0_i32_1 = arith.constant 0 : i32
    return %c0_i32, %c0_i32_0 : i32, i32
  }
  func.func @transform_6(%arg0: i32) -> (i32, i32, i32, i32) {
    %c0_i32 = arith.constant 0 : i32
    %c0_i32_0 = arith.constant 0 : i32
    %c0_i32_1 = arith.constant 0 : i32
    %c0_i32_2 = arith.constant 0 : i32
    return %arg0, %c0_i32, %c0_i32_0, %c0_i32_1 : i32, i32, i32, i32
  }
  func.func @transform_7(%arg0: i32) -> (i32, i32) {
    %c0_i32 = arith.constant 0 : i32
    %c0_i32_0 = arith.constant 0 : i32
    %c0_i32_1 = arith.constant 0 : i32
    return %c0_i32, %c0_i32_0 : i32, i32
  }
  func.func @transform_8(%arg0: i32) -> (i32, i32) {
    %c0_i32 = arith.constant 0 : i32
    %c0_i32_0 = arith.constant 0 : i32
    %c0_i32_1 = arith.constant 0 : i32
    return %c0_i32, %c0_i32_0 : i32, i32
  }
  func.func @transform_9(%arg0: i32) -> (i32, i32, i32, i32, i32) {
    %c0_i32 = arith.constant 0 : i32
    %c0_i32_0 = arith.constant 0 : i32
    %c0_i32_1 = arith.constant 0 : i32
    %c0_i32_2 = arith.constant 0 : i32
    %c0_i32_3 = arith.constant 0 : i32
    return %arg0, %c0_i32, %c0_i32_0, %c0_i32_1, %c0_i32_2 : i32, i32, i32, i32, i32
  }
}

</mosaic_0001>

<llo_original>
// kernel: base_gen_block.6
$region0: #{base_gen_block.6}
  #allocation0 [shape = 'u32[]', space=smem, size = 0x4, offset = 0x4, fixed_abs, tag = 'smem constant byte address 0x4 - core index']
  #allocation1 [shape = 'u32[144,128]{1,0:T(1,128)}', space=vmem, size = 0x12000, scoped, tag = 'internal scratch']
  %s0 = inlined_call_operand.vmem [shape: f32[2,2,64], index: 0, kind: input, shape index: {}]
  %s1 = inlined_call_operand.vmem [shape: f32[2,64], index: 1, kind: output, shape index: {}]
  %s2 = sld [smem:[#allocation0]]
  $region49: #{base_gen_block.6} parent=0
    _
  %s4 = ssub.s32 1, %s2
  %s5 = scalar_select 0, %s4, %s2
  loop: start=0, step=1, limit=4
  $region2: #{base_gen_block.6} parent=0 // loop_pre_header
    _
  $region3: #{base_gen_block.6} parent=0 // loop_header
    %s7 = sphi 0, %s11
    %p8 = scmp.ge.s32.totalorder %s7, 4
    %s17 = sphi 0, %s19
    %s20 = sphi 0, %s17
    %s21 = sphi 0, %s20
    %s37 = sphi 0, %s21
    %s41 = sphi 0, %s41
    %s43 = sphi 0, %s41
    %s44 = sphi 0, %s43
    %s58 = sphi 0, %s44
  $region4: #{base_gen_block.6} parent=0 // loop_header_branch
    %10 = sbr.rel (%p8) target = $region8
  $region5: #{base_gen_block.6} parent=0 // loop_body
    %s12 = ssub.s32 %s7, 1
    %s13 = ssub.s32 %s7, 2
    %s14 = sadd.s32 %s7, 1
    %s15 = ssub.s32 %s7, %s14
    %p16 = scmp.eq.s32.totalorder %s15, 0
    %s18 = sadd.s32 %s17, 1
    %s19 = scalar_select %p16, %s17, %s18
    %p22 = pneg %p16
    %p23 = scmp.eq.s32.totalorder %s7, 1
    %p24 = por %p22, %p23
    %p25 = scmp.ne.s32.totalorder %s17, %s20
    %p26 = scmp.eq.s32.totalorder %s7, 0
    %p27 = por %p25, %p26
    %p28 = scmp.ne.s32.totalorder %s17, %s20
    %p29 = scmp.eq.s32.totalorder %s12, 1
    %p30 = por %p28, %p29
    %p31 = scmp.ne.s32.totalorder %s20, %s21
    %p32 = scmp.eq.s32.totalorder %s12, 0
    %p33 = por %p31, %p32
    %p34 = scmp.ne.s32.totalorder %s20, %s21
    %p35 = scmp.eq.s32.totalorder %s13, 1
    %p36 = por %p34, %p35
    %p38 = scmp.ne.s32.totalorder %s21, %s37
    %p39 = scmp.eq.s32.totalorder %s13, 0
    %p40 = por %p38, %p39
    %s42 = sadd.s32 %s41, 1
    %p45 = scmp.eq.s32.totalorder %s7, 1
    %p46 = scmp.ne.s32.totalorder %s41, %s43
    %p47 = scmp.eq.s32.totalorder %s7, 0
    %p48 = por %p46, %p47
    %p49 = scmp.ne.s32.totalorder %s41, %s43
    %p50 = scmp.eq.s32.totalorder %s12, 1
    %p51 = por %p49, %p50
    %p52 = scmp.ne.s32.totalorder %s43, %s44
    %p53 = scmp.eq.s32.totalorder %s12, 0
    %p54 = por %p52, %p53
    %p55 = scmp.ne.s32.totalorder %s43, %s44
    %p56 = scmp.eq.s32.totalorder %s13, 1
    %p57 = por %p55, %p56
    %p59 = scmp.ne.s32.totalorder %s44, %s58
    %p60 = scmp.eq.s32.totalorder %s13, 0
    %p61 = por %p59, %p60
    %p62 = scmp.le.s32.totalorder 1, %s7
    %p63 = scmp.lt.s32.totalorder %s7, 3
    %p64 = pnand %p62, %p63
    %p65 = pneg %p64
    // Predicated region
    $region9: #{base_gen_block.6} parent=5 // pred_check
      _
    $region10: #{base_gen_block.6} parent=5 // pred_check_branch
      %67 = sbr.rel (%p64) target = $region12
    $region11: #{base_gen_block.6} parent=5 // pred_region
      %s68 = ssub.s32 %s7, 1
    $region12: #{base_gen_block.6} parent=5 // pred_fallthru
      _
    %p69 = scmp.lt.s32.totalorder %s7, 2
    // Predicated region
    $region13: #{base_gen_block.6} parent=5 // pred_check
      %p70 = pneg %p69
    $region14: #{base_gen_block.6} parent=5 // pred_check_branch
      %72 = sbr.rel (%p70) target = $region16
    $region15: #{base_gen_block.6} parent=5 // pred_region
      // Predicated region
      $region17: #{base_gen_block.6} parent=15 // pred_check
        %p73 = pneg %p27
      $region18: #{base_gen_block.6} parent=15 // pred_check_branch
        %75 = sbr.rel (%p73) target = $region20
      $region19: #{base_gen_block.6} parent=15 // pred_region
        %p76 = scmp.lt.s32.totalorder %s7, 1
        %s77 = scalar_select %p76, %s7, 1
        %s78 = smul.addr %s77, 2
        %s79 = scalar_lea.vmem %s0, %s78
      $region20: #{base_gen_block.6} parent=15 // pred_fallthru
        _
    $region16: #{base_gen_block.6} parent=5 // pred_fallthru
      _
    %p80 = scmp.le.s32.totalorder 1, %s7
    %p81 = scmp.lt.s32.totalorder %s7, 3
    %p82 = pnand %p80, %p81
    %p83 = pneg %p82
    // Predicated region
    $region21: #{base_gen_block.6} parent=5 // pred_check
      _
    $region22: #{base_gen_block.6} parent=5 // pred_check_branch
      %85 = sbr.rel (%p82) target = $region24
    $region23: #{base_gen_block.6} parent=5 // pred_region
      %s86 = ssub.s32 %s7, 1
      %p87 = scmp.lt.s32.totalorder %s12, 1
      %s88 = scalar_select %p87, %s12, 1
      %s89 = smul.addr %s88, 2
      %s90 = scalar_lea.vmem %s0, %s89
      %p91 = pneg %p33
      %p92 = pneg %p30
      %p93 = pneg %p54
      %p94 = pneg %p51
      %p95 = scmp.lt.s32.totalorder %s12, 1
      %s96 = scalar_select %p95, %s12, 1
      %s97 = smul.addr %s96, 2
      %s98 = scalar_lea.vmem %s0, %s97
      %v99 = vld [vmem:[%s98] sm:$0x3]
      %p100 = scmp.eq.s32.totalorder %s12, 0
      // Predicated region
      $region25: #{base_gen_block.6} parent=23 // pred_check
        %p101 = pneg %p100
      $region26: #{base_gen_block.6} parent=23 // pred_check_branch
        %103 = sbr.rel (%p101) target = $region28
      $region27: #{base_gen_block.6} parent=23 // pred_region
        %vm104 = vcmask 517120
        %105 = vst.msk [vmem:[%s1] sm:$0x3] %vm104, %v99
      $region28: #{base_gen_block.6} parent=23 // pred_fallthru
        _
      %p106 = scmp.gt.s32.totalorder %s12, 0
      // Predicated region
      $region29: #{base_gen_block.6} parent=23 // pred_check
        %p107 = pneg %p106
      $region30: #{base_gen_block.6} parent=23 // pred_check_branch
        %109 = sbr.rel (%p107) target = $region32
      $region31: #{base_gen_block.6} parent=23 // pred_region
        %v110 = vld [vmem:[%s1] sm:$0x3]
        %v111 = vadd.f32 %v110, %v99
        %vm112 = vcmask 517120
        %113 = vst.msk [vmem:[%s1] sm:$0x3] %vm112, %v111
      $region32: #{base_gen_block.6} parent=23 // pred_fallthru
        _
      %p114 = scmp.eq.s32.totalorder %s12, 1
      // Predicated region
      $region33: #{base_gen_block.6} parent=23 // pred_check
        %p115 = pneg %p114
      $region34: #{base_gen_block.6} parent=23 // pred_check_branch
        %117 = sbr.rel (%p115) target = $region36
      $region35: #{base_gen_block.6} parent=23 // pred_region
        %v118 = vld [vmem:[%s1] sm:$0x1]
        %v119 = vmul.f32 %v118, 0.0078125
        %v120 = vld [vmem:[%s1 + $0x1] sm:$0x1]
        %v121 = vmul.f32 %v120, 0.0078125
        %v122 = vmul.f32 %v119, %v119
        %v123 = vsub.f32 %v121, %v122
        %v124 = vmax.f32 %v123, 0.0
        %vm125 = vcmask 516096
        %126 = vst.msk [vmem:[%s1] sm:$0x1] %vm125, %v119
        %v127 = vadd.f32 %v124, 1e-05
        %v128 = vrsqrt.pop %v127
        %129 = vst.msk [vmem:[%s1 + $0x1] sm:$0x1] %vm125, %v128
      $region36: #{base_gen_block.6} parent=23 // pred_fallthru
        _
      // Predicated region
      $region37: #{base_gen_block.6} parent=23 // pred_check
        %p130 = pneg %p51
      $region38: #{base_gen_block.6} parent=23 // pred_check_branch
        %132 = sbr.rel (%p130) target = $region40
      $region39: #{base_gen_block.6} parent=23 // pred_region
        _
      $region40: #{base_gen_block.6} parent=23 // pred_fallthru
        _
      // Predicated region
      $region41: #{base_gen_block.6} parent=23 // pred_check
        %p133 = pneg %p51
      $region42: #{base_gen_block.6} parent=23 // pred_check_branch
        %135 = sbr.rel (%p133) target = $region44
      $region43: #{base_gen_block.6} parent=23 // pred_region
        _
      $region44: #{base_gen_block.6} parent=23 // pred_fallthru
        _
    $region24: #{base_gen_block.6} parent=5 // pred_fallthru
      _
    %p136 = scmp.le.s32.totalorder 2, %s7
    // Predicated region
    $region45: #{base_gen_block.6} parent=5 // pred_check
      %p137 = pneg %p136
    $region46: #{base_gen_block.6} parent=5 // pred_check_branch
      %139 = sbr.rel (%p137) target = $region48
    $region47: #{base_gen_block.6} parent=5 // pred_region
      %s140 = ssub.s32 %s7, 2
    $region48: #{base_gen_block.6} parent=5 // pred_fallthru
      _
  $region6: #{base_gen_block.6} parent=0 // loop_footer
    %s11 = sadd.s32 1, %s7
  $region7: #{base_gen_block.6} parent=0 // loop_footer_branch
    %6 = sbr.rel target = $region3
  $region8: #{base_gen_block.6} parent=0 // loop_exit
    _

// kernel: base_gen_block.5
$region0: #{base_gen_block.5}
  #allocation0 [shape = 'u32[]', space=smem, size = 0x4, offset = 0x4, fixed_abs, tag = 'smem constant byte address 0x4 - core index']
  #allocation1 [shape = 'u32[144,128]{1,0:T(1,128)}', space=vmem, size = 0x12000, scoped, tag = 'internal scratch']
  %s0 = inlined_call_operand.vmem [shape: f32[2,8,8,64], index: 0, kind: input, shape index: {}]
  %s1 = inlined_call_operand.vmem [shape: f32[2,2,64], index: 1, kind: output, shape index: {}]
  %s2 = sld [smem:[#allocation0]]
  $region37: #{base_gen_block.5} parent=0
    _
  %s4 = ssub.s32 1, %s2
  %s5 = scalar_select 0, %s4, %s2
  loop: start=0, step=1, limit=4
  $region2: #{base_gen_block.5} parent=0 // loop_pre_header
    _
  $region3: #{base_gen_block.5} parent=0 // loop_header
    %s7 = sphi 0, %s11
    %p8 = scmp.ge.s32.totalorder %s7, 4
    %s17 = sphi 0, %s19
    %s20 = sphi 0, %s17
    %s21 = sphi 0, %s20
    %s37 = sphi 0, %s21
    %s43 = sphi 0, %s45
    %s46 = sphi 0, %s43
    %s47 = sphi 0, %s46
    %s63 = sphi 0, %s47
  $region4: #{base_gen_block.5} parent=0 // loop_header_branch
    %10 = sbr.rel (%p8) target = $region8
  $region5: #{base_gen_block.5} parent=0 // loop_body
    %s12 = ssub.s32 %s7, 1
    %s13 = ssub.s32 %s7, 2
    %s14 = sadd.s32 %s7, 1
    %s15 = ssub.s32 %s7, %s14
    %p16 = scmp.eq.s32.totalorder %s15, 0
    %s18 = sadd.s32 %s17, 1
    %s19 = scalar_select %p16, %s17, %s18
    %p22 = pneg %p16
    %p23 = scmp.eq.s32.totalorder %s7, 1
    %p24 = por %p22, %p23
    %p25 = scmp.ne.s32.totalorder %s17, %s20
    %p26 = scmp.eq.s32.totalorder %s7, 0
    %p27 = por %p25, %p26
    %p28 = scmp.ne.s32.totalorder %s17, %s20
    %p29 = scmp.eq.s32.totalorder %s12, 1
    %p30 = por %p28, %p29
    %p31 = scmp.ne.s32.totalorder %s20, %s21
    %p32 = scmp.eq.s32.totalorder %s12, 0
    %p33 = por %p31, %p32
    %p34 = scmp.ne.s32.totalorder %s20, %s21
    %p35 = scmp.eq.s32.totalorder %s13, 1
    %p36 = por %p34, %p35
    %p38 = scmp.ne.s32.totalorder %s21, %s37
    %p39 = scmp.eq.s32.totalorder %s13, 0
    %p40 = por %p38, %p39
    %s41 = ssub.s32 %s7, %s14
    %p42 = scmp.eq.s32.totalorder %s41, 0
    %s44 = sadd.s32 %s43, 1
    %s45 = scalar_select %p42, %s43, %s44
    %p48 = pneg %p42
    %p49 = scmp.eq.s32.totalorder %s7, 1
    %p50 = por %p48, %p49
    %p51 = scmp.ne.s32.totalorder %s43, %s46
    %p52 = scmp.eq.s32.totalorder %s7, 0
    %p53 = por %p51, %p52
    %p54 = scmp.ne.s32.totalorder %s43, %s46
    %p55 = scmp.eq.s32.totalorder %s12, 1
    %p56 = por %p54, %p55
    %p57 = scmp.ne.s32.totalorder %s46, %s47
    %p58 = scmp.eq.s32.totalorder %s12, 0
    %p59 = por %p57, %p58
    %p60 = scmp.ne.s32.totalorder %s46, %s47
    %p61 = scmp.eq.s32.totalorder %s13, 1
    %p62 = por %p60, %p61
    %p64 = scmp.ne.s32.totalorder %s47, %s63
    %p65 = scmp.eq.s32.totalorder %s13, 0
    %p66 = por %p64, %p65
    %p67 = scmp.le.s32.totalorder 1, %s7
    %p68 = scmp.lt.s32.totalorder %s7, 3
    %p69 = pnand %p67, %p68
    %p70 = pneg %p69
    // Predicated region
    $region9: #{base_gen_block.5} parent=5 // pred_check
      _
    $region10: #{base_gen_block.5} parent=5 // pred_check_branch
      %72 = sbr.rel (%p69) target = $region12
    $region11: #{base_gen_block.5} parent=5 // pred_region
      %s73 = ssub.s32 %s7, 1
    $region12: #{base_gen_block.5} parent=5 // pred_fallthru
      _
    %p74 = scmp.lt.s32.totalorder %s7, 2
    // Predicated region
    $region13: #{base_gen_block.5} parent=5 // pred_check
      %p75 = pneg %p74
    $region14: #{base_gen_block.5} parent=5 // pred_check_branch
      %77 = sbr.rel (%p75) target = $region16
    $region15: #{base_gen_block.5} parent=5 // pred_region
      // Predicated region
      $region17: #{base_gen_block.5} parent=15 // pred_check
        %p78 = pneg %p27
      $region18: #{base_gen_block.5} parent=15 // pred_check_branch
        %80 = sbr.rel (%p78) target = $region20
      $region19: #{base_gen_block.5} parent=15 // pred_region
        %p81 = scmp.lt.s32.totalorder %s7, 1
        %s82 = scalar_select %p81, %s7, 1
        %s83 = smul.addr %s82, 8
        %s84 = smul.addr %s83, 8
        %s85 = scalar_lea.vmem %s0, %s84
      $region20: #{base_gen_block.5} parent=15 // pred_fallthru
        _
    $region16: #{base_gen_block.5} parent=5 // pred_fallthru
      _
    %p86 = scmp.le.s32.totalorder 1, %s7
    %p87 = scmp.lt.s32.totalorder %s7, 3
    %p88 = pnand %p86, %p87
    %p89 = pneg %p88
    // Predicated region
    $region21: #{base_gen_block.5} parent=5 // pred_check
      _
    $region22: #{base_gen_block.5} parent=5 // pred_check_branch
      %91 = sbr.rel (%p88) target = $region24
    $region23: #{base_gen_block.5} parent=5 // pred_region
      %s92 = ssub.s32 %s7, 1
      %p93 = scmp.lt.s32.totalorder %s12, 1
      %s94 = scalar_select %p93, %s12, 1
      %s95 = smul.addr %s94, 8
      %s96 = smul.addr %s95, 8
      %s97 = scalar_lea.vmem %s0, %s96
      %p98 = pneg %p33
      %p99 = pneg %p30
      %p100 = pneg %p59
      %p101 = pneg %p56
      %p102 = scmp.lt.s32.totalorder %s12, 1
      %s103 = scalar_select %p102, %s12, 1
      %s104 = smul.addr %s103, 2
      %s105 = scalar_lea.vmem %s1, %s104
      %p106 = scmp.lt.s32.totalorder %s12, 1
      %s107 = scalar_select %p106, %s12, 1
      %s108 = smul.addr %s107, 8
      %s109 = smul.addr %s108, 8
      %s110 = scalar_lea.vmem %s0, %s109
      %p111 = scmp.lt.s32.totalorder %s12, 1
      %s112 = scalar_select %p111, %s12, 1
      %s113 = smul.addr %s112, 2
      %s114 = scalar_lea.vmem %s1, %s113
      %v115 = vld [vmem:[%s110] sm:$0xff]
      %v116 = vld [vmem:[%s110 + $0x8] sm:$0xff]
      %v117 = vld [vmem:[%s110 + $0x10] sm:$0xff]
      %v118 = vld [vmem:[%s110 + $0x18] sm:$0xff]
      %v119 = vld [vmem:[%s110 + $0x20] sm:$0xff]
      %v120 = vld [vmem:[%s110 + $0x28] sm:$0xff]
      %v121 = vld [vmem:[%s110 + $0x30] sm:$0xff]
      %v122 = vld [vmem:[%s110 + $0x38] sm:$0xff]
      %vm123 = vcmask 523264
      %v124 = vsel %vm123, %v115, 0.0
      %v125 = vsel %vm123, %v116, 0.0
      %v126 = vadd.f32 %v124, %v125
      %v127 = vsel %vm123, %v117, 0.0
      %v128 = vadd.f32 %v126, %v127
      %v129 = vsel %vm123, %v118, 0.0
      %v130 = vadd.f32 %v128, %v129
      %v131 = vsel %vm123, %v119, 0.0
      %v132 = vadd.f32 %v130, %v131
      %v133 = vsel %vm123, %v120, 0.0
      %v134 = vadd.f32 %v132, %v133
      %v135 = vsel %vm123, %v121, 0.0
      %v136 = vadd.f32 %v134, %v135
      %v137 = vsel %vm123, %v122, 0.0
      %v138 = vadd.f32 %v136, %v137
      %v139 = vrot.slane %v138, 4
      %v140 = vadd.f32 %v138, %v139
      %v141 = vrot.slane %v140, 2
      %v142 = vadd.f32 %v140, %v141
      %v143 = vrot.slane %v142, 1
      %v144 = vadd.f32 %v142, %v143
      %vm145 = vcmask 516096
      %146 = vst.msk [vmem:[%s114] sm:$0x1] %vm145, %v144
      %v147 = vmul.f32 %v115, %v115
      %v148 = vmul.f32 %v116, %v116
      %v149 = vmul.f32 %v117, %v117
      %v150 = vmul.f32 %v118, %v118
      %v151 = vmul.f32 %v119, %v119
      %v152 = vmul.f32 %v120, %v120
      %v153 = vmul.f32 %v121, %v121
      %v154 = vmul.f32 %v122, %v122
      %v155 = vsel %vm123, %v147, 0.0
      %v156 = vsel %vm123, %v148, 0.0
      %v157 = vadd.f32 %v155, %v156
      %v158 = vsel %vm123, %v149, 0.0
      %v159 = vadd.f32 %v157, %v158
      %v160 = vsel %vm123, %v150, 0.0
      %v161 = vadd.f32 %v159, %v160
      %v162 = vsel %vm123, %v151, 0.0
      %v163 = vadd.f32 %v161, %v162
      %v164 = vsel %vm123, %v152, 0.0
      %v165 = vadd.f32 %v163, %v164
      %v166 = vsel %vm123, %v153, 0.0
      %v167 = vadd.f32 %v165, %v166
      %v168 = vsel %vm123, %v154, 0.0
      %v169 = vadd.f32 %v167, %v168
      %v170 = vrot.slane %v169, 4
      %v171 = vadd.f32 %v169, %v170
      %v172 = vrot.slane %v171, 2
      %v173 = vadd.f32 %v171, %v172
      %v174 = vrot.slane %v173, 1
      %v175 = vadd.f32 %v173, %v174
      %176 = vst.msk [vmem:[%s114 + $0x1] sm:$0x1] %vm145, %v175
      %p177 = scmp.lt.s32.totalorder %s12, 1
      %s178 = scalar_select %p177, %s12, 1
      %s179 = smul.addr %s178, 2
      %s180 = scalar_lea.vmem %s1, %s179
      // Predicated region
      $region25: #{base_gen_block.5} parent=23 // pred_check
        %p181 = pneg %p56
      $region26: #{base_gen_block.5} parent=23 // pred_check_branch
        %183 = sbr.rel (%p181) target = $region28
      $region27: #{base_gen_block.5} parent=23 // pred_region
        _
      $region28: #{base_gen_block.5} parent=23 // pred_fallthru
        _
    $region24: #{base_gen_block.5} parent=5 // pred_fallthru
      _
    %p184 = scmp.le.s32.totalorder 2, %s7
    // Predicated region
    $region29: #{base_gen_block.5} parent=5 // pred_check
      %p185 = pneg %p184
    $region30: #{base_gen_block.5} parent=5 // pred_check_branch
      %187 = sbr.rel (%p185) target = $region32
    $region31: #{base_gen_block.5} parent=5 // pred_region
      %s188 = ssub.s32 %s7, 2
      // Predicated region
      $region33: #{base_gen_block.5} parent=31 // pred_check
        %p189 = pneg %p62
      $region34: #{base_gen_block.5} parent=31 // pred_check_branch
        %191 = sbr.rel (%p189) target = $region36
      $region35: #{base_gen_block.5} parent=31 // pred_region
        %p192 = scmp.lt.s32.totalorder %s13, 1
        %s193 = scalar_select %p192, %s13, 1
        %s194 = smul.addr %s193, 2
        %s195 = scalar_lea.vmem %s1, %s194
      $region36: #{base_gen_block.5} parent=31 // pred_fallthru
        _
    $region32: #{base_gen_block.5} parent=5 // pred_fallthru
      _
  $region6: #{base_gen_block.5} parent=0 // loop_footer
    %s11 = sadd.s32 1, %s7
  $region7: #{base_gen_block.5} parent=0 // loop_footer_branch
    %6 = sbr.rel target = $region3
  $region8: #{base_gen_block.5} parent=0 // loop_exit
    _

// kernel: base_gen_block.8
$region0: #{base_gen_block.8}
  #allocation0 [shape = 'u32[]', space=smem, size = 0x4, offset = 0x4, fixed_abs, tag = 'smem constant byte address 0x4 - core index']
  #allocation1 [shape = 'u32[144,128]{1,0:T(1,128)}', space=vmem, size = 0x12000, scoped, tag = 'internal scratch']
  %s0 = inlined_call_operand.vmem [shape: f32[2,2,128], index: 0, kind: input, shape index: {}]
  %s1 = inlined_call_operand.vmem [shape: f32[2,128], index: 1, kind: output, shape index: {}]
  %s2 = sld [smem:[#allocation0]]
  $region49: #{base_gen_block.8} parent=0
    _
  %s4 = ssub.s32 1, %s2
  %s5 = scalar_select 0, %s4, %s2
  loop: start=0, step=1, limit=4
  $region2: #{base_gen_block.8} parent=0 // loop_pre_header
    _
  $region3: #{base_gen_block.8} parent=0 // loop_header
    %s7 = sphi 0, %s11
    %p8 = scmp.ge.s32.totalorder %s7, 4
    %s17 = sphi 0, %s19
    %s20 = sphi 0, %s17
    %s21 = sphi 0, %s20
    %s37 = sphi 0, %s21
    %s41 = sphi 0, %s41
    %s43 = sphi 0, %s41
    %s44 = sphi 0, %s43
    %s58 = sphi 0, %s44
  $region4: #{base_gen_block.8} parent=0 // loop_header_branch
    %10 = sbr.rel (%p8) target = $region8
  $region5: #{base_gen_block.8} parent=0 // loop_body
    %s12 = ssub.s32 %s7, 1
    %s13 = ssub.s32 %s7, 2
    %s14 = sadd.s32 %s7, 1
    %s15 = ssub.s32 %s7, %s14
    %p16 = scmp.eq.s32.totalorder %s15, 0
    %s18 = sadd.s32 %s17, 1
    %s19 = scalar_select %p16, %s17, %s18
    %p22 = pneg %p16
    %p23 = scmp.eq.s32.totalorder %s7, 1
    %p24 = por %p22, %p23
    %p25 = scmp.ne.s32.totalorder %s17, %s20
    %p26 = scmp.eq.s32.totalorder %s7, 0
    %p27 = por %p25, %p26
    %p28 = scmp.ne.s32.totalorder %s17, %s20
    %p29 = scmp.eq.s32.totalorder %s12, 1
    %p30 = por %p28, %p29
    %p31 = scmp.ne.s32.totalorder %s20, %s21
    %p32 = scmp.eq.s32.totalorder %s12, 0
    %p33 = por %p31, %p32
    %p34 = scmp.ne.s32.totalorder %s20, %s21
    %p35 = scmp.eq.s32.totalorder %s13, 1
    %p36 = por %p34, %p35
    %p38 = scmp.ne.s32.totalorder %s21, %s37
    %p39 = scmp.eq.s32.totalorder %s13, 0
    %p40 = por %p38, %p39
    %s42 = sadd.s32 %s41, 1
    %p45 = scmp.eq.s32.totalorder %s7, 1
    %p46 = scmp.ne.s32.totalorder %s41, %s43
    %p47 = scmp.eq.s32.totalorder %s7, 0
    %p48 = por %p46, %p47
    %p49 = scmp.ne.s32.totalorder %s41, %s43
    %p50 = scmp.eq.s32.totalorder %s12, 1
    %p51 = por %p49, %p50
    %p52 = scmp.ne.s32.totalorder %s43, %s44
    %p53 = scmp.eq.s32.totalorder %s12, 0
    %p54 = por %p52, %p53
    %p55 = scmp.ne.s32.totalorder %s43, %s44
    %p56 = scmp.eq.s32.totalorder %s13, 1
    %p57 = por %p55, %p56
    %p59 = scmp.ne.s32.totalorder %s44, %s58
    %p60 = scmp.eq.s32.totalorder %s13, 0
    %p61 = por %p59, %p60
    %p62 = scmp.le.s32.totalorder 1, %s7
    %p63 = scmp.lt.s32.totalorder %s7, 3
    %p64 = pnand %p62, %p63
    %p65 = pneg %p64
    // Predicated region
    $region9: #{base_gen_block.8} parent=5 // pred_check
      _
    $region10: #{base_gen_block.8} parent=5 // pred_check_branch
      %67 = sbr.rel (%p64) target = $region12
    $region11: #{base_gen_block.8} parent=5 // pred_region
      %s68 = ssub.s32 %s7, 1
    $region12: #{base_gen_block.8} parent=5 // pred_fallthru
      _
    %p69 = scmp.lt.s32.totalorder %s7, 2
    // Predicated region
    $region13: #{base_gen_block.8} parent=5 // pred_check
      %p70 = pneg %p69
    $region14: #{base_gen_block.8} parent=5 // pred_check_branch
      %72 = sbr.rel (%p70) target = $region16
    $region15: #{base_gen_block.8} parent=5 // pred_region
      // Predicated region
      $region17: #{base_gen_block.8} parent=15 // pred_check
        %p73 = pneg %p27
      $region18: #{base_gen_block.8} parent=15 // pred_check_branch
        %75 = sbr.rel (%p73) target = $region20
      $region19: #{base_gen_block.8} parent=15 // pred_region
        %p76 = scmp.lt.s32.totalorder %s7, 1
        %s77 = scalar_select %p76, %s7, 1
        %s78 = smul.addr %s77, 2
        %s79 = scalar_lea.vmem %s0, %s78
      $region20: #{base_gen_block.8} parent=15 // pred_fallthru
        _
    $region16: #{base_gen_block.8} parent=5 // pred_fallthru
      _
    %p80 = scmp.le.s32.totalorder 1, %s7
    %p81 = scmp.lt.s32.totalorder %s7, 3
    %p82 = pnand %p80, %p81
    %p83 = pneg %p82
    // Predicated region
    $region21: #{base_gen_block.8} parent=5 // pred_check
      _
    $region22: #{base_gen_block.8} parent=5 // pred_check_branch
      %85 = sbr.rel (%p82) target = $region24
    $region23: #{base_gen_block.8} parent=5 // pred_region
      %s86 = ssub.s32 %s7, 1
      %p87 = scmp.lt.s32.totalorder %s12, 1
      %s88 = scalar_select %p87, %s12, 1
      %s89 = smul.addr %s88, 2
      %s90 = scalar_lea.vmem %s0, %s89
      %p91 = pneg %p33
      %p92 = pneg %p30
      %p93 = pneg %p54
      %p94 = pneg %p51
      %p95 = scmp.lt.s32.totalorder %s12, 1
      %s96 = scalar_select %p95, %s12, 1
      %s97 = smul.addr %s96, 2
      %s98 = scalar_lea.vmem %s0, %s97
      %v99 = vld [vmem:[%s98] sm:$0x3]
      %p100 = scmp.eq.s32.totalorder %s12, 0
      // Predicated region
      $region25: #{base_gen_block.8} parent=23 // pred_check
        %p101 = pneg %p100
      $region26: #{base_gen_block.8} parent=23 // pred_check_branch
        %103 = sbr.rel (%p101) target = $region28
      $region27: #{base_gen_block.8} parent=23 // pred_region
        %104 = vst [vmem:[%s1] sm:$0x3] %v99
      $region28: #{base_gen_block.8} parent=23 // pred_fallthru
        _
      %p105 = scmp.gt.s32.totalorder %s12, 0
      // Predicated region
      $region29: #{base_gen_block.8} parent=23 // pred_check
        %p106 = pneg %p105
      $region30: #{base_gen_block.8} parent=23 // pred_check_branch
        %108 = sbr.rel (%p106) target = $region32
      $region31: #{base_gen_block.8} parent=23 // pred_region
        %v109 = vld [vmem:[%s1] sm:$0x3]
        %v110 = vadd.f32 %v109, %v99
        %111 = vst [vmem:[%s1] sm:$0x3] %v110
      $region32: #{base_gen_block.8} parent=23 // pred_fallthru
        _
      %p112 = scmp.eq.s32.totalorder %s12, 1
      // Predicated region
      $region33: #{base_gen_block.8} parent=23 // pred_check
        %p113 = pneg %p112
      $region34: #{base_gen_block.8} parent=23 // pred_check_branch
        %115 = sbr.rel (%p113) target = $region36
      $region35: #{base_gen_block.8} parent=23 // pred_region
        %v116 = vld [vmem:[%s1] sm:$0x1]
        %v117 = vmul.f32 %v116, 0.001953125
        %v118 = vld [vmem:[%s1 + $0x1] sm:$0x1]
        %v119 = vmul.f32 %v118, 0.001953125
        %v120 = vmul.f32 %v117, %v117
        %v121 = vsub.f32 %v119, %v120
        %v122 = vmax.f32 %v121, 0.0
        %123 = vst [vmem:[%s1] sm:$0x1] %v117
        %v124 = vadd.f32 %v122, 1e-05
        %v125 = vrsqrt.pop %v124
        %126 = vst [vmem:[%s1 + $0x1] sm:$0x1] %v125
      $region36: #{base_gen_block.8} parent=23 // pred_fallthru
        _
      // Predicated region
      $region37: #{base_gen_block.8} parent=23 // pred_check
        %p127 = pneg %p51
      $region38: #{base_gen_block.8} parent=23 // pred_check_branch
        %129 = sbr.rel (%p127) target = $region40
      $region39: #{base_gen_block.8} parent=23 // pred_region
        _
      $region40: #{base_gen_block.8} parent=23 // pred_fallthru
        _
      // Predicated region
      $region41: #{base_gen_block.8} parent=23 // pred_check
        %p130 = pneg %p51
      $region42: #{base_gen_block.8} parent=23 // pred_check_branch
        %132 = sbr.rel (%p130) target = $region44
      $region43: #{base_gen_block.8} parent=23 // pred_region
        _
      $region44: #{base_gen_block.8} parent=23 // pred_fallthru
        _
    $region24: #{base_gen_block.8} parent=5 // pred_fallthru
      _
    %p133 = scmp.le.s32.totalorder 2, %s7
    // Predicated region
    $region45: #{base_gen_block.8} parent=5 // pred_check
      %p134 = pneg %p133
    $region46: #{base_gen_block.8} parent=5 // pred_check_branch
      %136 = sbr.rel (%p134) target = $region48
    $region47: #{base_gen_block.8} parent=5 // pred_region
      %s137 = ssub.s32 %s7, 2
    $region48: #{base_gen_block.8} parent=5 // pred_fallthru
      _
  $region6: #{base_gen_block.8} parent=0 // loop_footer
    %s11 = sadd.s32 1, %s7
  $region7: #{base_gen_block.8} parent=0 // loop_footer_branch
    %6 = sbr.rel target = $region3
  $region8: #{base_gen_block.8} parent=0 // loop_exit
    _

// kernel: base_gen_block.7
$region0: #{base_gen_block.7}
  #allocation0 [shape = 'u32[]', space=smem, size = 0x4, offset = 0x4, fixed_abs, tag = 'smem constant byte address 0x4 - core index']
  #allocation1 [shape = 'u32[144,128]{1,0:T(1,128)}', space=vmem, size = 0x12000, scoped, tag = 'internal scratch']
  #allocation2 [shape = 'f32[18,10,64]{2,1,0:T(8,128)}', space=vmem, size = 0x24000, scoped, tag = 'scratch operand']
  #allocation3 [shape = 'f32[128,384]{1,0:T(8,128)}', space=vmem, size = 0x30000, scoped, tag = 'scratch operand']
  %s0 = inlined_call_operand.vmem [shape: f32[2,8,8,64], index: 0, kind: input, shape index: {}]
  %s1 = inlined_call_operand.vmem [shape: f32[2,64], index: 1, kind: input, shape index: {}]
  %s2 = inlined_call_operand.vmem [shape: f32[1,64], index: 2, kind: input, shape index: {}]
  %s3 = inlined_call_operand.vmem [shape: f32[1,64], index: 3, kind: input, shape index: {}]
  %s4 = inlined_call_operand.vmem [shape: f32[2,384,128], index: 4, kind: input, shape index: {}]
  %s5 = inlined_call_operand.vmem [shape: f32[1,128], index: 5, kind: input, shape index: {}]
  %s6 = inlined_call_operand.vmem [shape: f32[2,2,16,8,128], index: 6, kind: output, shape index: {0}]
  %s7 = inlined_call_operand.vmem [shape: f32[2,2,128], index: 7, kind: output, shape index: {1}]
  %8 = xla_tuple %s6, %s7
  %s9 = sld [smem:[#allocation0]]
  $region65: #{base_gen_block.7} parent=0
    _
  %s11 = ssub.s32 1, %s9
  %s12 = scalar_select 0, %s11, %s9
  loop: start=0, step=1, limit=4
  $region2: #{base_gen_block.7} parent=0 // loop_pre_header
    _
  $region3: #{base_gen_block.7} parent=0 // loop_header
    %s14 = sphi 0, %s18
    %p15 = scmp.ge.s32.totalorder %s14, 4
    %s24 = sphi 0, %s26
    %s27 = sphi 0, %s24
    %s28 = sphi 0, %s27
    %s44 = sphi 0, %s28
    %s48 = sphi 0, %s48
    %s50 = sphi 0, %s48
    %s51 = sphi 0, %s50
    %s65 = sphi 0, %s51
    %s69 = sphi 0, %s69
    %s71 = sphi 0, %s69
    %s72 = sphi 0, %s71
    %s86 = sphi 0, %s72
    %s90 = sphi 0, %s90
    %s92 = sphi 0, %s90
    %s93 = sphi 0, %s92
    %s107 = sphi 0, %s93
    %s111 = sphi 0, %s111
    %s113 = sphi 0, %s111
    %s114 = sphi 0, %s113
    %s128 = sphi 0, %s114
    %s132 = sphi 0, %s132
    %s134 = sphi 0, %s132
    %s135 = sphi 0, %s134
    %s149 = sphi 0, %s135
    %s155 = sphi 0, %s157
    %s158 = sphi 0, %s155
    %s159 = sphi 0, %s158
    %s175 = sphi 0, %s159
    %s181 = sphi 0, %s183
    %s184 = sphi 0, %s181
    %s185 = sphi 0, %s184
    %s201 = sphi 0, %s185
  $region4: #{base_gen_block.7} parent=0 // loop_header_branch
    %17 = sbr.rel (%p15) target = $region8
  $region5: #{base_gen_block.7} parent=0 // loop_body
    %s19 = ssub.s32 %s14, 1
    %s20 = ssub.s32 %s14, 2
    %s21 = sadd.s32 %s14, 1
    %s22 = ssub.s32 %s14, %s21
    %p23 = scmp.eq.s32.totalorder %s22, 0
    %s25 = sadd.s32 %s24, 1
    %s26 = scalar_select %p23, %s24, %s25
    %p29 = pneg %p23
    %p30 = scmp.eq.s32.totalorder %s14, 1
    %p31 = por %p29, %p30
    %p32 = scmp.ne.s32.totalorder %s24, %s27
    %p33 = scmp.eq.s32.totalorder %s14, 0
    %p34 = por %p32, %p33
    %p35 = scmp.ne.s32.totalorder %s24, %s27
    %p36 = scmp.eq.s32.totalorder %s19, 1
    %p37 = por %p35, %p36
    %p38 = scmp.ne.s32.totalorder %s27, %s28
    %p39 = scmp.eq.s32.totalorder %s19, 0
    %p40 = por %p38, %p39
    %p41 = scmp.ne.s32.totalorder %s27, %s28
    %p42 = scmp.eq.s32.totalorder %s20, 1
    %p43 = por %p41, %p42
    %p45 = scmp.ne.s32.totalorder %s28, %s44
    %p46 = scmp.eq.s32.totalorder %s20, 0
    %p47 = por %p45, %p46
    %s49 = sadd.s32 %s48, 1
    %p52 = scmp.eq.s32.totalorder %s14, 1
    %p53 = scmp.ne.s32.totalorder %s48, %s50
    %p54 = scmp.eq.s32.totalorder %s14, 0
    %p55 = por %p53, %p54
    %p56 = scmp.ne.s32.totalorder %s48, %s50
    %p57 = scmp.eq.s32.totalorder %s19, 1
    %p58 = por %p56, %p57
    %p59 = scmp.ne.s32.totalorder %s50, %s51
    %p60 = scmp.eq.s32.totalorder %s19, 0
    %p61 = por %p59, %p60
    %p62 = scmp.ne.s32.totalorder %s50, %s51
    %p63 = scmp.eq.s32.totalorder %s20, 1
    %p64 = por %p62, %p63
    %p66 = scmp.ne.s32.totalorder %s51, %s65
    %p67 = scmp.eq.s32.totalorder %s20, 0
    %p68 = por %p66, %p67
    %s70 = sadd.s32 %s69, 1
    %p73 = scmp.eq.s32.totalorder %s14, 1
    %p74 = scmp.ne.s32.totalorder %s69, %s71
    %p75 = scmp.eq.s32.totalorder %s14, 0
    %p76 = por %p74, %p75
    %p77 = scmp.ne.s32.totalorder %s69, %s71
    %p78 = scmp.eq.s32.totalorder %s19, 1
    %p79 = por %p77, %p78
    %p80 = scmp.ne.s32.totalorder %s71, %s72
    %p81 = scmp.eq.s32.totalorder %s19, 0
    %p82 = por %p80, %p81
    %p83 = scmp.ne.s32.totalorder %s71, %s72
    %p84 = scmp.eq.s32.totalorder %s20, 1
    %p85 = por %p83, %p84
    %p87 = scmp.ne.s32.totalorder %s72, %s86
    %p88 = scmp.eq.s32.totalorder %s20, 0
    %p89 = por %p87, %p88
    %s91 = sadd.s32 %s90, 1
    %p94 = scmp.eq.s32.totalorder %s14, 1
    %p95 = scmp.ne.s32.totalorder %s90, %s92
    %p96 = scmp.eq.s32.totalorder %s14, 0
    %p97 = por %p95, %p96
    %p98 = scmp.ne.s32.totalorder %s90, %s92
    %p99 = scmp.eq.s32.totalorder %s19, 1
    %p100 = por %p98, %p99
    %p101 = scmp.ne.s32.totalorder %s92, %s93
    %p102 = scmp.eq.s32.totalorder %s19, 0
    %p103 = por %p101, %p102
    %p104 = scmp.ne.s32.totalorder %s92, %s93
    %p105 = scmp.eq.s32.totalorder %s20, 1
    %p106 = por %p104, %p105
    %p108 = scmp.ne.s32.totalorder %s93, %s107
    %p109 = scmp.eq.s32.totalorder %s20, 0
    %p110 = por %p108, %p109
    %s112 = sadd.s32 %s111, 1
    %p115 = scmp.eq.s32.totalorder %s14, 1
    %p116 = scmp.ne.s32.totalorder %s111, %s113
    %p117 = scmp.eq.s32.totalorder %s14, 0
    %p118 = por %p116, %p117
    %p119 = scmp.ne.s32.totalorder %s111, %s113
    %p120 = scmp.eq.s32.totalorder %s19, 1
    %p121 = por %p119, %p120
    %p122 = scmp.ne.s32.totalorder %s113, %s114
    %p123 = scmp.eq.s32.totalorder %s19, 0
    %p124 = por %p122, %p123
    %p125 = scmp.ne.s32.totalorder %s113, %s114
    %p126 = scmp.eq.s32.totalorder %s20, 1
    %p127 = por %p125, %p126
    %p129 = scmp.ne.s32.totalorder %s114, %s128
    %p130 = scmp.eq.s32.totalorder %s20, 0
    %p131 = por %p129, %p130
    %s133 = sadd.s32 %s132, 1
    %p136 = scmp.eq.s32.totalorder %s14, 1
    %p137 = scmp.ne.s32.totalorder %s132, %s134
    %p138 = scmp.eq.s32.totalorder %s14, 0
    %p139 = por %p137, %p138
    %p140 = scmp.ne.s32.totalorder %s132, %s134
    %p141 = scmp.eq.s32.totalorder %s19, 1
    %p142 = por %p140, %p141
    %p143 = scmp.ne.s32.totalorder %s134, %s135
    %p144 = scmp.eq.s32.totalorder %s19, 0
    %p145 = por %p143, %p144
    %p146 = scmp.ne.s32.totalorder %s134, %s135
    %p147 = scmp.eq.s32.totalorder %s20, 1
    %p148 = por %p146, %p147
    %p150 = scmp.ne.s32.totalorder %s135, %s149
    %p151 = scmp.eq.s32.totalorder %s20, 0
    %p152 = por %p150, %p151
    %s153 = ssub.s32 %s14, %s21
    %p154 = scmp.eq.s32.totalorder %s153, 0
    %s156 = sadd.s32 %s155, 1
    %s157 = scalar_select %p154, %s155, %s156
    %p160 = pneg %p154
    %p161 = scmp.eq.s32.totalorder %s14, 1
    %p162 = por %p160, %p161
    %p163 = scmp.ne.s32.totalorder %s155, %s158
    %p164 = scmp.eq.s32.totalorder %s14, 0
    %p165 = por %p163, %p164
    %p166 = scmp.ne.s32.totalorder %s155, %s158
    %p167 = scmp.eq.s32.totalorder %s19, 1
    %p168 = por %p166, %p167
    %p169 = scmp.ne.s32.totalorder %s158, %s159
    %p170 = scmp.eq.s32.totalorder %s19, 0
    %p171 = por %p169, %p170
    %p172 = scmp.ne.s32.totalorder %s158, %s159
    %p173 = scmp.eq.s32.totalorder %s20, 1
    %p174 = por %p172, %p173
    %p176 = scmp.ne.s32.totalorder %s159, %s175
    %p177 = scmp.eq.s32.totalorder %s20, 0
    %p178 = por %p176, %p177
    %s179 = ssub.s32 %s14, %s21
    %p180 = scmp.eq.s32.totalorder %s179, 0
    %s182 = sadd.s32 %s181, 1
    %s183 = scalar_select %p180, %s181, %s182
    %p186 = pneg %p180
    %p187 = scmp.eq.s32.totalorder %s14, 1
    %p188 = por %p186, %p187
    %p189 = scmp.ne.s32.totalorder %s181, %s184
    %p190 = scmp.eq.s32.totalorder %s14, 0
    %p191 = por %p189, %p190
    %p192 = scmp.ne.s32.totalorder %s181, %s184
    %p193 = scmp.eq.s32.totalorder %s19, 1
    %p194 = por %p192, %p193
    %p195 = scmp.ne.s32.totalorder %s184, %s185
    %p196 = scmp.eq.s32.totalorder %s19, 0
    %p197 = por %p195, %p196
    %p198 = scmp.ne.s32.totalorder %s184, %s185
    %p199 = scmp.eq.s32.totalorder %s20, 1
    %p200 = por %p198, %p199
    %p202 = scmp.ne.s32.totalorder %s185, %s201
    %p203 = scmp.eq.s32.totalorder %s20, 0
    %p204 = por %p202, %p203
    %p205 = scmp.le.s32.totalorder 1, %s14
    %p206 = scmp.lt.s32.totalorder %s14, 3
    %p207 = pnand %p205, %p206
    %p208 = pneg %p207
    // Predicated region
    $region9: #{base_gen_block.7} parent=5 // pred_check
      _
    $region10: #{base_gen_block.7} parent=5 // pred_check_branch
      %210 = sbr.rel (%p207) target = $region12
    $region11: #{base_gen_block.7} parent=5 // pred_region
      %s211 = ssub.s32 %s14, 1
      // Predicated region
      $region13: #{base_gen_block.7} parent=11 // pred_check
        %p212 = pneg %p61
      $region14: #{base_gen_block.7} parent=11 // pred_check_branch
        %214 = sbr.rel (%p212) target = $region16
      $region15: #{base_gen_block.7} parent=11 // pred_region
        _
      $region16: #{base_gen_block.7} parent=11 // pred_fallthru
        _
      // Predicated region
      $region17: #{base_gen_block.7} parent=11 // pred_check
        %p215 = pneg %p82
      $region18: #{base_gen_block.7} parent=11 // pred_check_branch
        %217 = sbr.rel (%p215) target = $region20
      $region19: #{base_gen_block.7} parent=11 // pred_region
        _
      $region20: #{base_gen_block.7} parent=11 // pred_fallthru
        _
      // Predicated region
      $region21: #{base_gen_block.7} parent=11 // pred_check
        %p218 = pneg %p103
      $region22: #{base_gen_block.7} parent=11 // pred_check_branch
        %220 = sbr.rel (%p218) target = $region24
      $region23: #{base_gen_block.7} parent=11 // pred_region
        _
      $region24: #{base_gen_block.7} parent=11 // pred_fallthru
        _
      // Predicated region
      $region25: #{base_gen_block.7} parent=11 // pred_check
        %p221 = pneg %p124
      $region26: #{base_gen_block.7} parent=11 // pred_check_branch
        %223 = sbr.rel (%p221) target = $region28
      $region27: #{base_gen_block.7} parent=11 // pred_region
        _
      $region28: #{base_gen_block.7} parent=11 // pred_fallthru
        _
      // Predicated region
      $region29: #{base_gen_block.7} parent=11 // pred_check
        %p224 = pneg %p145
      $region30: #{base_gen_block.7} parent=11 // pred_check_branch
        %226 = sbr.rel (%p224) target = $region32
      $region31: #{base_gen_block.7} parent=11 // pred_region
        _
      $region32: #{base_gen_block.7} parent=11 // pred_fallthru
        _
    $region12: #{base_gen_block.7} parent=5 // pred_fallthru
      _
    %p227 = scmp.lt.s32.totalorder %s14, 2
    // Predicated region
    $region33: #{base_gen_block.7} parent=5 // pred_check
      %p228 = pneg %p227
    $region34: #{base_gen_block.7} parent=5 // pred_check_branch
      %230 = sbr.rel (%p228) target = $region36
    $region35: #{base_gen_block.7} parent=5 // pred_region
      // Predicated region
      $region37: #{base_gen_block.7} parent=35 // pred_check
        %p231 = pneg %p34
      $region38: #{base_gen_block.7} parent=35 // pred_check_branch
        %233 = sbr.rel (%p231) target = $region40
      $region39: #{base_gen_block.7} parent=35 // pred_region
        %p234 = scmp.lt.s32.totalorder %s14, 1
        %s235 = scalar_select %p234, %s14, 1
        %s236 = smul.addr %s235, 8
        %s237 = smul.addr %s236, 8
        %s238 = scalar_lea.vmem %s0, %s237
      $region40: #{base_gen_block.7} parent=35 // pred_fallthru
        _
    $region36: #{base_gen_block.7} parent=5 // pred_fallthru
      _
    %p239 = scmp.le.s32.totalorder 1, %s14
    %p240 = scmp.lt.s32.totalorder %s14, 3
    %p241 = pnand %p239, %p240
    %p242 = pneg %p241
    // Predicated region
    $region41: #{base_gen_block.7} parent=5 // pred_check
      _
    $region42: #{base_gen_block.7} parent=5 // pred_check_branch
      %244 = sbr.rel (%p241) target = $region44
    $region43: #{base_gen_block.7} parent=5 // pred_region
      %s245 = ssub.s32 %s14, 1
      %p246 = scmp.lt.s32.totalorder %s19, 1
      %s247 = scalar_select %p246, %s19, 1
      %s248 = smul.addr %s247, 8
      %s249 = smul.addr %s248, 8
      %s250 = scalar_lea.vmem %s0, %s249
      %p251 = pneg %p40
      %p252 = pneg %p37
      %p253 = pneg %p61
      %p254 = pneg %p58
      %p255 = pneg %p82
      %p256 = pneg %p79
      %p257 = pneg %p103
      %p258 = pneg %p100
      %p259 = pneg %p124
      %p260 = pneg %p121
      %p261 = pneg %p145
      %p262 = pneg %p142
      %p263 = pneg %p171
      %p264 = pneg %p168
      %p265 = scmp.lt.s32.totalorder %s19, 1
      %s266 = scalar_select %p265, %s19, 1
      %s267 = smul.addr %s266, 32
      %s268 = smul.addr %s267, 8
      %s269 = scalar_lea.vmem %s6, %s268
      %p270 = pneg %p197
      %p271 = pneg %p194
      %p272 = scmp.lt.s32.totalorder %s19, 1
      %s273 = scalar_select %p272, %s19, 1
      %s274 = smul.addr %s273, 2
      %s275 = scalar_lea.vmem %s7, %s274
      %p276 = scmp.lt.s32.totalorder %s19, 1
      %s277 = scalar_select %p276, %s19, 1
      %s278 = smul.addr %s277, 8
      %s279 = smul.addr %s278, 8
      %s280 = scalar_lea.vmem %s0, %s279
      %p281 = scmp.lt.s32.totalorder %s19, 1
      %s282 = scalar_select %p281, %s19, 1
      %s283 = smul.addr %s282, 32
      %s284 = smul.addr %s283, 8
      %s285 = scalar_lea.vmem %s6, %s284
      %p286 = scmp.lt.s32.totalorder %s19, 1
      %s287 = scalar_select %p286, %s19, 1
      %s288 = smul.addr %s287, 2
      %s289 = scalar_lea.vmem %s7, %s288
      %v290 = vld [vmem:[%s1] sm:$0x1]
      %v291 = vld [vmem:[%s1 + $0x1] sm:$0x1]
      %v292 = vld [vmem:[%s2] sm:$0x1]
      %v293 = vmul.f32 %v291, %v292
      %v294 = vld [vmem:[%s3] sm:$0x1]
      %v295 = vmul.f32 %v290, %v293
      %v296 = vsub.f32 %v294, %v295
      %v297 = vld [vmem:[%s280] sm:$0xff]
      %v298 = vld [vmem:[%s280 + $0x8] sm:$0xff]
      %v299 = vld [vmem:[%s280 + $0x10] sm:$0xff]
      %v300 = vld [vmem:[%s280 + $0x18] sm:$0xff]
      %v301 = vld [vmem:[%s280 + $0x20] sm:$0xff]
      %v302 = vld [vmem:[%s280 + $0x28] sm:$0xff]
      %v303 = vld [vmem:[%s280 + $0x30] sm:$0xff]
      %v304 = vld [vmem:[%s280 + $0x38] sm:$0xff]
      %v305 = vlaneseq
      %v306 = vshrl.u32 %v305, 7
      %v307 = vsub.s32 0, %v306
      %v308 = vrot.slane %v293, %v307
      %v309 = vmul.f32 %v297, %v308
      %v310 = vmul.f32 %v298, %v308
      %v311 = vmul.f32 %v299, %v308
      %v312 = vmul.f32 %v300, %v308
      %v313 = vmul.f32 %v301, %v308
      %v314 = vmul.f32 %v302, %v308
      %v315 = vmul.f32 %v303, %v308
      %v316 = vmul.f32 %v304, %v308
      %v318 = vlaneseq
      %v319 = vshrl.u32 %v318, 7
      %v320 = vsub.s32 0, %v319
      %v321 = vrot.slane %v296, %v320
      %v323 = vadd.f32 %v309, %v321
      %v324 = vadd.f32 %v310, %v321
      %v325 = vadd.f32 %v311, %v321
      %v326 = vadd.f32 %v312, %v321
      %v327 = vadd.f32 %v313, %v321
      %v328 = vadd.f32 %v314, %v321
      %v329 = vadd.f32 %v315, %v321
      %v330 = vadd.f32 %v316, %v321
      %v331 = vmax.f32 %v323, 0.0
      %v332 = vmax.f32 %v324, 0.0
      %v333 = vmax.f32 %v325, 0.0
      %v334 = vmax.f32 %v326, 0.0
      %v335 = vmax.f32 %v327, 0.0
      %v336 = vmax.f32 %v328, 0.0
      %v337 = vmax.f32 %v329, 0.0
      %v338 = vmax.f32 %v330, 0.0
      %vm339 = vcmask 523264
      %340 = vst.msk [vmem:[#allocation2] sm:$0xff] %vm339, 0.0
      %vm341 = vcmask 517120
      %342 = vst.msk [vmem:[#allocation2 + $0x8] sm:$0x3] %vm341, 0.0
      %s343 = scalar_lea.vmem [#allocation2], 272
      %344 = vst.msk [vmem:[%s343] sm:$0xff] %vm339, 0.0
      %345 = vst.msk [vmem:[%s343 + $0x8] sm:$0x3] %vm341, 0.0
      %vm346 = vcmask 516096
      %347 = vst.msk [vmem:[#allocation2] sm:$0x1] %vm346, 0.0
      %348 = vst.msk [vmem:[#allocation2 + $0x10] sm:$0x1] %vm346, 0.0
      %349 = vst.msk [vmem:[#allocation2 + $0x20] sm:$0x1] %vm346, 0.0
      %350 = vst.msk [vmem:[#allocation2 + $0x30] sm:$0x1] %vm346, 0.0
      %351 = vst.msk [vmem:[#allocation2 + $0x40] sm:$0x1] %vm346, 0.0
      %352 = vst.msk [vmem:[#allocation2 + $0x50] sm:$0x1] %vm346, 0.0
      %353 = vst.msk [vmem:[#allocation2 + $0x60] sm:$0x1] %vm346, 0.0
      %354 = vst.msk [vmem:[#allocation2 + $0x70] sm:$0x1] %vm346, 0.0
      %355 = vst.msk [vmem:[#allocation2 + $0x80] sm:$0x1] %vm346, 0.0
      %356 = vst.msk [vmem:[#allocation2 + $0x90] sm:$0x1] %vm346, 0.0
      %357 = vst.msk [vmem:[#allocation2 + $0xa0] sm:$0x1] %vm346, 0.0
      %358 = vst.msk [vmem:[#allocation2 + $0xb0] sm:$0x1] %vm346, 0.0
      %359 = vst.msk [vmem:[#allocation2 + $0xc0] sm:$0x1] %vm346, 0.0
      %360 = vst.msk [vmem:[#allocation2 + $0xd0] sm:$0x1] %vm346, 0.0
      %361 = vst.msk [vmem:[#allocation2 + $0xe0] sm:$0x1] %vm346, 0.0
      %362 = vst.msk [vmem:[#allocation2 + $0xf0] sm:$0x1] %vm346, 0.0
      %363 = vst.msk [vmem:[#allocation2 + $0x100] sm:$0x1] %vm346, 0.0
      %364 = vst.msk [vmem:[#allocation2 + $0x110] sm:$0x1] %vm346, 0.0
      %365 = vst.msk [vmem:[#allocation2 + $0x9] sm:$0x1] %vm346, 0.0
      %366 = vst.msk [vmem:[#allocation2 + $0x19] sm:$0x1] %vm346, 0.0
      %367 = vst.msk [vmem:[#allocation2 + $0x29] sm:$0x1] %vm346, 0.0
      %368 = vst.msk [vmem:[#allocation2 + $0x39] sm:$0x1] %vm346, 0.0
      %369 = vst.msk [vmem:[#allocation2 + $0x49] sm:$0x1] %vm346, 0.0
      %370 = vst.msk [vmem:[#allocation2 + $0x59] sm:$0x1] %vm346, 0.0
      %371 = vst.msk [vmem:[#allocation2 + $0x69] sm:$0x1] %vm346, 0.0
      %372 = vst.msk [vmem:[#allocation2 + $0x79] sm:$0x1] %vm346, 0.0
      %373 = vst.msk [vmem:[#allocation2 + $0x89] sm:$0x1] %vm346, 0.0
      %374 = vst.msk [vmem:[#allocation2 + $0x99] sm:$0x1] %vm346, 0.0
      %375 = vst.msk [vmem:[#allocation2 + $0xa9] sm:$0x1] %vm346, 0.0
      %376 = vst.msk [vmem:[#allocation2 + $0xb9] sm:$0x1] %vm346, 0.0
      %377 = vst.msk [vmem:[#allocation2 + $0xc9] sm:$0x1] %vm346, 0.0
      %378 = vst.msk [vmem:[#allocation2 + $0xd9] sm:$0x1] %vm346, 0.0
      %379 = vst.msk [vmem:[#allocation2 + $0xe9] sm:$0x1] %vm346, 0.0
      %380 = vst.msk [vmem:[#allocation2 + $0xf9] sm:$0x1] %vm346, 0.0
      %381 = vst.msk [vmem:[#allocation2 + $0x109] sm:$0x1] %vm346, 0.0
      %382 = vst.msk [vmem:[#allocation2 + $0x119] sm:$0x1] %vm346, 0.0
      %s383 = scalar_lea.vmem [#allocation2], 16
      %384 = vst.msk [vmem:[%s383 + $0x1] sm:$0xff] %vm339, %v331
      %385 = vst.msk [vmem:[%s383 + $0x11] sm:$0xff] %vm339, %v331
      %386 = vst.msk [vmem:[%s383 + $0x21] sm:$0xff] %vm339, %v332
      %387 = vst.msk [vmem:[%s383 + $0x31] sm:$0xff] %vm339, %v332
      %388 = vst.msk [vmem:[%s383 + $0x41] sm:$0xff] %vm339, %v333
      %389 = vst.msk [vmem:[%s383 + $0x51] sm:$0xff] %vm339, %v333
      %390 = vst.msk [vmem:[%s383 + $0x61] sm:$0xff] %vm339, %v334
      %391 = vst.msk [vmem:[%s383 + $0x71] sm:$0xff] %vm339, %v334
      %392 = vst.msk [vmem:[%s383 + $0x81] sm:$0xff] %vm339, %v335
      %393 = vst.msk [vmem:[%s383 + $0x91] sm:$0xff] %vm339, %v335
      %394 = vst.msk [vmem:[%s383 + $0xa1] sm:$0xff] %vm339, %v336
      %395 = vst.msk [vmem:[%s383 + $0xb1] sm:$0xff] %vm339, %v336
      %396 = vst.msk [vmem:[%s383 + $0xc1] sm:$0xff] %vm339, %v337
      %397 = vst.msk [vmem:[%s383 + $0xd1] sm:$0xff] %vm339, %v337
      %398 = vst.msk [vmem:[%s383 + $0xe1] sm:$0xff] %vm339, %v338
      %399 = vst.msk [vmem:[%s383 + $0xf1] sm:$0xff] %vm339, %v338
      %v400 = vld [vmem:[#allocation2] sm:$0xff]
      %v401 = vld [vmem:[#allocation2 + $0x10] sm:$0xff]
      %v402 = vld [vmem:[#allocation2 + $0x20] sm:$0xff]
      %v403 = vld [vmem:[#allocation2 + $0x30] sm:$0xff]
      %v404 = vld [vmem:[#allocation2 + $0x40] sm:$0xff]
      %v405 = vld [vmem:[#allocation2 + $0x50] sm:$0xff]
      %v406 = vld [vmem:[#allocation2 + $0x60] sm:$0xff]
      %v407 = vld [vmem:[#allocation2 + $0x70] sm:$0xff]
      %v408 = vld [vmem:[#allocation2 + $0x80] sm:$0xff]
      %v409 = vld [vmem:[#allocation2 + $0x90] sm:$0xff]
      %v410 = vld [vmem:[#allocation2 + $0xa0] sm:$0xff]
      %v411 = vld [vmem:[#allocation2 + $0xb0] sm:$0xff]
      %v412 = vld [vmem:[#allocation2 + $0xc0] sm:$0xff]
      %v413 = vld [vmem:[#allocation2 + $0xd0] sm:$0xff]
      %v414 = vld [vmem:[#allocation2 + $0xe0] sm:$0xff]
      %v415 = vld [vmem:[#allocation2 + $0xf0] sm:$0xff]
      %416 = vst.msk [vmem:[#allocation3] sm:$0xff] %vm339, %v400
      %417 = vst.msk [vmem:[#allocation3 + $0x18] sm:$0xff] %vm339, %v401
      %418 = vst.msk [vmem:[#allocation3 + $0x30] sm:$0xff] %vm339, %v402
      %419 = vst.msk [vmem:[#allocation3 + $0x48] sm:$0xff] %vm339, %v403
      %420 = vst.msk [vmem:[#allocation3 + $0x60] sm:$0xff] %vm339, %v404
      %421 = vst.msk [vmem:[#allocation3 + $0x78] sm:$0xff] %vm339, %v405
      %422 = vst.msk [vmem:[#allocation3 + $0x90] sm:$0xff] %vm339, %v406
      %423 = vst.msk [vmem:[#allocation3 + $0xa8] sm:$0xff] %vm339, %v407
      %424 = vst.msk [vmem:[#allocation3 + $0xc0] sm:$0xff] %vm339, %v408
      %425 = vst.msk [vmem:[#allocation3 + $0xd8] sm:$0xff] %vm339, %v409
      %426 = vst.msk [vmem:[#allocation3 + $0xf0] sm:$0xff] %vm339, %v410
      %427 = vst.msk [vmem:[#allocation3 + $0x108] sm:$0xff] %vm339, %v411
      %428 = vst.msk [vmem:[#allocation3 + $0x120] sm:$0xff] %vm339, %v412
      %429 = vst.msk [vmem:[#allocation3 + $0x138] sm:$0xff] %vm339, %v413
      %430 = vst.msk [vmem:[#allocation3 + $0x150] sm:$0xff] %vm339, %v414
      %431 = vst.msk [vmem:[#allocation3 + $0x168] sm:$0xff] %vm339, %v415
      %v432 = vld [vmem:[#allocation2 + $0x1] sm:$0xff]
      %v433 = vld [vmem:[#allocation2 + $0x11] sm:$0xff]
      %v434 = vld [vmem:[#allocation2 + $0x21] sm:$0xff]
      %v435 = vld [vmem:[#allocation2 + $0x31] sm:$0xff]
      %v436 = vld [vmem:[#allocation2 + $0x41] sm:$0xff]
      %v437 = vld [vmem:[#allocation2 + $0x51] sm:$0xff]
      %v438 = vld [vmem:[#allocation2 + $0x61] sm:$0xff]
      %v439 = vld [vmem:[#allocation2 + $0x71] sm:$0xff]
      %v440 = vld [vmem:[#allocation2 + $0x81] sm:$0xff]
      %v441 = vld [vmem:[#allocation2 + $0x91] sm:$0xff]
      %v442 = vld [vmem:[#allocation2 + $0xa1] sm:$0xff]
      %v443 = vld [vmem:[#allocation2 + $0xb1] sm:$0xff]
      %v444 = vld [vmem:[#allocation2 + $0xc1] sm:$0xff]
      %v445 = vld [vmem:[#allocation2 + $0xd1] sm:$0xff]
      %v446 = vld [vmem:[#allocation2 + $0xe1] sm:$0xff]
      %v447 = vld [vmem:[#allocation2 + $0xf1] sm:$0xff]
      %464 = vrot.lane.b32.xlu0 %v432, 64
      %v465 = vpop.permute.xlu0 %464
      %466 = vrot.lane.b32.xlu0 %v433, 64
      %v467 = vpop.permute.xlu0 %466
      %468 = vrot.lane.b32.xlu0 %v434, 64
      %v469 = vpop.permute.xlu0 %468
      %470 = vrot.lane.b32.xlu0 %v435, 64
      %v471 = vpop.permute.xlu0 %470
      %472 = vrot.lane.b32.xlu0 %v436, 64
      %v473 = vpop.permute.xlu0 %472
      %474 = vrot.lane.b32.xlu0 %v437, 64
      %v475 = vpop.permute.xlu0 %474
      %476 = vrot.lane.b32.xlu0 %v438, 64
      %v477 = vpop.permute.xlu0 %476
      %478 = vrot.lane.b32.xlu0 %v439, 64
      %v479 = vpop.permute.xlu0 %478
      %480 = vrot.lane.b32.xlu0 %v440, 64
      %v481 = vpop.permute.xlu0 %480
      %482 = vrot.lane.b32.xlu0 %v441, 64
      %v483 = vpop.permute.xlu0 %482
      %484 = vrot.lane.b32.xlu0 %v442, 64
      %v485 = vpop.permute.xlu0 %484
      %486 = vrot.lane.b32.xlu0 %v443, 64
      %v487 = vpop.permute.xlu0 %486
      %488 = vrot.lane.b32.xlu0 %v444, 64
      %v489 = vpop.permute.xlu0 %488
      %490 = vrot.lane.b32.xlu0 %v445, 64
      %v491 = vpop.permute.xlu0 %490
      %492 = vrot.lane.b32.xlu0 %v446, 64
      %v493 = vpop.permute.xlu0 %492
      %494 = vrot.lane.b32.xlu0 %v447, 64
      %v495 = vpop.permute.xlu0 %494
      %vm512 = vcmask 1048064
      %513 = vst.msk [vmem:[#allocation3] sm:$0xff] %vm512, %v465
      %514 = vst.msk [vmem:[#allocation3 + $0x18] sm:$0xff] %vm512, %v467
      %515 = vst.msk [vmem:[#allocation3 + $0x30] sm:$0xff] %vm512, %v469
      %516 = vst.msk [vmem:[#allocation3 + $0x48] sm:$0xff] %vm512, %v471
      %517 = vst.msk [vmem:[#allocation3 + $0x60] sm:$0xff] %vm512, %v473
      %518 = vst.msk [vmem:[#allocation3 + $0x78] sm:$0xff] %vm512, %v475
      %519 = vst.msk [vmem:[#allocation3 + $0x90] sm:$0xff] %vm512, %v477
      %520 = vst.msk [vmem:[#allocation3 + $0xa8] sm:$0xff] %vm512, %v479
      %521 = vst.msk [vmem:[#allocation3 + $0xc0] sm:$0xff] %vm512, %v481
      %522 = vst.msk [vmem:[#allocation3 + $0xd8] sm:$0xff] %vm512, %v483
      %523 = vst.msk [vmem:[#allocation3 + $0xf0] sm:$0xff] %vm512, %v485
      %524 = vst.msk [vmem:[#allocation3 + $0x108] sm:$0xff] %vm512, %v487
      %525 = vst.msk [vmem:[#allocation3 + $0x120] sm:$0xff] %vm512, %v489
      %526 = vst.msk [vmem:[#allocation3 + $0x138] sm:$0xff] %vm512, %v491
      %527 = vst.msk [vmem:[#allocation3 + $0x150] sm:$0xff] %vm512, %v493
      %528 = vst.msk [vmem:[#allocation3 + $0x168] sm:$0xff] %vm512, %v495
      %v529 = vld [vmem:[%s383] sm:$0xff]
      %v530 = vld [vmem:[%s383 + $0x10] sm:$0xff]
      %v531 = vld [vmem:[%s383 + $0x20] sm:$0xff]
      %v532 = vld [vmem:[%s383 + $0x30] sm:$0xff]
      %v533 = vld [vmem:[%s383 + $0x40] sm:$0xff]
      %v534 = vld [vmem:[%s383 + $0x50] sm:$0xff]
      %v535 = vld [vmem:[%s383 + $0x60] sm:$0xff]
      %v536 = vld [vmem:[%s383 + $0x70] sm:$0xff]
      %v537 = vld [vmem:[%s383 + $0x80] sm:$0xff]
      %v538 = vld [vmem:[%s383 + $0x90] sm:$0xff]
      %v539 = vld [vmem:[%s383 + $0xa0] sm:$0xff]
      %v540 = vld [vmem:[%s383 + $0xb0] sm:$0xff]
      %v541 = vld [vmem:[%s383 + $0xc0] sm:$0xff]
      %v542 = vld [vmem:[%s383 + $0xd0] sm:$0xff]
      %v543 = vld [vmem:[%s383 + $0xe0] sm:$0xff]
      %v544 = vld [vmem:[%s383 + $0xf0] sm:$0xff]
      %545 = vst.msk [vmem:[#allocation3 + $0x8] sm:$0xff] %vm339, %v529
      %546 = vst.msk [vmem:[#allocation3 + $0x20] sm:$0xff] %vm339, %v530
      %547 = vst.msk [vmem:[#allocation3 + $0x38] sm:$0xff] %vm339, %v531
      %548 = vst.msk [vmem:[#allocation3 + $0x50] sm:$0xff] %vm339, %v532
      %549 = vst.msk [vmem:[#allocation3 + $0x68] sm:$0xff] %vm339, %v533
      %550 = vst.msk [vmem:[#allocation3 + $0x80] sm:$0xff] %vm339, %v534
      %551 = vst.msk [vmem:[#allocation3 + $0x98] sm:$0xff] %vm339, %v535
      %552 = vst.msk [vmem:[#allocation3 + $0xb0] sm:$0xff] %vm339, %v536
      %553 = vst.msk [vmem:[#allocation3 + $0xc8] sm:$0xff] %vm339, %v537
      %554 = vst.msk [vmem:[#allocation3 + $0xe0] sm:$0xff] %vm339, %v538
      %555 = vst.msk [vmem:[#allocation3 + $0xf8] sm:$0xff] %vm339, %v539
      %556 = vst.msk [vmem:[#allocation3 + $0x110] sm:$0xff] %vm339, %v540
      %557 = vst.msk [vmem:[#allocation3 + $0x128] sm:$0xff] %vm339, %v541
      %558 = vst.msk [vmem:[#allocation3 + $0x140] sm:$0xff] %vm339, %v542
      %559 = vst.msk [vmem:[#allocation3 + $0x158] sm:$0xff] %vm339, %v543
      %560 = vst.msk [vmem:[#allocation3 + $0x170] sm:$0xff] %vm339, %v544
      %v561 = vld [vmem:[%s383 + $0x1] sm:$0xff]
      %v562 = vld [vmem:[%s383 + $0x11] sm:$0xff]
      %v563 = vld [vmem:[%s383 + $0x21] sm:$0xff]
      %v564 = vld [vmem:[%s383 + $0x31] sm:$0xff]
      %v565 = vld [vmem:[%s383 + $0x41] sm:$0xff]
      %v566 = vld [vmem:[%s383 + $0x51] sm:$0xff]
      %v567 = vld [vmem:[%s383 + $0x61] sm:$0xff]
      %v568 = vld [vmem:[%s383 + $0x71] sm:$0xff]
      %v569 = vld [vmem:[%s383 + $0x81] sm:$0xff]
      %v570 = vld [vmem:[%s383 + $0x91] sm:$0xff]
      %v571 = vld [vmem:[%s383 + $0xa1] sm:$0xff]
      %v572 = vld [vmem:[%s383 + $0xb1] sm:$0xff]
      %v573 = vld [vmem:[%s383 + $0xc1] sm:$0xff]
      %v574 = vld [vmem:[%s383 + $0xd1] sm:$0xff]
      %v575 = vld [vmem:[%s383 + $0xe1] sm:$0xff]
      %v576 = vld [vmem:[%s383 + $0xf1] sm:$0xff]
      %593 = vrot.lane.b32.xlu0 %v561, 64
      %v594 = vpop.permute.xlu0 %593
      %595 = vrot.lane.b32.xlu0 %v562, 64
      %v596 = vpop.permute.xlu0 %595
      %597 = vrot.lane.b32.xlu0 %v563, 64
      %v598 = vpop.permute.xlu0 %597
      %599 = vrot.lane.b32.xlu0 %v564, 64
      %v600 = vpop.permute.xlu0 %599
      %601 = vrot.lane.b32.xlu0 %v565, 64
      %v602 = vpop.permute.xlu0 %601
      %603 = vrot.lane.b32.xlu0 %v566, 64
      %v604 = vpop.permute.xlu0 %603
      %605 = vrot.lane.b32.xlu0 %v567, 64
      %v606 = vpop.permute.xlu0 %605
      %607 = vrot.lane.b32.xlu0 %v568, 64
      %v608 = vpop.permute.xlu0 %607
      %609 = vrot.lane.b32.xlu0 %v569, 64
      %v610 = vpop.permute.xlu0 %609
      %611 = vrot.lane.b32.xlu0 %v570, 64
      %v612 = vpop.permute.xlu0 %611
      %613 = vrot.lane.b32.xlu0 %v571, 64
      %v614 = vpop.permute.xlu0 %613
      %615 = vrot.lane.b32.xlu0 %v572, 64
      %v616 = vpop.permute.xlu0 %615
      %617 = vrot.lane.b32.xlu0 %v573, 64
      %v618 = vpop.permute.xlu0 %617
      %619 = vrot.lane.b32.xlu0 %v574, 64
      %v620 = vpop.permute.xlu0 %619
      %621 = vrot.lane.b32.xlu0 %v575, 64
      %v622 = vpop.permute.xlu0 %621
      %623 = vrot.lane.b32.xlu0 %v576, 64
      %v624 = vpop.permute.xlu0 %623
      %641 = vst.msk [vmem:[#allocation3 + $0x8] sm:$0xff] %vm512, %v594
      %642 = vst.msk [vmem:[#allocation3 + $0x20] sm:$0xff] %vm512, %v596
      %643 = vst.msk [vmem:[#allocation3 + $0x38] sm:$0xff] %vm512, %v598
      %644 = vst.msk [vmem:[#allocation3 + $0x50] sm:$0xff] %vm512, %v600
      %645 = vst.msk [vmem:[#allocation3 + $0x68] sm:$0xff] %vm512, %v602
      %646 = vst.msk [vmem:[#allocation3 + $0x80] sm:$0xff] %vm512, %v604
      %647 = vst.msk [vmem:[#allocation3 + $0x98] sm:$0xff] %vm512, %v606
      %648 = vst.msk [vmem:[#allocation3 + $0xb0] sm:$0xff] %vm512, %v608
      %649 = vst.msk [vmem:[#allocation3 + $0xc8] sm:$0xff] %vm512, %v610
      %650 = vst.msk [vmem:[#allocation3 + $0xe0] sm:$0xff] %vm512, %v612
      %651 = vst.msk [vmem:[#allocation3 + $0xf8] sm:$0xff] %vm512, %v614
      %652 = vst.msk [vmem:[#allocation3 + $0x110] sm:$0xff] %vm512, %v616
      %653 = vst.msk [vmem:[#allocation3 + $0x128] sm:$0xff] %vm512, %v618
      %654 = vst.msk [vmem:[#allocation3 + $0x140] sm:$0xff] %vm512, %v620
      %655 = vst.msk [vmem:[#allocation3 + $0x158] sm:$0xff] %vm512, %v622
      %656 = vst.msk [vmem:[#allocation3 + $0x170] sm:$0xff] %vm512, %v624
      %s657 = scalar_lea.vmem [#allocation2], 32
      %v658 = vld [vmem:[%s657] sm:$0xff]
      %v659 = vld [vmem:[%s657 + $0x10] sm:$0xff]
      %v660 = vld [vmem:[%s657 + $0x20] sm:$0xff]
      %v661 = vld [vmem:[%s657 + $0x30] sm:$0xff]
      %v662 = vld [vmem:[%s657 + $0x40] sm:$0xff]
      %v663 = vld [vmem:[%s657 + $0x50] sm:$0xff]
      %v664 = vld [vmem:[%s657 + $0x60] sm:$0xff]
      %v665 = vld [vmem:[%s657 + $0x70] sm:$0xff]
      %v666 = vld [vmem:[%s657 + $0x80] sm:$0xff]
      %v667 = vld [vmem:[%s657 + $0x90] sm:$0xff]
      %v668 = vld [vmem:[%s657 + $0xa0] sm:$0xff]
      %v669 = vld [vmem:[%s657 + $0xb0] sm:$0xff]
      %v670 = vld [vmem:[%s657 + $0xc0] sm:$0xff]
      %v671 = vld [vmem:[%s657 + $0xd0] sm:$0xff]
      %v672 = vld [vmem:[%s657 + $0xe0] sm:$0xff]
      %v673 = vld [vmem:[%s657 + $0xf0] sm:$0xff]
      %674 = vst.msk [vmem:[#allocation3 + $0x10] sm:$0xff] %vm339, %v658
      %675 = vst.msk [vmem:[#allocation3 + $0x28] sm:$0xff] %vm339, %v659
      %676 = vst.msk [vmem:[#allocation3 + $0x40] sm:$0xff] %vm339, %v660
      %677 = vst.msk [vmem:[#allocation3 + $0x58] sm:$0xff] %vm339, %v661
      %678 = vst.msk [vmem:[#allocation3 + $0x70] sm:$0xff] %vm339, %v662
      %679 = vst.msk [vmem:[#allocation3 + $0x88] sm:$0xff] %vm339, %v663
      %680 = vst.msk [vmem:[#allocation3 + $0xa0] sm:$0xff] %vm339, %v664
      %681 = vst.msk [vmem:[#allocation3 + $0xb8] sm:$0xff] %vm339, %v665
      %682 = vst.msk [vmem:[#allocation3 + $0xd0] sm:$0xff] %vm339, %v666
      %683 = vst.msk [vmem:[#allocation3 + $0xe8] sm:$0xff] %vm339, %v667
      %684 = vst.msk [vmem:[#allocation3 + $0x100] sm:$0xff] %vm339, %v668
      %685 = vst.msk [vmem:[#allocation3 + $0x118] sm:$0xff] %vm339, %v669
      %686 = vst.msk [vmem:[#allocation3 + $0x130] sm:$0xff] %vm339, %v670
      %687 = vst.msk [vmem:[#allocation3 + $0x148] sm:$0xff] %vm339, %v671
      %688 = vst.msk [vmem:[#allocation3 + $0x160] sm:$0xff] %vm339, %v672
      %689 = vst.msk [vmem:[#allocation3 + $0x178] sm:$0xff] %vm339, %v673
      %v690 = vld [vmem:[%s657 + $0x1] sm:$0xff]
      %v691 = vld [vmem:[%s657 + $0x11] sm:$0xff]
      %v692 = vld [vmem:[%s657 + $0x21] sm:$0xff]
      %v693 = vld [vmem:[%s657 + $0x31] sm:$0xff]
      %v694 = vld [vmem:[%s657 + $0x41] sm:$0xff]
      %v695 = vld [vmem:[%s657 + $0x51] sm:$0xff]
      %v696 = vld [vmem:[%s657 + $0x61] sm:$0xff]
      %v697 = vld [vmem:[%s657 + $0x71] sm:$0xff]
      %v698 = vld [vmem:[%s657 + $0x81] sm:$0xff]
      %v699 = vld [vmem:[%s657 + $0x91] sm:$0xff]
      %v700 = vld [vmem:[%s657 + $0xa1] sm:$0xff]
      %v701 = vld [vmem:[%s657 + $0xb1] sm:$0xff]
      %v702 = vld [vmem:[%s657 + $0xc1] sm:$0xff]
      %v703 = vld [vmem:[%s657 + $0xd1] sm:$0xff]
      %v704 = vld [vmem:[%s657 + $0xe1] sm:$0xff]
      %v705 = vld [vmem:[%s657 + $0xf1] sm:$0xff]
      %722 = vrot.lane.b32.xlu0 %v690, 64
      %v723 = vpop.permute.xlu0 %722
      %724 = vrot.lane.b32.xlu0 %v691, 64
      %v725 = vpop.permute.xlu0 %724
      %726 = vrot.lane.b32.xlu0 %v692, 64
      %v727 = vpop.permute.xlu0 %726
      %728 = vrot.lane.b32.xlu0 %v693, 64
      %v729 = vpop.permute.xlu0 %728
      %730 = vrot.lane.b32.xlu0 %v694, 64
      %v731 = vpop.permute.xlu0 %730
      %732 = vrot.lane.b32.xlu0 %v695, 64
      %v733 = vpop.permute.xlu0 %732
      %734 = vrot.lane.b32.xlu0 %v696, 64
      %v735 = vpop.permute.xlu0 %734
      %736 = vrot.lane.b32.xlu0 %v697, 64
      %v737 = vpop.permute.xlu0 %736
      %738 = vrot.lane.b32.xlu0 %v698, 64
      %v739 = vpop.permute.xlu0 %738
      %740 = vrot.lane.b32.xlu0 %v699, 64
      %v741 = vpop.permute.xlu0 %740
      %742 = vrot.lane.b32.xlu0 %v700, 64
      %v743 = vpop.permute.xlu0 %742
      %744 = vrot.lane.b32.xlu0 %v701, 64
      %v745 = vpop.permute.xlu0 %744
      %746 = vrot.lane.b32.xlu0 %v702, 64
      %v747 = vpop.permute.xlu0 %746
      %748 = vrot.lane.b32.xlu0 %v703, 64
      %v749 = vpop.permute.xlu0 %748
      %750 = vrot.lane.b32.xlu0 %v704, 64
      %v751 = vpop.permute.xlu0 %750
      %752 = vrot.lane.b32.xlu0 %v705, 64
      %v753 = vpop.permute.xlu0 %752
      %770 = vst.msk [vmem:[#allocation3 + $0x10] sm:$0xff] %vm512, %v723
      %771 = vst.msk [vmem:[#allocation3 + $0x28] sm:$0xff] %vm512, %v725
      %772 = vst.msk [vmem:[#allocation3 + $0x40] sm:$0xff] %vm512, %v727
      %773 = vst.msk [vmem:[#allocation3 + $0x58] sm:$0xff] %vm512, %v729
      %774 = vst.msk [vmem:[#allocation3 + $0x70] sm:$0xff] %vm512, %v731
      %775 = vst.msk [vmem:[#allocation3 + $0x88] sm:$0xff] %vm512, %v733
      %776 = vst.msk [vmem:[#allocation3 + $0xa0] sm:$0xff] %vm512, %v735
      %777 = vst.msk [vmem:[#allocation3 + $0xb8] sm:$0xff] %vm512, %v737
      %778 = vst.msk [vmem:[#allocation3 + $0xd0] sm:$0xff] %vm512, %v739
      %779 = vst.msk [vmem:[#allocation3 + $0xe8] sm:$0xff] %vm512, %v741
      %780 = vst.msk [vmem:[#allocation3 + $0x100] sm:$0xff] %vm512, %v743
      %781 = vst.msk [vmem:[#allocation3 + $0x118] sm:$0xff] %vm512, %v745
      %782 = vst.msk [vmem:[#allocation3 + $0x130] sm:$0xff] %vm512, %v747
      %783 = vst.msk [vmem:[#allocation3 + $0x148] sm:$0xff] %vm512, %v749
      %784 = vst.msk [vmem:[#allocation3 + $0x160] sm:$0xff] %vm512, %v751
      %785 = vst.msk [vmem:[#allocation3 + $0x178] sm:$0xff] %vm512, %v753
      %v786 = vld [vmem:[#allocation3] sm:$0xff]
      %v787 = vld [vmem:[#allocation3 + $0x8] sm:$0xff]
      %v788 = vld [vmem:[#allocation3 + $0x10] sm:$0xff]
      %v789 = vld [vmem:[#allocation3 + $0x18] sm:$0xff]
      %v790 = vld [vmem:[#allocation3 + $0x20] sm:$0xff]
      %v791 = vld [vmem:[#allocation3 + $0x28] sm:$0xff]
      %v792 = vld [vmem:[#allocation3 + $0x30] sm:$0xff]
      %v793 = vld [vmem:[#allocation3 + $0x38] sm:$0xff]
      %v794 = vld [vmem:[#allocation3 + $0x40] sm:$0xff]
      %v795 = vld [vmem:[#allocation3 + $0x48] sm:$0xff]
      %v796 = vld [vmem:[#allocation3 + $0x50] sm:$0xff]
      %v797 = vld [vmem:[#allocation3 + $0x58] sm:$0xff]
      %v798 = vld [vmem:[#allocation3 + $0x60] sm:$0xff]
      %v799 = vld [vmem:[#allocation3 + $0x68] sm:$0xff]
      %v800 = vld [vmem:[#allocation3 + $0x70] sm:$0xff]
      %v801 = vld [vmem:[#allocation3 + $0x78] sm:$0xff]
      %v802 = vld [vmem:[#allocation3 + $0x80] sm:$0xff]
      %v803 = vld [vmem:[#allocation3 + $0x88] sm:$0xff]
      %v804 = vld [vmem:[#allocation3 + $0x90] sm:$0xff]
      %v805 = vld [vmem:[#allocation3 + $0x98] sm:$0xff]
      %v806 = vld [vmem:[#allocation3 + $0xa0] sm:$0xff]
      %v807 = vld [vmem:[#allocation3 + $0xa8] sm:$0xff]
      %v808 = vld [vmem:[#allocation3 + $0xb0] sm:$0xff]
      %v809 = vld [vmem:[#allocation3 + $0xb8] sm:$0xff]
      %v810 = vld [vmem:[#allocation3 + $0xc0] sm:$0xff]
      %v811 = vld [vmem:[#allocation3 + $0xc8] sm:$0xff]
      %v812 = vld [vmem:[#allocation3 + $0xd0] sm:$0xff]
      %v813 = vld [vmem:[#allocation3 + $0xd8] sm:$0xff]
      %v814 = vld [vmem:[#allocation3 + $0xe0] sm:$0xff]
      %v815 = vld [vmem:[#allocation3 + $0xe8] sm:$0xff]
      %v816 = vld [vmem:[#allocation3 + $0xf0] sm:$0xff]
      %v817 = vld [vmem:[#allocation3 + $0xf8] sm:$0xff]
      %v818 = vld [vmem:[#allocation3 + $0x100] sm:$0xff]
      %v819 = vld [vmem:[#allocation3 + $0x108] sm:$0xff]
      %v820 = vld [vmem:[#allocation3 + $0x110] sm:$0xff]
      %v821 = vld [vmem:[#allocation3 + $0x118] sm:$0xff]
      %v822 = vld [vmem:[#allocation3 + $0x120] sm:$0xff]
      %v823 = vld [vmem:[#allocation3 + $0x128] sm:$0xff]
      %v824 = vld [vmem:[#allocation3 + $0x130] sm:$0xff]
      %v825 = vld [vmem:[#allocation3 + $0x138] sm:$0xff]
      %v826 = vld [vmem:[#allocation3 + $0x140] sm:$0xff]
      %v827 = vld [vmem:[#allocation3 + $0x148] sm:$0xff]
      %v828 = vld [vmem:[#allocation3 + $0x150] sm:$0xff]
      %v829 = vld [vmem:[#allocation3 + $0x158] sm:$0xff]
      %v830 = vld [vmem:[#allocation3 + $0x160] sm:$0xff]
      %v831 = vld [vmem:[#allocation3 + $0x168] sm:$0xff]
      %v832 = vld [vmem:[#allocation3 + $0x170] sm:$0xff]
      %v833 = vld [vmem:[#allocation3 + $0x178] sm:$0xff]
      %v834 = vld [vmem:[%s4] sm:$0xff]
      %v835 = vld [vmem:[%s4 + $0x8] sm:$0xff]
      %v836 = vld [vmem:[%s4 + $0x10] sm:$0xff]
      %v837 = vld [vmem:[%s4 + $0x18] sm:$0xff]
      %v838 = vld [vmem:[%s4 + $0x20] sm:$0xff]
      %v839 = vld [vmem:[%s4 + $0x28] sm:$0xff]
      %v840 = vld [vmem:[%s4 + $0x30] sm:$0xff]
      %v841 = vld [vmem:[%s4 + $0x38] sm:$0xff]
      %v842 = vld [vmem:[%s4 + $0x40] sm:$0xff]
      %v843 = vld [vmem:[%s4 + $0x48] sm:$0xff]
      %v844 = vld [vmem:[%s4 + $0x50] sm:$0xff]
      %v845 = vld [vmem:[%s4 + $0x58] sm:$0xff]
      %v846 = vld [vmem:[%s4 + $0x60] sm:$0xff]
      %v847 = vld [vmem:[%s4 + $0x68] sm:$0xff]
      %v848 = vld [vmem:[%s4 + $0x70] sm:$0xff]
      %v849 = vld [vmem:[%s4 + $0x78] sm:$0xff]
      %v850 = vld [vmem:[%s4 + $0x80] sm:$0xff]
      %v851 = vld [vmem:[%s4 + $0x88] sm:$0xff]
      %v852 = vld [vmem:[%s4 + $0x90] sm:$0xff]
      %v853 = vld [vmem:[%s4 + $0x98] sm:$0xff]
      %v854 = vld [vmem:[%s4 + $0xa0] sm:$0xff]
      %v855 = vld [vmem:[%s4 + $0xa8] sm:$0xff]
      %v856 = vld [vmem:[%s4 + $0xb0] sm:$0xff]
      %v857 = vld [vmem:[%s4 + $0xb8] sm:$0xff]
      %v858 = vld [vmem:[%s4 + $0xc0] sm:$0xff]
      %v859 = vld [vmem:[%s4 + $0xc8] sm:$0xff]
      %v860 = vld [vmem:[%s4 + $0xd0] sm:$0xff]
      %v861 = vld [vmem:[%s4 + $0xd8] sm:$0xff]
      %v862 = vld [vmem:[%s4 + $0xe0] sm:$0xff]
      %v863 = vld [vmem:[%s4 + $0xe8] sm:$0xff]
      %v864 = vld [vmem:[%s4 + $0xf0] sm:$0xff]
      %v865 = vld [vmem:[%s4 + $0xf8] sm:$0xff]
      %v866 = vld [vmem:[%s4 + $0x100] sm:$0xff]
      %v867 = vld [vmem:[%s4 + $0x108] sm:$0xff]
      %v868 = vld [vmem:[%s4 + $0x110] sm:$0xff]
      %v869 = vld [vmem:[%s4 + $0x118] sm:$0xff]
      %v870 = vld [vmem:[%s4 + $0x120] sm:$0xff]
      %v871 = vld [vmem:[%s4 + $0x128] sm:$0xff]
      %v872 = vld [vmem:[%s4 + $0x130] sm:$0xff]
      %v873 = vld [vmem:[%s4 + $0x138] sm:$0xff]
      %v874 = vld [vmem:[%s4 + $0x140] sm:$0xff]
      %v875 = vld [vmem:[%s4 + $0x148] sm:$0xff]
      %v876 = vld [vmem:[%s4 + $0x150] sm:$0xff]
      %v877 = vld [vmem:[%s4 + $0x158] sm:$0xff]
      %v878 = vld [vmem:[%s4 + $0x160] sm:$0xff]
      %v879 = vld [vmem:[%s4 + $0x168] sm:$0xff]
      %v880 = vld [vmem:[%s4 + $0x170] sm:$0xff]
      %v881 = vld [vmem:[%s4 + $0x178] sm:$0xff]
      %v882 = vld [vmem:[%s5] sm:$0x1]
      %v884 = vlaneseq
      %v885 = vshrl.u32 %v884, 7
      %v886 = vsub.s32 0, %v885
      %v887 = vrot.slane %v882, %v886
      %889 = vmatprep.subr.mxu0 0.0
      %890 = vmatpush1.msra.mxu0 %v849
      %891 = vmatprep.subr.mxu0 0.0
      %892 = vmatpush1.msra.mxu0 %v848
      %893 = vmatprep.subr.mxu0 0.0
      %894 = vmatpush1.msra.mxu0 %v847
      %895 = vmatprep.subr.mxu0 0.0
      %896 = vmatpush1.msra.mxu0 %v846
      %897 = vmatprep.subr.mxu0 0.0
      %898 = vmatpush1.msra.mxu0 %v845
      %899 = vmatprep.subr.mxu0 0.0
      %900 = vmatpush1.msra.mxu0 %v844
      %901 = vmatprep.subr.mxu0 0.0
      %902 = vmatpush1.msra.mxu0 %v843
      %903 = vmatprep.subr.mxu0 0.0
      %904 = vmatpush1.msra.mxu0 %v842
      %905 = vmatprep.subr.mxu0 0.0
      %906 = vmatpush1.msra.mxu0 %v841
      %907 = vmatprep.subr.mxu0 0.0
      %908 = vmatpush1.msra.mxu0 %v840
      %909 = vmatprep.subr.mxu0 0.0
      %910 = vmatpush1.msra.mxu0 %v839
      %911 = vmatprep.subr.mxu0 0.0
      %912 = vmatpush1.msra.mxu0 %v838
      %913 = vmatprep.subr.mxu0 0.0
      %914 = vmatpush1.msra.mxu0 %v837
      %915 = vmatprep.subr.mxu0 0.0
      %916 = vmatpush1.msra.mxu0 %v836
      %917 = vmatprep.subr.mxu0 0.0
      %918 = vmatpush1.msra.mxu0 %v835
      %919 = vmatprep.subr.mxu0 0.0
      %920 = vmatpush1.msra.mxu0 %v834
      %921 = vmatprep.subr.mxu0 0.0
      %922 = vmatpush2.msra.mxu0 %v865
      %923 = vmatprep.subr.mxu0 0.0
      %924 = vmatpush2.msra.mxu0 %v864
      %925 = vmatprep.subr.mxu0 0.0
      %926 = vmatpush2.msra.mxu0 %v863
      %927 = vmatprep.subr.mxu0 0.0
      %928 = vmatpush2.msra.mxu0 %v862
      %929 = vmatprep.subr.mxu0 0.0
      %930 = vmatpush2.msra.mxu0 %v861
      %931 = vmatprep.subr.mxu0 0.0
      %932 = vmatpush2.msra.mxu0 %v860
      %933 = vmatprep.subr.mxu0 0.0
      %934 = vmatpush2.msra.mxu0 %v859
      %935 = vmatprep.subr.mxu0 0.0
      %936 = vmatpush2.msra.mxu0 %v858
      %937 = vmatprep.subr.mxu0 0.0
      %938 = vmatpush2.msra.mxu0 %v857
      %939 = vmatprep.subr.mxu0 0.0
      %940 = vmatpush2.msra.mxu0 %v856
      %941 = vmatprep.subr.mxu0 0.0
      %942 = vmatpush2.msra.mxu0 %v855
      %943 = vmatprep.subr.mxu0 0.0
      %944 = vmatpush2.msra.mxu0 %v854
      %945 = vmatprep.subr.mxu0 0.0
      %946 = vmatpush2.msra.mxu0 %v853
      %947 = vmatprep.subr.mxu0 0.0
      %948 = vmatpush2.msra.mxu0 %v852
      %949 = vmatprep.subr.mxu0 0.0
      %950 = vmatpush2.msra.mxu0 %v851
      %951 = vmatprep.subr.mxu0 0.0
      %952 = vmatpush2.msra.mxu0 %v850
      %953 = vmatprep.mubr.f32.mxu0 %v787
      %954 = vmatmul.mubr.f32.gmra.mxu0 %v786
      %v955 = vpop.f32.mrf.mxu0
      %v956 = vadd.f32 %v887, %v955
      %v957 = vpop.f32.mrf.mxu0
      %958 = vmatprep.mubr.f32.mxu0 %v790
      %959 = vmatmul.mubr.f32.gmra.mxu0 %v789
      %v960 = vpop.f32.mrf.mxu0
      %v961 = vadd.f32 %v887, %v960
      %v962 = vpop.f32.mrf.mxu0
      %963 = vmatprep.mubr.f32.mxu0 %v793
      %964 = vmatmul.mubr.f32.gmra.mxu0 %v792
      %v965 = vpop.f32.mrf.mxu0
      %v966 = vadd.f32 %v887, %v965
      %v967 = vpop.f32.mrf.mxu0
      %968 = vmatprep.mubr.f32.mxu0 %v796
      %969 = vmatmul.mubr.f32.gmra.mxu0 %v795
      %v970 = vpop.f32.mrf.mxu0
      %v971 = vadd.f32 %v887, %v970
      %v972 = vpop.f32.mrf.mxu0
      %973 = vmatprep.mubr.f32.mxu0 %v799
      %974 = vmatmul.mubr.f32.gmra.mxu0 %v798
      %v975 = vpop.f32.mrf.mxu0
      %v976 = vadd.f32 %v887, %v975
      %v977 = vpop.f32.mrf.mxu0
      %978 = vmatprep.mubr.f32.mxu0 %v802
      %979 = vmatmul.mubr.f32.gmra.mxu0 %v801
      %v980 = vpop.f32.mrf.mxu0
      %v981 = vadd.f32 %v887, %v980
      %v982 = vpop.f32.mrf.mxu0
      %983 = vmatprep.mubr.f32.mxu0 %v805
      %984 = vmatmul.mubr.f32.gmra.mxu0 %v804
      %v985 = vpop.f32.mrf.mxu0
      %v986 = vadd.f32 %v887, %v985
      %v987 = vpop.f32.mrf.mxu0
      %988 = vmatprep.mubr.f32.mxu0 %v808
      %989 = vmatmul.mubr.f32.gmra.mxu0 %v807
      %v990 = vpop.f32.mrf.mxu0
      %v991 = vadd.f32 %v887, %v990
      %v992 = vpop.f32.mrf.mxu0
      %993 = vmatprep.mubr.f32.mxu0 %v811
      %994 = vmatmul.mubr.f32.gmra.mxu0 %v810
      %v995 = vpop.f32.mrf.mxu0
      %v996 = vadd.f32 %v887, %v995
      %v997 = vpop.f32.mrf.mxu0
      %998 = vmatprep.mubr.f32.mxu0 %v814
      %999 = vmatmul.mubr.f32.gmra.mxu0 %v813
      %v1000 = vpop.f32.mrf.mxu0
      %v1001 = vadd.f32 %v887, %v1000
      %v1002 = vpop.f32.mrf.mxu0
      %1003 = vmatprep.mubr.f32.mxu0 %v817
      %1004 = vmatmul.mubr.f32.gmra.mxu0 %v816
      %v1005 = vpop.f32.mrf.mxu0
      %v1006 = vadd.f32 %v887, %v1005
      %v1007 = vpop.f32.mrf.mxu0
      %1008 = vmatprep.mubr.f32.mxu0 %v820
      %1009 = vmatmul.mubr.f32.gmra.mxu0 %v819
      %v1010 = vpop.f32.mrf.mxu0
      %v1011 = vadd.f32 %v887, %v1010
      %v1012 = vpop.f32.mrf.mxu0
      %1013 = vmatprep.mubr.f32.mxu0 %v823
      %1014 = vmatmul.mubr.f32.gmra.mxu0 %v822
      %v1015 = vpop.f32.mrf.mxu0
      %v1016 = vadd.f32 %v887, %v1015
      %v1017 = vpop.f32.mrf.mxu0
      %1018 = vmatprep.mubr.f32.mxu0 %v826
      %1019 = vmatmul.mubr.f32.gmra.mxu0 %v825
      %v1020 = vpop.f32.mrf.mxu0
      %v1021 = vadd.f32 %v887, %v1020
      %v1022 = vpop.f32.mrf.mxu0
      %1023 = vmatprep.mubr.f32.mxu0 %v829
      %1024 = vmatmul.mubr.f32.gmra.mxu0 %v828
      %v1025 = vpop.f32.mrf.mxu0
      %v1026 = vadd.f32 %v887, %v1025
      %v1027 = vpop.f32.mrf.mxu0
      %1028 = vmatprep.mubr.f32.mxu0 %v832
      %1029 = vmatmul.mubr.f32.gmra.mxu0 %v831
      %v1030 = vpop.f32.mrf.mxu0
      %v1031 = vadd.f32 %v887, %v1030
      %v1032 = vpop.f32.mrf.mxu0
      %1033 = vdwg.mxu0
      %1034 = vmatprep.subr.mxu0 0.0
      %1035 = vmatpush1.msra.mxu0 %v881
      %1036 = vmatprep.subr.mxu0 0.0
      %1037 = vmatpush1.msra.mxu0 %v880
      %1038 = vmatprep.subr.mxu0 0.0
      %1039 = vmatpush1.msra.mxu0 %v879
      %1040 = vmatprep.subr.mxu0 0.0
      %1041 = vmatpush1.msra.mxu0 %v878
      %1042 = vmatprep.subr.mxu0 0.0
      %1043 = vmatpush1.msra.mxu0 %v877
      %1044 = vmatprep.subr.mxu0 0.0
      %1045 = vmatpush1.msra.mxu0 %v876
      %1046 = vmatprep.subr.mxu0 0.0
      %1047 = vmatpush1.msra.mxu0 %v875
      %1048 = vmatprep.subr.mxu0 0.0
      %1049 = vmatpush1.msra.mxu0 %v874
      %1050 = vmatprep.subr.mxu0 0.0
      %1051 = vmatpush1.msra.mxu0 %v873
      %1052 = vmatprep.subr.mxu0 0.0
      %1053 = vmatpush1.msra.mxu0 %v872
      %1054 = vmatprep.subr.mxu0 0.0
      %1055 = vmatpush1.msra.mxu0 %v871
      %1056 = vmatprep.subr.mxu0 0.0
      %1057 = vmatpush1.msra.mxu0 %v870
      %1058 = vmatprep.subr.mxu0 0.0
      %1059 = vmatpush1.msra.mxu0 %v869
      %1060 = vmatprep.subr.mxu0 0.0
      %1061 = vmatpush1.msra.mxu0 %v868
      %1062 = vmatprep.subr.mxu0 0.0
      %1063 = vmatpush1.msra.mxu0 %v867
      %1064 = vmatprep.subr.mxu0 0.0
      %1065 = vmatpush1.msra.mxu0 %v866
      %1066 = vmatprep.subr.mxu0 0.0
      %1067 = vmatpush2.msra.mxu0 0.0
      %1068 = vmatprep.subr.mxu0 0.0
      %1069 = vmatpush2.msra.mxu0 0.0
      %1070 = vmatprep.subr.mxu0 0.0
      %1071 = vmatpush2.msra.mxu0 0.0
      %1072 = vmatprep.subr.mxu0 0.0
      %1073 = vmatpush2.msra.mxu0 0.0
      %1074 = vmatprep.subr.mxu0 0.0
      %1075 = vmatpush2.msra.mxu0 0.0
      %1076 = vmatprep.subr.mxu0 0.0
      %1077 = vmatpush2.msra.mxu0 0.0
      %1078 = vmatprep.subr.mxu0 0.0
      %1079 = vmatpush2.msra.mxu0 0.0
      %1080 = vmatprep.subr.mxu0 0.0
      %1081 = vmatpush2.msra.mxu0 0.0
      %1082 = vmatprep.subr.mxu0 0.0
      %1083 = vmatpush2.msra.mxu0 0.0
      %1084 = vmatprep.subr.mxu0 0.0
      %1085 = vmatpush2.msra.mxu0 0.0
      %1086 = vmatprep.subr.mxu0 0.0
      %1087 = vmatpush2.msra.mxu0 0.0
      %1088 = vmatprep.subr.mxu0 0.0
      %1089 = vmatpush2.msra.mxu0 0.0
      %1090 = vmatprep.subr.mxu0 0.0
      %1091 = vmatpush2.msra.mxu0 0.0
      %1092 = vmatprep.subr.mxu0 0.0
      %1093 = vmatpush2.msra.mxu0 0.0
      %1094 = vmatprep.subr.mxu0 0.0
      %1095 = vmatpush2.msra.mxu0 0.0
      %1096 = vmatprep.subr.mxu0 0.0
      %1097 = vmatpush2.msra.mxu0 0.0
      %1098 = vmatprep.mubr.f32.mxu0 0.0
      %1099 = vmatmul.mubr.f32.gmra.mxu0 %v788
      %v1100 = vpop.f32.mrf.mxu0
      %v1101 = vadd.f32 %v956, %v1100
      %v1102 = vpop.f32.mrf.mxu0
      %1103 = vmatprep.mubr.f32.mxu0 0.0
      %1104 = vmatmul.mubr.f32.gmra.mxu0 %v791
      %v1105 = vpop.f32.mrf.mxu0
      %v1106 = vadd.f32 %v961, %v1105
      %v1107 = vpop.f32.mrf.mxu0
      %1108 = vmatprep.mubr.f32.mxu0 0.0
      %1109 = vmatmul.mubr.f32.gmra.mxu0 %v794
      %v1110 = vpop.f32.mrf.mxu0
      %v1111 = vadd.f32 %v966, %v1110
      %v1112 = vpop.f32.mrf.mxu0
      %1113 = vmatprep.mubr.f32.mxu0 0.0
      %1114 = vmatmul.mubr.f32.gmra.mxu0 %v797
      %v1115 = vpop.f32.mrf.mxu0
      %v1116 = vadd.f32 %v971, %v1115
      %v1117 = vpop.f32.mrf.mxu0
      %1118 = vmatprep.mubr.f32.mxu0 0.0
      %1119 = vmatmul.mubr.f32.gmra.mxu0 %v800
      %v1120 = vpop.f32.mrf.mxu0
      %v1121 = vadd.f32 %v976, %v1120
      %v1122 = vpop.f32.mrf.mxu0
      %1123 = vmatprep.mubr.f32.mxu0 0.0
      %1124 = vmatmul.mubr.f32.gmra.mxu0 %v803
      %v1125 = vpop.f32.mrf.mxu0
      %v1126 = vadd.f32 %v981, %v1125
      %v1127 = vpop.f32.mrf.mxu0
      %1128 = vmatprep.mubr.f32.mxu0 0.0
      %1129 = vmatmul.mubr.f32.gmra.mxu0 %v806
      %v1130 = vpop.f32.mrf.mxu0
      %v1131 = vadd.f32 %v986, %v1130
      %v1132 = vpop.f32.mrf.mxu0
      %1133 = vmatprep.mubr.f32.mxu0 0.0
      %1134 = vmatmul.mubr.f32.gmra.mxu0 %v809
      %v1135 = vpop.f32.mrf.mxu0
      %v1136 = vadd.f32 %v991, %v1135
      %v1137 = vpop.f32.mrf.mxu0
      %1138 = vmatprep.mubr.f32.mxu0 0.0
      %1139 = vmatmul.mubr.f32.gmra.mxu0 %v812
      %v1140 = vpop.f32.mrf.mxu0
      %v1141 = vadd.f32 %v996, %v1140
      %v1142 = vpop.f32.mrf.mxu0
      %1143 = vmatprep.mubr.f32.mxu0 0.0
      %1144 = vmatmul.mubr.f32.gmra.mxu0 %v815
      %v1145 = vpop.f32.mrf.mxu0
      %v1146 = vadd.f32 %v1001, %v1145
      %v1147 = vpop.f32.mrf.mxu0
      %1148 = vmatprep.mubr.f32.mxu0 0.0
      %1149 = vmatmul.mubr.f32.gmra.mxu0 %v818
      %v1150 = vpop.f32.mrf.mxu0
      %v1151 = vadd.f32 %v1006, %v1150
      %v1152 = vpop.f32.mrf.mxu0
      %1153 = vmatprep.mubr.f32.mxu0 0.0
      %1154 = vmatmul.mubr.f32.gmra.mxu0 %v821
      %v1155 = vpop.f32.mrf.mxu0
      %v1156 = vadd.f32 %v1011, %v1155
      %v1157 = vpop.f32.mrf.mxu0
      %1158 = vmatprep.mubr.f32.mxu0 0.0
      %1159 = vmatmul.mubr.f32.gmra.mxu0 %v824
      %v1160 = vpop.f32.mrf.mxu0
      %v1161 = vadd.f32 %v1016, %v1160
      %v1162 = vpop.f32.mrf.mxu0
      %1163 = vmatprep.mubr.f32.mxu0 0.0
      %1164 = vmatmul.mubr.f32.gmra.mxu0 %v827
      %v1165 = vpop.f32.mrf.mxu0
      %v1166 = vadd.f32 %v1021, %v1165
      %v1167 = vpop.f32.mrf.mxu0
      %1168 = vmatprep.mubr.f32.mxu0 0.0
      %1169 = vmatmul.mubr.f32.gmra.mxu0 %v830
      %v1170 = vpop.f32.mrf.mxu0
      %v1171 = vadd.f32 %v1026, %v1170
      %v1172 = vpop.f32.mrf.mxu0
      %1173 = vmatprep.mubr.f32.mxu0 0.0
      %1174 = vmatmul.mubr.f32.gmra.mxu0 %v833
      %v1175 = vpop.f32.mrf.mxu0
      %v1176 = vadd.f32 %v1031, %v1175
      %v1177 = vpop.f32.mrf.mxu0
      %1178 = vdwg.mxu0
      %1179 = vst [vmem:[%s285] sm:$0xff] %v1101
      %1180 = vst [vmem:[%s285 + $0x8] sm:$0xff] %v1106
      %1181 = vst [vmem:[%s285 + $0x10] sm:$0xff] %v1111
      %1182 = vst [vmem:[%s285 + $0x18] sm:$0xff] %v1116
      %1183 = vst [vmem:[%s285 + $0x20] sm:$0xff] %v1121
      %1184 = vst [vmem:[%s285 + $0x28] sm:$0xff] %v1126
      %1185 = vst [vmem:[%s285 + $0x30] sm:$0xff] %v1131
      %1186 = vst [vmem:[%s285 + $0x38] sm:$0xff] %v1136
      %1187 = vst [vmem:[%s285 + $0x40] sm:$0xff] %v1141
      %1188 = vst [vmem:[%s285 + $0x48] sm:$0xff] %v1146
      %1189 = vst [vmem:[%s285 + $0x50] sm:$0xff] %v1151
      %1190 = vst [vmem:[%s285 + $0x58] sm:$0xff] %v1156
      %1191 = vst [vmem:[%s285 + $0x60] sm:$0xff] %v1161
      %1192 = vst [vmem:[%s285 + $0x68] sm:$0xff] %v1166
      %1193 = vst [vmem:[%s285 + $0x70] sm:$0xff] %v1171
      %1194 = vst [vmem:[%s285 + $0x78] sm:$0xff] %v1176
      %v1195 = vadd.f32 %v1101, %v1106
      %v1196 = vadd.f32 %v1195, %v1111
      %v1197 = vadd.f32 %v1196, %v1116
      %v1198 = vadd.f32 %v1197, %v1121
      %v1199 = vadd.f32 %v1198, %v1126
      %v1200 = vadd.f32 %v1199, %v1131
      %v1201 = vadd.f32 %v1200, %v1136
      %v1202 = vadd.f32 %v1201, %v1141
      %v1203 = vadd.f32 %v1202, %v1146
      %v1204 = vadd.f32 %v1203, %v1151
      %v1205 = vadd.f32 %v1204, %v1156
      %v1206 = vadd.f32 %v1205, %v1161
      %v1207 = vadd.f32 %v1206, %v1166
      %v1208 = vadd.f32 %v1207, %v1171
      %v1209 = vadd.f32 %v1208, %v1176
      %v1210 = vrot.slane %v1209, 4
      %v1211 = vadd.f32 %v1209, %v1210
      %v1212 = vrot.slane %v1211, 2
      %v1213 = vadd.f32 %v1211, %v1212
      %v1214 = vrot.slane %v1213, 1
      %v1215 = vadd.f32 %v1213, %v1214
      %v1216 = vadd.f32 %v1215, 0.0
      %v1217 = vmul.f32 %v1101, %v1101
      %v1218 = vmul.f32 %v1106, %v1106
      %v1219 = vmul.f32 %v1111, %v1111
      %v1220 = vmul.f32 %v1116, %v1116
      %v1221 = vmul.f32 %v1121, %v1121
      %v1222 = vmul.f32 %v1126, %v1126
      %v1223 = vmul.f32 %v1131, %v1131
      %v1224 = vmul.f32 %v1136, %v1136
      %v1225 = vmul.f32 %v1141, %v1141
      %v1226 = vmul.f32 %v1146, %v1146
      %v1227 = vmul.f32 %v1151, %v1151
      %v1228 = vmul.f32 %v1156, %v1156
      %v1229 = vmul.f32 %v1161, %v1161
      %v1230 = vmul.f32 %v1166, %v1166
      %v1231 = vmul.f32 %v1171, %v1171
      %v1232 = vmul.f32 %v1176, %v1176
      %v1233 = vadd.f32 %v1217, %v1218
      %v1234 = vadd.f32 %v1233, %v1219
      %v1235 = vadd.f32 %v1234, %v1220
      %v1236 = vadd.f32 %v1235, %v1221
      %v1237 = vadd.f32 %v1236, %v1222
      %v1238 = vadd.f32 %v1237, %v1223
      %v1239 = vadd.f32 %v1238, %v1224
      %v1240 = vadd.f32 %v1239, %v1225
      %v1241 = vadd.f32 %v1240, %v1226
      %v1242 = vadd.f32 %v1241, %v1227
      %v1243 = vadd.f32 %v1242, %v1228
      %v1244 = vadd.f32 %v1243, %v1229
      %v1245 = vadd.f32 %v1244, %v1230
      %v1246 = vadd.f32 %v1245, %v1231
      %v1247 = vadd.f32 %v1246, %v1232
      %v1248 = vrot.slane %v1247, 4
      %v1249 = vadd.f32 %v1247, %v1248
      %v1250 = vrot.slane %v1249, 2
      %v1251 = vadd.f32 %v1249, %v1250
      %v1252 = vrot.slane %v1251, 1
      %v1253 = vadd.f32 %v1251, %v1252
      %v1254 = vadd.f32 %v1253, 0.0
      %v1255 = vld [vmem:[#allocation2 + $0x1] sm:$0xff]
      %v1256 = vld [vmem:[#allocation2 + $0x11] sm:$0xff]
      %v1257 = vld [vmem:[#allocation2 + $0x21] sm:$0xff]
      %v1258 = vld [vmem:[#allocation2 + $0x31] sm:$0xff]
      %v1259 = vld [vmem:[#allocation2 + $0x41] sm:$0xff]
      %v1260 = vld [vmem:[#allocation2 + $0x51] sm:$0xff]
      %v1261 = vld [vmem:[#allocation2 + $0x61] sm:$0xff]
      %v1262 = vld [vmem:[#allocation2 + $0x71] sm:$0xff]
      %v1263 = vld [vmem:[#allocation2 + $0x81] sm:$0xff]
      %v1264 = vld [vmem:[#allocation2 + $0x91] sm:$0xff]
      %v1265 = vld [vmem:[#allocation2 + $0xa1] sm:$0xff]
      %v1266 = vld [vmem:[#allocation2 + $0xb1] sm:$0xff]
      %v1267 = vld [vmem:[#allocation2 + $0xc1] sm:$0xff]
      %v1268 = vld [vmem:[#allocation2 + $0xd1] sm:$0xff]
      %v1269 = vld [vmem:[#allocation2 + $0xe1] sm:$0xff]
      %v1270 = vld [vmem:[#allocation2 + $0xf1] sm:$0xff]
      %1271 = vst.msk [vmem:[#allocation3] sm:$0xff] %vm339, %v1255
      %1272 = vst.msk [vmem:[#allocation3 + $0x18] sm:$0xff] %vm339, %v1256
      %1273 = vst.msk [vmem:[#allocation3 + $0x30] sm:$0xff] %vm339, %v1257
      %1274 = vst.msk [vmem:[#allocation3 + $0x48] sm:$0xff] %vm339, %v1258
      %1275 = vst.msk [vmem:[#allocation3 + $0x60] sm:$0xff] %vm339, %v1259
      %1276 = vst.msk [vmem:[#allocation3 + $0x78] sm:$0xff] %vm339, %v1260
      %1277 = vst.msk [vmem:[#allocation3 + $0x90] sm:$0xff] %vm339, %v1261
      %1278 = vst.msk [vmem:[#allocation3 + $0xa8] sm:$0xff] %vm339, %v1262
      %1279 = vst.msk [vmem:[#allocation3 + $0xc0] sm:$0xff] %vm339, %v1263
      %1280 = vst.msk [vmem:[#allocation3 + $0xd8] sm:$0xff] %vm339, %v1264
      %1281 = vst.msk [vmem:[#allocation3 + $0xf0] sm:$0xff] %vm339, %v1265
      %1282 = vst.msk [vmem:[#allocation3 + $0x108] sm:$0xff] %vm339, %v1266
      %1283 = vst.msk [vmem:[#allocation3 + $0x120] sm:$0xff] %vm339, %v1267
      %1284 = vst.msk [vmem:[#allocation3 + $0x138] sm:$0xff] %vm339, %v1268
      %1285 = vst.msk [vmem:[#allocation3 + $0x150] sm:$0xff] %vm339, %v1269
      %1286 = vst.msk [vmem:[#allocation3 + $0x168] sm:$0xff] %vm339, %v1270
      %v1287 = vld [vmem:[#allocation2 + $0x2] sm:$0xff]
      %v1288 = vld [vmem:[#allocation2 + $0x12] sm:$0xff]
      %v1289 = vld [vmem:[#allocation2 + $0x22] sm:$0xff]
      %v1290 = vld [vmem:[#allocation2 + $0x32] sm:$0xff]
      %v1291 = vld [vmem:[#allocation2 + $0x42] sm:$0xff]
      %v1292 = vld [vmem:[#allocation2 + $0x52] sm:$0xff]
      %v1293 = vld [vmem:[#allocation2 + $0x62] sm:$0xff]
      %v1294 = vld [vmem:[#allocation2 + $0x72] sm:$0xff]
      %v1295 = vld [vmem:[#allocation2 + $0x82] sm:$0xff]
      %v1296 = vld [vmem:[#allocation2 + $0x92] sm:$0xff]
      %v1297 = vld [vmem:[#allocation2 + $0xa2] sm:$0xff]
      %v1298 = vld [vmem:[#allocation2 + $0xb2] sm:$0xff]
      %v1299 = vld [vmem:[#allocation2 + $0xc2] sm:$0xff]
      %v1300 = vld [vmem:[#allocation2 + $0xd2] sm:$0xff]
      %v1301 = vld [vmem:[#allocation2 + $0xe2] sm:$0xff]
      %v1302 = vld [vmem:[#allocation2 + $0xf2] sm:$0xff]
      %1319 = vrot.lane.b32.xlu0 %v1287, 64
      %v1320 = vpop.permute.xlu0 %1319
      %1321 = vrot.lane.b32.xlu0 %v1288, 64
      %v1322 = vpop.permute.xlu0 %1321
      %1323 = vrot.lane.b32.xlu0 %v1289, 64
      %v1324 = vpop.permute.xlu0 %1323
      %1325 = vrot.lane.b32.xlu0 %v1290, 64
      %v1326 = vpop.permute.xlu0 %1325
      %1327 = vrot.lane.b32.xlu0 %v1291, 64
      %v1328 = vpop.permute.xlu0 %1327
      %1329 = vrot.lane.b32.xlu0 %v1292, 64
      %v1330 = vpop.permute.xlu0 %1329
      %1331 = vrot.lane.b32.xlu0 %v1293, 64
      %v1332 = vpop.permute.xlu0 %1331
      %1333 = vrot.lane.b32.xlu0 %v1294, 64
      %v1334 = vpop.permute.xlu0 %1333
      %1335 = vrot.lane.b32.xlu0 %v1295, 64
      %v1336 = vpop.permute.xlu0 %1335
      %1337 = vrot.lane.b32.xlu0 %v1296, 64
      %v1338 = vpop.permute.xlu0 %1337
      %1339 = vrot.lane.b32.xlu0 %v1297, 64
      %v1340 = vpop.permute.xlu0 %1339
      %1341 = vrot.lane.b32.xlu0 %v1298, 64
      %v1342 = vpop.permute.xlu0 %1341
      %1343 = vrot.lane.b32.xlu0 %v1299, 64
      %v1344 = vpop.permute.xlu0 %1343
      %1345 = vrot.lane.b32.xlu0 %v1300, 64
      %v1346 = vpop.permute.xlu0 %1345
      %1347 = vrot.lane.b32.xlu0 %v1301, 64
      %v1348 = vpop.permute.xlu0 %1347
      %1349 = vrot.lane.b32.xlu0 %v1302, 64
      %v1350 = vpop.permute.xlu0 %1349
      %1367 = vst.msk [vmem:[#allocation3] sm:$0xff] %vm512, %v1320
      %1368 = vst.msk [vmem:[#allocation3 + $0x18] sm:$0xff] %vm512, %v1322
      %1369 = vst.msk [vmem:[#allocation3 + $0x30] sm:$0xff] %vm512, %v1324
      %1370 = vst.msk [vmem:[#allocation3 + $0x48] sm:$0xff] %vm512, %v1326
      %1371 = vst.msk [vmem:[#allocation3 + $0x60] sm:$0xff] %vm512, %v1328
      %1372 = vst.msk [vmem:[#allocation3 + $0x78] sm:$0xff] %vm512, %v1330
      %1373 = vst.msk [vmem:[#allocation3 + $0x90] sm:$0xff] %vm512, %v1332
      %1374 = vst.msk [vmem:[#allocation3 + $0xa8] sm:$0xff] %vm512, %v1334
      %1375 = vst.msk [vmem:[#allocation3 + $0xc0] sm:$0xff] %vm512, %v1336
      %1376 = vst.msk [vmem:[#allocation3 + $0xd8] sm:$0xff] %vm512, %v1338
      %1377 = vst.msk [vmem:[#allocation3 + $0xf0] sm:$0xff] %vm512, %v1340
      %1378 = vst.msk [vmem:[#allocation3 + $0x108] sm:$0xff] %vm512, %v1342
      %1379 = vst.msk [vmem:[#allocation3 + $0x120] sm:$0xff] %vm512, %v1344
      %1380 = vst.msk [vmem:[#allocation3 + $0x138] sm:$0xff] %vm512, %v1346
      %1381 = vst.msk [vmem:[#allocation3 + $0x150] sm:$0xff] %vm512, %v1348
      %1382 = vst.msk [vmem:[#allocation3 + $0x168] sm:$0xff] %vm512, %v1350
      %v1383 = vld [vmem:[%s383 + $0x1] sm:$0xff]
      %v1384 = vld [vmem:[%s383 + $0x11] sm:$0xff]
      %v1385 = vld [vmem:[%s383 + $0x21] sm:$0xff]
      %v1386 = vld [vmem:[%s383 + $0x31] sm:$0xff]
      %v1387 = vld [vmem:[%s383 + $0x41] sm:$0xff]
      %v1388 = vld [vmem:[%s383 + $0x51] sm:$0xff]
      %v1389 = vld [vmem:[%s383 + $0x61] sm:$0xff]
      %v1390 = vld [vmem:[%s383 + $0x71] sm:$0xff]
      %v1391 = vld [vmem:[%s383 + $0x81] sm:$0xff]
      %v1392 = vld [vmem:[%s383 + $0x91] sm:$0xff]
      %v1393 = vld [vmem:[%s383 + $0xa1] sm:$0xff]
      %v1394 = vld [vmem:[%s383 + $0xb1] sm:$0xff]
      %v1395 = vld [vmem:[%s383 + $0xc1] sm:$0xff]
      %v1396 = vld [vmem:[%s383 + $0xd1] sm:$0xff]
      %v1397 = vld [vmem:[%s383 + $0xe1] sm:$0xff]
      %v1398 = vld [vmem:[%s383 + $0xf1] sm:$0xff]
      %1399 = vst.msk [vmem:[#allocation3 + $0x8] sm:$0xff] %vm339, %v1383
      %1400 = vst.msk [vmem:[#allocation3 + $0x20] sm:$0xff] %vm339, %v1384
      %1401 = vst.msk [vmem:[#allocation3 + $0x38] sm:$0xff] %vm339, %v1385
      %1402 = vst.msk [vmem:[#allocation3 + $0x50] sm:$0xff] %vm339, %v1386
      %1403 = vst.msk [vmem:[#allocation3 + $0x68] sm:$0xff] %vm339, %v1387
      %1404 = vst.msk [vmem:[#allocation3 + $0x80] sm:$0xff] %vm339, %v1388
      %1405 = vst.msk [vmem:[#allocation3 + $0x98] sm:$0xff] %vm339, %v1389
      %1406 = vst.msk [vmem:[#allocation3 + $0xb0] sm:$0xff] %vm339, %v1390
      %1407 = vst.msk [vmem:[#allocation3 + $0xc8] sm:$0xff] %vm339, %v1391
      %1408 = vst.msk [vmem:[#allocation3 + $0xe0] sm:$0xff] %vm339, %v1392
      %1409 = vst.msk [vmem:[#allocation3 + $0xf8] sm:$0xff] %vm339, %v1393
      %1410 = vst.msk [vmem:[#allocation3 + $0x110] sm:$0xff] %vm339, %v1394
      %1411 = vst.msk [vmem:[#allocation3 + $0x128] sm:$0xff] %vm339, %v1395
      %1412 = vst.msk [vmem:[#allocation3 + $0x140] sm:$0xff] %vm339, %v1396
      %1413 = vst.msk [vmem:[#allocation3 + $0x158] sm:$0xff] %vm339, %v1397
      %1414 = vst.msk [vmem:[#allocation3 + $0x170] sm:$0xff] %vm339, %v1398
      %v1415 = vld [vmem:[%s383 + $0x2] sm:$0xff]
      %v1416 = vld [vmem:[%s383 + $0x12] sm:$0xff]
      %v1417 = vld [vmem:[%s383 + $0x22] sm:$0xff]
      %v1418 = vld [vmem:[%s383 + $0x32] sm:$0xff]
      %v1419 = vld [vmem:[%s383 + $0x42] sm:$0xff]
      %v1420 = vld [vmem:[%s383 + $0x52] sm:$0xff]
      %v1421 = vld [vmem:[%s383 + $0x62] sm:$0xff]
      %v1422 = vld [vmem:[%s383 + $0x72] sm:$0xff]
      %v1423 = vld [vmem:[%s383 + $0x82] sm:$0xff]
      %v1424 = vld [vmem:[%s383 + $0x92] sm:$0xff]
      %v1425 = vld [vmem:[%s383 + $0xa2] sm:$0xff]
      %v1426 = vld [vmem:[%s383 + $0xb2] sm:$0xff]
      %v1427 = vld [vmem:[%s383 + $0xc2] sm:$0xff]
      %v1428 = vld [vmem:[%s383 + $0xd2] sm:$0xff]
      %v1429 = vld [vmem:[%s383 + $0xe2] sm:$0xff]
      %v1430 = vld [vmem:[%s383 + $0xf2] sm:$0xff]
      %1447 = vrot.lane.b32.xlu0 %v1415, 64
      %v1448 = vpop.permute.xlu0 %1447
      %1449 = vrot.lane.b32.xlu0 %v1416, 64
      %v1450 = vpop.permute.xlu0 %1449
      %1451 = vrot.lane.b32.xlu0 %v1417, 64
      %v1452 = vpop.permute.xlu0 %1451
      %1453 = vrot.lane.b32.xlu0 %v1418, 64
      %v1454 = vpop.permute.xlu0 %1453
      %1455 = vrot.lane.b32.xlu0 %v1419, 64
      %v1456 = vpop.permute.xlu0 %1455
      %1457 = vrot.lane.b32.xlu0 %v1420, 64
      %v1458 = vpop.permute.xlu0 %1457
      %1459 = vrot.lane.b32.xlu0 %v1421, 64
      %v1460 = vpop.permute.xlu0 %1459
      %1461 = vrot.lane.b32.xlu0 %v1422, 64
      %v1462 = vpop.permute.xlu0 %1461
      %1463 = vrot.lane.b32.xlu0 %v1423, 64
      %v1464 = vpop.permute.xlu0 %1463
      %1465 = vrot.lane.b32.xlu0 %v1424, 64
      %v1466 = vpop.permute.xlu0 %1465
      %1467 = vrot.lane.b32.xlu0 %v1425, 64
      %v1468 = vpop.permute.xlu0 %1467
      %1469 = vrot.lane.b32.xlu0 %v1426, 64
      %v1470 = vpop.permute.xlu0 %1469
      %1471 = vrot.lane.b32.xlu0 %v1427, 64
      %v1472 = vpop.permute.xlu0 %1471
      %1473 = vrot.lane.b32.xlu0 %v1428, 64
      %v1474 = vpop.permute.xlu0 %1473
      %1475 = vrot.lane.b32.xlu0 %v1429, 64
      %v1476 = vpop.permute.xlu0 %1475
      %1477 = vrot.lane.b32.xlu0 %v1430, 64
      %v1478 = vpop.permute.xlu0 %1477
      %1495 = vst.msk [vmem:[#allocation3 + $0x8] sm:$0xff] %vm512, %v1448
      %1496 = vst.msk [vmem:[#allocation3 + $0x20] sm:$0xff] %vm512, %v1450
      %1497 = vst.msk [vmem:[#allocation3 + $0x38] sm:$0xff] %vm512, %v1452
      %1498 = vst.msk [vmem:[#allocation3 + $0x50] sm:$0xff] %vm512, %v1454
      %1499 = vst.msk [vmem:[#allocation3 + $0x68] sm:$0xff] %vm512, %v1456
      %1500 = vst.msk [vmem:[#allocation3 + $0x80] sm:$0xff] %vm512, %v1458
      %1501 = vst.msk [vmem:[#allocation3 + $0x98] sm:$0xff] %vm512, %v1460
      %1502 = vst.msk [vmem:[#allocation3 + $0xb0] sm:$0xff] %vm512, %v1462
      %1503 = vst.msk [vmem:[#allocation3 + $0xc8] sm:$0xff] %vm512, %v1464
      %1504 = vst.msk [vmem:[#allocation3 + $0xe0] sm:$0xff] %vm512, %v1466
      %1505 = vst.msk [vmem:[#allocation3 + $0xf8] sm:$0xff] %vm512, %v1468
      %1506 = vst.msk [vmem:[#allocation3 + $0x110] sm:$0xff] %vm512, %v1470
      %1507 = vst.msk [vmem:[#allocation3 + $0x128] sm:$0xff] %vm512, %v1472
      %1508 = vst.msk [vmem:[#allocation3 + $0x140] sm:$0xff] %vm512, %v1474
      %1509 = vst.msk [vmem:[#allocation3 + $0x158] sm:$0xff] %vm512, %v1476
      %1510 = vst.msk [vmem:[#allocation3 + $0x170] sm:$0xff] %vm512, %v1478
      %v1511 = vld [vmem:[%s657 + $0x1] sm:$0xff]
      %v1512 = vld [vmem:[%s657 + $0x11] sm:$0xff]
      %v1513 = vld [vmem:[%s657 + $0x21] sm:$0xff]
      %v1514 = vld [vmem:[%s657 + $0x31] sm:$0xff]
      %v1515 = vld [vmem:[%s657 + $0x41] sm:$0xff]
      %v1516 = vld [vmem:[%s657 + $0x51] sm:$0xff]
      %v1517 = vld [vmem:[%s657 + $0x61] sm:$0xff]
      %v1518 = vld [vmem:[%s657 + $0x71] sm:$0xff]
      %v1519 = vld [vmem:[%s657 + $0x81] sm:$0xff]
      %v1520 = vld [vmem:[%s657 + $0x91] sm:$0xff]
      %v1521 = vld [vmem:[%s657 + $0xa1] sm:$0xff]
      %v1522 = vld [vmem:[%s657 + $0xb1] sm:$0xff]
      %v1523 = vld [vmem:[%s657 + $0xc1] sm:$0xff]
      %v1524 = vld [vmem:[%s657 + $0xd1] sm:$0xff]
      %v1525 = vld [vmem:[%s657 + $0xe1] sm:$0xff]
      %v1526 = vld [vmem:[%s657 + $0xf1] sm:$0xff]
      %1527 = vst.msk [vmem:[#allocation3 + $0x10] sm:$0xff] %vm339, %v1511
      %1528 = vst.msk [vmem:[#allocation3 + $0x28] sm:$0xff] %vm339, %v1512
      %1529 = vst.msk [vmem:[#allocation3 + $0x40] sm:$0xff] %vm339, %v1513
      %1530 = vst.msk [vmem:[#allocation3 + $0x58] sm:$0xff] %vm339, %v1514
      %1531 = vst.msk [vmem:[#allocation3 + $0x70] sm:$0xff] %vm339, %v1515
      %1532 = vst.msk [vmem:[#allocation3 + $0x88] sm:$0xff] %vm339, %v1516
      %1533 = vst.msk [vmem:[#allocation3 + $0xa0] sm:$0xff] %vm339, %v1517
      %1534 = vst.msk [vmem:[#allocation3 + $0xb8] sm:$0xff] %vm339, %v1518
      %1535 = vst.msk [vmem:[#allocation3 + $0xd0] sm:$0xff] %vm339, %v1519
      %1536 = vst.msk [vmem:[#allocation3 + $0xe8] sm:$0xff] %vm339, %v1520
      %1537 = vst.msk [vmem:[#allocation3 + $0x100] sm:$0xff] %vm339, %v1521
      %1538 = vst.msk [vmem:[#allocation3 + $0x118] sm:$0xff] %vm339, %v1522
      %1539 = vst.msk [vmem:[#allocation3 + $0x130] sm:$0xff] %vm339, %v1523
      %1540 = vst.msk [vmem:[#allocation3 + $0x148] sm:$0xff] %vm339, %v1524
      %1541 = vst.msk [vmem:[#allocation3 + $0x160] sm:$0xff] %vm339, %v1525
      %1542 = vst.msk [vmem:[#allocation3 + $0x178] sm:$0xff] %vm339, %v1526
      %v1543 = vld [vmem:[%s657 + $0x2] sm:$0xff]
      %v1544 = vld [vmem:[%s657 + $0x12] sm:$0xff]
      %v1545 = vld [vmem:[%s657 + $0x22] sm:$0xff]
      %v1546 = vld [vmem:[%s657 + $0x32] sm:$0xff]
      %v1547 = vld [vmem:[%s657 + $0x42] sm:$0xff]
      %v1548 = vld [vmem:[%s657 + $0x52] sm:$0xff]
      %v1549 = vld [vmem:[%s657 + $0x62] sm:$0xff]
      %v1550 = vld [vmem:[%s657 + $0x72] sm:$0xff]
      %v1551 = vld [vmem:[%s657 + $0x82] sm:$0xff]
      %v1552 = vld [vmem:[%s657 + $0x92] sm:$0xff]
      %v1553 = vld [vmem:[%s657 + $0xa2] sm:$0xff]
      %v1554 = vld [vmem:[%s657 + $0xb2] sm:$0xff]
      %v1555 = vld [vmem:[%s657 + $0xc2] sm:$0xff]
      %v1556 = vld [vmem:[%s657 + $0xd2] sm:$0xff]
      %v1557 = vld [vmem:[%s657 + $0xe2] sm:$0xff]
      %v1558 = vld [vmem:[%s657 + $0xf2] sm:$0xff]
      %1575 = vrot.lane.b32.xlu0 %v1543, 64
      %v1576 = vpop.permute.xlu0 %1575
      %1577 = vrot.lane.b32.xlu0 %v1544, 64
      %v1578 = vpop.permute.xlu0 %1577
      %1579 = vrot.lane.b32.xlu0 %v1545, 64
      %v1580 = vpop.permute.xlu0 %1579
      %1581 = vrot.lane.b32.xlu0 %v1546, 64
      %v1582 = vpop.permute.xlu0 %1581
      %1583 = vrot.lane.b32.xlu0 %v1547, 64
      %v1584 = vpop.permute.xlu0 %1583
      %1585 = vrot.lane.b32.xlu0 %v1548, 64
      %v1586 = vpop.permute.xlu0 %1585
      %1587 = vrot.lane.b32.xlu0 %v1549, 64
      %v1588 = vpop.permute.xlu0 %1587
      %1589 = vrot.lane.b32.xlu0 %v1550, 64
      %v1590 = vpop.permute.xlu0 %1589
      %1591 = vrot.lane.b32.xlu0 %v1551, 64
      %v1592 = vpop.permute.xlu0 %1591
      %1593 = vrot.lane.b32.xlu0 %v1552, 64
      %v1594 = vpop.permute.xlu0 %1593
      %1595 = vrot.lane.b32.xlu0 %v1553, 64
      %v1596 = vpop.permute.xlu0 %1595
      %1597 = vrot.lane.b32.xlu0 %v1554, 64
      %v1598 = vpop.permute.xlu0 %1597
      %1599 = vrot.lane.b32.xlu0 %v1555, 64
      %v1600 = vpop.permute.xlu0 %1599
      %1601 = vrot.lane.b32.xlu0 %v1556, 64
      %v1602 = vpop.permute.xlu0 %1601
      %1603 = vrot.lane.b32.xlu0 %v1557, 64
      %v1604 = vpop.permute.xlu0 %1603
      %1605 = vrot.lane.b32.xlu0 %v1558, 64
      %v1606 = vpop.permute.xlu0 %1605
      %1623 = vst.msk [vmem:[#allocation3 + $0x10] sm:$0xff] %vm512, %v1576
      %1624 = vst.msk [vmem:[#allocation3 + $0x28] sm:$0xff] %vm512, %v1578
      %1625 = vst.msk [vmem:[#allocation3 + $0x40] sm:$0xff] %vm512, %v1580
      %1626 = vst.msk [vmem:[#allocation3 + $0x58] sm:$0xff] %vm512, %v1582
      %1627 = vst.msk [vmem:[#allocation3 + $0x70] sm:$0xff] %vm512, %v1584
      %1628 = vst.msk [vmem:[#allocation3 + $0x88] sm:$0xff] %vm512, %v1586
      %1629 = vst.msk [vmem:[#allocation3 + $0xa0] sm:$0xff] %vm512, %v1588
      %1630 = vst.msk [vmem:[#allocation3 + $0xb8] sm:$0xff] %vm512, %v1590
      %1631 = vst.msk [vmem:[#allocation3 + $0xd0] sm:$0xff] %vm512, %v1592
      %1632 = vst.msk [vmem:[#allocation3 + $0xe8] sm:$0xff] %vm512, %v1594
      %1633 = vst.msk [vmem:[#allocation3 + $0x100] sm:$0xff] %vm512, %v1596
      %1634 = vst.msk [vmem:[#allocation3 + $0x118] sm:$0xff] %vm512, %v1598
      %1635 = vst.msk [vmem:[#allocation3 + $0x130] sm:$0xff] %vm512, %v1600
      %1636 = vst.msk [vmem:[#allocation3 + $0x148] sm:$0xff] %vm512, %v1602
      %1637 = vst.msk [vmem:[#allocation3 + $0x160] sm:$0xff] %vm512, %v1604
      %1638 = vst.msk [vmem:[#allocation3 + $0x178] sm:$0xff] %vm512, %v1606
      %v1639 = vld [vmem:[#allocation3] sm:$0xff]
      %v1640 = vld [vmem:[#allocation3 + $0x8] sm:$0xff]
      %v1641 = vld [vmem:[#allocation3 + $0x10] sm:$0xff]
      %v1642 = vld [vmem:[#allocation3 + $0x18] sm:$0xff]
      %v1643 = vld [vmem:[#allocation3 + $0x20] sm:$0xff]
      %v1644 = vld [vmem:[#allocation3 + $0x28] sm:$0xff]
      %v1645 = vld [vmem:[#allocation3 + $0x30] sm:$0xff]
      %v1646 = vld [vmem:[#allocation3 + $0x38] sm:$0xff]
      %v1647 = vld [vmem:[#allocation3 + $0x40] sm:$0xff]
      %v1648 = vld [vmem:[#allocation3 + $0x48] sm:$0xff]
      %v1649 = vld [vmem:[#allocation3 + $0x50] sm:$0xff]
      %v1650 = vld [vmem:[#allocation3 + $0x58] sm:$0xff]
      %v1651 = vld [vmem:[#allocation3 + $0x60] sm:$0xff]
      %v1652 = vld [vmem:[#allocation3 + $0x68] sm:$0xff]
      %v1653 = vld [vmem:[#allocation3 + $0x70] sm:$0xff]
      %v1654 = vld [vmem:[#allocation3 + $0x78] sm:$0xff]
      %v1655 = vld [vmem:[#allocation3 + $0x80] sm:$0xff]
      %v1656 = vld [vmem:[#allocation3 + $0x88] sm:$0xff]
      %v1657 = vld [vmem:[#allocation3 + $0x90] sm:$0xff]
      %v1658 = vld [vmem:[#allocation3 + $0x98] sm:$0xff]
      %v1659 = vld [vmem:[#allocation3 + $0xa0] sm:$0xff]
      %v1660 = vld [vmem:[#allocation3 + $0xa8] sm:$0xff]
      %v1661 = vld [vmem:[#allocation3 + $0xb0] sm:$0xff]
      %v1662 = vld [vmem:[#allocation3 + $0xb8] sm:$0xff]
      %v1663 = vld [vmem:[#allocation3 + $0xc0] sm:$0xff]
      %v1664 = vld [vmem:[#allocation3 + $0xc8] sm:$0xff]
      %v1665 = vld [vmem:[#allocation3 + $0xd0] sm:$0xff]
      %v1666 = vld [vmem:[#allocation3 + $0xd8] sm:$0xff]
      %v1667 = vld [vmem:[#allocation3 + $0xe0] sm:$0xff]
      %v1668 = vld [vmem:[#allocation3 + $0xe8] sm:$0xff]
      %v1669 = vld [vmem:[#allocation3 + $0xf0] sm:$0xff]
      %v1670 = vld [vmem:[#allocation3 + $0xf8] sm:$0xff]
      %v1671 = vld [vmem:[#allocation3 + $0x100] sm:$0xff]
      %v1672 = vld [vmem:[#allocation3 + $0x108] sm:$0xff]
      %v1673 = vld [vmem:[#allocation3 + $0x110] sm:$0xff]
      %v1674 = vld [vmem:[#allocation3 + $0x118] sm:$0xff]
      %v1675 = vld [vmem:[#allocation3 + $0x120] sm:$0xff]
      %v1676 = vld [vmem:[#allocation3 + $0x128] sm:$0xff]
      %v1677 = vld [vmem:[#allocation3 + $0x130] sm:$0xff]
      %v1678 = vld [vmem:[#allocation3 + $0x138] sm:$0xff]
      %v1679 = vld [vmem:[#allocation3 + $0x140] sm:$0xff]
      %v1680 = vld [vmem:[#allocation3 + $0x148] sm:$0xff]
      %v1681 = vld [vmem:[#allocation3 + $0x150] sm:$0xff]
      %v1682 = vld [vmem:[#allocation3 + $0x158] sm:$0xff]
      %v1683 = vld [vmem:[#allocation3 + $0x160] sm:$0xff]
      %v1684 = vld [vmem:[#allocation3 + $0x168] sm:$0xff]
      %v1685 = vld [vmem:[#allocation3 + $0x170] sm:$0xff]
      %v1686 = vld [vmem:[#allocation3 + $0x178] sm:$0xff]
      %s1687 = scalar_lea.vmem %s4, 384
      %v1688 = vld [vmem:[%s1687] sm:$0xff]
      %v1689 = vld [vmem:[%s1687 + $0x8] sm:$0xff]
      %v1690 = vld [vmem:[%s1687 + $0x10] sm:$0xff]
      %v1691 = vld [vmem:[%s1687 + $0x18] sm:$0xff]
      %v1692 = vld [vmem:[%s1687 + $0x20] sm:$0xff]
      %v1693 = vld [vmem:[%s1687 + $0x28] sm:$0xff]
      %v1694 = vld [vmem:[%s1687 + $0x30] sm:$0xff]
      %v1695 = vld [vmem:[%s1687 + $0x38] sm:$0xff]
      %v1696 = vld [vmem:[%s1687 + $0x40] sm:$0xff]
      %v1697 = vld [vmem:[%s1687 + $0x48] sm:$0xff]
      %v1698 = vld [vmem:[%s1687 + $0x50] sm:$0xff]
      %v1699 = vld [vmem:[%s1687 + $0x58] sm:$0xff]
      %v1700 = vld [vmem:[%s1687 + $0x60] sm:$0xff]
      %v1701 = vld [vmem:[%s1687 + $0x68] sm:$0xff]
      %v1702 = vld [vmem:[%s1687 + $0x70] sm:$0xff]
      %v1703 = vld [vmem:[%s1687 + $0x78] sm:$0xff]
      %v1704 = vld [vmem:[%s1687 + $0x80] sm:$0xff]
      %v1705 = vld [vmem:[%s1687 + $0x88] sm:$0xff]
      %v1706 = vld [vmem:[%s1687 + $0x90] sm:$0xff]
      %v1707 = vld [vmem:[%s1687 + $0x98] sm:$0xff]
      %v1708 = vld [vmem:[%s1687 + $0xa0] sm:$0xff]
      %v1709 = vld [vmem:[%s1687 + $0xa8] sm:$0xff]
      %v1710 = vld [vmem:[%s1687 + $0xb0] sm:$0xff]
      %v1711 = vld [vmem:[%s1687 + $0xb8] sm:$0xff]
      %v1712 = vld [vmem:[%s1687 + $0xc0] sm:$0xff]
      %v1713 = vld [vmem:[%s1687 + $0xc8] sm:$0xff]
      %v1714 = vld [vmem:[%s1687 + $0xd0] sm:$0xff]
      %v1715 = vld [vmem:[%s1687 + $0xd8] sm:$0xff]
      %v1716 = vld [vmem:[%s1687 + $0xe0] sm:$0xff]
      %v1717 = vld [vmem:[%s1687 + $0xe8] sm:$0xff]
      %v1718 = vld [vmem:[%s1687 + $0xf0] sm:$0xff]
      %v1719 = vld [vmem:[%s1687 + $0xf8] sm:$0xff]
      %v1720 = vld [vmem:[%s1687 + $0x100] sm:$0xff]
      %v1721 = vld [vmem:[%s1687 + $0x108] sm:$0xff]
      %v1722 = vld [vmem:[%s1687 + $0x110] sm:$0xff]
      %v1723 = vld [vmem:[%s1687 + $0x118] sm:$0xff]
      %v1724 = vld [vmem:[%s1687 + $0x120] sm:$0xff]
      %v1725 = vld [vmem:[%s1687 + $0x128] sm:$0xff]
      %v1726 = vld [vmem:[%s1687 + $0x130] sm:$0xff]
      %v1727 = vld [vmem:[%s1687 + $0x138] sm:$0xff]
      %v1728 = vld [vmem:[%s1687 + $0x140] sm:$0xff]
      %v1729 = vld [vmem:[%s1687 + $0x148] sm:$0xff]
      %v1730 = vld [vmem:[%s1687 + $0x150] sm:$0xff]
      %v1731 = vld [vmem:[%s1687 + $0x158] sm:$0xff]
      %v1732 = vld [vmem:[%s1687 + $0x160] sm:$0xff]
      %v1733 = vld [vmem:[%s1687 + $0x168] sm:$0xff]
      %v1734 = vld [vmem:[%s1687 + $0x170] sm:$0xff]
      %v1735 = vld [vmem:[%s1687 + $0x178] sm:$0xff]
      %v1736 = vld [vmem:[%s5] sm:$0x1]
      %v1738 = vlaneseq
      %v1739 = vshrl.u32 %v1738, 7
      %v1740 = vsub.s32 0, %v1739
      %v1741 = vrot.slane %v1736, %v1740
      %1743 = vmatprep.subr.mxu0 0.0
      %1744 = vmatpush1.msra.mxu0 %v1703
      %1745 = vmatprep.subr.mxu0 0.0
      %1746 = vmatpush1.msra.mxu0 %v1702
      %1747 = vmatprep.subr.mxu0 0.0
      %1748 = vmatpush1.msra.mxu0 %v1701
      %1749 = vmatprep.subr.mxu0 0.0
      %1750 = vmatpush1.msra.mxu0 %v1700
      %1751 = vmatprep.subr.mxu0 0.0
      %1752 = vmatpush1.msra.mxu0 %v1699
      %1753 = vmatprep.subr.mxu0 0.0
      %1754 = vmatpush1.msra.mxu0 %v1698
      %1755 = vmatprep.subr.mxu0 0.0
      %1756 = vmatpush1.msra.mxu0 %v1697
      %1757 = vmatprep.subr.mxu0 0.0
      %1758 = vmatpush1.msra.mxu0 %v1696
      %1759 = vmatprep.subr.mxu0 0.0
      %1760 = vmatpush1.msra.mxu0 %v1695
      %1761 = vmatprep.subr.mxu0 0.0
      %1762 = vmatpush1.msra.mxu0 %v1694
      %1763 = vmatprep.subr.mxu0 0.0
      %1764 = vmatpush1.msra.mxu0 %v1693
      %1765 = vmatprep.subr.mxu0 0.0
      %1766 = vmatpush1.msra.mxu0 %v1692
      %1767 = vmatprep.subr.mxu0 0.0
      %1768 = vmatpush1.msra.mxu0 %v1691
      %1769 = vmatprep.subr.mxu0 0.0
      %1770 = vmatpush1.msra.mxu0 %v1690
      %1771 = vmatprep.subr.mxu0 0.0
      %1772 = vmatpush1.msra.mxu0 %v1689
      %1773 = vmatprep.subr.mxu0 0.0
      %1774 = vmatpush1.msra.mxu0 %v1688
      %1775 = vmatprep.subr.mxu0 0.0
      %1776 = vmatpush2.msra.mxu0 %v1719
      %1777 = vmatprep.subr.mxu0 0.0
      %1778 = vmatpush2.msra.mxu0 %v1718
      %1779 = vmatprep.subr.mxu0 0.0
      %1780 = vmatpush2.msra.mxu0 %v1717
      %1781 = vmatprep.subr.mxu0 0.0
      %1782 = vmatpush2.msra.mxu0 %v1716
      %1783 = vmatprep.subr.mxu0 0.0
      %1784 = vmatpush2.msra.mxu0 %v1715
      %1785 = vmatprep.subr.mxu0 0.0
      %1786 = vmatpush2.msra.mxu0 %v1714
      %1787 = vmatprep.subr.mxu0 0.0
      %1788 = vmatpush2.msra.mxu0 %v1713
      %1789 = vmatprep.subr.mxu0 0.0
      %1790 = vmatpush2.msra.mxu0 %v1712
      %1791 = vmatprep.subr.mxu0 0.0
      %1792 = vmatpush2.msra.mxu0 %v1711
      %1793 = vmatprep.subr.mxu0 0.0
      %1794 = vmatpush2.msra.mxu0 %v1710
      %1795 = vmatprep.subr.mxu0 0.0
      %1796 = vmatpush2.msra.mxu0 %v1709
      %1797 = vmatprep.subr.mxu0 0.0
      %1798 = vmatpush2.msra.mxu0 %v1708
      %1799 = vmatprep.subr.mxu0 0.0
      %1800 = vmatpush2.msra.mxu0 %v1707
      %1801 = vmatprep.subr.mxu0 0.0
      %1802 = vmatpush2.msra.mxu0 %v1706
      %1803 = vmatprep.subr.mxu0 0.0
      %1804 = vmatpush2.msra.mxu0 %v1705
      %1805 = vmatprep.subr.mxu0 0.0
      %1806 = vmatpush2.msra.mxu0 %v1704
      %1807 = vmatprep.mubr.f32.mxu0 %v1640
      %1808 = vmatmul.mubr.f32.gmra.mxu0 %v1639
      %v1809 = vpop.f32.mrf.mxu0
      %v1810 = vadd.f32 %v1741, %v1809
      %v1811 = vpop.f32.mrf.mxu0
      %1812 = vmatprep.mubr.f32.mxu0 %v1643
      %1813 = vmatmul.mubr.f32.gmra.mxu0 %v1642
      %v1814 = vpop.f32.mrf.mxu0
      %v1815 = vadd.f32 %v1741, %v1814
      %v1816 = vpop.f32.mrf.mxu0
      %1817 = vmatprep.mubr.f32.mxu0 %v1646
      %1818 = vmatmul.mubr.f32.gmra.mxu0 %v1645
      %v1819 = vpop.f32.mrf.mxu0
      %v1820 = vadd.f32 %v1741, %v1819
      %v1821 = vpop.f32.mrf.mxu0
      %1822 = vmatprep.mubr.f32.mxu0 %v1649
      %1823 = vmatmul.mubr.f32.gmra.mxu0 %v1648
      %v1824 = vpop.f32.mrf.mxu0
      %v1825 = vadd.f32 %v1741, %v1824
      %v1826 = vpop.f32.mrf.mxu0
      %1827 = vmatprep.mubr.f32.mxu0 %v1652
      %1828 = vmatmul.mubr.f32.gmra.mxu0 %v1651
      %v1829 = vpop.f32.mrf.mxu0
      %v1830 = vadd.f32 %v1741, %v1829
      %v1831 = vpop.f32.mrf.mxu0
      %1832 = vmatprep.mubr.f32.mxu0 %v1655
      %1833 = vmatmul.mubr.f32.gmra.mxu0 %v1654
      %v1834 = vpop.f32.mrf.mxu0
      %v1835 = vadd.f32 %v1741, %v1834
      %v1836 = vpop.f32.mrf.mxu0
      %1837 = vmatprep.mubr.f32.mxu0 %v1658
      %1838 = vmatmul.mubr.f32.gmra.mxu0 %v1657
      %v1839 = vpop.f32.mrf.mxu0
      %v1840 = vadd.f32 %v1741, %v1839
      %v1841 = vpop.f32.mrf.mxu0
      %1842 = vmatprep.mubr.f32.mxu0 %v1661
      %1843 = vmatmul.mubr.f32.gmra.mxu0 %v1660
      %v1844 = vpop.f32.mrf.mxu0
      %v1845 = vadd.f32 %v1741, %v1844
      %v1846 = vpop.f32.mrf.mxu0
      %1847 = vmatprep.mubr.f32.mxu0 %v1664
      %1848 = vmatmul.mubr.f32.gmra.mxu0 %v1663
      %v1849 = vpop.f32.mrf.mxu0
      %v1850 = vadd.f32 %v1741, %v1849
      %v1851 = vpop.f32.mrf.mxu0
      %1852 = vmatprep.mubr.f32.mxu0 %v1667
      %1853 = vmatmul.mubr.f32.gmra.mxu0 %v1666
      %v1854 = vpop.f32.mrf.mxu0
      %v1855 = vadd.f32 %v1741, %v1854
      %v1856 = vpop.f32.mrf.mxu0
      %1857 = vmatprep.mubr.f32.mxu0 %v1670
      %1858 = vmatmul.mubr.f32.gmra.mxu0 %v1669
      %v1859 = vpop.f32.mrf.mxu0
      %v1860 = vadd.f32 %v1741, %v1859
      %v1861 = vpop.f32.mrf.mxu0
      %1862 = vmatprep.mubr.f32.mxu0 %v1673
      %1863 = vmatmul.mubr.f32.gmra.mxu0 %v1672
      %v1864 = vpop.f32.mrf.mxu0
      %v1865 = vadd.f32 %v1741, %v1864
      %v1866 = vpop.f32.mrf.mxu0
      %1867 = vmatprep.mubr.f32.mxu0 %v1676
      %1868 = vmatmul.mubr.f32.gmra.mxu0 %v1675
      %v1869 = vpop.f32.mrf.mxu0
      %v1870 = vadd.f32 %v1741, %v1869
      %v1871 = vpop.f32.mrf.mxu0
      %1872 = vmatprep.mubr.f32.mxu0 %v1679
      %1873 = vmatmul.mubr.f32.gmra.mxu0 %v1678
      %v1874 = vpop.f32.mrf.mxu0
      %v1875 = vadd.f32 %v1741, %v1874
      %v1876 = vpop.f32.mrf.mxu0
      %1877 = vmatprep.mubr.f32.mxu0 %v1682
      %1878 = vmatmul.mubr.f32.gmra.mxu0 %v1681
      %v1879 = vpop.f32.mrf.mxu0
      %v1880 = vadd.f32 %v1741, %v1879
      %v1881 = vpop.f32.mrf.mxu0
      %1882 = vmatprep.mubr.f32.mxu0 %v1685
      %1883 = vmatmul.mubr.f32.gmra.mxu0 %v1684
      %v1884 = vpop.f32.mrf.mxu0
      %v1885 = vadd.f32 %v1741, %v1884
      %v1886 = vpop.f32.mrf.mxu0
      %1887 = vdwg.mxu0
      %1888 = vmatprep.subr.mxu0 0.0
      %1889 = vmatpush1.msra.mxu0 %v1735
      %1890 = vmatprep.subr.mxu0 0.0
      %1891 = vmatpush1.msra.mxu0 %v1734
      %1892 = vmatprep.subr.mxu0 0.0
      %1893 = vmatpush1.msra.mxu0 %v1733
      %1894 = vmatprep.subr.mxu0 0.0
      %1895 = vmatpush1.msra.mxu0 %v1732
      %1896 = vmatprep.subr.mxu0 0.0
      %1897 = vmatpush1.msra.mxu0 %v1731
      %1898 = vmatprep.subr.mxu0 0.0
      %1899 = vmatpush1.msra.mxu0 %v1730
      %1900 = vmatprep.subr.mxu0 0.0
      %1901 = vmatpush1.msra.mxu0 %v1729
      %1902 = vmatprep.subr.mxu0 0.0
      %1903 = vmatpush1.msra.mxu0 %v1728
      %1904 = vmatprep.subr.mxu0 0.0
      %1905 = vmatpush1.msra.mxu0 %v1727
      %1906 = vmatprep.subr.mxu0 0.0
      %1907 = vmatpush1.msra.mxu0 %v1726
      %1908 = vmatprep.subr.mxu0 0.0
      %1909 = vmatpush1.msra.mxu0 %v1725
      %1910 = vmatprep.subr.mxu0 0.0
      %1911 = vmatpush1.msra.mxu0 %v1724
      %1912 = vmatprep.subr.mxu0 0.0
      %1913 = vmatpush1.msra.mxu0 %v1723
      %1914 = vmatprep.subr.mxu0 0.0
      %1915 = vmatpush1.msra.mxu0 %v1722
      %1916 = vmatprep.subr.mxu0 0.0
      %1917 = vmatpush1.msra.mxu0 %v1721
      %1918 = vmatprep.subr.mxu0 0.0
      %1919 = vmatpush1.msra.mxu0 %v1720
      %1920 = vmatprep.subr.mxu0 0.0
      %1921 = vmatpush2.msra.mxu0 0.0
      %1922 = vmatprep.subr.mxu0 0.0
      %1923 = vmatpush2.msra.mxu0 0.0
      %1924 = vmatprep.subr.mxu0 0.0
      %1925 = vmatpush2.msra.mxu0 0.0
      %1926 = vmatprep.subr.mxu0 0.0
      %1927 = vmatpush2.msra.mxu0 0.0
      %1928 = vmatprep.subr.mxu0 0.0
      %1929 = vmatpush2.msra.mxu0 0.0
      %1930 = vmatprep.subr.mxu0 0.0
      %1931 = vmatpush2.msra.mxu0 0.0
      %1932 = vmatprep.subr.mxu0 0.0
      %1933 = vmatpush2.msra.mxu0 0.0
      %1934 = vmatprep.subr.mxu0 0.0
      %1935 = vmatpush2.msra.mxu0 0.0
      %1936 = vmatprep.subr.mxu0 0.0
      %1937 = vmatpush2.msra.mxu0 0.0
      %1938 = vmatprep.subr.mxu0 0.0
      %1939 = vmatpush2.msra.mxu0 0.0
      %1940 = vmatprep.subr.mxu0 0.0
      %1941 = vmatpush2.msra.mxu0 0.0
      %1942 = vmatprep.subr.mxu0 0.0
      %1943 = vmatpush2.msra.mxu0 0.0
      %1944 = vmatprep.subr.mxu0 0.0
      %1945 = vmatpush2.msra.mxu0 0.0
      %1946 = vmatprep.subr.mxu0 0.0
      %1947 = vmatpush2.msra.mxu0 0.0
      %1948 = vmatprep.subr.mxu0 0.0
      %1949 = vmatpush2.msra.mxu0 0.0
      %1950 = vmatprep.subr.mxu0 0.0
      %1951 = vmatpush2.msra.mxu0 0.0
      %1952 = vmatprep.mubr.f32.mxu0 0.0
      %1953 = vmatmul.mubr.f32.gmra.mxu0 %v1641
      %v1954 = vpop.f32.mrf.mxu0
      %v1955 = vadd.f32 %v1810, %v1954
      %v1956 = vpop.f32.mrf.mxu0
      %1957 = vmatprep.mubr.f32.mxu0 0.0
      %1958 = vmatmul.mubr.f32.gmra.mxu0 %v1644
      %v1959 = vpop.f32.mrf.mxu0
      %v1960 = vadd.f32 %v1815, %v1959
      %v1961 = vpop.f32.mrf.mxu0
      %1962 = vmatprep.mubr.f32.mxu0 0.0
      %1963 = vmatmul.mubr.f32.gmra.mxu0 %v1647
      %v1964 = vpop.f32.mrf.mxu0
      %v1965 = vadd.f32 %v1820, %v1964
      %v1966 = vpop.f32.mrf.mxu0
      %1967 = vmatprep.mubr.f32.mxu0 0.0
      %1968 = vmatmul.mubr.f32.gmra.mxu0 %v1650
      %v1969 = vpop.f32.mrf.mxu0
      %v1970 = vadd.f32 %v1825, %v1969
      %v1971 = vpop.f32.mrf.mxu0
      %1972 = vmatprep.mubr.f32.mxu0 0.0
      %1973 = vmatmul.mubr.f32.gmra.mxu0 %v1653
      %v1974 = vpop.f32.mrf.mxu0
      %v1975 = vadd.f32 %v1830, %v1974
      %v1976 = vpop.f32.mrf.mxu0
      %1977 = vmatprep.mubr.f32.mxu0 0.0
      %1978 = vmatmul.mubr.f32.gmra.mxu0 %v1656
      %v1979 = vpop.f32.mrf.mxu0
      %v1980 = vadd.f32 %v1835, %v1979
      %v1981 = vpop.f32.mrf.mxu0
      %1982 = vmatprep.mubr.f32.mxu0 0.0
      %1983 = vmatmul.mubr.f32.gmra.mxu0 %v1659
      %v1984 = vpop.f32.mrf.mxu0
      %v1985 = vadd.f32 %v1840, %v1984
      %v1986 = vpop.f32.mrf.mxu0
      %1987 = vmatprep.mubr.f32.mxu0 0.0
      %1988 = vmatmul.mubr.f32.gmra.mxu0 %v1662
      %v1989 = vpop.f32.mrf.mxu0
      %v1990 = vadd.f32 %v1845, %v1989
      %v1991 = vpop.f32.mrf.mxu0
      %1992 = vmatprep.mubr.f32.mxu0 0.0
      %1993 = vmatmul.mubr.f32.gmra.mxu0 %v1665
      %v1994 = vpop.f32.mrf.mxu0
      %v1995 = vadd.f32 %v1850, %v1994
      %v1996 = vpop.f32.mrf.mxu0
      %1997 = vmatprep.mubr.f32.mxu0 0.0
      %1998 = vmatmul.mubr.f32.gmra.mxu0 %v1668
      %v1999 = vpop.f32.mrf.mxu0
      %v2000 = vadd.f32 %v1855, %v1999
      %v2001 = vpop.f32.mrf.mxu0
      %2002 = vmatprep.mubr.f32.mxu0 0.0
      %2003 = vmatmul.mubr.f32.gmra.mxu0 %v1671
      %v2004 = vpop.f32.mrf.mxu0
      %v2005 = vadd.f32 %v1860, %v2004
      %v2006 = vpop.f32.mrf.mxu0
      %2007 = vmatprep.mubr.f32.mxu0 0.0
      %2008 = vmatmul.mubr.f32.gmra.mxu0 %v1674
      %v2009 = vpop.f32.mrf.mxu0
      %v2010 = vadd.f32 %v1865, %v2009
      %v2011 = vpop.f32.mrf.mxu0
      %2012 = vmatprep.mubr.f32.mxu0 0.0
      %2013 = vmatmul.mubr.f32.gmra.mxu0 %v1677
      %v2014 = vpop.f32.mrf.mxu0
      %v2015 = vadd.f32 %v1870, %v2014
      %v2016 = vpop.f32.mrf.mxu0
      %2017 = vmatprep.mubr.f32.mxu0 0.0
      %2018 = vmatmul.mubr.f32.gmra.mxu0 %v1680
      %v2019 = vpop.f32.mrf.mxu0
      %v2020 = vadd.f32 %v1875, %v2019
      %v2021 = vpop.f32.mrf.mxu0
      %2022 = vmatprep.mubr.f32.mxu0 0.0
      %2023 = vmatmul.mubr.f32.gmra.mxu0 %v1683
      %v2024 = vpop.f32.mrf.mxu0
      %v2025 = vadd.f32 %v1880, %v2024
      %v2026 = vpop.f32.mrf.mxu0
      %2027 = vmatprep.mubr.f32.mxu0 0.0
      %2028 = vmatmul.mubr.f32.gmra.mxu0 %v1686
      %v2029 = vpop.f32.mrf.mxu0
      %v2030 = vadd.f32 %v1885, %v2029
      %v2031 = vpop.f32.mrf.mxu0
      %2032 = vdwg.mxu0
      %s2033 = scalar_lea.vmem %s285, 128
      %2034 = vst [vmem:[%s2033] sm:$0xff] %v1955
      %2035 = vst [vmem:[%s2033 + $0x8] sm:$0xff] %v1960
      %2036 = vst [vmem:[%s2033 + $0x10] sm:$0xff] %v1965
      %2037 = vst [vmem:[%s2033 + $0x18] sm:$0xff] %v1970
      %2038 = vst [vmem:[%s2033 + $0x20] sm:$0xff] %v1975
      %2039 = vst [vmem:[%s2033 + $0x28] sm:$0xff] %v1980
      %2040 = vst [vmem:[%s2033 + $0x30] sm:$0xff] %v1985
      %2041 = vst [vmem:[%s2033 + $0x38] sm:$0xff] %v1990
      %2042 = vst [vmem:[%s2033 + $0x40] sm:$0xff] %v1995
      %2043 = vst [vmem:[%s2033 + $0x48] sm:$0xff] %v2000
      %2044 = vst [vmem:[%s2033 + $0x50] sm:$0xff] %v2005
      %2045 = vst [vmem:[%s2033 + $0x58] sm:$0xff] %v2010
      %2046 = vst [vmem:[%s2033 + $0x60] sm:$0xff] %v2015
      %2047 = vst [vmem:[%s2033 + $0x68] sm:$0xff] %v2020
      %2048 = vst [vmem:[%s2033 + $0x70] sm:$0xff] %v2025
      %2049 = vst [vmem:[%s2033 + $0x78] sm:$0xff] %v2030
      %v2050 = vadd.f32 %v1955, %v1960
      %v2051 = vadd.f32 %v2050, %v1965
      %v2052 = vadd.f32 %v2051, %v1970
      %v2053 = vadd.f32 %v2052, %v1975
      %v2054 = vadd.f32 %v2053, %v1980
      %v2055 = vadd.f32 %v2054, %v1985
      %v2056 = vadd.f32 %v2055, %v1990
      %v2057 = vadd.f32 %v2056, %v1995
      %v2058 = vadd.f32 %v2057, %v2000
      %v2059 = vadd.f32 %v2058, %v2005
      %v2060 = vadd.f32 %v2059, %v2010
      %v2061 = vadd.f32 %v2060, %v2015
      %v2062 = vadd.f32 %v2061, %v2020
      %v2063 = vadd.f32 %v2062, %v2025
      %v2064 = vadd.f32 %v2063, %v2030
      %v2065 = vrot.slane %v2064, 4
      %v2066 = vadd.f32 %v2064, %v2065
      %v2067 = vrot.slane %v2066, 2
      %v2068 = vadd.f32 %v2066, %v2067
      %v2069 = vrot.slane %v2068, 1
      %v2070 = vadd.f32 %v2068, %v2069
      %v2071 = vadd.f32 %v1216, %v2070
      %v2072 = vmul.f32 %v1955, %v1955
      %v2073 = vmul.f32 %v1960, %v1960
      %v2074 = vmul.f32 %v1965, %v1965
      %v2075 = vmul.f32 %v1970, %v1970
      %v2076 = vmul.f32 %v1975, %v1975
      %v2077 = vmul.f32 %v1980, %v1980
      %v2078 = vmul.f32 %v1985, %v1985
      %v2079 = vmul.f32 %v1990, %v1990
      %v2080 = vmul.f32 %v1995, %v1995
      %v2081 = vmul.f32 %v2000, %v2000
      %v2082 = vmul.f32 %v2005, %v2005
      %v2083 = vmul.f32 %v2010, %v2010
      %v2084 = vmul.f32 %v2015, %v2015
      %v2085 = vmul.f32 %v2020, %v2020
      %v2086 = vmul.f32 %v2025, %v2025
      %v2087 = vmul.f32 %v2030, %v2030
      %v2088 = vadd.f32 %v2072, %v2073
      %v2089 = vadd.f32 %v2088, %v2074
      %v2090 = vadd.f32 %v2089, %v2075
      %v2091 = vadd.f32 %v2090, %v2076
      %v2092 = vadd.f32 %v2091, %v2077
      %v2093 = vadd.f32 %v2092, %v2078
      %v2094 = vadd.f32 %v2093, %v2079
      %v2095 = vadd.f32 %v2094, %v2080
      %v2096 = vadd.f32 %v2095, %v2081
      %v2097 = vadd.f32 %v2096, %v2082
      %v2098 = vadd.f32 %v2097, %v2083
      %v2099 = vadd.f32 %v2098, %v2084
      %v2100 = vadd.f32 %v2099, %v2085
      %v2101 = vadd.f32 %v2100, %v2086
      %v2102 = vadd.f32 %v2101, %v2087
      %v2103 = vrot.slane %v2102, 4
      %v2104 = vadd.f32 %v2102, %v2103
      %v2105 = vrot.slane %v2104, 2
      %v2106 = vadd.f32 %v2104, %v2105
      %v2107 = vrot.slane %v2106, 1
      %v2108 = vadd.f32 %v2106, %v2107
      %v2109 = vadd.f32 %v1254, %v2108
      %2110 = vst [vmem:[%s289] sm:$0x1] %v2071
      %2111 = vst [vmem:[%s289 + $0x1] sm:$0x1] %v2109
      %p2112 = scmp.lt.s32.totalorder %s19, 1
      %s2113 = scalar_select %p2112, %s19, 1
      %s2114 = smul.addr %s2113, 32
      %s2115 = smul.addr %s2114, 8
      %s2116 = scalar_lea.vmem %s6, %s2115
      %p2117 = scmp.lt.s32.totalorder %s19, 1
      %s2118 = scalar_select %p2117, %s19, 1
      %s2119 = smul.addr %s2118, 2
      %s2120 = scalar_lea.vmem %s7, %s2119
      // Predicated region
      $region45: #{base_gen_block.7} parent=43 // pred_check
        %p2121 = pneg %p168
      $region46: #{base_gen_block.7} parent=43 // pred_check_branch
        %2123 = sbr.rel (%p2121) target = $region48
      $region47: #{base_gen_block.7} parent=43 // pred_region
        _
      $region48: #{base_gen_block.7} parent=43 // pred_fallthru
        _
      // Predicated region
      $region49: #{base_gen_block.7} parent=43 // pred_check
        %p2124 = pneg %p194
      $region50: #{base_gen_block.7} parent=43 // pred_check_branch
        %2126 = sbr.rel (%p2124) target = $region52
      $region51: #{base_gen_block.7} parent=43 // pred_region
        _
      $region52: #{base_gen_block.7} parent=43 // pred_fallthru
        _
    $region44: #{base_gen_block.7} parent=5 // pred_fallthru
      _
    %p2127 = scmp.le.s32.totalorder 2, %s14
    // Predicated region
    $region53: #{base_gen_block.7} parent=5 // pred_check
      %p2128 = pneg %p2127
    $region54: #{base_gen_block.7} parent=5 // pred_check_branch
      %2130 = sbr.rel (%p2128) target = $region56
    $region55: #{base_gen_block.7} parent=5 // pred_region
      %s2131 = ssub.s32 %s14, 2
      // Predicated region
      $region57: #{base_gen_block.7} parent=55 // pred_check
        %p2132 = pneg %p174
      $region58: #{base_gen_block.7} parent=55 // pred_check_branch
        %2134 = sbr.rel (%p2132) target = $region60
      $region59: #{base_gen_block.7} parent=55 // pred_region
        %p2135 = scmp.lt.s32.totalorder %s20, 1
        %s2136 = scalar_select %p2135, %s20, 1
        %s2137 = smul.addr %s2136, 32
        %s2138 = smul.addr %s2137, 8
        %s2139 = scalar_lea.vmem %s6, %s2138
      $region60: #{base_gen_block.7} parent=55 // pred_fallthru
        _
      // Predicated region
      $region61: #{base_gen_block.7} parent=55 // pred_check
        %p2140 = pneg %p200
      $region62: #{base_gen_block.7} parent=55 // pred_check_branch
        %2142 = sbr.rel (%p2140) target = $region64
      $region63: #{base_gen_block.7} parent=55 // pred_region
        %p2143 = scmp.lt.s32.totalorder %s20, 1
        %s2144 = scalar_select %p2143, %s20, 1
        %s2145 = smul.addr %s2144, 2
        %s2146 = scalar_lea.vmem %s7, %s2145
      $region64: #{base_gen_block.7} parent=55 // pred_fallthru
        _
    $region56: #{base_gen_block.7} parent=5 // pred_fallthru
      _
  $region6: #{base_gen_block.7} parent=0 // loop_footer
    %s18 = sadd.s32 1, %s14
  $region7: #{base_gen_block.7} parent=0 // loop_footer_branch
    %13 = sbr.rel target = $region3
  $region8: #{base_gen_block.7} parent=0 // loop_exit
    _

// kernel: base_gen_block.9
$region0: #{base_gen_block.9}
  #allocation0 [shape = 'u32[]', space=smem, size = 0x4, offset = 0x4, fixed_abs, tag = 'smem constant byte address 0x4 - core index']
  #allocation1 [shape = 'u32[144,128]{1,0:T(1,128)}', space=vmem, size = 0x12000, scoped, tag = 'internal scratch']
  #allocation2 [shape = 'f32[2,18,10,128]{3,2,1,0:T(8,128)}', space=vmem, size = 0x48000, scoped, tag = 'scratch operand']
  #allocation3 [shape = 'f32[128,1152]{1,0:T(8,128)}', space=vmem, size = 0x90000, scoped, tag = 'scratch operand']
  %s0 = inlined_call_operand.vmem [shape: f32[2,2,16,8,128], index: 0, kind: input, shape index: {}]
  %s1 = inlined_call_operand.vmem [shape: f32[2,128], index: 1, kind: input, shape index: {}]
  %s2 = inlined_call_operand.vmem [shape: f32[1,128], index: 2, kind: input, shape index: {}]
  %s3 = inlined_call_operand.vmem [shape: f32[1,128], index: 3, kind: input, shape index: {}]
  %s4 = inlined_call_operand.vmem [shape: f32[1152,128], index: 4, kind: input, shape index: {}]
  %s5 = inlined_call_operand.vmem [shape: f32[1,128], index: 5, kind: input, shape index: {}]
  %s6 = inlined_call_operand.vmem [shape: f32[2,8,8,64], index: 6, kind: input, shape index: {}]
  %s7 = inlined_call_operand.vmem [shape: f32[64,128], index: 7, kind: input, shape index: {}]
  %s8 = inlined_call_operand.vmem [shape: f32[1,128], index: 8, kind: input, shape index: {}]
  %s9 = inlined_call_operand.vmem [shape: f32[2,2,16,8,128], index: 9, kind: output, shape index: {}]
  %s10 = sld [smem:[#allocation0]]
  $region69: #{base_gen_block.9} parent=0
    _
  %s12 = ssub.s32 1, %s10
  %s13 = scalar_select 0, %s12, %s10
  loop: start=0, step=1, limit=4
  $region2: #{base_gen_block.9} parent=0 // loop_pre_header
    _
  $region3: #{base_gen_block.9} parent=0 // loop_header
    %s15 = sphi 0, %s19
    %p16 = scmp.ge.s32.totalorder %s15, 4
    %s25 = sphi 0, %s27
    %s28 = sphi 0, %s25
    %s29 = sphi 0, %s28
    %s45 = sphi 0, %s29
    %s49 = sphi 0, %s49
    %s51 = sphi 0, %s49
    %s52 = sphi 0, %s51
    %s66 = sphi 0, %s52
    %s70 = sphi 0, %s70
    %s72 = sphi 0, %s70
    %s73 = sphi 0, %s72
    %s87 = sphi 0, %s73
    %s91 = sphi 0, %s91
    %s93 = sphi 0, %s91
    %s94 = sphi 0, %s93
    %s108 = sphi 0, %s94
    %s112 = sphi 0, %s112
    %s114 = sphi 0, %s112
    %s115 = sphi 0, %s114
    %s129 = sphi 0, %s115
    %s133 = sphi 0, %s133
    %s135 = sphi 0, %s133
    %s136 = sphi 0, %s135
    %s150 = sphi 0, %s136
    %s156 = sphi 0, %s158
    %s159 = sphi 0, %s156
    %s160 = sphi 0, %s159
    %s176 = sphi 0, %s160
    %s180 = sphi 0, %s180
    %s182 = sphi 0, %s180
    %s183 = sphi 0, %s182
    %s197 = sphi 0, %s183
    %s201 = sphi 0, %s201
    %s203 = sphi 0, %s201
    %s204 = sphi 0, %s203
    %s218 = sphi 0, %s204
    %s224 = sphi 0, %s226
    %s227 = sphi 0, %s224
    %s228 = sphi 0, %s227
    %s244 = sphi 0, %s228
  $region4: #{base_gen_block.9} parent=0 // loop_header_branch
    %18 = sbr.rel (%p16) target = $region8
  $region5: #{base_gen_block.9} parent=0 // loop_body
    %s20 = ssub.s32 %s15, 1
    %s21 = ssub.s32 %s15, 2
    %s22 = sadd.s32 %s15, 1
    %s23 = ssub.s32 %s15, %s22
    %p24 = scmp.eq.s32.totalorder %s23, 0
    %s26 = sadd.s32 %s25, 1
    %s27 = scalar_select %p24, %s25, %s26
    %p30 = pneg %p24
    %p31 = scmp.eq.s32.totalorder %s15, 1
    %p32 = por %p30, %p31
    %p33 = scmp.ne.s32.totalorder %s25, %s28
    %p34 = scmp.eq.s32.totalorder %s15, 0
    %p35 = por %p33, %p34
    %p36 = scmp.ne.s32.totalorder %s25, %s28
    %p37 = scmp.eq.s32.totalorder %s20, 1
    %p38 = por %p36, %p37
    %p39 = scmp.ne.s32.totalorder %s28, %s29
    %p40 = scmp.eq.s32.totalorder %s20, 0
    %p41 = por %p39, %p40
    %p42 = scmp.ne.s32.totalorder %s28, %s29
    %p43 = scmp.eq.s32.totalorder %s21, 1
    %p44 = por %p42, %p43
    %p46 = scmp.ne.s32.totalorder %s29, %s45
    %p47 = scmp.eq.s32.totalorder %s21, 0
    %p48 = por %p46, %p47
    %s50 = sadd.s32 %s49, 1
    %p53 = scmp.eq.s32.totalorder %s15, 1
    %p54 = scmp.ne.s32.totalorder %s49, %s51
    %p55 = scmp.eq.s32.totalorder %s15, 0
    %p56 = por %p54, %p55
    %p57 = scmp.ne.s32.totalorder %s49, %s51
    %p58 = scmp.eq.s32.totalorder %s20, 1
    %p59 = por %p57, %p58
    %p60 = scmp.ne.s32.totalorder %s51, %s52
    %p61 = scmp.eq.s32.totalorder %s20, 0
    %p62 = por %p60, %p61
    %p63 = scmp.ne.s32.totalorder %s51, %s52
    %p64 = scmp.eq.s32.totalorder %s21, 1
    %p65 = por %p63, %p64
    %p67 = scmp.ne.s32.totalorder %s52, %s66
    %p68 = scmp.eq.s32.totalorder %s21, 0
    %p69 = por %p67, %p68
    %s71 = sadd.s32 %s70, 1
    %p74 = scmp.eq.s32.totalorder %s15, 1
    %p75 = scmp.ne.s32.totalorder %s70, %s72
    %p76 = scmp.eq.s32.totalorder %s15, 0
    %p77 = por %p75, %p76
    %p78 = scmp.ne.s32.totalorder %s70, %s72
    %p79 = scmp.eq.s32.totalorder %s20, 1
    %p80 = por %p78, %p79
    %p81 = scmp.ne.s32.totalorder %s72, %s73
    %p82 = scmp.eq.s32.totalorder %s20, 0
    %p83 = por %p81, %p82
    %p84 = scmp.ne.s32.totalorder %s72, %s73
    %p85 = scmp.eq.s32.totalorder %s21, 1
    %p86 = por %p84, %p85
    %p88 = scmp.ne.s32.totalorder %s73, %s87
    %p89 = scmp.eq.s32.totalorder %s21, 0
    %p90 = por %p88, %p89
    %s92 = sadd.s32 %s91, 1
    %p95 = scmp.eq.s32.totalorder %s15, 1
    %p96 = scmp.ne.s32.totalorder %s91, %s93
    %p97 = scmp.eq.s32.totalorder %s15, 0
    %p98 = por %p96, %p97
    %p99 = scmp.ne.s32.totalorder %s91, %s93
    %p100 = scmp.eq.s32.totalorder %s20, 1
    %p101 = por %p99, %p100
    %p102 = scmp.ne.s32.totalorder %s93, %s94
    %p103 = scmp.eq.s32.totalorder %s20, 0
    %p104 = por %p102, %p103
    %p105 = scmp.ne.s32.totalorder %s93, %s94
    %p106 = scmp.eq.s32.totalorder %s21, 1
    %p107 = por %p105, %p106
    %p109 = scmp.ne.s32.totalorder %s94, %s108
    %p110 = scmp.eq.s32.totalorder %s21, 0
    %p111 = por %p109, %p110
    %s113 = sadd.s32 %s112, 1
    %p116 = scmp.eq.s32.totalorder %s15, 1
    %p117 = scmp.ne.s32.totalorder %s112, %s114
    %p118 = scmp.eq.s32.totalorder %s15, 0
    %p119 = por %p117, %p118
    %p120 = scmp.ne.s32.totalorder %s112, %s114
    %p121 = scmp.eq.s32.totalorder %s20, 1
    %p122 = por %p120, %p121
    %p123 = scmp.ne.s32.totalorder %s114, %s115
    %p124 = scmp.eq.s32.totalorder %s20, 0
    %p125 = por %p123, %p124
    %p126 = scmp.ne.s32.totalorder %s114, %s115
    %p127 = scmp.eq.s32.totalorder %s21, 1
    %p128 = por %p126, %p127
    %p130 = scmp.ne.s32.totalorder %s115, %s129
    %p131 = scmp.eq.s32.totalorder %s21, 0
    %p132 = por %p130, %p131
    %s134 = sadd.s32 %s133, 1
    %p137 = scmp.eq.s32.totalorder %s15, 1
    %p138 = scmp.ne.s32.totalorder %s133, %s135
    %p139 = scmp.eq.s32.totalorder %s15, 0
    %p140 = por %p138, %p139
    %p141 = scmp.ne.s32.totalorder %s133, %s135
    %p142 = scmp.eq.s32.totalorder %s20, 1
    %p143 = por %p141, %p142
    %p144 = scmp.ne.s32.totalorder %s135, %s136
    %p145 = scmp.eq.s32.totalorder %s20, 0
    %p146 = por %p144, %p145
    %p147 = scmp.ne.s32.totalorder %s135, %s136
    %p148 = scmp.eq.s32.totalorder %s21, 1
    %p149 = por %p147, %p148
    %p151 = scmp.ne.s32.totalorder %s136, %s150
    %p152 = scmp.eq.s32.totalorder %s21, 0
    %p153 = por %p151, %p152
    %s154 = ssub.s32 %s15, %s22
    %p155 = scmp.eq.s32.totalorder %s154, 0
    %s157 = sadd.s32 %s156, 1
    %s158 = scalar_select %p155, %s156, %s157
    %p161 = pneg %p155
    %p162 = scmp.eq.s32.totalorder %s15, 1
    %p163 = por %p161, %p162
    %p164 = scmp.ne.s32.totalorder %s156, %s159
    %p165 = scmp.eq.s32.totalorder %s15, 0
    %p166 = por %p164, %p165
    %p167 = scmp.ne.s32.totalorder %s156, %s159
    %p168 = scmp.eq.s32.totalorder %s20, 1
    %p169 = por %p167, %p168
    %p170 = scmp.ne.s32.totalorder %s159, %s160
    %p171 = scmp.eq.s32.totalorder %s20, 0
    %p172 = por %p170, %p171
    %p173 = scmp.ne.s32.totalorder %s159, %s160
    %p174 = scmp.eq.s32.totalorder %s21, 1
    %p175 = por %p173, %p174
    %p177 = scmp.ne.s32.totalorder %s160, %s176
    %p178 = scmp.eq.s32.totalorder %s21, 0
    %p179 = por %p177, %p178
    %s181 = sadd.s32 %s180, 1
    %p184 = scmp.eq.s32.totalorder %s15, 1
    %p185 = scmp.ne.s32.totalorder %s180, %s182
    %p186 = scmp.eq.s32.totalorder %s15, 0
    %p187 = por %p185, %p186
    %p188 = scmp.ne.s32.totalorder %s180, %s182
    %p189 = scmp.eq.s32.totalorder %s20, 1
    %p190 = por %p188, %p189
    %p191 = scmp.ne.s32.totalorder %s182, %s183
    %p192 = scmp.eq.s32.totalorder %s20, 0
    %p193 = por %p191, %p192
    %p194 = scmp.ne.s32.totalorder %s182, %s183
    %p195 = scmp.eq.s32.totalorder %s21, 1
    %p196 = por %p194, %p195
    %p198 = scmp.ne.s32.totalorder %s183, %s197
    %p199 = scmp.eq.s32.totalorder %s21, 0
    %p200 = por %p198, %p199
    %s202 = sadd.s32 %s201, 1
    %p205 = scmp.eq.s32.totalorder %s15, 1
    %p206 = scmp.ne.s32.totalorder %s201, %s203
    %p207 = scmp.eq.s32.totalorder %s15, 0
    %p208 = por %p206, %p207
    %p209 = scmp.ne.s32.totalorder %s201, %s203
    %p210 = scmp.eq.s32.totalorder %s20, 1
    %p211 = por %p209, %p210
    %p212 = scmp.ne.s32.totalorder %s203, %s204
    %p213 = scmp.eq.s32.totalorder %s20, 0
    %p214 = por %p212, %p213
    %p215 = scmp.ne.s32.totalorder %s203, %s204
    %p216 = scmp.eq.s32.totalorder %s21, 1
    %p217 = por %p215, %p216
    %p219 = scmp.ne.s32.totalorder %s204, %s218
    %p220 = scmp.eq.s32.totalorder %s21, 0
    %p221 = por %p219, %p220
    %s222 = ssub.s32 %s15, %s22
    %p223 = scmp.eq.s32.totalorder %s222, 0
    %s225 = sadd.s32 %s224, 1
    %s226 = scalar_select %p223, %s224, %s225
    %p229 = pneg %p223
    %p230 = scmp.eq.s32.totalorder %s15, 1
    %p231 = por %p229, %p230
    %p232 = scmp.ne.s32.totalorder %s224, %s227
    %p233 = scmp.eq.s32.totalorder %s15, 0
    %p234 = por %p232, %p233
    %p235 = scmp.ne.s32.totalorder %s224, %s227
    %p236 = scmp.eq.s32.totalorder %s20, 1
    %p237 = por %p235, %p236
    %p238 = scmp.ne.s32.totalorder %s227, %s228
    %p239 = scmp.eq.s32.totalorder %s20, 0
    %p240 = por %p238, %p239
    %p241 = scmp.ne.s32.totalorder %s227, %s228
    %p242 = scmp.eq.s32.totalorder %s21, 1
    %p243 = por %p241, %p242
    %p245 = scmp.ne.s32.totalorder %s228, %s244
    %p246 = scmp.eq.s32.totalorder %s21, 0
    %p247 = por %p245, %p246
    %p248 = scmp.le.s32.totalorder 1, %s15
    %p249 = scmp.lt.s32.totalorder %s15, 3
    %p250 = pnand %p248, %p249
    %p251 = pneg %p250
    // Predicated region
    $region9: #{base_gen_block.9} parent=5 // pred_check
      _
    $region10: #{base_gen_block.9} parent=5 // pred_check_branch
      %253 = sbr.rel (%p250) target = $region12
    $region11: #{base_gen_block.9} parent=5 // pred_region
      %s254 = ssub.s32 %s15, 1
      // Predicated region
      $region13: #{base_gen_block.9} parent=11 // pred_check
        %p255 = pneg %p62
      $region14: #{base_gen_block.9} parent=11 // pred_check_branch
        %257 = sbr.rel (%p255) target = $region16
      $region15: #{base_gen_block.9} parent=11 // pred_region
        _
      $region16: #{base_gen_block.9} parent=11 // pred_fallthru
        _
      // Predicated region
      $region17: #{base_gen_block.9} parent=11 // pred_check
        %p258 = pneg %p83
      $region18: #{base_gen_block.9} parent=11 // pred_check_branch
        %260 = sbr.rel (%p258) target = $region20
      $region19: #{base_gen_block.9} parent=11 // pred_region
        _
      $region20: #{base_gen_block.9} parent=11 // pred_fallthru
        _
      // Predicated region
      $region21: #{base_gen_block.9} parent=11 // pred_check
        %p261 = pneg %p104
      $region22: #{base_gen_block.9} parent=11 // pred_check_branch
        %263 = sbr.rel (%p261) target = $region24
      $region23: #{base_gen_block.9} parent=11 // pred_region
        _
      $region24: #{base_gen_block.9} parent=11 // pred_fallthru
        _
      // Predicated region
      $region25: #{base_gen_block.9} parent=11 // pred_check
        %p264 = pneg %p125
      $region26: #{base_gen_block.9} parent=11 // pred_check_branch
        %266 = sbr.rel (%p264) target = $region28
      $region27: #{base_gen_block.9} parent=11 // pred_region
        _
      $region28: #{base_gen_block.9} parent=11 // pred_fallthru
        _
      // Predicated region
      $region29: #{base_gen_block.9} parent=11 // pred_check
        %p267 = pneg %p146
      $region30: #{base_gen_block.9} parent=11 // pred_check_branch
        %269 = sbr.rel (%p267) target = $region32
      $region31: #{base_gen_block.9} parent=11 // pred_region
        _
      $region32: #{base_gen_block.9} parent=11 // pred_fallthru
        _
      // Predicated region
      $region33: #{base_gen_block.9} parent=11 // pred_check
        %p270 = pneg %p193
      $region34: #{base_gen_block.9} parent=11 // pred_check_branch
        %272 = sbr.rel (%p270) target = $region36
      $region35: #{base_gen_block.9} parent=11 // pred_region
        _
      $region36: #{base_gen_block.9} parent=11 // pred_fallthru
        _
      // Predicated region
      $region37: #{base_gen_block.9} parent=11 // pred_check
        %p273 = pneg %p214
      $region38: #{base_gen_block.9} parent=11 // pred_check_branch
        %275 = sbr.rel (%p273) target = $region40
      $region39: #{base_gen_block.9} parent=11 // pred_region
        _
      $region40: #{base_gen_block.9} parent=11 // pred_fallthru
        _
    $region12: #{base_gen_block.9} parent=5 // pred_fallthru
      _
    %p276 = scmp.lt.s32.totalorder %s15, 2
    // Predicated region
    $region41: #{base_gen_block.9} parent=5 // pred_check
      %p277 = pneg %p276
    $region42: #{base_gen_block.9} parent=5 // pred_check_branch
      %279 = sbr.rel (%p277) target = $region44
    $region43: #{base_gen_block.9} parent=5 // pred_region
      // Predicated region
      $region45: #{base_gen_block.9} parent=43 // pred_check
        %p280 = pneg %p35
      $region46: #{base_gen_block.9} parent=43 // pred_check_branch
        %282 = sbr.rel (%p280) target = $region48
      $region47: #{base_gen_block.9} parent=43 // pred_region
        %p283 = scmp.lt.s32.totalorder %s15, 1
        %s284 = scalar_select %p283, %s15, 1
        %s285 = smul.addr %s284, 32
        %s286 = smul.addr %s285, 8
        %s287 = scalar_lea.vmem %s0, %s286
      $region48: #{base_gen_block.9} parent=43 // pred_fallthru
        _
      // Predicated region
      $region49: #{base_gen_block.9} parent=43 // pred_check
        %p288 = pneg %p166
      $region50: #{base_gen_block.9} parent=43 // pred_check_branch
        %290 = sbr.rel (%p288) target = $region52
      $region51: #{base_gen_block.9} parent=43 // pred_region
        %p291 = scmp.lt.s32.totalorder %s15, 1
        %s292 = scalar_select %p291, %s15, 1
        %s293 = smul.addr %s292, 8
        %s294 = smul.addr %s293, 8
        %s295 = scalar_lea.vmem %s6, %s294
      $region52: #{base_gen_block.9} parent=43 // pred_fallthru
        _
    $region44: #{base_gen_block.9} parent=5 // pred_fallthru
      _
    %p296 = scmp.le.s32.totalorder 1, %s15
    %p297 = scmp.lt.s32.totalorder %s15, 3
    %p298 = pnand %p296, %p297
    %p299 = pneg %p298
    // Predicated region
    $region53: #{base_gen_block.9} parent=5 // pred_check
      _
    $region54: #{base_gen_block.9} parent=5 // pred_check_branch
      %301 = sbr.rel (%p298) target = $region56
    $region55: #{base_gen_block.9} parent=5 // pred_region
      %s302 = ssub.s32 %s15, 1
      %p303 = scmp.lt.s32.totalorder %s20, 1
      %s304 = scalar_select %p303, %s20, 1
      %s305 = smul.addr %s304, 32
      %s306 = smul.addr %s305, 8
      %s307 = scalar_lea.vmem %s0, %s306
      %p308 = pneg %p41
      %p309 = pneg %p38
      %p310 = pneg %p62
      %p311 = pneg %p59
      %p312 = pneg %p83
      %p313 = pneg %p80
      %p314 = pneg %p104
      %p315 = pneg %p101
      %p316 = pneg %p125
      %p317 = pneg %p122
      %p318 = pneg %p146
      %p319 = pneg %p143
      %p320 = scmp.lt.s32.totalorder %s20, 1
      %s321 = scalar_select %p320, %s20, 1
      %s322 = smul.addr %s321, 8
      %s323 = smul.addr %s322, 8
      %s324 = scalar_lea.vmem %s6, %s323
      %p325 = pneg %p172
      %p326 = pneg %p169
      %p327 = pneg %p193
      %p328 = pneg %p190
      %p329 = pneg %p214
      %p330 = pneg %p211
      %p331 = pneg %p240
      %p332 = pneg %p237
      %p333 = scmp.lt.s32.totalorder %s20, 1
      %s334 = scalar_select %p333, %s20, 1
      %s335 = smul.addr %s334, 32
      %s336 = smul.addr %s335, 8
      %s337 = scalar_lea.vmem %s9, %s336
      %p338 = scmp.lt.s32.totalorder %s20, 1
      %s339 = scalar_select %p338, %s20, 1
      %s340 = smul.addr %s339, 32
      %s341 = smul.addr %s340, 8
      %s342 = scalar_lea.vmem %s0, %s341
      %p343 = scmp.lt.s32.totalorder %s20, 1
      %s344 = scalar_select %p343, %s20, 1
      %s345 = smul.addr %s344, 8
      %s346 = smul.addr %s345, 8
      %s347 = scalar_lea.vmem %s6, %s346
      %p348 = scmp.lt.s32.totalorder %s20, 1
      %s349 = scalar_select %p348, %s20, 1
      %s350 = smul.addr %s349, 32
      %s351 = smul.addr %s350, 8
      %s352 = scalar_lea.vmem %s9, %s351
      %v353 = vld [vmem:[%s1] sm:$0x1]
      %v354 = vld [vmem:[%s1 + $0x1] sm:$0x1]
      %v355 = vld [vmem:[%s2] sm:$0x1]
      %v356 = vmul.f32 %v354, %v355
      %v357 = vld [vmem:[%s3] sm:$0x1]
      %v358 = vmul.f32 %v353, %v356
      %v359 = vsub.f32 %v357, %v358
      %360 = vst [vmem:[#allocation2] sm:$0xff] 0.0
      %361 = vst [vmem:[#allocation2 + $0x8] sm:$0x3] 0.0
      %s362 = scalar_lea.vmem [#allocation2], 272
      %363 = vst [vmem:[%s362] sm:$0xff] 0.0
      %364 = vst [vmem:[%s362 + $0x8] sm:$0x3] 0.0
      %365 = vst [vmem:[#allocation2] sm:$0x1] 0.0
      %366 = vst [vmem:[#allocation2 + $0x10] sm:$0x1] 0.0
      %367 = vst [vmem:[#allocation2 + $0x20] sm:$0x1] 0.0
      %368 = vst [vmem:[#allocation2 + $0x30] sm:$0x1] 0.0
      %369 = vst [vmem:[#allocation2 + $0x40] sm:$0x1] 0.0
      %370 = vst [vmem:[#allocation2 + $0x50] sm:$0x1] 0.0
      %371 = vst [vmem:[#allocation2 + $0x60] sm:$0x1] 0.0
      %372 = vst [vmem:[#allocation2 + $0x70] sm:$0x1] 0.0
      %373 = vst [vmem:[#allocation2 + $0x80] sm:$0x1] 0.0
      %374 = vst [vmem:[#allocation2 + $0x90] sm:$0x1] 0.0
      %375 = vst [vmem:[#allocation2 + $0xa0] sm:$0x1] 0.0
      %376 = vst [vmem:[#allocation2 + $0xb0] sm:$0x1] 0.0
      %377 = vst [vmem:[#allocation2 + $0xc0] sm:$0x1] 0.0
      %378 = vst [vmem:[#allocation2 + $0xd0] sm:$0x1] 0.0
      %379 = vst [vmem:[#allocation2 + $0xe0] sm:$0x1] 0.0
      %380 = vst [vmem:[#allocation2 + $0xf0] sm:$0x1] 0.0
      %381 = vst [vmem:[#allocation2 + $0x100] sm:$0x1] 0.0
      %382 = vst [vmem:[#allocation2 + $0x110] sm:$0x1] 0.0
      %383 = vst [vmem:[#allocation2 + $0x9] sm:$0x1] 0.0
      %384 = vst [vmem:[#allocation2 + $0x19] sm:$0x1] 0.0
      %385 = vst [vmem:[#allocation2 + $0x29] sm:$0x1] 0.0
      %386 = vst [vmem:[#allocation2 + $0x39] sm:$0x1] 0.0
      %387 = vst [vmem:[#allocation2 + $0x49] sm:$0x1] 0.0
      %388 = vst [vmem:[#allocation2 + $0x59] sm:$0x1] 0.0
      %389 = vst [vmem:[#allocation2 + $0x69] sm:$0x1] 0.0
      %390 = vst [vmem:[#allocation2 + $0x79] sm:$0x1] 0.0
      %391 = vst [vmem:[#allocation2 + $0x89] sm:$0x1] 0.0
      %392 = vst [vmem:[#allocation2 + $0x99] sm:$0x1] 0.0
      %393 = vst [vmem:[#allocation2 + $0xa9] sm:$0x1] 0.0
      %394 = vst [vmem:[#allocation2 + $0xb9] sm:$0x1] 0.0
      %395 = vst [vmem:[#allocation2 + $0xc9] sm:$0x1] 0.0
      %396 = vst [vmem:[#allocation2 + $0xd9] sm:$0x1] 0.0
      %397 = vst [vmem:[#allocation2 + $0xe9] sm:$0x1] 0.0
      %398 = vst [vmem:[#allocation2 + $0xf9] sm:$0x1] 0.0
      %399 = vst [vmem:[#allocation2 + $0x109] sm:$0x1] 0.0
      %400 = vst [vmem:[#allocation2 + $0x119] sm:$0x1] 0.0
      %v401 = vld [vmem:[%s342] sm:$0xff]
      %v402 = vld [vmem:[%s342 + $0x8] sm:$0xff]
      %v403 = vld [vmem:[%s342 + $0x10] sm:$0xff]
      %v404 = vld [vmem:[%s342 + $0x18] sm:$0xff]
      %v405 = vld [vmem:[%s342 + $0x20] sm:$0xff]
      %v406 = vld [vmem:[%s342 + $0x28] sm:$0xff]
      %v407 = vld [vmem:[%s342 + $0x30] sm:$0xff]
      %v408 = vld [vmem:[%s342 + $0x38] sm:$0xff]
      %v409 = vld [vmem:[%s342 + $0x40] sm:$0xff]
      %v410 = vld [vmem:[%s342 + $0x48] sm:$0xff]
      %v411 = vld [vmem:[%s342 + $0x50] sm:$0xff]
      %v412 = vld [vmem:[%s342 + $0x58] sm:$0xff]
      %v413 = vld [vmem:[%s342 + $0x60] sm:$0xff]
      %v414 = vld [vmem:[%s342 + $0x68] sm:$0xff]
      %v415 = vld [vmem:[%s342 + $0x70] sm:$0xff]
      %v416 = vld [vmem:[%s342 + $0x78] sm:$0xff]
      %v417 = vlaneseq
      %v418 = vshrl.u32 %v417, 7
      %v419 = vsub.s32 0, %v418
      %v420 = vrot.slane %v356, %v419
      %v421 = vmul.f32 %v401, %v420
      %v422 = vmul.f32 %v402, %v420
      %v423 = vmul.f32 %v403, %v420
      %v424 = vmul.f32 %v404, %v420
      %v425 = vmul.f32 %v405, %v420
      %v426 = vmul.f32 %v406, %v420
      %v427 = vmul.f32 %v407, %v420
      %v428 = vmul.f32 %v408, %v420
      %v429 = vmul.f32 %v409, %v420
      %v430 = vmul.f32 %v410, %v420
      %v431 = vmul.f32 %v411, %v420
      %v432 = vmul.f32 %v412, %v420
      %v433 = vmul.f32 %v413, %v420
      %v434 = vmul.f32 %v414, %v420
      %v435 = vmul.f32 %v415, %v420
      %v436 = vmul.f32 %v416, %v420
      %v438 = vlaneseq
      %v439 = vshrl.u32 %v438, 7
      %v440 = vsub.s32 0, %v439
      %v441 = vrot.slane %v359, %v440
      %v443 = vadd.f32 %v421, %v441
      %v444 = vadd.f32 %v422, %v441
      %v445 = vadd.f32 %v423, %v441
      %v446 = vadd.f32 %v424, %v441
      %v447 = vadd.f32 %v425, %v441
      %v448 = vadd.f32 %v426, %v441
      %v449 = vadd.f32 %v427, %v441
      %v450 = vadd.f32 %v428, %v441
      %v451 = vadd.f32 %v429, %v441
      %v452 = vadd.f32 %v430, %v441
      %v453 = vadd.f32 %v431, %v441
      %v454 = vadd.f32 %v432, %v441
      %v455 = vadd.f32 %v433, %v441
      %v456 = vadd.f32 %v434, %v441
      %v457 = vadd.f32 %v435, %v441
      %v458 = vadd.f32 %v436, %v441
      %v459 = vmax.f32 %v443, 0.0
      %v460 = vmax.f32 %v444, 0.0
      %v461 = vmax.f32 %v445, 0.0
      %v462 = vmax.f32 %v446, 0.0
      %v463 = vmax.f32 %v447, 0.0
      %v464 = vmax.f32 %v448, 0.0
      %v465 = vmax.f32 %v449, 0.0
      %v466 = vmax.f32 %v450, 0.0
      %v467 = vmax.f32 %v451, 0.0
      %v468 = vmax.f32 %v452, 0.0
      %v469 = vmax.f32 %v453, 0.0
      %v470 = vmax.f32 %v454, 0.0
      %v471 = vmax.f32 %v455, 0.0
      %v472 = vmax.f32 %v456, 0.0
      %v473 = vmax.f32 %v457, 0.0
      %v474 = vmax.f32 %v458, 0.0
      %s475 = scalar_lea.vmem [#allocation2], 16
      %476 = vst [vmem:[%s475 + $0x1] sm:$0xff] %v459
      %477 = vst [vmem:[%s475 + $0x11] sm:$0xff] %v460
      %478 = vst [vmem:[%s475 + $0x21] sm:$0xff] %v461
      %479 = vst [vmem:[%s475 + $0x31] sm:$0xff] %v462
      %480 = vst [vmem:[%s475 + $0x41] sm:$0xff] %v463
      %481 = vst [vmem:[%s475 + $0x51] sm:$0xff] %v464
      %482 = vst [vmem:[%s475 + $0x61] sm:$0xff] %v465
      %483 = vst [vmem:[%s475 + $0x71] sm:$0xff] %v466
      %484 = vst [vmem:[%s475 + $0x81] sm:$0xff] %v467
      %485 = vst [vmem:[%s475 + $0x91] sm:$0xff] %v468
      %486 = vst [vmem:[%s475 + $0xa1] sm:$0xff] %v469
      %487 = vst [vmem:[%s475 + $0xb1] sm:$0xff] %v470
      %488 = vst [vmem:[%s475 + $0xc1] sm:$0xff] %v471
      %489 = vst [vmem:[%s475 + $0xd1] sm:$0xff] %v472
      %490 = vst [vmem:[%s475 + $0xe1] sm:$0xff] %v473
      %491 = vst [vmem:[%s475 + $0xf1] sm:$0xff] %v474
      %s492 = scalar_lea.vmem [#allocation2], 288
      %493 = vst [vmem:[%s492] sm:$0xff] 0.0
      %494 = vst [vmem:[%s492 + $0x8] sm:$0x3] 0.0
      %s495 = scalar_lea.vmem [#allocation2], 560
      %496 = vst [vmem:[%s495] sm:$0xff] 0.0
      %497 = vst [vmem:[%s495 + $0x8] sm:$0x3] 0.0
      %498 = vst [vmem:[%s492] sm:$0x1] 0.0
      %499 = vst [vmem:[%s492 + $0x10] sm:$0x1] 0.0
      %500 = vst [vmem:[%s492 + $0x20] sm:$0x1] 0.0
      %501 = vst [vmem:[%s492 + $0x30] sm:$0x1] 0.0
      %502 = vst [vmem:[%s492 + $0x40] sm:$0x1] 0.0
      %503 = vst [vmem:[%s492 + $0x50] sm:$0x1] 0.0
      %504 = vst [vmem:[%s492 + $0x60] sm:$0x1] 0.0
      %505 = vst [vmem:[%s492 + $0x70] sm:$0x1] 0.0
      %506 = vst [vmem:[%s492 + $0x80] sm:$0x1] 0.0
      %507 = vst [vmem:[%s492 + $0x90] sm:$0x1] 0.0
      %508 = vst [vmem:[%s492 + $0xa0] sm:$0x1] 0.0
      %509 = vst [vmem:[%s492 + $0xb0] sm:$0x1] 0.0
      %510 = vst [vmem:[%s492 + $0xc0] sm:$0x1] 0.0
      %511 = vst [vmem:[%s492 + $0xd0] sm:$0x1] 0.0
      %512 = vst [vmem:[%s492 + $0xe0] sm:$0x1] 0.0
      %513 = vst [vmem:[%s492 + $0xf0] sm:$0x1] 0.0
      %514 = vst [vmem:[%s492 + $0x100] sm:$0x1] 0.0
      %515 = vst [vmem:[%s492 + $0x110] sm:$0x1] 0.0
      %516 = vst [vmem:[%s492 + $0x9] sm:$0x1] 0.0
      %517 = vst [vmem:[%s492 + $0x19] sm:$0x1] 0.0
      %518 = vst [vmem:[%s492 + $0x29] sm:$0x1] 0.0
      %519 = vst [vmem:[%s492 + $0x39] sm:$0x1] 0.0
      %520 = vst [vmem:[%s492 + $0x49] sm:$0x1] 0.0
      %521 = vst [vmem:[%s492 + $0x59] sm:$0x1] 0.0
      %522 = vst [vmem:[%s492 + $0x69] sm:$0x1] 0.0
      %523 = vst [vmem:[%s492 + $0x79] sm:$0x1] 0.0
      %524 = vst [vmem:[%s492 + $0x89] sm:$0x1] 0.0
      %525 = vst [vmem:[%s492 + $0x99] sm:$0x1] 0.0
      %526 = vst [vmem:[%s492 + $0xa9] sm:$0x1] 0.0
      %527 = vst [vmem:[%s492 + $0xb9] sm:$0x1] 0.0
      %528 = vst [vmem:[%s492 + $0xc9] sm:$0x1] 0.0
      %529 = vst [vmem:[%s492 + $0xd9] sm:$0x1] 0.0
      %530 = vst [vmem:[%s492 + $0xe9] sm:$0x1] 0.0
      %531 = vst [vmem:[%s492 + $0xf9] sm:$0x1] 0.0
      %532 = vst [vmem:[%s492 + $0x109] sm:$0x1] 0.0
      %533 = vst [vmem:[%s492 + $0x119] sm:$0x1] 0.0
      %s534 = scalar_lea.vmem %s342, 128
      %v535 = vld [vmem:[%s534] sm:$0xff]
      %v536 = vld [vmem:[%s534 + $0x8] sm:$0xff]
      %v537 = vld [vmem:[%s534 + $0x10] sm:$0xff]
      %v538 = vld [vmem:[%s534 + $0x18] sm:$0xff]
      %v539 = vld [vmem:[%s534 + $0x20] sm:$0xff]
      %v540 = vld [vmem:[%s534 + $0x28] sm:$0xff]
      %v541 = vld [vmem:[%s534 + $0x30] sm:$0xff]
      %v542 = vld [vmem:[%s534 + $0x38] sm:$0xff]
      %v543 = vld [vmem:[%s534 + $0x40] sm:$0xff]
      %v544 = vld [vmem:[%s534 + $0x48] sm:$0xff]
      %v545 = vld [vmem:[%s534 + $0x50] sm:$0xff]
      %v546 = vld [vmem:[%s534 + $0x58] sm:$0xff]
      %v547 = vld [vmem:[%s534 + $0x60] sm:$0xff]
      %v548 = vld [vmem:[%s534 + $0x68] sm:$0xff]
      %v549 = vld [vmem:[%s534 + $0x70] sm:$0xff]
      %v550 = vld [vmem:[%s534 + $0x78] sm:$0xff]
      %v551 = vmul.f32 %v535, %v420
      %v552 = vmul.f32 %v536, %v420
      %v553 = vmul.f32 %v537, %v420
      %v554 = vmul.f32 %v538, %v420
      %v555 = vmul.f32 %v539, %v420
      %v556 = vmul.f32 %v540, %v420
      %v557 = vmul.f32 %v541, %v420
      %v558 = vmul.f32 %v542, %v420
      %v559 = vmul.f32 %v543, %v420
      %v560 = vmul.f32 %v544, %v420
      %v561 = vmul.f32 %v545, %v420
      %v562 = vmul.f32 %v546, %v420
      %v563 = vmul.f32 %v547, %v420
      %v564 = vmul.f32 %v548, %v420
      %v565 = vmul.f32 %v549, %v420
      %v566 = vmul.f32 %v550, %v420
      %v567 = vadd.f32 %v551, %v441
      %v568 = vadd.f32 %v552, %v441
      %v569 = vadd.f32 %v553, %v441
      %v570 = vadd.f32 %v554, %v441
      %v571 = vadd.f32 %v555, %v441
      %v572 = vadd.f32 %v556, %v441
      %v573 = vadd.f32 %v557, %v441
      %v574 = vadd.f32 %v558, %v441
      %v575 = vadd.f32 %v559, %v441
      %v576 = vadd.f32 %v560, %v441
      %v577 = vadd.f32 %v561, %v441
      %v578 = vadd.f32 %v562, %v441
      %v579 = vadd.f32 %v563, %v441
      %v580 = vadd.f32 %v564, %v441
      %v581 = vadd.f32 %v565, %v441
      %v582 = vadd.f32 %v566, %v441
      %v583 = vmax.f32 %v567, 0.0
      %v584 = vmax.f32 %v568, 0.0
      %v585 = vmax.f32 %v569, 0.0
      %v586 = vmax.f32 %v570, 0.0
      %v587 = vmax.f32 %v571, 0.0
      %v588 = vmax.f32 %v572, 0.0
      %v589 = vmax.f32 %v573, 0.0
      %v590 = vmax.f32 %v574, 0.0
      %v591 = vmax.f32 %v575, 0.0
      %v592 = vmax.f32 %v576, 0.0
      %v593 = vmax.f32 %v577, 0.0
      %v594 = vmax.f32 %v578, 0.0
      %v595 = vmax.f32 %v579, 0.0
      %v596 = vmax.f32 %v580, 0.0
      %v597 = vmax.f32 %v581, 0.0
      %v598 = vmax.f32 %v582, 0.0
      %s599 = scalar_lea.vmem [#allocation2], 304
      %600 = vst [vmem:[%s599 + $0x1] sm:$0xff] %v583
      %601 = vst [vmem:[%s599 + $0x11] sm:$0xff] %v584
      %602 = vst [vmem:[%s599 + $0x21] sm:$0xff] %v585
      %603 = vst [vmem:[%s599 + $0x31] sm:$0xff] %v586
      %604 = vst [vmem:[%s599 + $0x41] sm:$0xff] %v587
      %605 = vst [vmem:[%s599 + $0x51] sm:$0xff] %v588
      %606 = vst [vmem:[%s599 + $0x61] sm:$0xff] %v589
      %607 = vst [vmem:[%s599 + $0x71] sm:$0xff] %v590
      %608 = vst [vmem:[%s599 + $0x81] sm:$0xff] %v591
      %609 = vst [vmem:[%s599 + $0x91] sm:$0xff] %v592
      %610 = vst [vmem:[%s599 + $0xa1] sm:$0xff] %v593
      %611 = vst [vmem:[%s599 + $0xb1] sm:$0xff] %v594
      %612 = vst [vmem:[%s599 + $0xc1] sm:$0xff] %v595
      %613 = vst [vmem:[%s599 + $0xd1] sm:$0xff] %v596
      %614 = vst [vmem:[%s599 + $0xe1] sm:$0xff] %v597
      %615 = vst [vmem:[%s599 + $0xf1] sm:$0xff] %v598
      %v616 = vld [vmem:[%s347] sm:$0xff]
      %v617 = vld [vmem:[%s347 + $0x8] sm:$0xff]
      %v618 = vld [vmem:[%s347 + $0x10] sm:$0xff]
      %v619 = vld [vmem:[%s347 + $0x18] sm:$0xff]
      %v620 = vld [vmem:[%s347 + $0x20] sm:$0xff]
      %v621 = vld [vmem:[%s347 + $0x28] sm:$0xff]
      %v622 = vld [vmem:[%s347 + $0x30] sm:$0xff]
      %v623 = vld [vmem:[%s347 + $0x38] sm:$0xff]
      %v624 = vld [vmem:[%s7] sm:$0xff]
      %v625 = vld [vmem:[%s7 + $0x8] sm:$0xff]
      %v626 = vld [vmem:[%s7 + $0x10] sm:$0xff]
      %v627 = vld [vmem:[%s7 + $0x18] sm:$0xff]
      %v628 = vld [vmem:[%s7 + $0x20] sm:$0xff]
      %v629 = vld [vmem:[%s7 + $0x28] sm:$0xff]
      %v630 = vld [vmem:[%s7 + $0x30] sm:$0xff]
      %v631 = vld [vmem:[%s7 + $0x38] sm:$0xff]
      %v632 = vld [vmem:[%s8] sm:$0x1]
      %v634 = vlaneseq
      %v635 = vshrl.u32 %v634, 7
      %v636 = vsub.s32 0, %v635
      %v637 = vrot.slane %v632, %v636
      %vm639 = vcmask 523264
      %v641 = vsel %vm639, %v616, 0
      %v644 = vsel %vm639, %v617, 0
      %v647 = vsel %vm639, %v618, 0
      %v650 = vsel %vm639, %v619, 0
      %v653 = vsel %vm639, %v620, 0
      %v656 = vsel %vm639, %v621, 0
      %v659 = vsel %vm639, %v622, 0
      %v662 = vsel %vm639, %v623, 0
      %664 = vmatprep.subr.mxu0 0.0
      %665 = vmatpush1.msra.mxu0 0.0
      %666 = vmatprep.subr.mxu0 0.0
      %667 = vmatpush1.msra.mxu0 0.0
      %668 = vmatprep.subr.mxu0 0.0
      %669 = vmatpush1.msra.mxu0 0.0
      %670 = vmatprep.subr.mxu0 0.0
      %671 = vmatpush1.msra.mxu0 0.0
      %672 = vmatprep.subr.mxu0 0.0
      %673 = vmatpush1.msra.mxu0 0.0
      %674 = vmatprep.subr.mxu0 0.0
      %675 = vmatpush1.msra.mxu0 0.0
      %676 = vmatprep.subr.mxu0 0.0
      %677 = vmatpush1.msra.mxu0 0.0
      %678 = vmatprep.subr.mxu0 0.0
      %679 = vmatpush1.msra.mxu0 0.0
      %680 = vmatprep.subr.mxu0 0.0
      %681 = vmatpush1.msra.mxu0 %v631
      %682 = vmatprep.subr.mxu0 0.0
      %683 = vmatpush1.msra.mxu0 %v630
      %684 = vmatprep.subr.mxu0 0.0
      %685 = vmatpush1.msra.mxu0 %v629
      %686 = vmatprep.subr.mxu0 0.0
      %687 = vmatpush1.msra.mxu0 %v628
      %688 = vmatprep.subr.mxu0 0.0
      %689 = vmatpush1.msra.mxu0 %v627
      %690 = vmatprep.subr.mxu0 0.0
      %691 = vmatpush1.msra.mxu0 %v626
      %692 = vmatprep.subr.mxu0 0.0
      %693 = vmatpush1.msra.mxu0 %v625
      %694 = vmatprep.subr.mxu0 0.0
      %695 = vmatpush1.msra.mxu0 %v624
      %696 = vmatprep.subr.mxu0 0.0
      %697 = vmatpush2.msra.mxu0 0.0
      %698 = vmatprep.subr.mxu0 0.0
      %699 = vmatpush2.msra.mxu0 0.0
      %700 = vmatprep.subr.mxu0 0.0
      %701 = vmatpush2.msra.mxu0 0.0
      %702 = vmatprep.subr.mxu0 0.0
      %703 = vmatpush2.msra.mxu0 0.0
      %704 = vmatprep.subr.mxu0 0.0
      %705 = vmatpush2.msra.mxu0 0.0
      %706 = vmatprep.subr.mxu0 0.0
      %707 = vmatpush2.msra.mxu0 0.0
      %708 = vmatprep.subr.mxu0 0.0
      %709 = vmatpush2.msra.mxu0 0.0
      %710 = vmatprep.subr.mxu0 0.0
      %711 = vmatpush2.msra.mxu0 0.0
      %712 = vmatprep.subr.mxu0 0.0
      %713 = vmatpush2.msra.mxu0 0.0
      %714 = vmatprep.subr.mxu0 0.0
      %715 = vmatpush2.msra.mxu0 0.0
      %716 = vmatprep.subr.mxu0 0.0
      %717 = vmatpush2.msra.mxu0 0.0
      %718 = vmatprep.subr.mxu0 0.0
      %719 = vmatpush2.msra.mxu0 0.0
      %720 = vmatprep.subr.mxu0 0.0
      %721 = vmatpush2.msra.mxu0 0.0
      %722 = vmatprep.subr.mxu0 0.0
      %723 = vmatpush2.msra.mxu0 0.0
      %724 = vmatprep.subr.mxu0 0.0
      %725 = vmatpush2.msra.mxu0 0.0
      %726 = vmatprep.subr.mxu0 0.0
      %727 = vmatpush2.msra.mxu0 0.0
      %728 = vmatprep.mubr.f32.mxu0 0.0
      %729 = vmatmul.mubr.f32.gmra.mxu0 %v641
      %v730 = vpop.f32.mrf.mxu0
      %v731 = vadd.f32 %v637, %v730
      %v732 = vpop.f32.mrf.mxu0
      %733 = vmatprep.mubr.f32.mxu0 0.0
      %734 = vmatmul.mubr.f32.gmra.mxu0 %v644
      %v735 = vpop.f32.mrf.mxu0
      %v736 = vadd.f32 %v637, %v735
      %v737 = vpop.f32.mrf.mxu0
      %738 = vmatprep.mubr.f32.mxu0 0.0
      %739 = vmatmul.mubr.f32.gmra.mxu0 %v647
      %v740 = vpop.f32.mrf.mxu0
      %v741 = vadd.f32 %v637, %v740
      %v742 = vpop.f32.mrf.mxu0
      %743 = vmatprep.mubr.f32.mxu0 0.0
      %744 = vmatmul.mubr.f32.gmra.mxu0 %v650
      %v745 = vpop.f32.mrf.mxu0
      %v746 = vadd.f32 %v637, %v745
      %v747 = vpop.f32.mrf.mxu0
      %748 = vmatprep.mubr.f32.mxu0 0.0
      %749 = vmatmul.mubr.f32.gmra.mxu0 %v653
      %v750 = vpop.f32.mrf.mxu0
      %v751 = vadd.f32 %v637, %v750
      %v752 = vpop.f32.mrf.mxu0
      %753 = vmatprep.mubr.f32.mxu0 0.0
      %754 = vmatmul.mubr.f32.gmra.mxu0 %v656
      %v755 = vpop.f32.mrf.mxu0
      %v756 = vadd.f32 %v637, %v755
      %v757 = vpop.f32.mrf.mxu0
      %758 = vmatprep.mubr.f32.mxu0 0.0
      %759 = vmatmul.mubr.f32.gmra.mxu0 %v659
      %v760 = vpop.f32.mrf.mxu0
      %v761 = vadd.f32 %v637, %v760
      %v762 = vpop.f32.mrf.mxu0
      %763 = vmatprep.mubr.f32.mxu0 0.0
      %764 = vmatmul.mubr.f32.gmra.mxu0 %v662
      %v765 = vpop.f32.mrf.mxu0
      %v766 = vadd.f32 %v637, %v765
      %v767 = vpop.f32.mrf.mxu0
      %768 = vdwg.mxu0
      %v769 = vld [vmem:[%s492] sm:$0xff]
      %v770 = vld [vmem:[%s492 + $0x10] sm:$0xff]
      %v771 = vld [vmem:[%s492 + $0x20] sm:$0xff]
      %v772 = vld [vmem:[%s492 + $0x30] sm:$0xff]
      %v773 = vld [vmem:[%s492 + $0x40] sm:$0xff]
      %v774 = vld [vmem:[%s492 + $0x50] sm:$0xff]
      %v775 = vld [vmem:[%s492 + $0x60] sm:$0xff]
      %v776 = vld [vmem:[%s492 + $0x70] sm:$0xff]
      %v777 = vld [vmem:[%s492 + $0x80] sm:$0xff]
      %v778 = vld [vmem:[%s492 + $0x90] sm:$0xff]
      %v779 = vld [vmem:[%s492 + $0xa0] sm:$0xff]
      %v780 = vld [vmem:[%s492 + $0xb0] sm:$0xff]
      %v781 = vld [vmem:[%s492 + $0xc0] sm:$0xff]
      %v782 = vld [vmem:[%s492 + $0xd0] sm:$0xff]
      %v783 = vld [vmem:[%s492 + $0xe0] sm:$0xff]
      %v784 = vld [vmem:[%s492 + $0xf0] sm:$0xff]
      %785 = vst [vmem:[#allocation3] sm:$0xff] %v769
      %786 = vst [vmem:[#allocation3 + $0x48] sm:$0xff] %v770
      %787 = vst [vmem:[#allocation3 + $0x90] sm:$0xff] %v771
      %788 = vst [vmem:[#allocation3 + $0xd8] sm:$0xff] %v772
      %789 = vst [vmem:[#allocation3 + $0x120] sm:$0xff] %v773
      %790 = vst [vmem:[#allocation3 + $0x168] sm:$0xff] %v774
      %791 = vst [vmem:[#allocation3 + $0x1b0] sm:$0xff] %v775
      %792 = vst [vmem:[#allocation3 + $0x1f8] sm:$0xff] %v776
      %793 = vst [vmem:[#allocation3 + $0x240] sm:$0xff] %v777
      %794 = vst [vmem:[#allocation3 + $0x288] sm:$0xff] %v778
      %795 = vst [vmem:[#allocation3 + $0x2d0] sm:$0xff] %v779
      %796 = vst [vmem:[#allocation3 + $0x318] sm:$0xff] %v780
      %797 = vst [vmem:[#allocation3 + $0x360] sm:$0xff] %v781
      %798 = vst [vmem:[#allocation3 + $0x3a8] sm:$0xff] %v782
      %799 = vst [vmem:[#allocation3 + $0x3f0] sm:$0xff] %v783
      %800 = vst [vmem:[#allocation3 + $0x438] sm:$0xff] %v784
      %v801 = vld [vmem:[#allocation2 + $0x1] sm:$0xff]
      %v802 = vld [vmem:[#allocation2 + $0x11] sm:$0xff]
      %v803 = vld [vmem:[#allocation2 + $0x21] sm:$0xff]
      %v804 = vld [vmem:[#allocation2 + $0x31] sm:$0xff]
      %v805 = vld [vmem:[#allocation2 + $0x41] sm:$0xff]
      %v806 = vld [vmem:[#allocation2 + $0x51] sm:$0xff]
      %v807 = vld [vmem:[#allocation2 + $0x61] sm:$0xff]
      %v808 = vld [vmem:[#allocation2 + $0x71] sm:$0xff]
      %v809 = vld [vmem:[#allocation2 + $0x81] sm:$0xff]
      %v810 = vld [vmem:[#allocation2 + $0x91] sm:$0xff]
      %v811 = vld [vmem:[#allocation2 + $0xa1] sm:$0xff]
      %v812 = vld [vmem:[#allocation2 + $0xb1] sm:$0xff]
      %v813 = vld [vmem:[#allocation2 + $0xc1] sm:$0xff]
      %v814 = vld [vmem:[#allocation2 + $0xd1] sm:$0xff]
      %v815 = vld [vmem:[#allocation2 + $0xe1] sm:$0xff]
      %v816 = vld [vmem:[#allocation2 + $0xf1] sm:$0xff]
      %817 = vst [vmem:[#allocation3 + $0x8] sm:$0xff] %v801
      %818 = vst [vmem:[#allocation3 + $0x50] sm:$0xff] %v802
      %819 = vst [vmem:[#allocation3 + $0x98] sm:$0xff] %v803
      %820 = vst [vmem:[#allocation3 + $0xe0] sm:$0xff] %v804
      %821 = vst [vmem:[#allocation3 + $0x128] sm:$0xff] %v805
      %822 = vst [vmem:[#allocation3 + $0x170] sm:$0xff] %v806
      %823 = vst [vmem:[#allocation3 + $0x1b8] sm:$0xff] %v807
      %824 = vst [vmem:[#allocation3 + $0x200] sm:$0xff] %v808
      %825 = vst [vmem:[#allocation3 + $0x248] sm:$0xff] %v809
      %826 = vst [vmem:[#allocation3 + $0x290] sm:$0xff] %v810
      %827 = vst [vmem:[#allocation3 + $0x2d8] sm:$0xff] %v811
      %828 = vst [vmem:[#allocation3 + $0x320] sm:$0xff] %v812
      %829 = vst [vmem:[#allocation3 + $0x368] sm:$0xff] %v813
      %830 = vst [vmem:[#allocation3 + $0x3b0] sm:$0xff] %v814
      %831 = vst [vmem:[#allocation3 + $0x3f8] sm:$0xff] %v815
      %832 = vst [vmem:[#allocation3 + $0x440] sm:$0xff] %v816
      %v833 = vld [vmem:[%s492 + $0x1] sm:$0xff]
      %v834 = vld [vmem:[%s492 + $0x11] sm:$0xff]
      %v835 = vld [vmem:[%s492 + $0x21] sm:$0xff]
      %v836 = vld [vmem:[%s492 + $0x31] sm:$0xff]
      %v837 = vld [vmem:[%s492 + $0x41] sm:$0xff]
      %v838 = vld [vmem:[%s492 + $0x51] sm:$0xff]
      %v839 = vld [vmem:[%s492 + $0x61] sm:$0xff]
      %v840 = vld [vmem:[%s492 + $0x71] sm:$0xff]
      %v841 = vld [vmem:[%s492 + $0x81] sm:$0xff]
      %v842 = vld [vmem:[%s492 + $0x91] sm:$0xff]
      %v843 = vld [vmem:[%s492 + $0xa1] sm:$0xff]
      %v844 = vld [vmem:[%s492 + $0xb1] sm:$0xff]
      %v845 = vld [vmem:[%s492 + $0xc1] sm:$0xff]
      %v846 = vld [vmem:[%s492 + $0xd1] sm:$0xff]
      %v847 = vld [vmem:[%s492 + $0xe1] sm:$0xff]
      %v848 = vld [vmem:[%s492 + $0xf1] sm:$0xff]
      %849 = vst [vmem:[#allocation3 + $0x10] sm:$0xff] %v833
      %850 = vst [vmem:[#allocation3 + $0x58] sm:$0xff] %v834
      %851 = vst [vmem:[#allocation3 + $0xa0] sm:$0xff] %v835
      %852 = vst [vmem:[#allocation3 + $0xe8] sm:$0xff] %v836
      %853 = vst [vmem:[#allocation3 + $0x130] sm:$0xff] %v837
      %854 = vst [vmem:[#allocation3 + $0x178] sm:$0xff] %v838
      %855 = vst [vmem:[#allocation3 + $0x1c0] sm:$0xff] %v839
      %856 = vst [vmem:[#allocation3 + $0x208] sm:$0xff] %v840
      %857 = vst [vmem:[#allocation3 + $0x250] sm:$0xff] %v841
      %858 = vst [vmem:[#allocation3 + $0x298] sm:$0xff] %v842
      %859 = vst [vmem:[#allocation3 + $0x2e0] sm:$0xff] %v843
      %860 = vst [vmem:[#allocation3 + $0x328] sm:$0xff] %v844
      %861 = vst [vmem:[#allocation3 + $0x370] sm:$0xff] %v845
      %862 = vst [vmem:[#allocation3 + $0x3b8] sm:$0xff] %v846
      %863 = vst [vmem:[#allocation3 + $0x400] sm:$0xff] %v847
      %864 = vst [vmem:[#allocation3 + $0x448] sm:$0xff] %v848
      %v865 = vld [vmem:[%s599] sm:$0xff]
      %v866 = vld [vmem:[%s599 + $0x10] sm:$0xff]
      %v867 = vld [vmem:[%s599 + $0x20] sm:$0xff]
      %v868 = vld [vmem:[%s599 + $0x30] sm:$0xff]
      %v869 = vld [vmem:[%s599 + $0x40] sm:$0xff]
      %v870 = vld [vmem:[%s599 + $0x50] sm:$0xff]
      %v871 = vld [vmem:[%s599 + $0x60] sm:$0xff]
      %v872 = vld [vmem:[%s599 + $0x70] sm:$0xff]
      %v873 = vld [vmem:[%s599 + $0x80] sm:$0xff]
      %v874 = vld [vmem:[%s599 + $0x90] sm:$0xff]
      %v875 = vld [vmem:[%s599 + $0xa0] sm:$0xff]
      %v876 = vld [vmem:[%s599 + $0xb0] sm:$0xff]
      %v877 = vld [vmem:[%s599 + $0xc0] sm:$0xff]
      %v878 = vld [vmem:[%s599 + $0xd0] sm:$0xff]
      %v879 = vld [vmem:[%s599 + $0xe0] sm:$0xff]
      %v880 = vld [vmem:[%s599 + $0xf0] sm:$0xff]
      %881 = vst [vmem:[#allocation3 + $0x18] sm:$0xff] %v865
      %882 = vst [vmem:[#allocation3 + $0x60] sm:$0xff] %v866
      %883 = vst [vmem:[#allocation3 + $0xa8] sm:$0xff] %v867
      %884 = vst [vmem:[#allocation3 + $0xf0] sm:$0xff] %v868
      %885 = vst [vmem:[#allocation3 + $0x138] sm:$0xff] %v869
      %886 = vst [vmem:[#allocation3 + $0x180] sm:$0xff] %v870
      %887 = vst [vmem:[#allocation3 + $0x1c8] sm:$0xff] %v871
      %888 = vst [vmem:[#allocation3 + $0x210] sm:$0xff] %v872
      %889 = vst [vmem:[#allocation3 + $0x258] sm:$0xff] %v873
      %890 = vst [vmem:[#allocation3 + $0x2a0] sm:$0xff] %v874
      %891 = vst [vmem:[#allocation3 + $0x2e8] sm:$0xff] %v875
      %892 = vst [vmem:[#allocation3 + $0x330] sm:$0xff] %v876
      %893 = vst [vmem:[#allocation3 + $0x378] sm:$0xff] %v877
      %894 = vst [vmem:[#allocation3 + $0x3c0] sm:$0xff] %v878
      %895 = vst [vmem:[#allocation3 + $0x408] sm:$0xff] %v879
      %896 = vst [vmem:[#allocation3 + $0x450] sm:$0xff] %v880
      %v897 = vld [vmem:[%s475 + $0x1] sm:$0xff]
      %v898 = vld [vmem:[%s475 + $0x11] sm:$0xff]
      %v899 = vld [vmem:[%s475 + $0x21] sm:$0xff]
      %v900 = vld [vmem:[%s475 + $0x31] sm:$0xff]
      %v901 = vld [vmem:[%s475 + $0x41] sm:$0xff]
      %v902 = vld [vmem:[%s475 + $0x51] sm:$0xff]
      %v903 = vld [vmem:[%s475 + $0x61] sm:$0xff]
      %v904 = vld [vmem:[%s475 + $0x71] sm:$0xff]
      %v905 = vld [vmem:[%s475 + $0x81] sm:$0xff]
      %v906 = vld [vmem:[%s475 + $0x91] sm:$0xff]
      %v907 = vld [vmem:[%s475 + $0xa1] sm:$0xff]
      %v908 = vld [vmem:[%s475 + $0xb1] sm:$0xff]
      %v909 = vld [vmem:[%s475 + $0xc1] sm:$0xff]
      %v910 = vld [vmem:[%s475 + $0xd1] sm:$0xff]
      %v911 = vld [vmem:[%s475 + $0xe1] sm:$0xff]
      %v912 = vld [vmem:[%s475 + $0xf1] sm:$0xff]
      %913 = vst [vmem:[#allocation3 + $0x20] sm:$0xff] %v897
      %914 = vst [vmem:[#allocation3 + $0x68] sm:$0xff] %v898
      %915 = vst [vmem:[#allocation3 + $0xb0] sm:$0xff] %v899
      %916 = vst [vmem:[#allocation3 + $0xf8] sm:$0xff] %v900
      %917 = vst [vmem:[#allocation3 + $0x140] sm:$0xff] %v901
      %918 = vst [vmem:[#allocation3 + $0x188] sm:$0xff] %v902
      %919 = vst [vmem:[#allocation3 + $0x1d0] sm:$0xff] %v903
      %920 = vst [vmem:[#allocation3 + $0x218] sm:$0xff] %v904
      %921 = vst [vmem:[#allocation3 + $0x260] sm:$0xff] %v905
      %922 = vst [vmem:[#allocation3 + $0x2a8] sm:$0xff] %v906
      %923 = vst [vmem:[#allocation3 + $0x2f0] sm:$0xff] %v907
      %924 = vst [vmem:[#allocation3 + $0x338] sm:$0xff] %v908
      %925 = vst [vmem:[#allocation3 + $0x380] sm:$0xff] %v909
      %926 = vst [vmem:[#allocation3 + $0x3c8] sm:$0xff] %v910
      %927 = vst [vmem:[#allocation3 + $0x410] sm:$0xff] %v911
      %928 = vst [vmem:[#allocation3 + $0x458] sm:$0xff] %v912
      %v929 = vld [vmem:[%s599 + $0x1] sm:$0xff]
      %v930 = vld [vmem:[%s599 + $0x11] sm:$0xff]
      %v931 = vld [vmem:[%s599 + $0x21] sm:$0xff]
      %v932 = vld [vmem:[%s599 + $0x31] sm:$0xff]
      %v933 = vld [vmem:[%s599 + $0x41] sm:$0xff]
      %v934 = vld [vmem:[%s599 + $0x51] sm:$0xff]
      %v935 = vld [vmem:[%s599 + $0x61] sm:$0xff]
      %v936 = vld [vmem:[%s599 + $0x71] sm:$0xff]
      %v937 = vld [vmem:[%s599 + $0x81] sm:$0xff]
      %v938 = vld [vmem:[%s599 + $0x91] sm:$0xff]
      %v939 = vld [vmem:[%s599 + $0xa1] sm:$0xff]
      %v940 = vld [vmem:[%s599 + $0xb1] sm:$0xff]
      %v941 = vld [vmem:[%s599 + $0xc1] sm:$0xff]
      %v942 = vld [vmem:[%s599 + $0xd1] sm:$0xff]
      %v943 = vld [vmem:[%s599 + $0xe1] sm:$0xff]
      %v944 = vld [vmem:[%s599 + $0xf1] sm:$0xff]
      %945 = vst [vmem:[#allocation3 + $0x28] sm:$0xff] %v929
      %946 = vst [vmem:[#allocation3 + $0x70] sm:$0xff] %v930
      %947 = vst [vmem:[#allocation3 + $0xb8] sm:$0xff] %v931
      %948 = vst [vmem:[#allocation3 + $0x100] sm:$0xff] %v932
      %949 = vst [vmem:[#allocation3 + $0x148] sm:$0xff] %v933
      %950 = vst [vmem:[#allocation3 + $0x190] sm:$0xff] %v934
      %951 = vst [vmem:[#allocation3 + $0x1d8] sm:$0xff] %v935
      %952 = vst [vmem:[#allocation3 + $0x220] sm:$0xff] %v936
      %953 = vst [vmem:[#allocation3 + $0x268] sm:$0xff] %v937
      %954 = vst [vmem:[#allocation3 + $0x2b0] sm:$0xff] %v938
      %955 = vst [vmem:[#allocation3 + $0x2f8] sm:$0xff] %v939
      %956 = vst [vmem:[#allocation3 + $0x340] sm:$0xff] %v940
      %957 = vst [vmem:[#allocation3 + $0x388] sm:$0xff] %v941
      %958 = vst [vmem:[#allocation3 + $0x3d0] sm:$0xff] %v942
      %959 = vst [vmem:[#allocation3 + $0x418] sm:$0xff] %v943
      %960 = vst [vmem:[#allocation3 + $0x460] sm:$0xff] %v944
      %s961 = scalar_lea.vmem [#allocation2], 320
      %v962 = vld [vmem:[%s961] sm:$0xff]
      %v963 = vld [vmem:[%s961 + $0x10] sm:$0xff]
      %v964 = vld [vmem:[%s961 + $0x20] sm:$0xff]
      %v965 = vld [vmem:[%s961 + $0x30] sm:$0xff]
      %v966 = vld [vmem:[%s961 + $0x40] sm:$0xff]
      %v967 = vld [vmem:[%s961 + $0x50] sm:$0xff]
      %v968 = vld [vmem:[%s961 + $0x60] sm:$0xff]
      %v969 = vld [vmem:[%s961 + $0x70] sm:$0xff]
      %v970 = vld [vmem:[%s961 + $0x80] sm:$0xff]
      %v971 = vld [vmem:[%s961 + $0x90] sm:$0xff]
      %v972 = vld [vmem:[%s961 + $0xa0] sm:$0xff]
      %v973 = vld [vmem:[%s961 + $0xb0] sm:$0xff]
      %v974 = vld [vmem:[%s961 + $0xc0] sm:$0xff]
      %v975 = vld [vmem:[%s961 + $0xd0] sm:$0xff]
      %v976 = vld [vmem:[%s961 + $0xe0] sm:$0xff]
      %v977 = vld [vmem:[%s961 + $0xf0] sm:$0xff]
      %978 = vst [vmem:[#allocation3 + $0x30] sm:$0xff] %v962
      %979 = vst [vmem:[#allocation3 + $0x78] sm:$0xff] %v963
      %980 = vst [vmem:[#allocation3 + $0xc0] sm:$0xff] %v964
      %981 = vst [vmem:[#allocation3 + $0x108] sm:$0xff] %v965
      %982 = vst [vmem:[#allocation3 + $0x150] sm:$0xff] %v966
      %983 = vst [vmem:[#allocation3 + $0x198] sm:$0xff] %v967
      %984 = vst [vmem:[#allocation3 + $0x1e0] sm:$0xff] %v968
      %985 = vst [vmem:[#allocation3 + $0x228] sm:$0xff] %v969
      %986 = vst [vmem:[#allocation3 + $0x270] sm:$0xff] %v970
      %987 = vst [vmem:[#allocation3 + $0x2b8] sm:$0xff] %v971
      %988 = vst [vmem:[#allocation3 + $0x300] sm:$0xff] %v972
      %989 = vst [vmem:[#allocation3 + $0x348] sm:$0xff] %v973
      %990 = vst [vmem:[#allocation3 + $0x390] sm:$0xff] %v974
      %991 = vst [vmem:[#allocation3 + $0x3d8] sm:$0xff] %v975
      %992 = vst [vmem:[#allocation3 + $0x420] sm:$0xff] %v976
      %993 = vst [vmem:[#allocation3 + $0x468] sm:$0xff] %v977
      %s994 = scalar_lea.vmem [#allocation2], 32
      %v995 = vld [vmem:[%s994 + $0x1] sm:$0xff]
      %v996 = vld [vmem:[%s994 + $0x11] sm:$0xff]
      %v997 = vld [vmem:[%s994 + $0x21] sm:$0xff]
      %v998 = vld [vmem:[%s994 + $0x31] sm:$0xff]
      %v999 = vld [vmem:[%s994 + $0x41] sm:$0xff]
      %v1000 = vld [vmem:[%s994 + $0x51] sm:$0xff]
      %v1001 = vld [vmem:[%s994 + $0x61] sm:$0xff]
      %v1002 = vld [vmem:[%s994 + $0x71] sm:$0xff]
      %v1003 = vld [vmem:[%s994 + $0x81] sm:$0xff]
      %v1004 = vld [vmem:[%s994 + $0x91] sm:$0xff]
      %v1005 = vld [vmem:[%s994 + $0xa1] sm:$0xff]
      %v1006 = vld [vmem:[%s994 + $0xb1] sm:$0xff]
      %v1007 = vld [vmem:[%s994 + $0xc1] sm:$0xff]
      %v1008 = vld [vmem:[%s994 + $0xd1] sm:$0xff]
      %v1009 = vld [vmem:[%s994 + $0xe1] sm:$0xff]
      %v1010 = vld [vmem:[%s994 + $0xf1] sm:$0xff]
      %1011 = vst [vmem:[#allocation3 + $0x38] sm:$0xff] %v995
      %1012 = vst [vmem:[#allocation3 + $0x80] sm:$0xff] %v996
      %1013 = vst [vmem:[#allocation3 + $0xc8] sm:$0xff] %v997
      %1014 = vst [vmem:[#allocation3 + $0x110] sm:$0xff] %v998
      %1015 = vst [vmem:[#allocation3 + $0x158] sm:$0xff] %v999
      %1016 = vst [vmem:[#allocation3 + $0x1a0] sm:$0xff] %v1000
      %1017 = vst [vmem:[#allocation3 + $0x1e8] sm:$0xff] %v1001
      %1018 = vst [vmem:[#allocation3 + $0x230] sm:$0xff] %v1002
      %1019 = vst [vmem:[#allocation3 + $0x278] sm:$0xff] %v1003
      %1020 = vst [vmem:[#allocation3 + $0x2c0] sm:$0xff] %v1004
      %1021 = vst [vmem:[#allocation3 + $0x308] sm:$0xff] %v1005
      %1022 = vst [vmem:[#allocation3 + $0x350] sm:$0xff] %v1006
      %1023 = vst [vmem:[#allocation3 + $0x398] sm:$0xff] %v1007
      %1024 = vst [vmem:[#allocation3 + $0x3e0] sm:$0xff] %v1008
      %1025 = vst [vmem:[#allocation3 + $0x428] sm:$0xff] %v1009
      %1026 = vst [vmem:[#allocation3 + $0x470] sm:$0xff] %v1010
      %v1027 = vld [vmem:[%s961 + $0x1] sm:$0xff]
      %v1028 = vld [vmem:[%s961 + $0x11] sm:$0xff]
      %v1029 = vld [vmem:[%s961 + $0x21] sm:$0xff]
      %v1030 = vld [vmem:[%s961 + $0x31] sm:$0xff]
      %v1031 = vld [vmem:[%s961 + $0x41] sm:$0xff]
      %v1032 = vld [vmem:[%s961 + $0x51] sm:$0xff]
      %v1033 = vld [vmem:[%s961 + $0x61] sm:$0xff]
      %v1034 = vld [vmem:[%s961 + $0x71] sm:$0xff]
      %v1035 = vld [vmem:[%s961 + $0x81] sm:$0xff]
      %v1036 = vld [vmem:[%s961 + $0x91] sm:$0xff]
      %v1037 = vld [vmem:[%s961 + $0xa1] sm:$0xff]
      %v1038 = vld [vmem:[%s961 + $0xb1] sm:$0xff]
      %v1039 = vld [vmem:[%s961 + $0xc1] sm:$0xff]
      %v1040 = vld [vmem:[%s961 + $0xd1] sm:$0xff]
      %v1041 = vld [vmem:[%s961 + $0xe1] sm:$0xff]
      %v1042 = vld [vmem:[%s961 + $0xf1] sm:$0xff]
      %1043 = vst [vmem:[#allocation3 + $0x40] sm:$0xff] %v1027
      %1044 = vst [vmem:[#allocation3 + $0x88] sm:$0xff] %v1028
      %1045 = vst [vmem:[#allocation3 + $0xd0] sm:$0xff] %v1029
      %1046 = vst [vmem:[#allocation3 + $0x118] sm:$0xff] %v1030
      %1047 = vst [vmem:[#allocation3 + $0x160] sm:$0xff] %v1031
      %1048 = vst [vmem:[#allocation3 + $0x1a8] sm:$0xff] %v1032
      %1049 = vst [vmem:[#allocation3 + $0x1f0] sm:$0xff] %v1033
      %1050 = vst [vmem:[#allocation3 + $0x238] sm:$0xff] %v1034
      %1051 = vst [vmem:[#allocation3 + $0x280] sm:$0xff] %v1035
      %1052 = vst [vmem:[#allocation3 + $0x2c8] sm:$0xff] %v1036
      %1053 = vst [vmem:[#allocation3 + $0x310] sm:$0xff] %v1037
      %1054 = vst [vmem:[#allocation3 + $0x358] sm:$0xff] %v1038
      %1055 = vst [vmem:[#allocation3 + $0x3a0] sm:$0xff] %v1039
      %1056 = vst [vmem:[#allocation3 + $0x3e8] sm:$0xff] %v1040
      %1057 = vst [vmem:[#allocation3 + $0x430] sm:$0xff] %v1041
      %1058 = vst [vmem:[#allocation3 + $0x478] sm:$0xff] %v1042
      %v1059 = vld [vmem:[#allocation3] sm:$0xff]
      %v1060 = vld [vmem:[#allocation3 + $0x8] sm:$0xff]
      %v1061 = vld [vmem:[#allocation3 + $0x10] sm:$0xff]
      %v1062 = vld [vmem:[#allocation3 + $0x48] sm:$0xff]
      %v1063 = vld [vmem:[#allocation3 + $0x50] sm:$0xff]
      %v1064 = vld [vmem:[#allocation3 + $0x58] sm:$0xff]
      %v1065 = vld [vmem:[#allocation3 + $0x90] sm:$0xff]
      %v1066 = vld [vmem:[#allocation3 + $0x98] sm:$0xff]
      %v1067 = vld [vmem:[#allocation3 + $0xa0] sm:$0xff]
      %v1068 = vld [vmem:[#allocation3 + $0xd8] sm:$0xff]
      %v1069 = vld [vmem:[#allocation3 + $0xe0] sm:$0xff]
      %v1070 = vld [vmem:[#allocation3 + $0xe8] sm:$0xff]
      %v1071 = vld [vmem:[#allocation3 + $0x120] sm:$0xff]
      %v1072 = vld [vmem:[#allocation3 + $0x128] sm:$0xff]
      %v1073 = vld [vmem:[#allocation3 + $0x130] sm:$0xff]
      %v1074 = vld [vmem:[#allocation3 + $0x168] sm:$0xff]
      %v1075 = vld [vmem:[#allocation3 + $0x170] sm:$0xff]
      %v1076 = vld [vmem:[#allocation3 + $0x178] sm:$0xff]
      %v1077 = vld [vmem:[#allocation3 + $0x1b0] sm:$0xff]
      %v1078 = vld [vmem:[#allocation3 + $0x1b8] sm:$0xff]
      %v1079 = vld [vmem:[#allocation3 + $0x1c0] sm:$0xff]
      %v1080 = vld [vmem:[#allocation3 + $0x1f8] sm:$0xff]
      %v1081 = vld [vmem:[#allocation3 + $0x200] sm:$0xff]
      %v1082 = vld [vmem:[#allocation3 + $0x208] sm:$0xff]
      %v1083 = vld [vmem:[#allocation3 + $0x240] sm:$0xff]
      %v1084 = vld [vmem:[#allocation3 + $0x248] sm:$0xff]
      %v1085 = vld [vmem:[#allocation3 + $0x250] sm:$0xff]
      %v1086 = vld [vmem:[#allocation3 + $0x288] sm:$0xff]
      %v1087 = vld [vmem:[#allocation3 + $0x290] sm:$0xff]
      %v1088 = vld [vmem:[#allocation3 + $0x298] sm:$0xff]
      %v1089 = vld [vmem:[#allocation3 + $0x2d0] sm:$0xff]
      %v1090 = vld [vmem:[#allocation3 + $0x2d8] sm:$0xff]
      %v1091 = vld [vmem:[#allocation3 + $0x2e0] sm:$0xff]
      %v1092 = vld [vmem:[#allocation3 + $0x318] sm:$0xff]
      %v1093 = vld [vmem:[#allocation3 + $0x320] sm:$0xff]
      %v1094 = vld [vmem:[#allocation3 + $0x328] sm:$0xff]
      %v1095 = vld [vmem:[#allocation3 + $0x360] sm:$0xff]
      %v1096 = vld [vmem:[#allocation3 + $0x368] sm:$0xff]
      %v1097 = vld [vmem:[#allocation3 + $0x370] sm:$0xff]
      %v1098 = vld [vmem:[#allocation3 + $0x3a8] sm:$0xff]
      %v1099 = vld [vmem:[#allocation3 + $0x3b0] sm:$0xff]
      %v1100 = vld [vmem:[#allocation3 + $0x3b8] sm:$0xff]
      %v1101 = vld [vmem:[#allocation3 + $0x3f0] sm:$0xff]
      %v1102 = vld [vmem:[#allocation3 + $0x3f8] sm:$0xff]
      %v1103 = vld [vmem:[#allocation3 + $0x400] sm:$0xff]
      %v1104 = vld [vmem:[#allocation3 + $0x438] sm:$0xff]
      %v1105 = vld [vmem:[#allocation3 + $0x440] sm:$0xff]
      %v1106 = vld [vmem:[#allocation3 + $0x448] sm:$0xff]
      %v1107 = vld [vmem:[%s4] sm:$0xff]
      %v1108 = vld [vmem:[%s4 + $0x8] sm:$0xff]
      %v1109 = vld [vmem:[%s4 + $0x10] sm:$0xff]
      %v1110 = vld [vmem:[%s4 + $0x18] sm:$0xff]
      %v1111 = vld [vmem:[%s4 + $0x20] sm:$0xff]
      %v1112 = vld [vmem:[%s4 + $0x28] sm:$0xff]
      %v1113 = vld [vmem:[%s4 + $0x30] sm:$0xff]
      %v1114 = vld [vmem:[%s4 + $0x38] sm:$0xff]
      %v1115 = vld [vmem:[%s4 + $0x40] sm:$0xff]
      %v1116 = vld [vmem:[%s4 + $0x48] sm:$0xff]
      %v1117 = vld [vmem:[%s4 + $0x50] sm:$0xff]
      %v1118 = vld [vmem:[%s4 + $0x58] sm:$0xff]
      %v1119 = vld [vmem:[%s4 + $0x60] sm:$0xff]
      %v1120 = vld [vmem:[%s4 + $0x68] sm:$0xff]
      %v1121 = vld [vmem:[%s4 + $0x70] sm:$0xff]
      %v1122 = vld [vmem:[%s4 + $0x78] sm:$0xff]
      %v1123 = vld [vmem:[%s4 + $0x80] sm:$0xff]
      %v1124 = vld [vmem:[%s4 + $0x88] sm:$0xff]
      %v1125 = vld [vmem:[%s4 + $0x90] sm:$0xff]
      %v1126 = vld [vmem:[%s4 + $0x98] sm:$0xff]
      %v1127 = vld [vmem:[%s4 + $0xa0] sm:$0xff]
      %v1128 = vld [vmem:[%s4 + $0xa8] sm:$0xff]
      %v1129 = vld [vmem:[%s4 + $0xb0] sm:$0xff]
      %v1130 = vld [vmem:[%s4 + $0xb8] sm:$0xff]
      %v1131 = vld [vmem:[%s4 + $0xc0] sm:$0xff]
      %v1132 = vld [vmem:[%s4 + $0xc8] sm:$0xff]
      %v1133 = vld [vmem:[%s4 + $0xd0] sm:$0xff]
      %v1134 = vld [vmem:[%s4 + $0xd8] sm:$0xff]
      %v1135 = vld [vmem:[%s4 + $0xe0] sm:$0xff]
      %v1136 = vld [vmem:[%s4 + $0xe8] sm:$0xff]
      %v1137 = vld [vmem:[%s4 + $0xf0] sm:$0xff]
      %v1138 = vld [vmem:[%s4 + $0xf8] sm:$0xff]
      %v1139 = vld [vmem:[%s4 + $0x100] sm:$0xff]
      %v1140 = vld [vmem:[%s4 + $0x108] sm:$0xff]
      %v1141 = vld [vmem:[%s4 + $0x110] sm:$0xff]
      %v1142 = vld [vmem:[%s4 + $0x118] sm:$0xff]
      %v1143 = vld [vmem:[%s4 + $0x120] sm:$0xff]
      %v1144 = vld [vmem:[%s4 + $0x128] sm:$0xff]
      %v1145 = vld [vmem:[%s4 + $0x130] sm:$0xff]
      %v1146 = vld [vmem:[%s4 + $0x138] sm:$0xff]
      %v1147 = vld [vmem:[%s4 + $0x140] sm:$0xff]
      %v1148 = vld [vmem:[%s4 + $0x148] sm:$0xff]
      %v1149 = vld [vmem:[%s4 + $0x150] sm:$0xff]
      %v1150 = vld [vmem:[%s4 + $0x158] sm:$0xff]
      %v1151 = vld [vmem:[%s4 + $0x160] sm:$0xff]
      %v1152 = vld [vmem:[%s4 + $0x168] sm:$0xff]
      %v1153 = vld [vmem:[%s4 + $0x170] sm:$0xff]
      %v1154 = vld [vmem:[%s4 + $0x178] sm:$0xff]
      %v1155 = vld [vmem:[#allocation3 + $0x18] sm:$0xff]
      %v1156 = vld [vmem:[#allocation3 + $0x20] sm:$0xff]
      %v1157 = vld [vmem:[#allocation3 + $0x28] sm:$0xff]
      %v1158 = vld [vmem:[#allocation3 + $0x60] sm:$0xff]
      %v1159 = vld [vmem:[#allocation3 + $0x68] sm:$0xff]
      %v1160 = vld [vmem:[#allocation3 + $0x70] sm:$0xff]
      %v1161 = vld [vmem:[#allocation3 + $0xa8] sm:$0xff]
      %v1162 = vld [vmem:[#allocation3 + $0xb0] sm:$0xff]
      %v1163 = vld [vmem:[#allocation3 + $0xb8] sm:$0xff]
      %v1164 = vld [vmem:[#allocation3 + $0xf0] sm:$0xff]
      %v1165 = vld [vmem:[#allocation3 + $0xf8] sm:$0xff]
      %v1166 = vld [vmem:[#allocation3 + $0x100] sm:$0xff]
      %v1167 = vld [vmem:[#allocation3 + $0x138] sm:$0xff]
      %v1168 = vld [vmem:[#allocation3 + $0x140] sm:$0xff]
      %v1169 = vld [vmem:[#allocation3 + $0x148] sm:$0xff]
      %v1170 = vld [vmem:[#allocation3 + $0x180] sm:$0xff]
      %v1171 = vld [vmem:[#allocation3 + $0x188] sm:$0xff]
      %v1172 = vld [vmem:[#allocation3 + $0x190] sm:$0xff]
      %v1173 = vld [vmem:[#allocation3 + $0x1c8] sm:$0xff]
      %v1174 = vld [vmem:[#allocation3 + $0x1d0] sm:$0xff]
      %v1175 = vld [vmem:[#allocation3 + $0x1d8] sm:$0xff]
      %v1176 = vld [vmem:[#allocation3 + $0x210] sm:$0xff]
      %v1177 = vld [vmem:[#allocation3 + $0x218] sm:$0xff]
      %v1178 = vld [vmem:[#allocation3 + $0x220] sm:$0xff]
      %v1179 = vld [vmem:[#allocation3 + $0x258] sm:$0xff]
      %v1180 = vld [vmem:[#allocation3 + $0x260] sm:$0xff]
      %v1181 = vld [vmem:[#allocation3 + $0x268] sm:$0xff]
      %v1182 = vld [vmem:[#allocation3 + $0x2a0] sm:$0xff]
      %v1183 = vld [vmem:[#allocation3 + $0x2a8] sm:$0xff]
      %v1184 = vld [vmem:[#allocation3 + $0x2b0] sm:$0xff]
      %v1185 = vld [vmem:[#allocation3 + $0x2e8] sm:$0xff]
      %v1186 = vld [vmem:[#allocation3 + $0x2f0] sm:$0xff]
      %v1187 = vld [vmem:[#allocation3 + $0x2f8] sm:$0xff]
      %v1188 = vld [vmem:[#allocation3 + $0x330] sm:$0xff]
      %v1189 = vld [vmem:[#allocation3 + $0x338] sm:$0xff]
      %v1190 = vld [vmem:[#allocation3 + $0x340] sm:$0xff]
      %v1191 = vld [vmem:[#allocation3 + $0x378] sm:$0xff]
      %v1192 = vld [vmem:[#allocation3 + $0x380] sm:$0xff]
      %v1193 = vld [vmem:[#allocation3 + $0x388] sm:$0xff]
      %v1194 = vld [vmem:[#allocation3 + $0x3c0] sm:$0xff]
      %v1195 = vld [vmem:[#allocation3 + $0x3c8] sm:$0xff]
      %v1196 = vld [vmem:[#allocation3 + $0x3d0] sm:$0xff]
      %v1197 = vld [vmem:[#allocation3 + $0x408] sm:$0xff]
      %v1198 = vld [vmem:[#allocation3 + $0x410] sm:$0xff]
      %v1199 = vld [vmem:[#allocation3 + $0x418] sm:$0xff]
      %v1200 = vld [vmem:[#allocation3 + $0x450] sm:$0xff]
      %v1201 = vld [vmem:[#allocation3 + $0x458] sm:$0xff]
      %v1202 = vld [vmem:[#allocation3 + $0x460] sm:$0xff]
      %v1203 = vld [vmem:[%s4 + $0x180] sm:$0xff]
      %v1204 = vld [vmem:[%s4 + $0x188] sm:$0xff]
      %v1205 = vld [vmem:[%s4 + $0x190] sm:$0xff]
      %v1206 = vld [vmem:[%s4 + $0x198] sm:$0xff]
      %v1207 = vld [vmem:[%s4 + $0x1a0] sm:$0xff]
      %v1208 = vld [vmem:[%s4 + $0x1a8] sm:$0xff]
      %v1209 = vld [vmem:[%s4 + $0x1b0] sm:$0xff]
      %v1210 = vld [vmem:[%s4 + $0x1b8] sm:$0xff]
      %v1211 = vld [vmem:[%s4 + $0x1c0] sm:$0xff]
      %v1212 = vld [vmem:[%s4 + $0x1c8] sm:$0xff]
      %v1213 = vld [vmem:[%s4 + $0x1d0] sm:$0xff]
      %v1214 = vld [vmem:[%s4 + $0x1d8] sm:$0xff]
      %v1215 = vld [vmem:[%s4 + $0x1e0] sm:$0xff]
      %v1216 = vld [vmem:[%s4 + $0x1e8] sm:$0xff]
      %v1217 = vld [vmem:[%s4 + $0x1f0] sm:$0xff]
      %v1218 = vld [vmem:[%s4 + $0x1f8] sm:$0xff]
      %v1219 = vld [vmem:[%s4 + $0x200] sm:$0xff]
      %v1220 = vld [vmem:[%s4 + $0x208] sm:$0xff]
      %v1221 = vld [vmem:[%s4 + $0x210] sm:$0xff]
      %v1222 = vld [vmem:[%s4 + $0x218] sm:$0xff]
      %v1223 = vld [vmem:[%s4 + $0x220] sm:$0xff]
      %v1224 = vld [vmem:[%s4 + $0x228] sm:$0xff]
      %v1225 = vld [vmem:[%s4 + $0x230] sm:$0xff]
      %v1226 = vld [vmem:[%s4 + $0x238] sm:$0xff]
      %v1227 = vld [vmem:[%s4 + $0x240] sm:$0xff]
      %v1228 = vld [vmem:[%s4 + $0x248] sm:$0xff]
      %v1229 = vld [vmem:[%s4 + $0x250] sm:$0xff]
      %v1230 = vld [vmem:[%s4 + $0x258] sm:$0xff]
      %v1231 = vld [vmem:[%s4 + $0x260] sm:$0xff]
      %v1232 = vld [vmem:[%s4 + $0x268] sm:$0xff]
      %v1233 = vld [vmem:[%s4 + $0x270] sm:$0xff]
      %v1234 = vld [vmem:[%s4 + $0x278] sm:$0xff]
      %v1235 = vld [vmem:[%s4 + $0x280] sm:$0xff]
      %v1236 = vld [vmem:[%s4 + $0x288] sm:$0xff]
      %v1237 = vld [vmem:[%s4 + $0x290] sm:$0xff]
      %v1238 = vld [vmem:[%s4 + $0x298] sm:$0xff]
      %v1239 = vld [vmem:[%s4 + $0x2a0] sm:$0xff]
      %v1240 = vld [vmem:[%s4 + $0x2a8] sm:$0xff]
      %v1241 = vld [vmem:[%s4 + $0x2b0] sm:$0xff]
      %v1242 = vld [vmem:[%s4 + $0x2b8] sm:$0xff]
      %v1243 = vld [vmem:[%s4 + $0x2c0] sm:$0xff]
      %v1244 = vld [vmem:[%s4 + $0x2c8] sm:$0xff]
      %v1245 = vld [vmem:[%s4 + $0x2d0] sm:$0xff]
      %v1246 = vld [vmem:[%s4 + $0x2d8] sm:$0xff]
      %v1247 = vld [vmem:[%s4 + $0x2e0] sm:$0xff]
      %v1248 = vld [vmem:[%s4 + $0x2e8] sm:$0xff]
      %v1249 = vld [vmem:[%s4 + $0x2f0] sm:$0xff]
      %v1250 = vld [vmem:[%s4 + $0x2f8] sm:$0xff]
      %1251 = vmatprep.subr.mxu0 0.0
      %1252 = vmatpush1.msra.mxu0 %v1218
      %1253 = vmatprep.subr.mxu0 0.0
      %1254 = vmatpush1.msra.mxu0 %v1217
      %1255 = vmatprep.subr.mxu0 0.0
      %1256 = vmatpush1.msra.mxu0 %v1216
      %1257 = vmatprep.subr.mxu0 0.0
      %1258 = vmatpush1.msra.mxu0 %v1215
      %1259 = vmatprep.subr.mxu0 0.0
      %1260 = vmatpush1.msra.mxu0 %v1214
      %1261 = vmatprep.subr.mxu0 0.0
      %1262 = vmatpush1.msra.mxu0 %v1213
      %1263 = vmatprep.subr.mxu0 0.0
      %1264 = vmatpush1.msra.mxu0 %v1212
      %1265 = vmatprep.subr.mxu0 0.0
      %1266 = vmatpush1.msra.mxu0 %v1211
      %1267 = vmatprep.subr.mxu0 0.0
      %1268 = vmatpush1.msra.mxu0 %v1210
      %1269 = vmatprep.subr.mxu0 0.0
      %1270 = vmatpush1.msra.mxu0 %v1209
      %1271 = vmatprep.subr.mxu0 0.0
      %1272 = vmatpush1.msra.mxu0 %v1208
      %1273 = vmatprep.subr.mxu0 0.0
      %1274 = vmatpush1.msra.mxu0 %v1207
      %1275 = vmatprep.subr.mxu0 0.0
      %1276 = vmatpush1.msra.mxu0 %v1206
      %1277 = vmatprep.subr.mxu0 0.0
      %1278 = vmatpush1.msra.mxu0 %v1205
      %1279 = vmatprep.subr.mxu0 0.0
      %1280 = vmatpush1.msra.mxu0 %v1204
      %1281 = vmatprep.subr.mxu0 0.0
      %1282 = vmatpush1.msra.mxu0 %v1203
      %1283 = vmatprep.subr.mxu0 0.0
      %1284 = vmatpush2.msra.mxu0 %v1234
      %1285 = vmatprep.subr.mxu0 0.0
      %1286 = vmatpush2.msra.mxu0 %v1233
      %1287 = vmatprep.subr.mxu0 0.0
      %1288 = vmatpush2.msra.mxu0 %v1232
      %1289 = vmatprep.subr.mxu0 0.0
      %1290 = vmatpush2.msra.mxu0 %v1231
      %1291 = vmatprep.subr.mxu0 0.0
      %1292 = vmatpush2.msra.mxu0 %v1230
      %1293 = vmatprep.subr.mxu0 0.0
      %1294 = vmatpush2.msra.mxu0 %v1229
      %1295 = vmatprep.subr.mxu0 0.0
      %1296 = vmatpush2.msra.mxu0 %v1228
      %1297 = vmatprep.subr.mxu0 0.0
      %1298 = vmatpush2.msra.mxu0 %v1227
      %1299 = vmatprep.subr.mxu0 0.0
      %1300 = vmatpush2.msra.mxu0 %v1226
      %1301 = vmatprep.subr.mxu0 0.0
      %1302 = vmatpush2.msra.mxu0 %v1225
      %1303 = vmatprep.subr.mxu0 0.0
      %1304 = vmatpush2.msra.mxu0 %v1224
      %1305 = vmatprep.subr.mxu0 0.0
      %1306 = vmatpush2.msra.mxu0 %v1223
      %1307 = vmatprep.subr.mxu0 0.0
      %1308 = vmatpush2.msra.mxu0 %v1222
      %1309 = vmatprep.subr.mxu0 0.0
      %1310 = vmatpush2.msra.mxu0 %v1221
      %1311 = vmatprep.subr.mxu0 0.0
      %1312 = vmatpush2.msra.mxu0 %v1220
      %1313 = vmatprep.subr.mxu0 0.0
      %1314 = vmatpush2.msra.mxu0 %v1219
      %1315 = vmatprep.mubr.f32.mxu0 %v1156
      %1316 = vmatmul.mubr.f32.gmra.mxu0 %v1155
      %v1317 = vpop.f32.mrf.mxu0
      %v1318 = vadd.f32 0.0, %v1317
      %v1319 = vpop.f32.mrf.mxu0
      %1320 = vmatprep.mubr.f32.mxu0 %v1159
      %1321 = vmatmul.mubr.f32.gmra.mxu0 %v1158
      %v1322 = vpop.f32.mrf.mxu0
      %v1323 = vadd.f32 0.0, %v1322
      %v1324 = vpop.f32.mrf.mxu0
      %1325 = vmatprep.mubr.f32.mxu0 %v1162
      %1326 = vmatmul.mubr.f32.gmra.mxu0 %v1161
      %v1327 = vpop.f32.mrf.mxu0
      %v1328 = vadd.f32 0.0, %v1327
      %v1329 = vpop.f32.mrf.mxu0
      %1330 = vmatprep.mubr.f32.mxu0 %v1165
      %1331 = vmatmul.mubr.f32.gmra.mxu0 %v1164
      %v1332 = vpop.f32.mrf.mxu0
      %v1333 = vadd.f32 0.0, %v1332
      %v1334 = vpop.f32.mrf.mxu0
      %1335 = vmatprep.mubr.f32.mxu0 %v1168
      %1336 = vmatmul.mubr.f32.gmra.mxu0 %v1167
      %v1337 = vpop.f32.mrf.mxu0
      %v1338 = vadd.f32 0.0, %v1337
      %v1339 = vpop.f32.mrf.mxu0
      %1340 = vmatprep.mubr.f32.mxu0 %v1171
      %1341 = vmatmul.mubr.f32.gmra.mxu0 %v1170
      %v1342 = vpop.f32.mrf.mxu0
      %v1343 = vadd.f32 0.0, %v1342
      %v1344 = vpop.f32.mrf.mxu0
      %1345 = vmatprep.mubr.f32.mxu0 %v1174
      %1346 = vmatmul.mubr.f32.gmra.mxu0 %v1173
      %v1347 = vpop.f32.mrf.mxu0
      %v1348 = vadd.f32 0.0, %v1347
      %v1349 = vpop.f32.mrf.mxu0
      %1350 = vmatprep.mubr.f32.mxu0 %v1177
      %1351 = vmatmul.mubr.f32.gmra.mxu0 %v1176
      %v1352 = vpop.f32.mrf.mxu0
      %v1353 = vadd.f32 0.0, %v1352
      %v1354 = vpop.f32.mrf.mxu0
      %1355 = vmatprep.mubr.f32.mxu0 %v1180
      %1356 = vmatmul.mubr.f32.gmra.mxu0 %v1179
      %v1357 = vpop.f32.mrf.mxu0
      %v1358 = vadd.f32 0.0, %v1357
      %v1359 = vpop.f32.mrf.mxu0
      %1360 = vmatprep.mubr.f32.mxu0 %v1183
      %1361 = vmatmul.mubr.f32.gmra.mxu0 %v1182
      %v1362 = vpop.f32.mrf.mxu0
      %v1363 = vadd.f32 0.0, %v1362
      %v1364 = vpop.f32.mrf.mxu0
      %1365 = vmatprep.mubr.f32.mxu0 %v1186
      %1366 = vmatmul.mubr.f32.gmra.mxu0 %v1185
      %v1367 = vpop.f32.mrf.mxu0
      %v1368 = vadd.f32 0.0, %v1367
      %v1369 = vpop.f32.mrf.mxu0
      %1370 = vmatprep.mubr.f32.mxu0 %v1189
      %1371 = vmatmul.mubr.f32.gmra.mxu0 %v1188
      %v1372 = vpop.f32.mrf.mxu0
      %v1373 = vadd.f32 0.0, %v1372
      %v1374 = vpop.f32.mrf.mxu0
      %1375 = vmatprep.mubr.f32.mxu0 %v1192
      %1376 = vmatmul.mubr.f32.gmra.mxu0 %v1191
      %v1377 = vpop.f32.mrf.mxu0
      %v1378 = vadd.f32 0.0, %v1377
      %v1379 = vpop.f32.mrf.mxu0
      %1380 = vmatprep.mubr.f32.mxu0 %v1195
      %1381 = vmatmul.mubr.f32.gmra.mxu0 %v1194
      %v1382 = vpop.f32.mrf.mxu0
      %v1383 = vadd.f32 0.0, %v1382
      %v1384 = vpop.f32.mrf.mxu0
      %1385 = vmatprep.mubr.f32.mxu0 %v1198
      %1386 = vmatmul.mubr.f32.gmra.mxu0 %v1197
      %v1387 = vpop.f32.mrf.mxu0
      %v1388 = vadd.f32 0.0, %v1387
      %v1389 = vpop.f32.mrf.mxu0
      %1390 = vmatprep.mubr.f32.mxu0 %v1201
      %1391 = vmatmul.mubr.f32.gmra.mxu0 %v1200
      %v1392 = vpop.f32.mrf.mxu0
      %v1393 = vadd.f32 0.0, %v1392
      %v1394 = vpop.f32.mrf.mxu0
      %1395 = vdwg.mxu0
      %1396 = vmatprep.subr.mxu0 0.0
      %1397 = vmatpush1.msra.mxu0 %v1250
      %1398 = vmatprep.subr.mxu0 0.0
      %1399 = vmatpush1.msra.mxu0 %v1249
      %1400 = vmatprep.subr.mxu0 0.0
      %1401 = vmatpush1.msra.mxu0 %v1248
      %1402 = vmatprep.subr.mxu0 0.0
      %1403 = vmatpush1.msra.mxu0 %v1247
      %1404 = vmatprep.subr.mxu0 0.0
      %1405 = vmatpush1.msra.mxu0 %v1246
      %1406 = vmatprep.subr.mxu0 0.0
      %1407 = vmatpush1.msra.mxu0 %v1245
      %1408 = vmatprep.subr.mxu0 0.0
      %1409 = vmatpush1.msra.mxu0 %v1244
      %1410 = vmatprep.subr.mxu0 0.0
      %1411 = vmatpush1.msra.mxu0 %v1243
      %1412 = vmatprep.subr.mxu0 0.0
      %1413 = vmatpush1.msra.mxu0 %v1242
      %1414 = vmatprep.subr.mxu0 0.0
      %1415 = vmatpush1.msra.mxu0 %v1241
      %1416 = vmatprep.subr.mxu0 0.0
      %1417 = vmatpush1.msra.mxu0 %v1240
      %1418 = vmatprep.subr.mxu0 0.0
      %1419 = vmatpush1.msra.mxu0 %v1239
      %1420 = vmatprep.subr.mxu0 0.0
      %1421 = vmatpush1.msra.mxu0 %v1238
      %1422 = vmatprep.subr.mxu0 0.0
      %1423 = vmatpush1.msra.mxu0 %v1237
      %1424 = vmatprep.subr.mxu0 0.0
      %1425 = vmatpush1.msra.mxu0 %v1236
      %1426 = vmatprep.subr.mxu0 0.0
      %1427 = vmatpush1.msra.mxu0 %v1235
      %1428 = vmatprep.subr.mxu0 0.0
      %1429 = vmatpush2.msra.mxu0 0.0
      %1430 = vmatprep.subr.mxu0 0.0
      %1431 = vmatpush2.msra.mxu0 0.0
      %1432 = vmatprep.subr.mxu0 0.0
      %1433 = vmatpush2.msra.mxu0 0.0
      %1434 = vmatprep.subr.mxu0 0.0
      %1435 = vmatpush2.msra.mxu0 0.0
      %1436 = vmatprep.subr.mxu0 0.0
      %1437 = vmatpush2.msra.mxu0 0.0
      %1438 = vmatprep.subr.mxu0 0.0
      %1439 = vmatpush2.msra.mxu0 0.0
      %1440 = vmatprep.subr.mxu0 0.0
      %1441 = vmatpush2.msra.mxu0 0.0
      %1442 = vmatprep.subr.mxu0 0.0
      %1443 = vmatpush2.msra.mxu0 0.0
      %1444 = vmatprep.subr.mxu0 0.0
      %1445 = vmatpush2.msra.mxu0 0.0
      %1446 = vmatprep.subr.mxu0 0.0
      %1447 = vmatpush2.msra.mxu0 0.0
      %1448 = vmatprep.subr.mxu0 0.0
      %1449 = vmatpush2.msra.mxu0 0.0
      %1450 = vmatprep.subr.mxu0 0.0
      %1451 = vmatpush2.msra.mxu0 0.0
      %1452 = vmatprep.subr.mxu0 0.0
      %1453 = vmatpush2.msra.mxu0 0.0
      %1454 = vmatprep.subr.mxu0 0.0
      %1455 = vmatpush2.msra.mxu0 0.0
      %1456 = vmatprep.subr.mxu0 0.0
      %1457 = vmatpush2.msra.mxu0 0.0
      %1458 = vmatprep.subr.mxu0 0.0
      %1459 = vmatpush2.msra.mxu0 0.0
      %1460 = vmatprep.mubr.f32.mxu0 0.0
      %1461 = vmatmul.mubr.f32.gmra.mxu0 %v1157
      %v1462 = vpop.f32.mrf.mxu0
      %v1463 = vadd.f32 %v1318, %v1462
      %v1464 = vpop.f32.mrf.mxu0
      %1465 = vmatprep.mubr.f32.mxu0 0.0
      %1466 = vmatmul.mubr.f32.gmra.mxu0 %v1160
      %v1467 = vpop.f32.mrf.mxu0
      %v1468 = vadd.f32 %v1323, %v1467
      %v1469 = vpop.f32.mrf.mxu0
      %1470 = vmatprep.mubr.f32.mxu0 0.0
      %1471 = vmatmul.mubr.f32.gmra.mxu0 %v1163
      %v1472 = vpop.f32.mrf.mxu0
      %v1473 = vadd.f32 %v1328, %v1472
      %v1474 = vpop.f32.mrf.mxu0
      %1475 = vmatprep.mubr.f32.mxu0 0.0
      %1476 = vmatmul.mubr.f32.gmra.mxu0 %v1166
      %v1477 = vpop.f32.mrf.mxu0
      %v1478 = vadd.f32 %v1333, %v1477
      %v1479 = vpop.f32.mrf.mxu0
      %1480 = vmatprep.mubr.f32.mxu0 0.0
      %1481 = vmatmul.mubr.f32.gmra.mxu0 %v1169
      %v1482 = vpop.f32.mrf.mxu0
      %v1483 = vadd.f32 %v1338, %v1482
      %v1484 = vpop.f32.mrf.mxu0
      %1485 = vmatprep.mubr.f32.mxu0 0.0
      %1486 = vmatmul.mubr.f32.gmra.mxu0 %v1172
      %v1487 = vpop.f32.mrf.mxu0
      %v1488 = vadd.f32 %v1343, %v1487
      %v1489 = vpop.f32.mrf.mxu0
      %1490 = vmatprep.mubr.f32.mxu0 0.0
      %1491 = vmatmul.mubr.f32.gmra.mxu0 %v1175
      %v1492 = vpop.f32.mrf.mxu0
      %v1493 = vadd.f32 %v1348, %v1492
      %v1494 = vpop.f32.mrf.mxu0
      %1495 = vmatprep.mubr.f32.mxu0 0.0
      %1496 = vmatmul.mubr.f32.gmra.mxu0 %v1178
      %v1497 = vpop.f32.mrf.mxu0
      %v1498 = vadd.f32 %v1353, %v1497
      %v1499 = vpop.f32.mrf.mxu0
      %1500 = vmatprep.mubr.f32.mxu0 0.0
      %1501 = vmatmul.mubr.f32.gmra.mxu0 %v1181
      %v1502 = vpop.f32.mrf.mxu0
      %v1503 = vadd.f32 %v1358, %v1502
      %v1504 = vpop.f32.mrf.mxu0
      %1505 = vmatprep.mubr.f32.mxu0 0.0
      %1506 = vmatmul.mubr.f32.gmra.mxu0 %v1184
      %v1507 = vpop.f32.mrf.mxu0
      %v1508 = vadd.f32 %v1363, %v1507
      %v1509 = vpop.f32.mrf.mxu0
      %1510 = vmatprep.mubr.f32.mxu0 0.0
      %1511 = vmatmul.mubr.f32.gmra.mxu0 %v1187
      %v1512 = vpop.f32.mrf.mxu0
      %v1513 = vadd.f32 %v1368, %v1512
      %v1514 = vpop.f32.mrf.mxu0
      %1515 = vmatprep.mubr.f32.mxu0 0.0
      %1516 = vmatmul.mubr.f32.gmra.mxu0 %v1190
      %v1517 = vpop.f32.mrf.mxu0
      %v1518 = vadd.f32 %v1373, %v1517
      %v1519 = vpop.f32.mrf.mxu0
      %1520 = vmatprep.mubr.f32.mxu0 0.0
      %1521 = vmatmul.mubr.f32.gmra.mxu0 %v1193
      %v1522 = vpop.f32.mrf.mxu0
      %v1523 = vadd.f32 %v1378, %v1522
      %v1524 = vpop.f32.mrf.mxu0
      %1525 = vmatprep.mubr.f32.mxu0 0.0
      %1526 = vmatmul.mubr.f32.gmra.mxu0 %v1196
      %v1527 = vpop.f32.mrf.mxu0
      %v1528 = vadd.f32 %v1383, %v1527
      %v1529 = vpop.f32.mrf.mxu0
      %1530 = vmatprep.mubr.f32.mxu0 0.0
      %1531 = vmatmul.mubr.f32.gmra.mxu0 %v1199
      %v1532 = vpop.f32.mrf.mxu0
      %v1533 = vadd.f32 %v1388, %v1532
      %v1534 = vpop.f32.mrf.mxu0
      %1535 = vmatprep.mubr.f32.mxu0 0.0
      %1536 = vmatmul.mubr.f32.gmra.mxu0 %v1202
      %v1537 = vpop.f32.mrf.mxu0
      %v1538 = vadd.f32 %v1393, %v1537
      %v1539 = vpop.f32.mrf.mxu0
      %1540 = vdwg.mxu0
      %1541 = vmatprep.subr.mxu0 0.0
      %1542 = vmatpush1.msra.mxu0 %v1122
      %1543 = vmatprep.subr.mxu0 0.0
      %1544 = vmatpush1.msra.mxu0 %v1121
      %1545 = vmatprep.subr.mxu0 0.0
      %1546 = vmatpush1.msra.mxu0 %v1120
      %1547 = vmatprep.subr.mxu0 0.0
      %1548 = vmatpush1.msra.mxu0 %v1119
      %1549 = vmatprep.subr.mxu0 0.0
      %1550 = vmatpush1.msra.mxu0 %v1118
      %1551 = vmatprep.subr.mxu0 0.0
      %1552 = vmatpush1.msra.mxu0 %v1117
      %1553 = vmatprep.subr.mxu0 0.0
      %1554 = vmatpush1.msra.mxu0 %v1116
      %1555 = vmatprep.subr.mxu0 0.0
      %1556 = vmatpush1.msra.mxu0 %v1115
      %1557 = vmatprep.subr.mxu0 0.0
      %1558 = vmatpush1.msra.mxu0 %v1114
      %1559 = vmatprep.subr.mxu0 0.0
      %1560 = vmatpush1.msra.mxu0 %v1113
      %1561 = vmatprep.subr.mxu0 0.0
      %1562 = vmatpush1.msra.mxu0 %v1112
      %1563 = vmatprep.subr.mxu0 0.0
      %1564 = vmatpush1.msra.mxu0 %v1111
      %1565 = vmatprep.subr.mxu0 0.0
      %1566 = vmatpush1.msra.mxu0 %v1110
      %1567 = vmatprep.subr.mxu0 0.0
      %1568 = vmatpush1.msra.mxu0 %v1109
      %1569 = vmatprep.subr.mxu0 0.0
      %1570 = vmatpush1.msra.mxu0 %v1108
      %1571 = vmatprep.subr.mxu0 0.0
      %1572 = vmatpush1.msra.mxu0 %v1107
      %1573 = vmatprep.subr.mxu0 0.0
      %1574 = vmatpush2.msra.mxu0 %v1138
      %1575 = vmatprep.subr.mxu0 0.0
      %1576 = vmatpush2.msra.mxu0 %v1137
      %1577 = vmatprep.subr.mxu0 0.0
      %1578 = vmatpush2.msra.mxu0 %v1136
      %1579 = vmatprep.subr.mxu0 0.0
      %1580 = vmatpush2.msra.mxu0 %v1135
      %1581 = vmatprep.subr.mxu0 0.0
      %1582 = vmatpush2.msra.mxu0 %v1134
      %1583 = vmatprep.subr.mxu0 0.0
      %1584 = vmatpush2.msra.mxu0 %v1133
      %1585 = vmatprep.subr.mxu0 0.0
      %1586 = vmatpush2.msra.mxu0 %v1132
      %1587 = vmatprep.subr.mxu0 0.0
      %1588 = vmatpush2.msra.mxu0 %v1131
      %1589 = vmatprep.subr.mxu0 0.0
      %1590 = vmatpush2.msra.mxu0 %v1130
      %1591 = vmatprep.subr.mxu0 0.0
      %1592 = vmatpush2.msra.mxu0 %v1129
      %1593 = vmatprep.subr.mxu0 0.0
      %1594 = vmatpush2.msra.mxu0 %v1128
      %1595 = vmatprep.subr.mxu0 0.0
      %1596 = vmatpush2.msra.mxu0 %v1127
      %1597 = vmatprep.subr.mxu0 0.0
      %1598 = vmatpush2.msra.mxu0 %v1126
      %1599 = vmatprep.subr.mxu0 0.0
      %1600 = vmatpush2.msra.mxu0 %v1125
      %1601 = vmatprep.subr.mxu0 0.0
      %1602 = vmatpush2.msra.mxu0 %v1124
      %1603 = vmatprep.subr.mxu0 0.0
      %1604 = vmatpush2.msra.mxu0 %v1123
      %1605 = vmatprep.mubr.f32.mxu0 %v1060
      %1606 = vmatmul.mubr.f32.gmra.mxu0 %v1059
      %v1607 = vpop.f32.mrf.mxu0
      %v1608 = vadd.f32 %v1463, %v1607
      %v1609 = vpop.f32.mrf.mxu0
      %1610 = vmatprep.mubr.f32.mxu0 %v1063
      %1611 = vmatmul.mubr.f32.gmra.mxu0 %v1062
      %v1612 = vpop.f32.mrf.mxu0
      %v1613 = vadd.f32 %v1468, %v1612
      %v1614 = vpop.f32.mrf.mxu0
      %1615 = vmatprep.mubr.f32.mxu0 %v1066
      %1616 = vmatmul.mubr.f32.gmra.mxu0 %v1065
      %v1617 = vpop.f32.mrf.mxu0
      %v1618 = vadd.f32 %v1473, %v1617
      %v1619 = vpop.f32.mrf.mxu0
      %1620 = vmatprep.mubr.f32.mxu0 %v1069
      %1621 = vmatmul.mubr.f32.gmra.mxu0 %v1068
      %v1622 = vpop.f32.mrf.mxu0
      %v1623 = vadd.f32 %v1478, %v1622
      %v1624 = vpop.f32.mrf.mxu0
      %1625 = vmatprep.mubr.f32.mxu0 %v1072
      %1626 = vmatmul.mubr.f32.gmra.mxu0 %v1071
      %v1627 = vpop.f32.mrf.mxu0
      %v1628 = vadd.f32 %v1483, %v1627
      %v1629 = vpop.f32.mrf.mxu0
      %1630 = vmatprep.mubr.f32.mxu0 %v1075
      %1631 = vmatmul.mubr.f32.gmra.mxu0 %v1074
      %v1632 = vpop.f32.mrf.mxu0
      %v1633 = vadd.f32 %v1488, %v1632
      %v1634 = vpop.f32.mrf.mxu0
      %1635 = vmatprep.mubr.f32.mxu0 %v1078
      %1636 = vmatmul.mubr.f32.gmra.mxu0 %v1077
      %v1637 = vpop.f32.mrf.mxu0
      %v1638 = vadd.f32 %v1493, %v1637
      %v1639 = vpop.f32.mrf.mxu0
      %1640 = vmatprep.mubr.f32.mxu0 %v1081
      %1641 = vmatmul.mubr.f32.gmra.mxu0 %v1080
      %v1642 = vpop.f32.mrf.mxu0
      %v1643 = vadd.f32 %v1498, %v1642
      %v1644 = vpop.f32.mrf.mxu0
      %1645 = vmatprep.mubr.f32.mxu0 %v1084
      %1646 = vmatmul.mubr.f32.gmra.mxu0 %v1083
      %v1647 = vpop.f32.mrf.mxu0
      %v1648 = vadd.f32 %v1503, %v1647
      %v1649 = vpop.f32.mrf.mxu0
      %1650 = vmatprep.mubr.f32.mxu0 %v1087
      %1651 = vmatmul.mubr.f32.gmra.mxu0 %v1086
      %v1652 = vpop.f32.mrf.mxu0
      %v1653 = vadd.f32 %v1508, %v1652
      %v1654 = vpop.f32.mrf.mxu0
      %1655 = vmatprep.mubr.f32.mxu0 %v1090
      %1656 = vmatmul.mubr.f32.gmra.mxu0 %v1089
      %v1657 = vpop.f32.mrf.mxu0
      %v1658 = vadd.f32 %v1513, %v1657
      %v1659 = vpop.f32.mrf.mxu0
      %1660 = vmatprep.mubr.f32.mxu0 %v1093
      %1661 = vmatmul.mubr.f32.gmra.mxu0 %v1092
      %v1662 = vpop.f32.mrf.mxu0
      %v1663 = vadd.f32 %v1518, %v1662
      %v1664 = vpop.f32.mrf.mxu0
      %1665 = vmatprep.mubr.f32.mxu0 %v1096
      %1666 = vmatmul.mubr.f32.gmra.mxu0 %v1095
      %v1667 = vpop.f32.mrf.mxu0
      %v1668 = vadd.f32 %v1523, %v1667
      %v1669 = vpop.f32.mrf.mxu0
      %1670 = vmatprep.mubr.f32.mxu0 %v1099
      %1671 = vmatmul.mubr.f32.gmra.mxu0 %v1098
      %v1672 = vpop.f32.mrf.mxu0
      %v1673 = vadd.f32 %v1528, %v1672
      %v1674 = vpop.f32.mrf.mxu0
      %1675 = vmatprep.mubr.f32.mxu0 %v1102
      %1676 = vmatmul.mubr.f32.gmra.mxu0 %v1101
      %v1677 = vpop.f32.mrf.mxu0
      %v1678 = vadd.f32 %v1533, %v1677
      %v1679 = vpop.f32.mrf.mxu0
      %1680 = vmatprep.mubr.f32.mxu0 %v1105
      %1681 = vmatmul.mubr.f32.gmra.mxu0 %v1104
      %v1682 = vpop.f32.mrf.mxu0
      %v1683 = vadd.f32 %v1538, %v1682
      %v1684 = vpop.f32.mrf.mxu0
      %1685 = vdwg.mxu0
      %1686 = vmatprep.subr.mxu0 0.0
      %1687 = vmatpush1.msra.mxu0 %v1154
      %1688 = vmatprep.subr.mxu0 0.0
      %1689 = vmatpush1.msra.mxu0 %v1153
      %1690 = vmatprep.subr.mxu0 0.0
      %1691 = vmatpush1.msra.mxu0 %v1152
      %1692 = vmatprep.subr.mxu0 0.0
      %1693 = vmatpush1.msra.mxu0 %v1151
      %1694 = vmatprep.subr.mxu0 0.0
      %1695 = vmatpush1.msra.mxu0 %v1150
      %1696 = vmatprep.subr.mxu0 0.0
      %1697 = vmatpush1.msra.mxu0 %v1149
      %1698 = vmatprep.subr.mxu0 0.0
      %1699 = vmatpush1.msra.mxu0 %v1148
      %1700 = vmatprep.subr.mxu0 0.0
      %1701 = vmatpush1.msra.mxu0 %v1147
      %1702 = vmatprep.subr.mxu0 0.0
      %1703 = vmatpush1.msra.mxu0 %v1146
      %1704 = vmatprep.subr.mxu0 0.0
      %1705 = vmatpush1.msra.mxu0 %v1145
      %1706 = vmatprep.subr.mxu0 0.0
      %1707 = vmatpush1.msra.mxu0 %v1144
      %1708 = vmatprep.subr.mxu0 0.0
      %1709 = vmatpush1.msra.mxu0 %v1143
      %1710 = vmatprep.subr.mxu0 0.0
      %1711 = vmatpush1.msra.mxu0 %v1142
      %1712 = vmatprep.subr.mxu0 0.0
      %1713 = vmatpush1.msra.mxu0 %v1141
      %1714 = vmatprep.subr.mxu0 0.0
      %1715 = vmatpush1.msra.mxu0 %v1140
      %1716 = vmatprep.subr.mxu0 0.0
      %1717 = vmatpush1.msra.mxu0 %v1139
      %1718 = vmatprep.subr.mxu0 0.0
      %1719 = vmatpush2.msra.mxu0 0.0
      %1720 = vmatprep.subr.mxu0 0.0
      %1721 = vmatpush2.msra.mxu0 0.0
      %1722 = vmatprep.subr.mxu0 0.0
      %1723 = vmatpush2.msra.mxu0 0.0
      %1724 = vmatprep.subr.mxu0 0.0
      %1725 = vmatpush2.msra.mxu0 0.0
      %1726 = vmatprep.subr.mxu0 0.0
      %1727 = vmatpush2.msra.mxu0 0.0
      %1728 = vmatprep.subr.mxu0 0.0
      %1729 = vmatpush2.msra.mxu0 0.0
      %1730 = vmatprep.subr.mxu0 0.0
      %1731 = vmatpush2.msra.mxu0 0.0
      %1732 = vmatprep.subr.mxu0 0.0
      %1733 = vmatpush2.msra.mxu0 0.0
      %1734 = vmatprep.subr.mxu0 0.0
      %1735 = vmatpush2.msra.mxu0 0.0
      %1736 = vmatprep.subr.mxu0 0.0
      %1737 = vmatpush2.msra.mxu0 0.0
      %1738 = vmatprep.subr.mxu0 0.0
      %1739 = vmatpush2.msra.mxu0 0.0
      %1740 = vmatprep.subr.mxu0 0.0
      %1741 = vmatpush2.msra.mxu0 0.0
      %1742 = vmatprep.subr.mxu0 0.0
      %1743 = vmatpush2.msra.mxu0 0.0
      %1744 = vmatprep.subr.mxu0 0.0
      %1745 = vmatpush2.msra.mxu0 0.0
      %1746 = vmatprep.subr.mxu0 0.0
      %1747 = vmatpush2.msra.mxu0 0.0
      %1748 = vmatprep.subr.mxu0 0.0
      %1749 = vmatpush2.msra.mxu0 0.0
      %1750 = vmatprep.mubr.f32.mxu0 0.0
      %1751 = vmatmul.mubr.f32.gmra.mxu0 %v1061
      %v1752 = vpop.f32.mrf.mxu0
      %v1753 = vadd.f32 %v1608, %v1752
      %v1754 = vpop.f32.mrf.mxu0
      %1755 = vmatprep.mubr.f32.mxu0 0.0
      %1756 = vmatmul.mubr.f32.gmra.mxu0 %v1064
      %v1757 = vpop.f32.mrf.mxu0
      %v1758 = vadd.f32 %v1613, %v1757
      %v1759 = vpop.f32.mrf.mxu0
      %1760 = vmatprep.mubr.f32.mxu0 0.0
      %1761 = vmatmul.mubr.f32.gmra.mxu0 %v1067
      %v1762 = vpop.f32.mrf.mxu0
      %v1763 = vadd.f32 %v1618, %v1762
      %v1764 = vpop.f32.mrf.mxu0
      %1765 = vmatprep.mubr.f32.mxu0 0.0
      %1766 = vmatmul.mubr.f32.gmra.mxu0 %v1070
      %v1767 = vpop.f32.mrf.mxu0
      %v1768 = vadd.f32 %v1623, %v1767
      %v1769 = vpop.f32.mrf.mxu0
      %1770 = vmatprep.mubr.f32.mxu0 0.0
      %1771 = vmatmul.mubr.f32.gmra.mxu0 %v1073
      %v1772 = vpop.f32.mrf.mxu0
      %v1773 = vadd.f32 %v1628, %v1772
      %v1774 = vpop.f32.mrf.mxu0
      %1775 = vmatprep.mubr.f32.mxu0 0.0
      %1776 = vmatmul.mubr.f32.gmra.mxu0 %v1076
      %v1777 = vpop.f32.mrf.mxu0
      %v1778 = vadd.f32 %v1633, %v1777
      %v1779 = vpop.f32.mrf.mxu0
      %1780 = vmatprep.mubr.f32.mxu0 0.0
      %1781 = vmatmul.mubr.f32.gmra.mxu0 %v1079
      %v1782 = vpop.f32.mrf.mxu0
      %v1783 = vadd.f32 %v1638, %v1782
      %v1784 = vpop.f32.mrf.mxu0
      %1785 = vmatprep.mubr.f32.mxu0 0.0
      %1786 = vmatmul.mubr.f32.gmra.mxu0 %v1082
      %v1787 = vpop.f32.mrf.mxu0
      %v1788 = vadd.f32 %v1643, %v1787
      %v1789 = vpop.f32.mrf.mxu0
      %1790 = vmatprep.mubr.f32.mxu0 0.0
      %1791 = vmatmul.mubr.f32.gmra.mxu0 %v1085
      %v1792 = vpop.f32.mrf.mxu0
      %v1793 = vadd.f32 %v1648, %v1792
      %v1794 = vpop.f32.mrf.mxu0
      %1795 = vmatprep.mubr.f32.mxu0 0.0
      %1796 = vmatmul.mubr.f32.gmra.mxu0 %v1088
      %v1797 = vpop.f32.mrf.mxu0
      %v1798 = vadd.f32 %v1653, %v1797
      %v1799 = vpop.f32.mrf.mxu0
      %1800 = vmatprep.mubr.f32.mxu0 0.0
      %1801 = vmatmul.mubr.f32.gmra.mxu0 %v1091
      %v1802 = vpop.f32.mrf.mxu0
      %v1803 = vadd.f32 %v1658, %v1802
      %v1804 = vpop.f32.mrf.mxu0
      %1805 = vmatprep.mubr.f32.mxu0 0.0
      %1806 = vmatmul.mubr.f32.gmra.mxu0 %v1094
      %v1807 = vpop.f32.mrf.mxu0
      %v1808 = vadd.f32 %v1663, %v1807
      %v1809 = vpop.f32.mrf.mxu0
      %1810 = vmatprep.mubr.f32.mxu0 0.0
      %1811 = vmatmul.mubr.f32.gmra.mxu0 %v1097
      %v1812 = vpop.f32.mrf.mxu0
      %v1813 = vadd.f32 %v1668, %v1812
      %v1814 = vpop.f32.mrf.mxu0
      %1815 = vmatprep.mubr.f32.mxu0 0.0
      %1816 = vmatmul.mubr.f32.gmra.mxu0 %v1100
      %v1817 = vpop.f32.mrf.mxu0
      %v1818 = vadd.f32 %v1673, %v1817
      %v1819 = vpop.f32.mrf.mxu0
      %1820 = vmatprep.mubr.f32.mxu0 0.0
      %1821 = vmatmul.mubr.f32.gmra.mxu0 %v1103
      %v1822 = vpop.f32.mrf.mxu0
      %v1823 = vadd.f32 %v1678, %v1822
      %v1824 = vpop.f32.mrf.mxu0
      %1825 = vmatprep.mubr.f32.mxu0 0.0
      %1826 = vmatmul.mubr.f32.gmra.mxu0 %v1106
      %v1827 = vpop.f32.mrf.mxu0
      %v1828 = vadd.f32 %v1683, %v1827
      %v1829 = vpop.f32.mrf.mxu0
      %1830 = vdwg.mxu0
      %v1831 = vld [vmem:[#allocation3 + $0x30] sm:$0xff]
      %v1832 = vld [vmem:[#allocation3 + $0x38] sm:$0xff]
      %v1833 = vld [vmem:[#allocation3 + $0x40] sm:$0xff]
      %v1834 = vld [vmem:[#allocation3 + $0x78] sm:$0xff]
      %v1835 = vld [vmem:[#allocation3 + $0x80] sm:$0xff]
      %v1836 = vld [vmem:[#allocation3 + $0x88] sm:$0xff]
      %v1837 = vld [vmem:[#allocation3 + $0xc0] sm:$0xff]
      %v1838 = vld [vmem:[#allocation3 + $0xc8] sm:$0xff]
      %v1839 = vld [vmem:[#allocation3 + $0xd0] sm:$0xff]
      %v1840 = vld [vmem:[#allocation3 + $0x108] sm:$0xff]
      %v1841 = vld [vmem:[#allocation3 + $0x110] sm:$0xff]
      %v1842 = vld [vmem:[#allocation3 + $0x118] sm:$0xff]
      %v1843 = vld [vmem:[#allocation3 + $0x150] sm:$0xff]
      %v1844 = vld [vmem:[#allocation3 + $0x158] sm:$0xff]
      %v1845 = vld [vmem:[#allocation3 + $0x160] sm:$0xff]
      %v1846 = vld [vmem:[#allocation3 + $0x198] sm:$0xff]
      %v1847 = vld [vmem:[#allocation3 + $0x1a0] sm:$0xff]
      %v1848 = vld [vmem:[#allocation3 + $0x1a8] sm:$0xff]
      %v1849 = vld [vmem:[#allocation3 + $0x1e0] sm:$0xff]
      %v1850 = vld [vmem:[#allocation3 + $0x1e8] sm:$0xff]
      %v1851 = vld [vmem:[#allocation3 + $0x1f0] sm:$0xff]
      %v1852 = vld [vmem:[#allocation3 + $0x228] sm:$0xff]
      %v1853 = vld [vmem:[#allocation3 + $0x230] sm:$0xff]
      %v1854 = vld [vmem:[#allocation3 + $0x238] sm:$0xff]
      %v1855 = vld [vmem:[#allocation3 + $0x270] sm:$0xff]
      %v1856 = vld [vmem:[#allocation3 + $0x278] sm:$0xff]
      %v1857 = vld [vmem:[#allocation3 + $0x280] sm:$0xff]
      %v1858 = vld [vmem:[#allocation3 + $0x2b8] sm:$0xff]
      %v1859 = vld [vmem:[#allocation3 + $0x2c0] sm:$0xff]
      %v1860 = vld [vmem:[#allocation3 + $0x2c8] sm:$0xff]
      %v1861 = vld [vmem:[#allocation3 + $0x300] sm:$0xff]
      %v1862 = vld [vmem:[#allocation3 + $0x308] sm:$0xff]
      %v1863 = vld [vmem:[#allocation3 + $0x310] sm:$0xff]
      %v1864 = vld [vmem:[#allocation3 + $0x348] sm:$0xff]
      %v1865 = vld [vmem:[#allocation3 + $0x350] sm:$0xff]
      %v1866 = vld [vmem:[#allocation3 + $0x358] sm:$0xff]
      %v1867 = vld [vmem:[#allocation3 + $0x390] sm:$0xff]
      %v1868 = vld [vmem:[#allocation3 + $0x398] sm:$0xff]
      %v1869 = vld [vmem:[#allocation3 + $0x3a0] sm:$0xff]
      %v1870 = vld [vmem:[#allocation3 + $0x3d8] sm:$0xff]
      %v1871 = vld [vmem:[#allocation3 + $0x3e0] sm:$0xff]
      %v1872 = vld [vmem:[#allocation3 + $0x3e8] sm:$0xff]
      %v1873 = vld [vmem:[#allocation3 + $0x420] sm:$0xff]
      %v1874 = vld [vmem:[#allocation3 + $0x428] sm:$0xff]
      %v1875 = vld [vmem:[#allocation3 + $0x430] sm:$0xff]
      %v1876 = vld [vmem:[#allocation3 + $0x468] sm:$0xff]
      %v1877 = vld [vmem:[#allocation3 + $0x470] sm:$0xff]
      %v1878 = vld [vmem:[#allocation3 + $0x478] sm:$0xff]
      %v1879 = vld [vmem:[%s4 + $0x300] sm:$0xff]
      %v1880 = vld [vmem:[%s4 + $0x308] sm:$0xff]
      %v1881 = vld [vmem:[%s4 + $0x310] sm:$0xff]
      %v1882 = vld [vmem:[%s4 + $0x318] sm:$0xff]
      %v1883 = vld [vmem:[%s4 + $0x320] sm:$0xff]
      %v1884 = vld [vmem:[%s4 + $0x328] sm:$0xff]
      %v1885 = vld [vmem:[%s4 + $0x330] sm:$0xff]
      %v1886 = vld [vmem:[%s4 + $0x338] sm:$0xff]
      %v1887 = vld [vmem:[%s4 + $0x340] sm:$0xff]
      %v1888 = vld [vmem:[%s4 + $0x348] sm:$0xff]
      %v1889 = vld [vmem:[%s4 + $0x350] sm:$0xff]
      %v1890 = vld [vmem:[%s4 + $0x358] sm:$0xff]
      %v1891 = vld [vmem:[%s4 + $0x360] sm:$0xff]
      %v1892 = vld [vmem:[%s4 + $0x368] sm:$0xff]
      %v1893 = vld [vmem:[%s4 + $0x370] sm:$0xff]
      %v1894 = vld [vmem:[%s4 + $0x378] sm:$0xff]
      %v1895 = vld [vmem:[%s4 + $0x380] sm:$0xff]
      %v1896 = vld [vmem:[%s4 + $0x388] sm:$0xff]
      %v1897 = vld [vmem:[%s4 + $0x390] sm:$0xff]
      %v1898 = vld [vmem:[%s4 + $0x398] sm:$0xff]
      %v1899 = vld [vmem:[%s4 + $0x3a0] sm:$0xff]
      %v1900 = vld [vmem:[%s4 + $0x3a8] sm:$0xff]
      %v1901 = vld [vmem:[%s4 + $0x3b0] sm:$0xff]
      %v1902 = vld [vmem:[%s4 + $0x3b8] sm:$0xff]
      %v1903 = vld [vmem:[%s4 + $0x3c0] sm:$0xff]
      %v1904 = vld [vmem:[%s4 + $0x3c8] sm:$0xff]
      %v1905 = vld [vmem:[%s4 + $0x3d0] sm:$0xff]
      %v1906 = vld [vmem:[%s4 + $0x3d8] sm:$0xff]
      %v1907 = vld [vmem:[%s4 + $0x3e0] sm:$0xff]
      %v1908 = vld [vmem:[%s4 + $0x3e8] sm:$0xff]
      %v1909 = vld [vmem:[%s4 + $0x3f0] sm:$0xff]
      %v1910 = vld [vmem:[%s4 + $0x3f8] sm:$0xff]
      %v1911 = vld [vmem:[%s4 + $0x400] sm:$0xff]
      %v1912 = vld [vmem:[%s4 + $0x408] sm:$0xff]
      %v1913 = vld [vmem:[%s4 + $0x410] sm:$0xff]
      %v1914 = vld [vmem:[%s4 + $0x418] sm:$0xff]
      %v1915 = vld [vmem:[%s4 + $0x420] sm:$0xff]
      %v1916 = vld [vmem:[%s4 + $0x428] sm:$0xff]
      %v1917 = vld [vmem:[%s4 + $0x430] sm:$0xff]
      %v1918 = vld [vmem:[%s4 + $0x438] sm:$0xff]
      %v1919 = vld [vmem:[%s4 + $0x440] sm:$0xff]
      %v1920 = vld [vmem:[%s4 + $0x448] sm:$0xff]
      %v1921 = vld [vmem:[%s4 + $0x450] sm:$0xff]
      %v1922 = vld [vmem:[%s4 + $0x458] sm:$0xff]
      %v1923 = vld [vmem:[%s4 + $0x460] sm:$0xff]
      %v1924 = vld [vmem:[%s4 + $0x468] sm:$0xff]
      %v1925 = vld [vmem:[%s4 + $0x470] sm:$0xff]
      %v1926 = vld [vmem:[%s4 + $0x478] sm:$0xff]
      %1927 = vmatprep.subr.mxu0 0.0
      %1928 = vmatpush1.msra.mxu0 %v1894
      %1929 = vmatprep.subr.mxu0 0.0
      %1930 = vmatpush1.msra.mxu0 %v1893
      %1931 = vmatprep.subr.mxu0 0.0
      %1932 = vmatpush1.msra.mxu0 %v1892
      %1933 = vmatprep.subr.mxu0 0.0
      %1934 = vmatpush1.msra.mxu0 %v1891
      %1935 = vmatprep.subr.mxu0 0.0
      %1936 = vmatpush1.msra.mxu0 %v1890
      %1937 = vmatprep.subr.mxu0 0.0
      %1938 = vmatpush1.msra.mxu0 %v1889
      %1939 = vmatprep.subr.mxu0 0.0
      %1940 = vmatpush1.msra.mxu0 %v1888
      %1941 = vmatprep.subr.mxu0 0.0
      %1942 = vmatpush1.msra.mxu0 %v1887
      %1943 = vmatprep.subr.mxu0 0.0
      %1944 = vmatpush1.msra.mxu0 %v1886
      %1945 = vmatprep.subr.mxu0 0.0
      %1946 = vmatpush1.msra.mxu0 %v1885
      %1947 = vmatprep.subr.mxu0 0.0
      %1948 = vmatpush1.msra.mxu0 %v1884
      %1949 = vmatprep.subr.mxu0 0.0
      %1950 = vmatpush1.msra.mxu0 %v1883
      %1951 = vmatprep.subr.mxu0 0.0
      %1952 = vmatpush1.msra.mxu0 %v1882
      %1953 = vmatprep.subr.mxu0 0.0
      %1954 = vmatpush1.msra.mxu0 %v1881
      %1955 = vmatprep.subr.mxu0 0.0
      %1956 = vmatpush1.msra.mxu0 %v1880
      %1957 = vmatprep.subr.mxu0 0.0
      %1958 = vmatpush1.msra.mxu0 %v1879
      %1959 = vmatprep.subr.mxu0 0.0
      %1960 = vmatpush2.msra.mxu0 %v1910
      %1961 = vmatprep.subr.mxu0 0.0
      %1962 = vmatpush2.msra.mxu0 %v1909
      %1963 = vmatprep.subr.mxu0 0.0
      %1964 = vmatpush2.msra.mxu0 %v1908
      %1965 = vmatprep.subr.mxu0 0.0
      %1966 = vmatpush2.msra.mxu0 %v1907
      %1967 = vmatprep.subr.mxu0 0.0
      %1968 = vmatpush2.msra.mxu0 %v1906
      %1969 = vmatprep.subr.mxu0 0.0
      %1970 = vmatpush2.msra.mxu0 %v1905
      %1971 = vmatprep.subr.mxu0 0.0
      %1972 = vmatpush2.msra.mxu0 %v1904
      %1973 = vmatprep.subr.mxu0 0.0
      %1974 = vmatpush2.msra.mxu0 %v1903
      %1975 = vmatprep.subr.mxu0 0.0
      %1976 = vmatpush2.msra.mxu0 %v1902
      %1977 = vmatprep.subr.mxu0 0.0
      %1978 = vmatpush2.msra.mxu0 %v1901
      %1979 = vmatprep.subr.mxu0 0.0
      %1980 = vmatpush2.msra.mxu0 %v1900
      %1981 = vmatprep.subr.mxu0 0.0
      %1982 = vmatpush2.msra.mxu0 %v1899
      %1983 = vmatprep.subr.mxu0 0.0
      %1984 = vmatpush2.msra.mxu0 %v1898
      %1985 = vmatprep.subr.mxu0 0.0
      %1986 = vmatpush2.msra.mxu0 %v1897
      %1987 = vmatprep.subr.mxu0 0.0
      %1988 = vmatpush2.msra.mxu0 %v1896
      %1989 = vmatprep.subr.mxu0 0.0
      %1990 = vmatpush2.msra.mxu0 %v1895
      %1991 = vmatprep.mubr.f32.mxu0 %v1832
      %1992 = vmatmul.mubr.f32.gmra.mxu0 %v1831
      %v1993 = vpop.f32.mrf.mxu0
      %v1994 = vadd.f32 0.0, %v1993
      %v1995 = vpop.f32.mrf.mxu0
      %1996 = vmatprep.mubr.f32.mxu0 %v1835
      %1997 = vmatmul.mubr.f32.gmra.mxu0 %v1834
      %v1998 = vpop.f32.mrf.mxu0
      %v1999 = vadd.f32 0.0, %v1998
      %v2000 = vpop.f32.mrf.mxu0
      %2001 = vmatprep.mubr.f32.mxu0 %v1838
      %2002 = vmatmul.mubr.f32.gmra.mxu0 %v1837
      %v2003 = vpop.f32.mrf.mxu0
      %v2004 = vadd.f32 0.0, %v2003
      %v2005 = vpop.f32.mrf.mxu0
      %2006 = vmatprep.mubr.f32.mxu0 %v1841
      %2007 = vmatmul.mubr.f32.gmra.mxu0 %v1840
      %v2008 = vpop.f32.mrf.mxu0
      %v2009 = vadd.f32 0.0, %v2008
      %v2010 = vpop.f32.mrf.mxu0
      %2011 = vmatprep.mubr.f32.mxu0 %v1844
      %2012 = vmatmul.mubr.f32.gmra.mxu0 %v1843
      %v2013 = vpop.f32.mrf.mxu0
      %v2014 = vadd.f32 0.0, %v2013
      %v2015 = vpop.f32.mrf.mxu0
      %2016 = vmatprep.mubr.f32.mxu0 %v1847
      %2017 = vmatmul.mubr.f32.gmra.mxu0 %v1846
      %v2018 = vpop.f32.mrf.mxu0
      %v2019 = vadd.f32 0.0, %v2018
      %v2020 = vpop.f32.mrf.mxu0
      %2021 = vmatprep.mubr.f32.mxu0 %v1850
      %2022 = vmatmul.mubr.f32.gmra.mxu0 %v1849
      %v2023 = vpop.f32.mrf.mxu0
      %v2024 = vadd.f32 0.0, %v2023
      %v2025 = vpop.f32.mrf.mxu0
      %2026 = vmatprep.mubr.f32.mxu0 %v1853
      %2027 = vmatmul.mubr.f32.gmra.mxu0 %v1852
      %v2028 = vpop.f32.mrf.mxu0
      %v2029 = vadd.f32 0.0, %v2028
      %v2030 = vpop.f32.mrf.mxu0
      %2031 = vmatprep.mubr.f32.mxu0 %v1856
      %2032 = vmatmul.mubr.f32.gmra.mxu0 %v1855
      %v2033 = vpop.f32.mrf.mxu0
      %v2034 = vadd.f32 0.0, %v2033
      %v2035 = vpop.f32.mrf.mxu0
      %2036 = vmatprep.mubr.f32.mxu0 %v1859
      %2037 = vmatmul.mubr.f32.gmra.mxu0 %v1858
      %v2038 = vpop.f32.mrf.mxu0
      %v2039 = vadd.f32 0.0, %v2038
      %v2040 = vpop.f32.mrf.mxu0
      %2041 = vmatprep.mubr.f32.mxu0 %v1862
      %2042 = vmatmul.mubr.f32.gmra.mxu0 %v1861
      %v2043 = vpop.f32.mrf.mxu0
      %v2044 = vadd.f32 0.0, %v2043
      %v2045 = vpop.f32.mrf.mxu0
      %2046 = vmatprep.mubr.f32.mxu0 %v1865
      %2047 = vmatmul.mubr.f32.gmra.mxu0 %v1864
      %v2048 = vpop.f32.mrf.mxu0
      %v2049 = vadd.f32 0.0, %v2048
      %v2050 = vpop.f32.mrf.mxu0
      %2051 = vmatprep.mubr.f32.mxu0 %v1868
      %2052 = vmatmul.mubr.f32.gmra.mxu0 %v1867
      %v2053 = vpop.f32.mrf.mxu0
      %v2054 = vadd.f32 0.0, %v2053
      %v2055 = vpop.f32.mrf.mxu0
      %2056 = vmatprep.mubr.f32.mxu0 %v1871
      %2057 = vmatmul.mubr.f32.gmra.mxu0 %v1870
      %v2058 = vpop.f32.mrf.mxu0
      %v2059 = vadd.f32 0.0, %v2058
      %v2060 = vpop.f32.mrf.mxu0
      %2061 = vmatprep.mubr.f32.mxu0 %v1874
      %2062 = vmatmul.mubr.f32.gmra.mxu0 %v1873
      %v2063 = vpop.f32.mrf.mxu0
      %v2064 = vadd.f32 0.0, %v2063
      %v2065 = vpop.f32.mrf.mxu0
      %2066 = vmatprep.mubr.f32.mxu0 %v1877
      %2067 = vmatmul.mubr.f32.gmra.mxu0 %v1876
      %v2068 = vpop.f32.mrf.mxu0
      %v2069 = vadd.f32 0.0, %v2068
      %v2070 = vpop.f32.mrf.mxu0
      %2071 = vdwg.mxu0
      %2072 = vmatprep.subr.mxu0 0.0
      %2073 = vmatpush1.msra.mxu0 %v1926
      %2074 = vmatprep.subr.mxu0 0.0
      %2075 = vmatpush1.msra.mxu0 %v1925
      %2076 = vmatprep.subr.mxu0 0.0
      %2077 = vmatpush1.msra.mxu0 %v1924
      %2078 = vmatprep.subr.mxu0 0.0
      %2079 = vmatpush1.msra.mxu0 %v1923
      %2080 = vmatprep.subr.mxu0 0.0
      %2081 = vmatpush1.msra.mxu0 %v1922
      %2082 = vmatprep.subr.mxu0 0.0
      %2083 = vmatpush1.msra.mxu0 %v1921
      %2084 = vmatprep.subr.mxu0 0.0
      %2085 = vmatpush1.msra.mxu0 %v1920
      %2086 = vmatprep.subr.mxu0 0.0
      %2087 = vmatpush1.msra.mxu0 %v1919
      %2088 = vmatprep.subr.mxu0 0.0
      %2089 = vmatpush1.msra.mxu0 %v1918
      %2090 = vmatprep.subr.mxu0 0.0
      %2091 = vmatpush1.msra.mxu0 %v1917
      %2092 = vmatprep.subr.mxu0 0.0
      %2093 = vmatpush1.msra.mxu0 %v1916
      %2094 = vmatprep.subr.mxu0 0.0
      %2095 = vmatpush1.msra.mxu0 %v1915
      %2096 = vmatprep.subr.mxu0 0.0
      %2097 = vmatpush1.msra.mxu0 %v1914
      %2098 = vmatprep.subr.mxu0 0.0
      %2099 = vmatpush1.msra.mxu0 %v1913
      %2100 = vmatprep.subr.mxu0 0.0
      %2101 = vmatpush1.msra.mxu0 %v1912
      %2102 = vmatprep.subr.mxu0 0.0
      %2103 = vmatpush1.msra.mxu0 %v1911
      %2104 = vmatprep.subr.mxu0 0.0
      %2105 = vmatpush2.msra.mxu0 0.0
      %2106 = vmatprep.subr.mxu0 0.0
      %2107 = vmatpush2.msra.mxu0 0.0
      %2108 = vmatprep.subr.mxu0 0.0
      %2109 = vmatpush2.msra.mxu0 0.0
      %2110 = vmatprep.subr.mxu0 0.0
      %2111 = vmatpush2.msra.mxu0 0.0
      %2112 = vmatprep.subr.mxu0 0.0
      %2113 = vmatpush2.msra.mxu0 0.0
      %2114 = vmatprep.subr.mxu0 0.0
      %2115 = vmatpush2.msra.mxu0 0.0
      %2116 = vmatprep.subr.mxu0 0.0
      %2117 = vmatpush2.msra.mxu0 0.0
      %2118 = vmatprep.subr.mxu0 0.0
      %2119 = vmatpush2.msra.mxu0 0.0
      %2120 = vmatprep.subr.mxu0 0.0
      %2121 = vmatpush2.msra.mxu0 0.0
      %2122 = vmatprep.subr.mxu0 0.0
      %2123 = vmatpush2.msra.mxu0 0.0
      %2124 = vmatprep.subr.mxu0 0.0
      %2125 = vmatpush2.msra.mxu0 0.0
      %2126 = vmatprep.subr.mxu0 0.0
      %2127 = vmatpush2.msra.mxu0 0.0
      %2128 = vmatprep.subr.mxu0 0.0
      %2129 = vmatpush2.msra.mxu0 0.0
      %2130 = vmatprep.subr.mxu0 0.0
      %2131 = vmatpush2.msra.mxu0 0.0
      %2132 = vmatprep.subr.mxu0 0.0
      %2133 = vmatpush2.msra.mxu0 0.0
      %2134 = vmatprep.subr.mxu0 0.0
      %2135 = vmatpush2.msra.mxu0 0.0
      %2136 = vmatprep.mubr.f32.mxu0 0.0
      %2137 = vmatmul.mubr.f32.gmra.mxu0 %v1833
      %v2138 = vpop.f32.mrf.mxu0
      %v2139 = vadd.f32 %v1994, %v2138
      %v2140 = vpop.f32.mrf.mxu0
      %2141 = vmatprep.mubr.f32.mxu0 0.0
      %2142 = vmatmul.mubr.f32.gmra.mxu0 %v1836
      %v2143 = vpop.f32.mrf.mxu0
      %v2144 = vadd.f32 %v1999, %v2143
      %v2145 = vpop.f32.mrf.mxu0
      %2146 = vmatprep.mubr.f32.mxu0 0.0
      %2147 = vmatmul.mubr.f32.gmra.mxu0 %v1839
      %v2148 = vpop.f32.mrf.mxu0
      %v2149 = vadd.f32 %v2004, %v2148
      %v2150 = vpop.f32.mrf.mxu0
      %2151 = vmatprep.mubr.f32.mxu0 0.0
      %2152 = vmatmul.mubr.f32.gmra.mxu0 %v1842
      %v2153 = vpop.f32.mrf.mxu0
      %v2154 = vadd.f32 %v2009, %v2153
      %v2155 = vpop.f32.mrf.mxu0
      %2156 = vmatprep.mubr.f32.mxu0 0.0
      %2157 = vmatmul.mubr.f32.gmra.mxu0 %v1845
      %v2158 = vpop.f32.mrf.mxu0
      %v2159 = vadd.f32 %v2014, %v2158
      %v2160 = vpop.f32.mrf.mxu0
      %2161 = vmatprep.mubr.f32.mxu0 0.0
      %2162 = vmatmul.mubr.f32.gmra.mxu0 %v1848
      %v2163 = vpop.f32.mrf.mxu0
      %v2164 = vadd.f32 %v2019, %v2163
      %v2165 = vpop.f32.mrf.mxu0
      %2166 = vmatprep.mubr.f32.mxu0 0.0
      %2167 = vmatmul.mubr.f32.gmra.mxu0 %v1851
      %v2168 = vpop.f32.mrf.mxu0
      %v2169 = vadd.f32 %v2024, %v2168
      %v2170 = vpop.f32.mrf.mxu0
      %2171 = vmatprep.mubr.f32.mxu0 0.0
      %2172 = vmatmul.mubr.f32.gmra.mxu0 %v1854
      %v2173 = vpop.f32.mrf.mxu0
      %v2174 = vadd.f32 %v2029, %v2173
      %v2175 = vpop.f32.mrf.mxu0
      %2176 = vmatprep.mubr.f32.mxu0 0.0
      %2177 = vmatmul.mubr.f32.gmra.mxu0 %v1857
      %v2178 = vpop.f32.mrf.mxu0
      %v2179 = vadd.f32 %v2034, %v2178
      %v2180 = vpop.f32.mrf.mxu0
      %2181 = vmatprep.mubr.f32.mxu0 0.0
      %2182 = vmatmul.mubr.f32.gmra.mxu0 %v1860
      %v2183 = vpop.f32.mrf.mxu0
      %v2184 = vadd.f32 %v2039, %v2183
      %v2185 = vpop.f32.mrf.mxu0
      %2186 = vmatprep.mubr.f32.mxu0 0.0
      %2187 = vmatmul.mubr.f32.gmra.mxu0 %v1863
      %v2188 = vpop.f32.mrf.mxu0
      %v2189 = vadd.f32 %v2044, %v2188
      %v2190 = vpop.f32.mrf.mxu0
      %2191 = vmatprep.mubr.f32.mxu0 0.0
      %2192 = vmatmul.mubr.f32.gmra.mxu0 %v1866
      %v2193 = vpop.f32.mrf.mxu0
      %v2194 = vadd.f32 %v2049, %v2193
      %v2195 = vpop.f32.mrf.mxu0
      %2196 = vmatprep.mubr.f32.mxu0 0.0
      %2197 = vmatmul.mubr.f32.gmra.mxu0 %v1869
      %v2198 = vpop.f32.mrf.mxu0
      %v2199 = vadd.f32 %v2054, %v2198
      %v2200 = vpop.f32.mrf.mxu0
      %2201 = vmatprep.mubr.f32.mxu0 0.0
      %2202 = vmatmul.mubr.f32.gmra.mxu0 %v1872
      %v2203 = vpop.f32.mrf.mxu0
      %v2204 = vadd.f32 %v2059, %v2203
      %v2205 = vpop.f32.mrf.mxu0
      %2206 = vmatprep.mubr.f32.mxu0 0.0
      %2207 = vmatmul.mubr.f32.gmra.mxu0 %v1875
      %v2208 = vpop.f32.mrf.mxu0
      %v2209 = vadd.f32 %v2064, %v2208
      %v2210 = vpop.f32.mrf.mxu0
      %2211 = vmatprep.mubr.f32.mxu0 0.0
      %2212 = vmatmul.mubr.f32.gmra.mxu0 %v1878
      %v2213 = vpop.f32.mrf.mxu0
      %v2214 = vadd.f32 %v2069, %v2213
      %v2215 = vpop.f32.mrf.mxu0
      %2216 = vdwg.mxu0
      %v2217 = vadd.f32 %v1753, %v2139
      %v2218 = vadd.f32 %v1758, %v2144
      %v2219 = vadd.f32 %v1763, %v2149
      %v2220 = vadd.f32 %v1768, %v2154
      %v2221 = vadd.f32 %v1773, %v2159
      %v2222 = vadd.f32 %v1778, %v2164
      %v2223 = vadd.f32 %v1783, %v2169
      %v2224 = vadd.f32 %v1788, %v2174
      %v2225 = vadd.f32 %v1793, %v2179
      %v2226 = vadd.f32 %v1798, %v2184
      %v2227 = vadd.f32 %v1803, %v2189
      %v2228 = vadd.f32 %v1808, %v2194
      %v2229 = vadd.f32 %v1813, %v2199
      %v2230 = vadd.f32 %v1818, %v2204
      %v2231 = vadd.f32 %v1823, %v2209
      %v2232 = vadd.f32 %v1828, %v2214
      %v2233 = vld [vmem:[%s5] sm:$0x1]
      %v2235 = vlaneseq
      %v2236 = vshrl.u32 %v2235, 7
      %v2237 = vsub.s32 0, %v2236
      %v2238 = vrot.slane %v2233, %v2237
      %v2240 = vadd.f32 %v2217, %v2238
      %v2241 = vadd.f32 %v2218, %v2238
      %v2242 = vadd.f32 %v2219, %v2238
      %v2243 = vadd.f32 %v2220, %v2238
      %v2244 = vadd.f32 %v2221, %v2238
      %v2245 = vadd.f32 %v2222, %v2238
      %v2246 = vadd.f32 %v2223, %v2238
      %v2247 = vadd.f32 %v2224, %v2238
      %v2248 = vadd.f32 %v2225, %v2238
      %v2249 = vadd.f32 %v2226, %v2238
      %v2250 = vadd.f32 %v2227, %v2238
      %v2251 = vadd.f32 %v2228, %v2238
      %v2252 = vadd.f32 %v2229, %v2238
      %v2253 = vadd.f32 %v2230, %v2238
      %v2254 = vadd.f32 %v2231, %v2238
      %v2255 = vadd.f32 %v2232, %v2238
      %v2256 = vadd.f32 %v2240, %v731
      %v2257 = vadd.f32 %v2241, %v731
      %v2258 = vadd.f32 %v2242, %v736
      %v2259 = vadd.f32 %v2243, %v736
      %v2260 = vadd.f32 %v2244, %v741
      %v2261 = vadd.f32 %v2245, %v741
      %v2262 = vadd.f32 %v2246, %v746
      %v2263 = vadd.f32 %v2247, %v746
      %v2264 = vadd.f32 %v2248, %v751
      %v2265 = vadd.f32 %v2249, %v751
      %v2266 = vadd.f32 %v2250, %v756
      %v2267 = vadd.f32 %v2251, %v756
      %v2268 = vadd.f32 %v2252, %v761
      %v2269 = vadd.f32 %v2253, %v761
      %v2270 = vadd.f32 %v2254, %v766
      %v2271 = vadd.f32 %v2255, %v766
      %2272 = vst [vmem:[%s352] sm:$0xff] %v2256
      %2273 = vst [vmem:[%s352 + $0x8] sm:$0xff] %v2257
      %2274 = vst [vmem:[%s352 + $0x10] sm:$0xff] %v2258
      %2275 = vst [vmem:[%s352 + $0x18] sm:$0xff] %v2259
      %2276 = vst [vmem:[%s352 + $0x20] sm:$0xff] %v2260
      %2277 = vst [vmem:[%s352 + $0x28] sm:$0xff] %v2261
      %2278 = vst [vmem:[%s352 + $0x30] sm:$0xff] %v2262
      %2279 = vst [vmem:[%s352 + $0x38] sm:$0xff] %v2263
      %2280 = vst [vmem:[%s352 + $0x40] sm:$0xff] %v2264
      %2281 = vst [vmem:[%s352 + $0x48] sm:$0xff] %v2265
      %2282 = vst [vmem:[%s352 + $0x50] sm:$0xff] %v2266
      %2283 = vst [vmem:[%s352 + $0x58] sm:$0xff] %v2267
      %2284 = vst [vmem:[%s352 + $0x60] sm:$0xff] %v2268
      %2285 = vst [vmem:[%s352 + $0x68] sm:$0xff] %v2269
      %2286 = vst [vmem:[%s352 + $0x70] sm:$0xff] %v2270
      %2287 = vst [vmem:[%s352 + $0x78] sm:$0xff] %v2271
      %v2288 = vld [vmem:[#allocation2 + $0x1] sm:$0xff]
      %v2289 = vld [vmem:[#allocation2 + $0x11] sm:$0xff]
      %v2290 = vld [vmem:[#allocation2 + $0x21] sm:$0xff]
      %v2291 = vld [vmem:[#allocation2 + $0x31] sm:$0xff]
      %v2292 = vld [vmem:[#allocation2 + $0x41] sm:$0xff]
      %v2293 = vld [vmem:[#allocation2 + $0x51] sm:$0xff]
      %v2294 = vld [vmem:[#allocation2 + $0x61] sm:$0xff]
      %v2295 = vld [vmem:[#allocation2 + $0x71] sm:$0xff]
      %v2296 = vld [vmem:[#allocation2 + $0x81] sm:$0xff]
      %v2297 = vld [vmem:[#allocation2 + $0x91] sm:$0xff]
      %v2298 = vld [vmem:[#allocation2 + $0xa1] sm:$0xff]
      %v2299 = vld [vmem:[#allocation2 + $0xb1] sm:$0xff]
      %v2300 = vld [vmem:[#allocation2 + $0xc1] sm:$0xff]
      %v2301 = vld [vmem:[#allocation2 + $0xd1] sm:$0xff]
      %v2302 = vld [vmem:[#allocation2 + $0xe1] sm:$0xff]
      %v2303 = vld [vmem:[#allocation2 + $0xf1] sm:$0xff]
      %2304 = vst [vmem:[#allocation3] sm:$0xff] %v2288
      %2305 = vst [vmem:[#allocation3 + $0x48] sm:$0xff] %v2289
      %2306 = vst [vmem:[#allocation3 + $0x90] sm:$0xff] %v2290
      %2307 = vst [vmem:[#allocation3 + $0xd8] sm:$0xff] %v2291
      %2308 = vst [vmem:[#allocation3 + $0x120] sm:$0xff] %v2292
      %2309 = vst [vmem:[#allocation3 + $0x168] sm:$0xff] %v2293
      %2310 = vst [vmem:[#allocation3 + $0x1b0] sm:$0xff] %v2294
      %2311 = vst [vmem:[#allocation3 + $0x1f8] sm:$0xff] %v2295
      %2312 = vst [vmem:[#allocation3 + $0x240] sm:$0xff] %v2296
      %2313 = vst [vmem:[#allocation3 + $0x288] sm:$0xff] %v2297
      %2314 = vst [vmem:[#allocation3 + $0x2d0] sm:$0xff] %v2298
      %2315 = vst [vmem:[#allocation3 + $0x318] sm:$0xff] %v2299
      %2316 = vst [vmem:[#allocation3 + $0x360] sm:$0xff] %v2300
      %2317 = vst [vmem:[#allocation3 + $0x3a8] sm:$0xff] %v2301
      %2318 = vst [vmem:[#allocation3 + $0x3f0] sm:$0xff] %v2302
      %2319 = vst [vmem:[#allocation3 + $0x438] sm:$0xff] %v2303
      %v2320 = vld [vmem:[%s492 + $0x1] sm:$0xff]
      %v2321 = vld [vmem:[%s492 + $0x11] sm:$0xff]
      %v2322 = vld [vmem:[%s492 + $0x21] sm:$0xff]
      %v2323 = vld [vmem:[%s492 + $0x31] sm:$0xff]
      %v2324 = vld [vmem:[%s492 + $0x41] sm:$0xff]
      %v2325 = vld [vmem:[%s492 + $0x51] sm:$0xff]
      %v2326 = vld [vmem:[%s492 + $0x61] sm:$0xff]
      %v2327 = vld [vmem:[%s492 + $0x71] sm:$0xff]
      %v2328 = vld [vmem:[%s492 + $0x81] sm:$0xff]
      %v2329 = vld [vmem:[%s492 + $0x91] sm:$0xff]
      %v2330 = vld [vmem:[%s492 + $0xa1] sm:$0xff]
      %v2331 = vld [vmem:[%s492 + $0xb1] sm:$0xff]
      %v2332 = vld [vmem:[%s492 + $0xc1] sm:$0xff]
      %v2333 = vld [vmem:[%s492 + $0xd1] sm:$0xff]
      %v2334 = vld [vmem:[%s492 + $0xe1] sm:$0xff]
      %v2335 = vld [vmem:[%s492 + $0xf1] sm:$0xff]
      %2336 = vst [vmem:[#allocation3 + $0x8] sm:$0xff] %v2320
      %2337 = vst [vmem:[#allocation3 + $0x50] sm:$0xff] %v2321
      %2338 = vst [vmem:[#allocation3 + $0x98] sm:$0xff] %v2322
      %2339 = vst [vmem:[#allocation3 + $0xe0] sm:$0xff] %v2323
      %2340 = vst [vmem:[#allocation3 + $0x128] sm:$0xff] %v2324
      %2341 = vst [vmem:[#allocation3 + $0x170] sm:$0xff] %v2325
      %2342 = vst [vmem:[#allocation3 + $0x1b8] sm:$0xff] %v2326
      %2343 = vst [vmem:[#allocation3 + $0x200] sm:$0xff] %v2327
      %2344 = vst [vmem:[#allocation3 + $0x248] sm:$0xff] %v2328
      %2345 = vst [vmem:[#allocation3 + $0x290] sm:$0xff] %v2329
      %2346 = vst [vmem:[#allocation3 + $0x2d8] sm:$0xff] %v2330
      %2347 = vst [vmem:[#allocation3 + $0x320] sm:$0xff] %v2331
      %2348 = vst [vmem:[#allocation3 + $0x368] sm:$0xff] %v2332
      %2349 = vst [vmem:[#allocation3 + $0x3b0] sm:$0xff] %v2333
      %2350 = vst [vmem:[#allocation3 + $0x3f8] sm:$0xff] %v2334
      %2351 = vst [vmem:[#allocation3 + $0x440] sm:$0xff] %v2335
      %v2352 = vld [vmem:[#allocation2 + $0x2] sm:$0xff]
      %v2353 = vld [vmem:[#allocation2 + $0x12] sm:$0xff]
      %v2354 = vld [vmem:[#allocation2 + $0x22] sm:$0xff]
      %v2355 = vld [vmem:[#allocation2 + $0x32] sm:$0xff]
      %v2356 = vld [vmem:[#allocation2 + $0x42] sm:$0xff]
      %v2357 = vld [vmem:[#allocation2 + $0x52] sm:$0xff]
      %v2358 = vld [vmem:[#allocation2 + $0x62] sm:$0xff]
      %v2359 = vld [vmem:[#allocation2 + $0x72] sm:$0xff]
      %v2360 = vld [vmem:[#allocation2 + $0x82] sm:$0xff]
      %v2361 = vld [vmem:[#allocation2 + $0x92] sm:$0xff]
      %v2362 = vld [vmem:[#allocation2 + $0xa2] sm:$0xff]
      %v2363 = vld [vmem:[#allocation2 + $0xb2] sm:$0xff]
      %v2364 = vld [vmem:[#allocation2 + $0xc2] sm:$0xff]
      %v2365 = vld [vmem:[#allocation2 + $0xd2] sm:$0xff]
      %v2366 = vld [vmem:[#allocation2 + $0xe2] sm:$0xff]
      %v2367 = vld [vmem:[#allocation2 + $0xf2] sm:$0xff]
      %2368 = vst [vmem:[#allocation3 + $0x10] sm:$0xff] %v2352
      %2369 = vst [vmem:[#allocation3 + $0x58] sm:$0xff] %v2353
      %2370 = vst [vmem:[#allocation3 + $0xa0] sm:$0xff] %v2354
      %2371 = vst [vmem:[#allocation3 + $0xe8] sm:$0xff] %v2355
      %2372 = vst [vmem:[#allocation3 + $0x130] sm:$0xff] %v2356
      %2373 = vst [vmem:[#allocation3 + $0x178] sm:$0xff] %v2357
      %2374 = vst [vmem:[#allocation3 + $0x1c0] sm:$0xff] %v2358
      %2375 = vst [vmem:[#allocation3 + $0x208] sm:$0xff] %v2359
      %2376 = vst [vmem:[#allocation3 + $0x250] sm:$0xff] %v2360
      %2377 = vst [vmem:[#allocation3 + $0x298] sm:$0xff] %v2361
      %2378 = vst [vmem:[#allocation3 + $0x2e0] sm:$0xff] %v2362
      %2379 = vst [vmem:[#allocation3 + $0x328] sm:$0xff] %v2363
      %2380 = vst [vmem:[#allocation3 + $0x370] sm:$0xff] %v2364
      %2381 = vst [vmem:[#allocation3 + $0x3b8] sm:$0xff] %v2365
      %2382 = vst [vmem:[#allocation3 + $0x400] sm:$0xff] %v2366
      %2383 = vst [vmem:[#allocation3 + $0x448] sm:$0xff] %v2367
      %v2384 = vld [vmem:[%s475 + $0x1] sm:$0xff]
      %v2385 = vld [vmem:[%s475 + $0x11] sm:$0xff]
      %v2386 = vld [vmem:[%s475 + $0x21] sm:$0xff]
      %v2387 = vld [vmem:[%s475 + $0x31] sm:$0xff]
      %v2388 = vld [vmem:[%s475 + $0x41] sm:$0xff]
      %v2389 = vld [vmem:[%s475 + $0x51] sm:$0xff]
      %v2390 = vld [vmem:[%s475 + $0x61] sm:$0xff]
      %v2391 = vld [vmem:[%s475 + $0x71] sm:$0xff]
      %v2392 = vld [vmem:[%s475 + $0x81] sm:$0xff]
      %v2393 = vld [vmem:[%s475 + $0x91] sm:$0xff]
      %v2394 = vld [vmem:[%s475 + $0xa1] sm:$0xff]
      %v2395 = vld [vmem:[%s475 + $0xb1] sm:$0xff]
      %v2396 = vld [vmem:[%s475 + $0xc1] sm:$0xff]
      %v2397 = vld [vmem:[%s475 + $0xd1] sm:$0xff]
      %v2398 = vld [vmem:[%s475 + $0xe1] sm:$0xff]
      %v2399 = vld [vmem:[%s475 + $0xf1] sm:$0xff]
      %2400 = vst [vmem:[#allocation3 + $0x18] sm:$0xff] %v2384
      %2401 = vst [vmem:[#allocation3 + $0x60] sm:$0xff] %v2385
      %2402 = vst [vmem:[#allocation3 + $0xa8] sm:$0xff] %v2386
      %2403 = vst [vmem:[#allocation3 + $0xf0] sm:$0xff] %v2387
      %2404 = vst [vmem:[#allocation3 + $0x138] sm:$0xff] %v2388
      %2405 = vst [vmem:[#allocation3 + $0x180] sm:$0xff] %v2389
      %2406 = vst [vmem:[#allocation3 + $0x1c8] sm:$0xff] %v2390
      %2407 = vst [vmem:[#allocation3 + $0x210] sm:$0xff] %v2391
      %2408 = vst [vmem:[#allocation3 + $0x258] sm:$0xff] %v2392
      %2409 = vst [vmem:[#allocation3 + $0x2a0] sm:$0xff] %v2393
      %2410 = vst [vmem:[#allocation3 + $0x2e8] sm:$0xff] %v2394
      %2411 = vst [vmem:[#allocation3 + $0x330] sm:$0xff] %v2395
      %2412 = vst [vmem:[#allocation3 + $0x378] sm:$0xff] %v2396
      %2413 = vst [vmem:[#allocation3 + $0x3c0] sm:$0xff] %v2397
      %2414 = vst [vmem:[#allocation3 + $0x408] sm:$0xff] %v2398
      %2415 = vst [vmem:[#allocation3 + $0x450] sm:$0xff] %v2399
      %v2416 = vld [vmem:[%s599 + $0x1] sm:$0xff]
      %v2417 = vld [vmem:[%s599 + $0x11] sm:$0xff]
      %v2418 = vld [vmem:[%s599 + $0x21] sm:$0xff]
      %v2419 = vld [vmem:[%s599 + $0x31] sm:$0xff]
      %v2420 = vld [vmem:[%s599 + $0x41] sm:$0xff]
      %v2421 = vld [vmem:[%s599 + $0x51] sm:$0xff]
      %v2422 = vld [vmem:[%s599 + $0x61] sm:$0xff]
      %v2423 = vld [vmem:[%s599 + $0x71] sm:$0xff]
      %v2424 = vld [vmem:[%s599 + $0x81] sm:$0xff]
      %v2425 = vld [vmem:[%s599 + $0x91] sm:$0xff]
      %v2426 = vld [vmem:[%s599 + $0xa1] sm:$0xff]
      %v2427 = vld [vmem:[%s599 + $0xb1] sm:$0xff]
      %v2428 = vld [vmem:[%s599 + $0xc1] sm:$0xff]
      %v2429 = vld [vmem:[%s599 + $0xd1] sm:$0xff]
      %v2430 = vld [vmem:[%s599 + $0xe1] sm:$0xff]
      %v2431 = vld [vmem:[%s599 + $0xf1] sm:$0xff]
      %2432 = vst [vmem:[#allocation3 + $0x20] sm:$0xff] %v2416
      %2433 = vst [vmem:[#allocation3 + $0x68] sm:$0xff] %v2417
      %2434 = vst [vmem:[#allocation3 + $0xb0] sm:$0xff] %v2418
      %2435 = vst [vmem:[#allocation3 + $0xf8] sm:$0xff] %v2419
      %2436 = vst [vmem:[#allocation3 + $0x140] sm:$0xff] %v2420
      %2437 = vst [vmem:[#allocation3 + $0x188] sm:$0xff] %v2421
      %2438 = vst [vmem:[#allocation3 + $0x1d0] sm:$0xff] %v2422
      %2439 = vst [vmem:[#allocation3 + $0x218] sm:$0xff] %v2423
      %2440 = vst [vmem:[#allocation3 + $0x260] sm:$0xff] %v2424
      %2441 = vst [vmem:[#allocation3 + $0x2a8] sm:$0xff] %v2425
      %2442 = vst [vmem:[#allocation3 + $0x2f0] sm:$0xff] %v2426
      %2443 = vst [vmem:[#allocation3 + $0x338] sm:$0xff] %v2427
      %2444 = vst [vmem:[#allocation3 + $0x380] sm:$0xff] %v2428
      %2445 = vst [vmem:[#allocation3 + $0x3c8] sm:$0xff] %v2429
      %2446 = vst [vmem:[#allocation3 + $0x410] sm:$0xff] %v2430
      %2447 = vst [vmem:[#allocation3 + $0x458] sm:$0xff] %v2431
      %v2448 = vld [vmem:[%s475 + $0x2] sm:$0xff]
      %v2449 = vld [vmem:[%s475 + $0x12] sm:$0xff]
      %v2450 = vld [vmem:[%s475 + $0x22] sm:$0xff]
      %v2451 = vld [vmem:[%s475 + $0x32] sm:$0xff]
      %v2452 = vld [vmem:[%s475 + $0x42] sm:$0xff]
      %v2453 = vld [vmem:[%s475 + $0x52] sm:$0xff]
      %v2454 = vld [vmem:[%s475 + $0x62] sm:$0xff]
      %v2455 = vld [vmem:[%s475 + $0x72] sm:$0xff]
      %v2456 = vld [vmem:[%s475 + $0x82] sm:$0xff]
      %v2457 = vld [vmem:[%s475 + $0x92] sm:$0xff]
      %v2458 = vld [vmem:[%s475 + $0xa2] sm:$0xff]
      %v2459 = vld [vmem:[%s475 + $0xb2] sm:$0xff]
      %v2460 = vld [vmem:[%s475 + $0xc2] sm:$0xff]
      %v2461 = vld [vmem:[%s475 + $0xd2] sm:$0xff]
      %v2462 = vld [vmem:[%s475 + $0xe2] sm:$0xff]
      %v2463 = vld [vmem:[%s475 + $0xf2] sm:$0xff]
      %2464 = vst [vmem:[#allocation3 + $0x28] sm:$0xff] %v2448
      %2465 = vst [vmem:[#allocation3 + $0x70] sm:$0xff] %v2449
      %2466 = vst [vmem:[#allocation3 + $0xb8] sm:$0xff] %v2450
      %2467 = vst [vmem:[#allocation3 + $0x100] sm:$0xff] %v2451
      %2468 = vst [vmem:[#allocation3 + $0x148] sm:$0xff] %v2452
      %2469 = vst [vmem:[#allocation3 + $0x190] sm:$0xff] %v2453
      %2470 = vst [vmem:[#allocation3 + $0x1d8] sm:$0xff] %v2454
      %2471 = vst [vmem:[#allocation3 + $0x220] sm:$0xff] %v2455
      %2472 = vst [vmem:[#allocation3 + $0x268] sm:$0xff] %v2456
      %2473 = vst [vmem:[#allocation3 + $0x2b0] sm:$0xff] %v2457
      %2474 = vst [vmem:[#allocation3 + $0x2f8] sm:$0xff] %v2458
      %2475 = vst [vmem:[#allocation3 + $0x340] sm:$0xff] %v2459
      %2476 = vst [vmem:[#allocation3 + $0x388] sm:$0xff] %v2460
      %2477 = vst [vmem:[#allocation3 + $0x3d0] sm:$0xff] %v2461
      %2478 = vst [vmem:[#allocation3 + $0x418] sm:$0xff] %v2462
      %2479 = vst [vmem:[#allocation3 + $0x460] sm:$0xff] %v2463
      %v2480 = vld [vmem:[%s994 + $0x1] sm:$0xff]
      %v2481 = vld [vmem:[%s994 + $0x11] sm:$0xff]
      %v2482 = vld [vmem:[%s994 + $0x21] sm:$0xff]
      %v2483 = vld [vmem:[%s994 + $0x31] sm:$0xff]
      %v2484 = vld [vmem:[%s994 + $0x41] sm:$0xff]
      %v2485 = vld [vmem:[%s994 + $0x51] sm:$0xff]
      %v2486 = vld [vmem:[%s994 + $0x61] sm:$0xff]
      %v2487 = vld [vmem:[%s994 + $0x71] sm:$0xff]
      %v2488 = vld [vmem:[%s994 + $0x81] sm:$0xff]
      %v2489 = vld [vmem:[%s994 + $0x91] sm:$0xff]
      %v2490 = vld [vmem:[%s994 + $0xa1] sm:$0xff]
      %v2491 = vld [vmem:[%s994 + $0xb1] sm:$0xff]
      %v2492 = vld [vmem:[%s994 + $0xc1] sm:$0xff]
      %v2493 = vld [vmem:[%s994 + $0xd1] sm:$0xff]
      %v2494 = vld [vmem:[%s994 + $0xe1] sm:$0xff]
      %v2495 = vld [vmem:[%s994 + $0xf1] sm:$0xff]
      %2496 = vst [vmem:[#allocation3 + $0x30] sm:$0xff] %v2480
      %2497 = vst [vmem:[#allocation3 + $0x78] sm:$0xff] %v2481
      %2498 = vst [vmem:[#allocation3 + $0xc0] sm:$0xff] %v2482
      %2499 = vst [vmem:[#allocation3 + $0x108] sm:$0xff] %v2483
      %2500 = vst [vmem:[#allocation3 + $0x150] sm:$0xff] %v2484
      %2501 = vst [vmem:[#allocation3 + $0x198] sm:$0xff] %v2485
      %2502 = vst [vmem:[#allocation3 + $0x1e0] sm:$0xff] %v2486
      %2503 = vst [vmem:[#allocation3 + $0x228] sm:$0xff] %v2487
      %2504 = vst [vmem:[#allocation3 + $0x270] sm:$0xff] %v2488
      %2505 = vst [vmem:[#allocation3 + $0x2b8] sm:$0xff] %v2489
      %2506 = vst [vmem:[#allocation3 + $0x300] sm:$0xff] %v2490
      %2507 = vst [vmem:[#allocation3 + $0x348] sm:$0xff] %v2491
      %2508 = vst [vmem:[#allocation3 + $0x390] sm:$0xff] %v2492
      %2509 = vst [vmem:[#allocation3 + $0x3d8] sm:$0xff] %v2493
      %2510 = vst [vmem:[#allocation3 + $0x420] sm:$0xff] %v2494
      %2511 = vst [vmem:[#allocation3 + $0x468] sm:$0xff] %v2495
      %v2512 = vld [vmem:[%s961 + $0x1] sm:$0xff]
      %v2513 = vld [vmem:[%s961 + $0x11] sm:$0xff]
      %v2514 = vld [vmem:[%s961 + $0x21] sm:$0xff]
      %v2515 = vld [vmem:[%s961 + $0x31] sm:$0xff]
      %v2516 = vld [vmem:[%s961 + $0x41] sm:$0xff]
      %v2517 = vld [vmem:[%s961 + $0x51] sm:$0xff]
      %v2518 = vld [vmem:[%s961 + $0x61] sm:$0xff]
      %v2519 = vld [vmem:[%s961 + $0x71] sm:$0xff]
      %v2520 = vld [vmem:[%s961 + $0x81] sm:$0xff]
      %v2521 = vld [vmem:[%s961 + $0x91] sm:$0xff]
      %v2522 = vld [vmem:[%s961 + $0xa1] sm:$0xff]
      %v2523 = vld [vmem:[%s961 + $0xb1] sm:$0xff]
      %v2524 = vld [vmem:[%s961 + $0xc1] sm:$0xff]
      %v2525 = vld [vmem:[%s961 + $0xd1] sm:$0xff]
      %v2526 = vld [vmem:[%s961 + $0xe1] sm:$0xff]
      %v2527 = vld [vmem:[%s961 + $0xf1] sm:$0xff]
      %2528 = vst [vmem:[#allocation3 + $0x38] sm:$0xff] %v2512
      %2529 = vst [vmem:[#allocation3 + $0x80] sm:$0xff] %v2513
      %2530 = vst [vmem:[#allocation3 + $0xc8] sm:$0xff] %v2514
      %2531 = vst [vmem:[#allocation3 + $0x110] sm:$0xff] %v2515
      %2532 = vst [vmem:[#allocation3 + $0x158] sm:$0xff] %v2516
      %2533 = vst [vmem:[#allocation3 + $0x1a0] sm:$0xff] %v2517
      %2534 = vst [vmem:[#allocation3 + $0x1e8] sm:$0xff] %v2518
      %2535 = vst [vmem:[#allocation3 + $0x230] sm:$0xff] %v2519
      %2536 = vst [vmem:[#allocation3 + $0x278] sm:$0xff] %v2520
      %2537 = vst [vmem:[#allocation3 + $0x2c0] sm:$0xff] %v2521
      %2538 = vst [vmem:[#allocation3 + $0x308] sm:$0xff] %v2522
      %2539 = vst [vmem:[#allocation3 + $0x350] sm:$0xff] %v2523
      %2540 = vst [vmem:[#allocation3 + $0x398] sm:$0xff] %v2524
      %2541 = vst [vmem:[#allocation3 + $0x3e0] sm:$0xff] %v2525
      %2542 = vst [vmem:[#allocation3 + $0x428] sm:$0xff] %v2526
      %2543 = vst [vmem:[#allocation3 + $0x470] sm:$0xff] %v2527
      %v2544 = vld [vmem:[%s994 + $0x2] sm:$0xff]
      %v2545 = vld [vmem:[%s994 + $0x12] sm:$0xff]
      %v2546 = vld [vmem:[%s994 + $0x22] sm:$0xff]
      %v2547 = vld [vmem:[%s994 + $0x32] sm:$0xff]
      %v2548 = vld [vmem:[%s994 + $0x42] sm:$0xff]
      %v2549 = vld [vmem:[%s994 + $0x52] sm:$0xff]
      %v2550 = vld [vmem:[%s994 + $0x62] sm:$0xff]
      %v2551 = vld [vmem:[%s994 + $0x72] sm:$0xff]
      %v2552 = vld [vmem:[%s994 + $0x82] sm:$0xff]
      %v2553 = vld [vmem:[%s994 + $0x92] sm:$0xff]
      %v2554 = vld [vmem:[%s994 + $0xa2] sm:$0xff]
      %v2555 = vld [vmem:[%s994 + $0xb2] sm:$0xff]
      %v2556 = vld [vmem:[%s994 + $0xc2] sm:$0xff]
      %v2557 = vld [vmem:[%s994 + $0xd2] sm:$0xff]
      %v2558 = vld [vmem:[%s994 + $0xe2] sm:$0xff]
      %v2559 = vld [vmem:[%s994 + $0xf2] sm:$0xff]
      %2560 = vst [vmem:[#allocation3 + $0x40] sm:$0xff] %v2544
      %2561 = vst [vmem:[#allocation3 + $0x88] sm:$0xff] %v2545
      %2562 = vst [vmem:[#allocation3 + $0xd0] sm:$0xff] %v2546
      %2563 = vst [vmem:[#allocation3 + $0x118] sm:$0xff] %v2547
      %2564 = vst [vmem:[#allocation3 + $0x160] sm:$0xff] %v2548
      %2565 = vst [vmem:[#allocation3 + $0x1a8] sm:$0xff] %v2549
      %2566 = vst [vmem:[#allocation3 + $0x1f0] sm:$0xff] %v2550
      %2567 = vst [vmem:[#allocation3 + $0x238] sm:$0xff] %v2551
      %2568 = vst [vmem:[#allocation3 + $0x280] sm:$0xff] %v2552
      %2569 = vst [vmem:[#allocation3 + $0x2c8] sm:$0xff] %v2553
      %2570 = vst [vmem:[#allocation3 + $0x310] sm:$0xff] %v2554
      %2571 = vst [vmem:[#allocation3 + $0x358] sm:$0xff] %v2555
      %2572 = vst [vmem:[#allocation3 + $0x3a0] sm:$0xff] %v2556
      %2573 = vst [vmem:[#allocation3 + $0x3e8] sm:$0xff] %v2557
      %2574 = vst [vmem:[#allocation3 + $0x430] sm:$0xff] %v2558
      %2575 = vst [vmem:[#allocation3 + $0x478] sm:$0xff] %v2559
      %v2576 = vld [vmem:[#allocation3] sm:$0xff]
      %v2577 = vld [vmem:[#allocation3 + $0x8] sm:$0xff]
      %v2578 = vld [vmem:[#allocation3 + $0x10] sm:$0xff]
      %v2579 = vld [vmem:[#allocation3 + $0x48] sm:$0xff]
      %v2580 = vld [vmem:[#allocation3 + $0x50] sm:$0xff]
      %v2581 = vld [vmem:[#allocation3 + $0x58] sm:$0xff]
      %v2582 = vld [vmem:[#allocation3 + $0x90] sm:$0xff]
      %v2583 = vld [vmem:[#allocation3 + $0x98] sm:$0xff]
      %v2584 = vld [vmem:[#allocation3 + $0xa0] sm:$0xff]
      %v2585 = vld [vmem:[#allocation3 + $0xd8] sm:$0xff]
      %v2586 = vld [vmem:[#allocation3 + $0xe0] sm:$0xff]
      %v2587 = vld [vmem:[#allocation3 + $0xe8] sm:$0xff]
      %v2588 = vld [vmem:[#allocation3 + $0x120] sm:$0xff]
      %v2589 = vld [vmem:[#allocation3 + $0x128] sm:$0xff]
      %v2590 = vld [vmem:[#allocation3 + $0x130] sm:$0xff]
      %v2591 = vld [vmem:[#allocation3 + $0x168] sm:$0xff]
      %v2592 = vld [vmem:[#allocation3 + $0x170] sm:$0xff]
      %v2593 = vld [vmem:[#allocation3 + $0x178] sm:$0xff]
      %v2594 = vld [vmem:[#allocation3 + $0x1b0] sm:$0xff]
      %v2595 = vld [vmem:[#allocation3 + $0x1b8] sm:$0xff]
      %v2596 = vld [vmem:[#allocation3 + $0x1c0] sm:$0xff]
      %v2597 = vld [vmem:[#allocation3 + $0x1f8] sm:$0xff]
      %v2598 = vld [vmem:[#allocation3 + $0x200] sm:$0xff]
      %v2599 = vld [vmem:[#allocation3 + $0x208] sm:$0xff]
      %v2600 = vld [vmem:[#allocation3 + $0x240] sm:$0xff]
      %v2601 = vld [vmem:[#allocation3 + $0x248] sm:$0xff]
      %v2602 = vld [vmem:[#allocation3 + $0x250] sm:$0xff]
      %v2603 = vld [vmem:[#allocation3 + $0x288] sm:$0xff]
      %v2604 = vld [vmem:[#allocation3 + $0x290] sm:$0xff]
      %v2605 = vld [vmem:[#allocation3 + $0x298] sm:$0xff]
      %v2606 = vld [vmem:[#allocation3 + $0x2d0] sm:$0xff]
      %v2607 = vld [vmem:[#allocation3 + $0x2d8] sm:$0xff]
      %v2608 = vld [vmem:[#allocation3 + $0x2e0] sm:$0xff]
      %v2609 = vld [vmem:[#allocation3 + $0x318] sm:$0xff]
      %v2610 = vld [vmem:[#allocation3 + $0x320] sm:$0xff]
      %v2611 = vld [vmem:[#allocation3 + $0x328] sm:$0xff]
      %v2612 = vld [vmem:[#allocation3 + $0x360] sm:$0xff]
      %v2613 = vld [vmem:[#allocation3 + $0x368] sm:$0xff]
      %v2614 = vld [vmem:[#allocation3 + $0x370] sm:$0xff]
      %v2615 = vld [vmem:[#allocation3 + $0x3a8] sm:$0xff]
      %v2616 = vld [vmem:[#allocation3 + $0x3b0] sm:$0xff]
      %v2617 = vld [vmem:[#allocation3 + $0x3b8] sm:$0xff]
      %v2618 = vld [vmem:[#allocation3 + $0x3f0] sm:$0xff]
      %v2619 = vld [vmem:[#allocation3 + $0x3f8] sm:$0xff]
      %v2620 = vld [vmem:[#allocation3 + $0x400] sm:$0xff]
      %v2621 = vld [vmem:[#allocation3 + $0x438] sm:$0xff]
      %v2622 = vld [vmem:[#allocation3 + $0x440] sm:$0xff]
      %v2623 = vld [vmem:[#allocation3 + $0x448] sm:$0xff]
      %v2624 = vld [vmem:[%s4] sm:$0xff]
      %v2625 = vld [vmem:[%s4 + $0x8] sm:$0xff]
      %v2626 = vld [vmem:[%s4 + $0x10] sm:$0xff]
      %v2627 = vld [vmem:[%s4 + $0x18] sm:$0xff]
      %v2628 = vld [vmem:[%s4 + $0x20] sm:$0xff]
      %v2629 = vld [vmem:[%s4 + $0x28] sm:$0xff]
      %v2630 = vld [vmem:[%s4 + $0x30] sm:$0xff]
      %v2631 = vld [vmem:[%s4 + $0x38] sm:$0xff]
      %v2632 = vld [vmem:[%s4 + $0x40] sm:$0xff]
      %v2633 = vld [vmem:[%s4 + $0x48] sm:$0xff]
      %v2634 = vld [vmem:[%s4 + $0x50] sm:$0xff]
      %v2635 = vld [vmem:[%s4 + $0x58] sm:$0xff]
      %v2636 = vld [vmem:[%s4 + $0x60] sm:$0xff]
      %v2637 = vld [vmem:[%s4 + $0x68] sm:$0xff]
      %v2638 = vld [vmem:[%s4 + $0x70] sm:$0xff]
      %v2639 = vld [vmem:[%s4 + $0x78] sm:$0xff]
      %v2640 = vld [vmem:[%s4 + $0x80] sm:$0xff]
      %v2641 = vld [vmem:[%s4 + $0x88] sm:$0xff]
      %v2642 = vld [vmem:[%s4 + $0x90] sm:$0xff]
      %v2643 = vld [vmem:[%s4 + $0x98] sm:$0xff]
      %v2644 = vld [vmem:[%s4 + $0xa0] sm:$0xff]
      %v2645 = vld [vmem:[%s4 + $0xa8] sm:$0xff]
      %v2646 = vld [vmem:[%s4 + $0xb0] sm:$0xff]
      %v2647 = vld [vmem:[%s4 + $0xb8] sm:$0xff]
      %v2648 = vld [vmem:[%s4 + $0xc0] sm:$0xff]
      %v2649 = vld [vmem:[%s4 + $0xc8] sm:$0xff]
      %v2650 = vld [vmem:[%s4 + $0xd0] sm:$0xff]
      %v2651 = vld [vmem:[%s4 + $0xd8] sm:$0xff]
      %v2652 = vld [vmem:[%s4 + $0xe0] sm:$0xff]
      %v2653 = vld [vmem:[%s4 + $0xe8] sm:$0xff]
      %v2654 = vld [vmem:[%s4 + $0xf0] sm:$0xff]
      %v2655 = vld [vmem:[%s4 + $0xf8] sm:$0xff]
      %v2656 = vld [vmem:[%s4 + $0x100] sm:$0xff]
      %v2657 = vld [vmem:[%s4 + $0x108] sm:$0xff]
      %v2658 = vld [vmem:[%s4 + $0x110] sm:$0xff]
      %v2659 = vld [vmem:[%s4 + $0x118] sm:$0xff]
      %v2660 = vld [vmem:[%s4 + $0x120] sm:$0xff]
      %v2661 = vld [vmem:[%s4 + $0x128] sm:$0xff]
      %v2662 = vld [vmem:[%s4 + $0x130] sm:$0xff]
      %v2663 = vld [vmem:[%s4 + $0x138] sm:$0xff]
      %v2664 = vld [vmem:[%s4 + $0x140] sm:$0xff]
      %v2665 = vld [vmem:[%s4 + $0x148] sm:$0xff]
      %v2666 = vld [vmem:[%s4 + $0x150] sm:$0xff]
      %v2667 = vld [vmem:[%s4 + $0x158] sm:$0xff]
      %v2668 = vld [vmem:[%s4 + $0x160] sm:$0xff]
      %v2669 = vld [vmem:[%s4 + $0x168] sm:$0xff]
      %v2670 = vld [vmem:[%s4 + $0x170] sm:$0xff]
      %v2671 = vld [vmem:[%s4 + $0x178] sm:$0xff]
      %v2672 = vld [vmem:[#allocation3 + $0x18] sm:$0xff]
      %v2673 = vld [vmem:[#allocation3 + $0x20] sm:$0xff]
      %v2674 = vld [vmem:[#allocation3 + $0x28] sm:$0xff]
      %v2675 = vld [vmem:[#allocation3 + $0x60] sm:$0xff]
      %v2676 = vld [vmem:[#allocation3 + $0x68] sm:$0xff]
      %v2677 = vld [vmem:[#allocation3 + $0x70] sm:$0xff]
      %v2678 = vld [vmem:[#allocation3 + $0xa8] sm:$0xff]
      %v2679 = vld [vmem:[#allocation3 + $0xb0] sm:$0xff]
      %v2680 = vld [vmem:[#allocation3 + $0xb8] sm:$0xff]
      %v2681 = vld [vmem:[#allocation3 + $0xf0] sm:$0xff]
      %v2682 = vld [vmem:[#allocation3 + $0xf8] sm:$0xff]
      %v2683 = vld [vmem:[#allocation3 + $0x100] sm:$0xff]
      %v2684 = vld [vmem:[#allocation3 + $0x138] sm:$0xff]
      %v2685 = vld [vmem:[#allocation3 + $0x140] sm:$0xff]
      %v2686 = vld [vmem:[#allocation3 + $0x148] sm:$0xff]
      %v2687 = vld [vmem:[#allocation3 + $0x180] sm:$0xff]
      %v2688 = vld [vmem:[#allocation3 + $0x188] sm:$0xff]
      %v2689 = vld [vmem:[#allocation3 + $0x190] sm:$0xff]
      %v2690 = vld [vmem:[#allocation3 + $0x1c8] sm:$0xff]
      %v2691 = vld [vmem:[#allocation3 + $0x1d0] sm:$0xff]
      %v2692 = vld [vmem:[#allocation3 + $0x1d8] sm:$0xff]
      %v2693 = vld [vmem:[#allocation3 + $0x210] sm:$0xff]
      %v2694 = vld [vmem:[#allocation3 + $0x218] sm:$0xff]
      %v2695 = vld [vmem:[#allocation3 + $0x220] sm:$0xff]
      %v2696 = vld [vmem:[#allocation3 + $0x258] sm:$0xff]
      %v2697 = vld [vmem:[#allocation3 + $0x260] sm:$0xff]
      %v2698 = vld [vmem:[#allocation3 + $0x268] sm:$0xff]
      %v2699 = vld [vmem:[#allocation3 + $0x2a0] sm:$0xff]
      %v2700 = vld [vmem:[#allocation3 + $0x2a8] sm:$0xff]
      %v2701 = vld [vmem:[#allocation3 + $0x2b0] sm:$0xff]
      %v2702 = vld [vmem:[#allocation3 + $0x2e8] sm:$0xff]
      %v2703 = vld [vmem:[#allocation3 + $0x2f0] sm:$0xff]
      %v2704 = vld [vmem:[#allocation3 + $0x2f8] sm:$0xff]
      %v2705 = vld [vmem:[#allocation3 + $0x330] sm:$0xff]
      %v2706 = vld [vmem:[#allocation3 + $0x338] sm:$0xff]
      %v2707 = vld [vmem:[#allocation3 + $0x340] sm:$0xff]
      %v2708 = vld [vmem:[#allocation3 + $0x378] sm:$0xff]
      %v2709 = vld [vmem:[#allocation3 + $0x380] sm:$0xff]
      %v2710 = vld [vmem:[#allocation3 + $0x388] sm:$0xff]
      %v2711 = vld [vmem:[#allocation3 + $0x3c0] sm:$0xff]
      %v2712 = vld [vmem:[#allocation3 + $0x3c8] sm:$0xff]
      %v2713 = vld [vmem:[#allocation3 + $0x3d0] sm:$0xff]
      %v2714 = vld [vmem:[#allocation3 + $0x408] sm:$0xff]
      %v2715 = vld [vmem:[#allocation3 + $0x410] sm:$0xff]
      %v2716 = vld [vmem:[#allocation3 + $0x418] sm:$0xff]
      %v2717 = vld [vmem:[#allocation3 + $0x450] sm:$0xff]
      %v2718 = vld [vmem:[#allocation3 + $0x458] sm:$0xff]
      %v2719 = vld [vmem:[#allocation3 + $0x460] sm:$0xff]
      %v2720 = vld [vmem:[%s4 + $0x180] sm:$0xff]
      %v2721 = vld [vmem:[%s4 + $0x188] sm:$0xff]
      %v2722 = vld [vmem:[%s4 + $0x190] sm:$0xff]
      %v2723 = vld [vmem:[%s4 + $0x198] sm:$0xff]
      %v2724 = vld [vmem:[%s4 + $0x1a0] sm:$0xff]
      %v2725 = vld [vmem:[%s4 + $0x1a8] sm:$0xff]
      %v2726 = vld [vmem:[%s4 + $0x1b0] sm:$0xff]
      %v2727 = vld [vmem:[%s4 + $0x1b8] sm:$0xff]
      %v2728 = vld [vmem:[%s4 + $0x1c0] sm:$0xff]
      %v2729 = vld [vmem:[%s4 + $0x1c8] sm:$0xff]
      %v2730 = vld [vmem:[%s4 + $0x1d0] sm:$0xff]
      %v2731 = vld [vmem:[%s4 + $0x1d8] sm:$0xff]
      %v2732 = vld [vmem:[%s4 + $0x1e0] sm:$0xff]
      %v2733 = vld [vmem:[%s4 + $0x1e8] sm:$0xff]
      %v2734 = vld [vmem:[%s4 + $0x1f0] sm:$0xff]
      %v2735 = vld [vmem:[%s4 + $0x1f8] sm:$0xff]
      %v2736 = vld [vmem:[%s4 + $0x200] sm:$0xff]
      %v2737 = vld [vmem:[%s4 + $0x208] sm:$0xff]
      %v2738 = vld [vmem:[%s4 + $0x210] sm:$0xff]
      %v2739 = vld [vmem:[%s4 + $0x218] sm:$0xff]
      %v2740 = vld [vmem:[%s4 + $0x220] sm:$0xff]
      %v2741 = vld [vmem:[%s4 + $0x228] sm:$0xff]
      %v2742 = vld [vmem:[%s4 + $0x230] sm:$0xff]
      %v2743 = vld [vmem:[%s4 + $0x238] sm:$0xff]
      %v2744 = vld [vmem:[%s4 + $0x240] sm:$0xff]
      %v2745 = vld [vmem:[%s4 + $0x248] sm:$0xff]
      %v2746 = vld [vmem:[%s4 + $0x250] sm:$0xff]
      %v2747 = vld [vmem:[%s4 + $0x258] sm:$0xff]
      %v2748 = vld [vmem:[%s4 + $0x260] sm:$0xff]
      %v2749 = vld [vmem:[%s4 + $0x268] sm:$0xff]
      %v2750 = vld [vmem:[%s4 + $0x270] sm:$0xff]
      %v2751 = vld [vmem:[%s4 + $0x278] sm:$0xff]
      %v2752 = vld [vmem:[%s4 + $0x280] sm:$0xff]
      %v2753 = vld [vmem:[%s4 + $0x288] sm:$0xff]
      %v2754 = vld [vmem:[%s4 + $0x290] sm:$0xff]
      %v2755 = vld [vmem:[%s4 + $0x298] sm:$0xff]
      %v2756 = vld [vmem:[%s4 + $0x2a0] sm:$0xff]
      %v2757 = vld [vmem:[%s4 + $0x2a8] sm:$0xff]
      %v2758 = vld [vmem:[%s4 + $0x2b0] sm:$0xff]
      %v2759 = vld [vmem:[%s4 + $0x2b8] sm:$0xff]
      %v2760 = vld [vmem:[%s4 + $0x2c0] sm:$0xff]
      %v2761 = vld [vmem:[%s4 + $0x2c8] sm:$0xff]
      %v2762 = vld [vmem:[%s4 + $0x2d0] sm:$0xff]
      %v2763 = vld [vmem:[%s4 + $0x2d8] sm:$0xff]
      %v2764 = vld [vmem:[%s4 + $0x2e0] sm:$0xff]
      %v2765 = vld [vmem:[%s4 + $0x2e8] sm:$0xff]
      %v2766 = vld [vmem:[%s4 + $0x2f0] sm:$0xff]
      %v2767 = vld [vmem:[%s4 + $0x2f8] sm:$0xff]
      %2768 = vmatprep.subr.mxu0 0.0
      %2769 = vmatpush1.msra.mxu0 %v2735
      %2770 = vmatprep.subr.mxu0 0.0
      %2771 = vmatpush1.msra.mxu0 %v2734
      %2772 = vmatprep.subr.mxu0 0.0
      %2773 = vmatpush1.msra.mxu0 %v2733
      %2774 = vmatprep.subr.mxu0 0.0
      %2775 = vmatpush1.msra.mxu0 %v2732
      %2776 = vmatprep.subr.mxu0 0.0
      %2777 = vmatpush1.msra.mxu0 %v2731
      %2778 = vmatprep.subr.mxu0 0.0
      %2779 = vmatpush1.msra.mxu0 %v2730
      %2780 = vmatprep.subr.mxu0 0.0
      %2781 = vmatpush1.msra.mxu0 %v2729
      %2782 = vmatprep.subr.mxu0 0.0
      %2783 = vmatpush1.msra.mxu0 %v2728
      %2784 = vmatprep.subr.mxu0 0.0
      %2785 = vmatpush1.msra.mxu0 %v2727
      %2786 = vmatprep.subr.mxu0 0.0
      %2787 = vmatpush1.msra.mxu0 %v2726
      %2788 = vmatprep.subr.mxu0 0.0
      %2789 = vmatpush1.msra.mxu0 %v2725
      %2790 = vmatprep.subr.mxu0 0.0
      %2791 = vmatpush1.msra.mxu0 %v2724
      %2792 = vmatprep.subr.mxu0 0.0
      %2793 = vmatpush1.msra.mxu0 %v2723
      %2794 = vmatprep.subr.mxu0 0.0
      %2795 = vmatpush1.msra.mxu0 %v2722
      %2796 = vmatprep.subr.mxu0 0.0
      %2797 = vmatpush1.msra.mxu0 %v2721
      %2798 = vmatprep.subr.mxu0 0.0
      %2799 = vmatpush1.msra.mxu0 %v2720
      %2800 = vmatprep.subr.mxu0 0.0
      %2801 = vmatpush2.msra.mxu0 %v2751
      %2802 = vmatprep.subr.mxu0 0.0
      %2803 = vmatpush2.msra.mxu0 %v2750
      %2804 = vmatprep.subr.mxu0 0.0
      %2805 = vmatpush2.msra.mxu0 %v2749
      %2806 = vmatprep.subr.mxu0 0.0
      %2807 = vmatpush2.msra.mxu0 %v2748
      %2808 = vmatprep.subr.mxu0 0.0
      %2809 = vmatpush2.msra.mxu0 %v2747
      %2810 = vmatprep.subr.mxu0 0.0
      %2811 = vmatpush2.msra.mxu0 %v2746
      %2812 = vmatprep.subr.mxu0 0.0
      %2813 = vmatpush2.msra.mxu0 %v2745
      %2814 = vmatprep.subr.mxu0 0.0
      %2815 = vmatpush2.msra.mxu0 %v2744
      %2816 = vmatprep.subr.mxu0 0.0
      %2817 = vmatpush2.msra.mxu0 %v2743
      %2818 = vmatprep.subr.mxu0 0.0
      %2819 = vmatpush2.msra.mxu0 %v2742
      %2820 = vmatprep.subr.mxu0 0.0
      %2821 = vmatpush2.msra.mxu0 %v2741
      %2822 = vmatprep.subr.mxu0 0.0
      %2823 = vmatpush2.msra.mxu0 %v2740
      %2824 = vmatprep.subr.mxu0 0.0
      %2825 = vmatpush2.msra.mxu0 %v2739
      %2826 = vmatprep.subr.mxu0 0.0
      %2827 = vmatpush2.msra.mxu0 %v2738
      %2828 = vmatprep.subr.mxu0 0.0
      %2829 = vmatpush2.msra.mxu0 %v2737
      %2830 = vmatprep.subr.mxu0 0.0
      %2831 = vmatpush2.msra.mxu0 %v2736
      %2832 = vmatprep.mubr.f32.mxu0 %v2673
      %2833 = vmatmul.mubr.f32.gmra.mxu0 %v2672
      %v2834 = vpop.f32.mrf.mxu0
      %v2835 = vadd.f32 0.0, %v2834
      %v2836 = vpop.f32.mrf.mxu0
      %2837 = vmatprep.mubr.f32.mxu0 %v2676
      %2838 = vmatmul.mubr.f32.gmra.mxu0 %v2675
      %v2839 = vpop.f32.mrf.mxu0
      %v2840 = vadd.f32 0.0, %v2839
      %v2841 = vpop.f32.mrf.mxu0
      %2842 = vmatprep.mubr.f32.mxu0 %v2679
      %2843 = vmatmul.mubr.f32.gmra.mxu0 %v2678
      %v2844 = vpop.f32.mrf.mxu0
      %v2845 = vadd.f32 0.0, %v2844
      %v2846 = vpop.f32.mrf.mxu0
      %2847 = vmatprep.mubr.f32.mxu0 %v2682
      %2848 = vmatmul.mubr.f32.gmra.mxu0 %v2681
      %v2849 = vpop.f32.mrf.mxu0
      %v2850 = vadd.f32 0.0, %v2849
      %v2851 = vpop.f32.mrf.mxu0
      %2852 = vmatprep.mubr.f32.mxu0 %v2685
      %2853 = vmatmul.mubr.f32.gmra.mxu0 %v2684
      %v2854 = vpop.f32.mrf.mxu0
      %v2855 = vadd.f32 0.0, %v2854
      %v2856 = vpop.f32.mrf.mxu0
      %2857 = vmatprep.mubr.f32.mxu0 %v2688
      %2858 = vmatmul.mubr.f32.gmra.mxu0 %v2687
      %v2859 = vpop.f32.mrf.mxu0
      %v2860 = vadd.f32 0.0, %v2859
      %v2861 = vpop.f32.mrf.mxu0
      %2862 = vmatprep.mubr.f32.mxu0 %v2691
      %2863 = vmatmul.mubr.f32.gmra.mxu0 %v2690
      %v2864 = vpop.f32.mrf.mxu0
      %v2865 = vadd.f32 0.0, %v2864
      %v2866 = vpop.f32.mrf.mxu0
      %2867 = vmatprep.mubr.f32.mxu0 %v2694
      %2868 = vmatmul.mubr.f32.gmra.mxu0 %v2693
      %v2869 = vpop.f32.mrf.mxu0
      %v2870 = vadd.f32 0.0, %v2869
      %v2871 = vpop.f32.mrf.mxu0
      %2872 = vmatprep.mubr.f32.mxu0 %v2697
      %2873 = vmatmul.mubr.f32.gmra.mxu0 %v2696
      %v2874 = vpop.f32.mrf.mxu0
      %v2875 = vadd.f32 0.0, %v2874
      %v2876 = vpop.f32.mrf.mxu0
      %2877 = vmatprep.mubr.f32.mxu0 %v2700
      %2878 = vmatmul.mubr.f32.gmra.mxu0 %v2699
      %v2879 = vpop.f32.mrf.mxu0
      %v2880 = vadd.f32 0.0, %v2879
      %v2881 = vpop.f32.mrf.mxu0
      %2882 = vmatprep.mubr.f32.mxu0 %v2703
      %2883 = vmatmul.mubr.f32.gmra.mxu0 %v2702
      %v2884 = vpop.f32.mrf.mxu0
      %v2885 = vadd.f32 0.0, %v2884
      %v2886 = vpop.f32.mrf.mxu0
      %2887 = vmatprep.mubr.f32.mxu0 %v2706
      %2888 = vmatmul.mubr.f32.gmra.mxu0 %v2705
      %v2889 = vpop.f32.mrf.mxu0
      %v2890 = vadd.f32 0.0, %v2889
      %v2891 = vpop.f32.mrf.mxu0
      %2892 = vmatprep.mubr.f32.mxu0 %v2709
      %2893 = vmatmul.mubr.f32.gmra.mxu0 %v2708
      %v2894 = vpop.f32.mrf.mxu0
      %v2895 = vadd.f32 0.0, %v2894
      %v2896 = vpop.f32.mrf.mxu0
      %2897 = vmatprep.mubr.f32.mxu0 %v2712
      %2898 = vmatmul.mubr.f32.gmra.mxu0 %v2711
      %v2899 = vpop.f32.mrf.mxu0
      %v2900 = vadd.f32 0.0, %v2899
      %v2901 = vpop.f32.mrf.mxu0
      %2902 = vmatprep.mubr.f32.mxu0 %v2715
      %2903 = vmatmul.mubr.f32.gmra.mxu0 %v2714
      %v2904 = vpop.f32.mrf.mxu0
      %v2905 = vadd.f32 0.0, %v2904
      %v2906 = vpop.f32.mrf.mxu0
      %2907 = vmatprep.mubr.f32.mxu0 %v2718
      %2908 = vmatmul.mubr.f32.gmra.mxu0 %v2717
      %v2909 = vpop.f32.mrf.mxu0
      %v2910 = vadd.f32 0.0, %v2909
      %v2911 = vpop.f32.mrf.mxu0
      %2912 = vdwg.mxu0
      %2913 = vmatprep.subr.mxu0 0.0
      %2914 = vmatpush1.msra.mxu0 %v2767
      %2915 = vmatprep.subr.mxu0 0.0
      %2916 = vmatpush1.msra.mxu0 %v2766
      %2917 = vmatprep.subr.mxu0 0.0
      %2918 = vmatpush1.msra.mxu0 %v2765
      %2919 = vmatprep.subr.mxu0 0.0
      %2920 = vmatpush1.msra.mxu0 %v2764
      %2921 = vmatprep.subr.mxu0 0.0
      %2922 = vmatpush1.msra.mxu0 %v2763
      %2923 = vmatprep.subr.mxu0 0.0
      %2924 = vmatpush1.msra.mxu0 %v2762
      %2925 = vmatprep.subr.mxu0 0.0
      %2926 = vmatpush1.msra.mxu0 %v2761
      %2927 = vmatprep.subr.mxu0 0.0
      %2928 = vmatpush1.msra.mxu0 %v2760
      %2929 = vmatprep.subr.mxu0 0.0
      %2930 = vmatpush1.msra.mxu0 %v2759
      %2931 = vmatprep.subr.mxu0 0.0
      %2932 = vmatpush1.msra.mxu0 %v2758
      %2933 = vmatprep.subr.mxu0 0.0
      %2934 = vmatpush1.msra.mxu0 %v2757
      %2935 = vmatprep.subr.mxu0 0.0
      %2936 = vmatpush1.msra.mxu0 %v2756
      %2937 = vmatprep.subr.mxu0 0.0
      %2938 = vmatpush1.msra.mxu0 %v2755
      %2939 = vmatprep.subr.mxu0 0.0
      %2940 = vmatpush1.msra.mxu0 %v2754
      %2941 = vmatprep.subr.mxu0 0.0
      %2942 = vmatpush1.msra.mxu0 %v2753
      %2943 = vmatprep.subr.mxu0 0.0
      %2944 = vmatpush1.msra.mxu0 %v2752
      %2945 = vmatprep.subr.mxu0 0.0
      %2946 = vmatpush2.msra.mxu0 0.0
      %2947 = vmatprep.subr.mxu0 0.0
      %2948 = vmatpush2.msra.mxu0 0.0
      %2949 = vmatprep.subr.mxu0 0.0
      %2950 = vmatpush2.msra.mxu0 0.0
      %2951 = vmatprep.subr.mxu0 0.0
      %2952 = vmatpush2.msra.mxu0 0.0
      %2953 = vmatprep.subr.mxu0 0.0
      %2954 = vmatpush2.msra.mxu0 0.0
      %2955 = vmatprep.subr.mxu0 0.0
      %2956 = vmatpush2.msra.mxu0 0.0
      %2957 = vmatprep.subr.mxu0 0.0
      %2958 = vmatpush2.msra.mxu0 0.0
      %2959 = vmatprep.subr.mxu0 0.0
      %2960 = vmatpush2.msra.mxu0 0.0
      %2961 = vmatprep.subr.mxu0 0.0
      %2962 = vmatpush2.msra.mxu0 0.0
      %2963 = vmatprep.subr.mxu0 0.0
      %2964 = vmatpush2.msra.mxu0 0.0
      %2965 = vmatprep.subr.mxu0 0.0
      %2966 = vmatpush2.msra.mxu0 0.0
      %2967 = vmatprep.subr.mxu0 0.0
      %2968 = vmatpush2.msra.mxu0 0.0
      %2969 = vmatprep.subr.mxu0 0.0
      %2970 = vmatpush2.msra.mxu0 0.0
      %2971 = vmatprep.subr.mxu0 0.0
      %2972 = vmatpush2.msra.mxu0 0.0
      %2973 = vmatprep.subr.mxu0 0.0
      %2974 = vmatpush2.msra.mxu0 0.0
      %2975 = vmatprep.subr.mxu0 0.0
      %2976 = vmatpush2.msra.mxu0 0.0
      %2977 = vmatprep.mubr.f32.mxu0 0.0
      %2978 = vmatmul.mubr.f32.gmra.mxu0 %v2674
      %v2979 = vpop.f32.mrf.mxu0
      %v2980 = vadd.f32 %v2835, %v2979
      %v2981 = vpop.f32.mrf.mxu0
      %2982 = vmatprep.mubr.f32.mxu0 0.0
      %2983 = vmatmul.mubr.f32.gmra.mxu0 %v2677
      %v2984 = vpop.f32.mrf.mxu0
      %v2985 = vadd.f32 %v2840, %v2984
      %v2986 = vpop.f32.mrf.mxu0
      %2987 = vmatprep.mubr.f32.mxu0 0.0
      %2988 = vmatmul.mubr.f32.gmra.mxu0 %v2680
      %v2989 = vpop.f32.mrf.mxu0
      %v2990 = vadd.f32 %v2845, %v2989
      %v2991 = vpop.f32.mrf.mxu0
      %2992 = vmatprep.mubr.f32.mxu0 0.0
      %2993 = vmatmul.mubr.f32.gmra.mxu0 %v2683
      %v2994 = vpop.f32.mrf.mxu0
      %v2995 = vadd.f32 %v2850, %v2994
      %v2996 = vpop.f32.mrf.mxu0
      %2997 = vmatprep.mubr.f32.mxu0 0.0
      %2998 = vmatmul.mubr.f32.gmra.mxu0 %v2686
      %v2999 = vpop.f32.mrf.mxu0
      %v3000 = vadd.f32 %v2855, %v2999
      %v3001 = vpop.f32.mrf.mxu0
      %3002 = vmatprep.mubr.f32.mxu0 0.0
      %3003 = vmatmul.mubr.f32.gmra.mxu0 %v2689
      %v3004 = vpop.f32.mrf.mxu0
      %v3005 = vadd.f32 %v2860, %v3004
      %v3006 = vpop.f32.mrf.mxu0
      %3007 = vmatprep.mubr.f32.mxu0 0.0
      %3008 = vmatmul.mubr.f32.gmra.mxu0 %v2692
      %v3009 = vpop.f32.mrf.mxu0
      %v3010 = vadd.f32 %v2865, %v3009
      %v3011 = vpop.f32.mrf.mxu0
      %3012 = vmatprep.mubr.f32.mxu0 0.0
      %3013 = vmatmul.mubr.f32.gmra.mxu0 %v2695
      %v3014 = vpop.f32.mrf.mxu0
      %v3015 = vadd.f32 %v2870, %v3014
      %v3016 = vpop.f32.mrf.mxu0
      %3017 = vmatprep.mubr.f32.mxu0 0.0
      %3018 = vmatmul.mubr.f32.gmra.mxu0 %v2698
      %v3019 = vpop.f32.mrf.mxu0
      %v3020 = vadd.f32 %v2875, %v3019
      %v3021 = vpop.f32.mrf.mxu0
      %3022 = vmatprep.mubr.f32.mxu0 0.0
      %3023 = vmatmul.mubr.f32.gmra.mxu0 %v2701
      %v3024 = vpop.f32.mrf.mxu0
      %v3025 = vadd.f32 %v2880, %v3024
      %v3026 = vpop.f32.mrf.mxu0
      %3027 = vmatprep.mubr.f32.mxu0 0.0
      %3028 = vmatmul.mubr.f32.gmra.mxu0 %v2704
      %v3029 = vpop.f32.mrf.mxu0
      %v3030 = vadd.f32 %v2885, %v3029
      %v3031 = vpop.f32.mrf.mxu0
      %3032 = vmatprep.mubr.f32.mxu0 0.0
      %3033 = vmatmul.mubr.f32.gmra.mxu0 %v2707
      %v3034 = vpop.f32.mrf.mxu0
      %v3035 = vadd.f32 %v2890, %v3034
      %v3036 = vpop.f32.mrf.mxu0
      %3037 = vmatprep.mubr.f32.mxu0 0.0
      %3038 = vmatmul.mubr.f32.gmra.mxu0 %v2710
      %v3039 = vpop.f32.mrf.mxu0
      %v3040 = vadd.f32 %v2895, %v3039
      %v3041 = vpop.f32.mrf.mxu0
      %3042 = vmatprep.mubr.f32.mxu0 0.0
      %3043 = vmatmul.mubr.f32.gmra.mxu0 %v2713
      %v3044 = vpop.f32.mrf.mxu0
      %v3045 = vadd.f32 %v2900, %v3044
      %v3046 = vpop.f32.mrf.mxu0
      %3047 = vmatprep.mubr.f32.mxu0 0.0
      %3048 = vmatmul.mubr.f32.gmra.mxu0 %v2716
      %v3049 = vpop.f32.mrf.mxu0
      %v3050 = vadd.f32 %v2905, %v3049
      %v3051 = vpop.f32.mrf.mxu0
      %3052 = vmatprep.mubr.f32.mxu0 0.0
      %3053 = vmatmul.mubr.f32.gmra.mxu0 %v2719
      %v3054 = vpop.f32.mrf.mxu0
      %v3055 = vadd.f32 %v2910, %v3054
      %v3056 = vpop.f32.mrf.mxu0
      %3057 = vdwg.mxu0
      %3058 = vmatprep.subr.mxu0 0.0
      %3059 = vmatpush1.msra.mxu0 %v2639
      %3060 = vmatprep.subr.mxu0 0.0
      %3061 = vmatpush1.msra.mxu0 %v2638
      %3062 = vmatprep.subr.mxu0 0.0
      %3063 = vmatpush1.msra.mxu0 %v2637
      %3064 = vmatprep.subr.mxu0 0.0
      %3065 = vmatpush1.msra.mxu0 %v2636
      %3066 = vmatprep.subr.mxu0 0.0
      %3067 = vmatpush1.msra.mxu0 %v2635
      %3068 = vmatprep.subr.mxu0 0.0
      %3069 = vmatpush1.msra.mxu0 %v2634
      %3070 = vmatprep.subr.mxu0 0.0
      %3071 = vmatpush1.msra.mxu0 %v2633
      %3072 = vmatprep.subr.mxu0 0.0
      %3073 = vmatpush1.msra.mxu0 %v2632
      %3074 = vmatprep.subr.mxu0 0.0
      %3075 = vmatpush1.msra.mxu0 %v2631
      %3076 = vmatprep.subr.mxu0 0.0
      %3077 = vmatpush1.msra.mxu0 %v2630
      %3078 = vmatprep.subr.mxu0 0.0
      %3079 = vmatpush1.msra.mxu0 %v2629
      %3080 = vmatprep.subr.mxu0 0.0
      %3081 = vmatpush1.msra.mxu0 %v2628
      %3082 = vmatprep.subr.mxu0 0.0
      %3083 = vmatpush1.msra.mxu0 %v2627
      %3084 = vmatprep.subr.mxu0 0.0
      %3085 = vmatpush1.msra.mxu0 %v2626
      %3086 = vmatprep.subr.mxu0 0.0
      %3087 = vmatpush1.msra.mxu0 %v2625
      %3088 = vmatprep.subr.mxu0 0.0
      %3089 = vmatpush1.msra.mxu0 %v2624
      %3090 = vmatprep.subr.mxu0 0.0
      %3091 = vmatpush2.msra.mxu0 %v2655
      %3092 = vmatprep.subr.mxu0 0.0
      %3093 = vmatpush2.msra.mxu0 %v2654
      %3094 = vmatprep.subr.mxu0 0.0
      %3095 = vmatpush2.msra.mxu0 %v2653
      %3096 = vmatprep.subr.mxu0 0.0
      %3097 = vmatpush2.msra.mxu0 %v2652
      %3098 = vmatprep.subr.mxu0 0.0
      %3099 = vmatpush2.msra.mxu0 %v2651
      %3100 = vmatprep.subr.mxu0 0.0
      %3101 = vmatpush2.msra.mxu0 %v2650
      %3102 = vmatprep.subr.mxu0 0.0
      %3103 = vmatpush2.msra.mxu0 %v2649
      %3104 = vmatprep.subr.mxu0 0.0
      %3105 = vmatpush2.msra.mxu0 %v2648
      %3106 = vmatprep.subr.mxu0 0.0
      %3107 = vmatpush2.msra.mxu0 %v2647
      %3108 = vmatprep.subr.mxu0 0.0
      %3109 = vmatpush2.msra.mxu0 %v2646
      %3110 = vmatprep.subr.mxu0 0.0
      %3111 = vmatpush2.msra.mxu0 %v2645
      %3112 = vmatprep.subr.mxu0 0.0
      %3113 = vmatpush2.msra.mxu0 %v2644
      %3114 = vmatprep.subr.mxu0 0.0
      %3115 = vmatpush2.msra.mxu0 %v2643
      %3116 = vmatprep.subr.mxu0 0.0
      %3117 = vmatpush2.msra.mxu0 %v2642
      %3118 = vmatprep.subr.mxu0 0.0
      %3119 = vmatpush2.msra.mxu0 %v2641
      %3120 = vmatprep.subr.mxu0 0.0
      %3121 = vmatpush2.msra.mxu0 %v2640
      %3122 = vmatprep.mubr.f32.mxu0 %v2577
      %3123 = vmatmul.mubr.f32.gmra.mxu0 %v2576
      %v3124 = vpop.f32.mrf.mxu0
      %v3125 = vadd.f32 %v2980, %v3124
      %v3126 = vpop.f32.mrf.mxu0
      %3127 = vmatprep.mubr.f32.mxu0 %v2580
      %3128 = vmatmul.mubr.f32.gmra.mxu0 %v2579
      %v3129 = vpop.f32.mrf.mxu0
      %v3130 = vadd.f32 %v2985, %v3129
      %v3131 = vpop.f32.mrf.mxu0
      %3132 = vmatprep.mubr.f32.mxu0 %v2583
      %3133 = vmatmul.mubr.f32.gmra.mxu0 %v2582
      %v3134 = vpop.f32.mrf.mxu0
      %v3135 = vadd.f32 %v2990, %v3134
      %v3136 = vpop.f32.mrf.mxu0
      %3137 = vmatprep.mubr.f32.mxu0 %v2586
      %3138 = vmatmul.mubr.f32.gmra.mxu0 %v2585
      %v3139 = vpop.f32.mrf.mxu0
      %v3140 = vadd.f32 %v2995, %v3139
      %v3141 = vpop.f32.mrf.mxu0
      %3142 = vmatprep.mubr.f32.mxu0 %v2589
      %3143 = vmatmul.mubr.f32.gmra.mxu0 %v2588
      %v3144 = vpop.f32.mrf.mxu0
      %v3145 = vadd.f32 %v3000, %v3144
      %v3146 = vpop.f32.mrf.mxu0
      %3147 = vmatprep.mubr.f32.mxu0 %v2592
      %3148 = vmatmul.mubr.f32.gmra.mxu0 %v2591
      %v3149 = vpop.f32.mrf.mxu0
      %v3150 = vadd.f32 %v3005, %v3149
      %v3151 = vpop.f32.mrf.mxu0
      %3152 = vmatprep.mubr.f32.mxu0 %v2595
      %3153 = vmatmul.mubr.f32.gmra.mxu0 %v2594
      %v3154 = vpop.f32.mrf.mxu0
      %v3155 = vadd.f32 %v3010, %v3154
      %v3156 = vpop.f32.mrf.mxu0
      %3157 = vmatprep.mubr.f32.mxu0 %v2598
      %3158 = vmatmul.mubr.f32.gmra.mxu0 %v2597
      %v3159 = vpop.f32.mrf.mxu0
      %v3160 = vadd.f32 %v3015, %v3159
      %v3161 = vpop.f32.mrf.mxu0
      %3162 = vmatprep.mubr.f32.mxu0 %v2601
      %3163 = vmatmul.mubr.f32.gmra.mxu0 %v2600
      %v3164 = vpop.f32.mrf.mxu0
      %v3165 = vadd.f32 %v3020, %v3164
      %v3166 = vpop.f32.mrf.mxu0
      %3167 = vmatprep.mubr.f32.mxu0 %v2604
      %3168 = vmatmul.mubr.f32.gmra.mxu0 %v2603
      %v3169 = vpop.f32.mrf.mxu0
      %v3170 = vadd.f32 %v3025, %v3169
      %v3171 = vpop.f32.mrf.mxu0
      %3172 = vmatprep.mubr.f32.mxu0 %v2607
      %3173 = vmatmul.mubr.f32.gmra.mxu0 %v2606
      %v3174 = vpop.f32.mrf.mxu0
      %v3175 = vadd.f32 %v3030, %v3174
      %v3176 = vpop.f32.mrf.mxu0
      %3177 = vmatprep.mubr.f32.mxu0 %v2610
      %3178 = vmatmul.mubr.f32.gmra.mxu0 %v2609
      %v3179 = vpop.f32.mrf.mxu0
      %v3180 = vadd.f32 %v3035, %v3179
      %v3181 = vpop.f32.mrf.mxu0
      %3182 = vmatprep.mubr.f32.mxu0 %v2613
      %3183 = vmatmul.mubr.f32.gmra.mxu0 %v2612
      %v3184 = vpop.f32.mrf.mxu0
      %v3185 = vadd.f32 %v3040, %v3184
      %v3186 = vpop.f32.mrf.mxu0
      %3187 = vmatprep.mubr.f32.mxu0 %v2616
      %3188 = vmatmul.mubr.f32.gmra.mxu0 %v2615
      %v3189 = vpop.f32.mrf.mxu0
      %v3190 = vadd.f32 %v3045, %v3189
      %v3191 = vpop.f32.mrf.mxu0
      %3192 = vmatprep.mubr.f32.mxu0 %v2619
      %3193 = vmatmul.mubr.f32.gmra.mxu0 %v2618
      %v3194 = vpop.f32.mrf.mxu0
      %v3195 = vadd.f32 %v3050, %v3194
      %v3196 = vpop.f32.mrf.mxu0
      %3197 = vmatprep.mubr.f32.mxu0 %v2622
      %3198 = vmatmul.mubr.f32.gmra.mxu0 %v2621
      %v3199 = vpop.f32.mrf.mxu0
      %v3200 = vadd.f32 %v3055, %v3199
      %v3201 = vpop.f32.mrf.mxu0
      %3202 = vdwg.mxu0
      %3203 = vmatprep.subr.mxu0 0.0
      %3204 = vmatpush1.msra.mxu0 %v2671
      %3205 = vmatprep.subr.mxu0 0.0
      %3206 = vmatpush1.msra.mxu0 %v2670
      %3207 = vmatprep.subr.mxu0 0.0
      %3208 = vmatpush1.msra.mxu0 %v2669
      %3209 = vmatprep.subr.mxu0 0.0
      %3210 = vmatpush1.msra.mxu0 %v2668
      %3211 = vmatprep.subr.mxu0 0.0
      %3212 = vmatpush1.msra.mxu0 %v2667
      %3213 = vmatprep.subr.mxu0 0.0
      %3214 = vmatpush1.msra.mxu0 %v2666
      %3215 = vmatprep.subr.mxu0 0.0
      %3216 = vmatpush1.msra.mxu0 %v2665
      %3217 = vmatprep.subr.mxu0 0.0
      %3218 = vmatpush1.msra.mxu0 %v2664
      %3219 = vmatprep.subr.mxu0 0.0
      %3220 = vmatpush1.msra.mxu0 %v2663
      %3221 = vmatprep.subr.mxu0 0.0
      %3222 = vmatpush1.msra.mxu0 %v2662
      %3223 = vmatprep.subr.mxu0 0.0
      %3224 = vmatpush1.msra.mxu0 %v2661
      %3225 = vmatprep.subr.mxu0 0.0
      %3226 = vmatpush1.msra.mxu0 %v2660
      %3227 = vmatprep.subr.mxu0 0.0
      %3228 = vmatpush1.msra.mxu0 %v2659
      %3229 = vmatprep.subr.mxu0 0.0
      %3230 = vmatpush1.msra.mxu0 %v2658
      %3231 = vmatprep.subr.mxu0 0.0
      %3232 = vmatpush1.msra.mxu0 %v2657
      %3233 = vmatprep.subr.mxu0 0.0
      %3234 = vmatpush1.msra.mxu0 %v2656
      %3235 = vmatprep.subr.mxu0 0.0
      %3236 = vmatpush2.msra.mxu0 0.0
      %3237 = vmatprep.subr.mxu0 0.0
      %3238 = vmatpush2.msra.mxu0 0.0
      %3239 = vmatprep.subr.mxu0 0.0
      %3240 = vmatpush2.msra.mxu0 0.0
      %3241 = vmatprep.subr.mxu0 0.0
      %3242 = vmatpush2.msra.mxu0 0.0
      %3243 = vmatprep.subr.mxu0 0.0
      %3244 = vmatpush2.msra.mxu0 0.0
      %3245 = vmatprep.subr.mxu0 0.0
      %3246 = vmatpush2.msra.mxu0 0.0
      %3247 = vmatprep.subr.mxu0 0.0
      %3248 = vmatpush2.msra.mxu0 0.0
      %3249 = vmatprep.subr.mxu0 0.0
      %3250 = vmatpush2.msra.mxu0 0.0
      %3251 = vmatprep.subr.mxu0 0.0
      %3252 = vmatpush2.msra.mxu0 0.0
      %3253 = vmatprep.subr.mxu0 0.0
      %3254 = vmatpush2.msra.mxu0 0.0
      %3255 = vmatprep.subr.mxu0 0.0
      %3256 = vmatpush2.msra.mxu0 0.0
      %3257 = vmatprep.subr.mxu0 0.0
      %3258 = vmatpush2.msra.mxu0 0.0
      %3259 = vmatprep.subr.mxu0 0.0
      %3260 = vmatpush2.msra.mxu0 0.0
      %3261 = vmatprep.subr.mxu0 0.0
      %3262 = vmatpush2.msra.mxu0 0.0
      %3263 = vmatprep.subr.mxu0 0.0
      %3264 = vmatpush2.msra.mxu0 0.0
      %3265 = vmatprep.subr.mxu0 0.0
      %3266 = vmatpush2.msra.mxu0 0.0
      %3267 = vmatprep.mubr.f32.mxu0 0.0
      %3268 = vmatmul.mubr.f32.gmra.mxu0 %v2578
      %v3269 = vpop.f32.mrf.mxu0
      %v3270 = vadd.f32 %v3125, %v3269
      %v3271 = vpop.f32.mrf.mxu0
      %3272 = vmatprep.mubr.f32.mxu0 0.0
      %3273 = vmatmul.mubr.f32.gmra.mxu0 %v2581
      %v3274 = vpop.f32.mrf.mxu0
      %v3275 = vadd.f32 %v3130, %v3274
      %v3276 = vpop.f32.mrf.mxu0
      %3277 = vmatprep.mubr.f32.mxu0 0.0
      %3278 = vmatmul.mubr.f32.gmra.mxu0 %v2584
      %v3279 = vpop.f32.mrf.mxu0
      %v3280 = vadd.f32 %v3135, %v3279
      %v3281 = vpop.f32.mrf.mxu0
      %3282 = vmatprep.mubr.f32.mxu0 0.0
      %3283 = vmatmul.mubr.f32.gmra.mxu0 %v2587
      %v3284 = vpop.f32.mrf.mxu0
      %v3285 = vadd.f32 %v3140, %v3284
      %v3286 = vpop.f32.mrf.mxu0
      %3287 = vmatprep.mubr.f32.mxu0 0.0
      %3288 = vmatmul.mubr.f32.gmra.mxu0 %v2590
      %v3289 = vpop.f32.mrf.mxu0
      %v3290 = vadd.f32 %v3145, %v3289
      %v3291 = vpop.f32.mrf.mxu0
      %3292 = vmatprep.mubr.f32.mxu0 0.0
      %3293 = vmatmul.mubr.f32.gmra.mxu0 %v2593
      %v3294 = vpop.f32.mrf.mxu0
      %v3295 = vadd.f32 %v3150, %v3294
      %v3296 = vpop.f32.mrf.mxu0
      %3297 = vmatprep.mubr.f32.mxu0 0.0
      %3298 = vmatmul.mubr.f32.gmra.mxu0 %v2596
      %v3299 = vpop.f32.mrf.mxu0
      %v3300 = vadd.f32 %v3155, %v3299
      %v3301 = vpop.f32.mrf.mxu0
      %3302 = vmatprep.mubr.f32.mxu0 0.0
      %3303 = vmatmul.mubr.f32.gmra.mxu0 %v2599
      %v3304 = vpop.f32.mrf.mxu0
      %v3305 = vadd.f32 %v3160, %v3304
      %v3306 = vpop.f32.mrf.mxu0
      %3307 = vmatprep.mubr.f32.mxu0 0.0
      %3308 = vmatmul.mubr.f32.gmra.mxu0 %v2602
      %v3309 = vpop.f32.mrf.mxu0
      %v3310 = vadd.f32 %v3165, %v3309
      %v3311 = vpop.f32.mrf.mxu0
      %3312 = vmatprep.mubr.f32.mxu0 0.0
      %3313 = vmatmul.mubr.f32.gmra.mxu0 %v2605
      %v3314 = vpop.f32.mrf.mxu0
      %v3315 = vadd.f32 %v3170, %v3314
      %v3316 = vpop.f32.mrf.mxu0
      %3317 = vmatprep.mubr.f32.mxu0 0.0
      %3318 = vmatmul.mubr.f32.gmra.mxu0 %v2608
      %v3319 = vpop.f32.mrf.mxu0
      %v3320 = vadd.f32 %v3175, %v3319
      %v3321 = vpop.f32.mrf.mxu0
      %3322 = vmatprep.mubr.f32.mxu0 0.0
      %3323 = vmatmul.mubr.f32.gmra.mxu0 %v2611
      %v3324 = vpop.f32.mrf.mxu0
      %v3325 = vadd.f32 %v3180, %v3324
      %v3326 = vpop.f32.mrf.mxu0
      %3327 = vmatprep.mubr.f32.mxu0 0.0
      %3328 = vmatmul.mubr.f32.gmra.mxu0 %v2614
      %v3329 = vpop.f32.mrf.mxu0
      %v3330 = vadd.f32 %v3185, %v3329
      %v3331 = vpop.f32.mrf.mxu0
      %3332 = vmatprep.mubr.f32.mxu0 0.0
      %3333 = vmatmul.mubr.f32.gmra.mxu0 %v2617
      %v3334 = vpop.f32.mrf.mxu0
      %v3335 = vadd.f32 %v3190, %v3334
      %v3336 = vpop.f32.mrf.mxu0
      %3337 = vmatprep.mubr.f32.mxu0 0.0
      %3338 = vmatmul.mubr.f32.gmra.mxu0 %v2620
      %v3339 = vpop.f32.mrf.mxu0
      %v3340 = vadd.f32 %v3195, %v3339
      %v3341 = vpop.f32.mrf.mxu0
      %3342 = vmatprep.mubr.f32.mxu0 0.0
      %3343 = vmatmul.mubr.f32.gmra.mxu0 %v2623
      %v3344 = vpop.f32.mrf.mxu0
      %v3345 = vadd.f32 %v3200, %v3344
      %v3346 = vpop.f32.mrf.mxu0
      %3347 = vdwg.mxu0
      %v3348 = vld [vmem:[#allocation3 + $0x30] sm:$0xff]
      %v3349 = vld [vmem:[#allocation3 + $0x38] sm:$0xff]
      %v3350 = vld [vmem:[#allocation3 + $0x40] sm:$0xff]
      %v3351 = vld [vmem:[#allocation3 + $0x78] sm:$0xff]
      %v3352 = vld [vmem:[#allocation3 + $0x80] sm:$0xff]
      %v3353 = vld [vmem:[#allocation3 + $0x88] sm:$0xff]
      %v3354 = vld [vmem:[#allocation3 + $0xc0] sm:$0xff]
      %v3355 = vld [vmem:[#allocation3 + $0xc8] sm:$0xff]
      %v3356 = vld [vmem:[#allocation3 + $0xd0] sm:$0xff]
      %v3357 = vld [vmem:[#allocation3 + $0x108] sm:$0xff]
      %v3358 = vld [vmem:[#allocation3 + $0x110] sm:$0xff]
      %v3359 = vld [vmem:[#allocation3 + $0x118] sm:$0xff]
      %v3360 = vld [vmem:[#allocation3 + $0x150] sm:$0xff]
      %v3361 = vld [vmem:[#allocation3 + $0x158] sm:$0xff]
      %v3362 = vld [vmem:[#allocation3 + $0x160] sm:$0xff]
      %v3363 = vld [vmem:[#allocation3 + $0x198] sm:$0xff]
      %v3364 = vld [vmem:[#allocation3 + $0x1a0] sm:$0xff]
      %v3365 = vld [vmem:[#allocation3 + $0x1a8] sm:$0xff]
      %v3366 = vld [vmem:[#allocation3 + $0x1e0] sm:$0xff]
      %v3367 = vld [vmem:[#allocation3 + $0x1e8] sm:$0xff]
      %v3368 = vld [vmem:[#allocation3 + $0x1f0] sm:$0xff]
      %v3369 = vld [vmem:[#allocation3 + $0x228] sm:$0xff]
      %v3370 = vld [vmem:[#allocation3 + $0x230] sm:$0xff]
      %v3371 = vld [vmem:[#allocation3 + $0x238] sm:$0xff]
      %v3372 = vld [vmem:[#allocation3 + $0x270] sm:$0xff]
      %v3373 = vld [vmem:[#allocation3 + $0x278] sm:$0xff]
      %v3374 = vld [vmem:[#allocation3 + $0x280] sm:$0xff]
      %v3375 = vld [vmem:[#allocation3 + $0x2b8] sm:$0xff]
      %v3376 = vld [vmem:[#allocation3 + $0x2c0] sm:$0xff]
      %v3377 = vld [vmem:[#allocation3 + $0x2c8] sm:$0xff]
      %v3378 = vld [vmem:[#allocation3 + $0x300] sm:$0xff]
      %v3379 = vld [vmem:[#allocation3 + $0x308] sm:$0xff]
      %v3380 = vld [vmem:[#allocation3 + $0x310] sm:$0xff]
      %v3381 = vld [vmem:[#allocation3 + $0x348] sm:$0xff]
      %v3382 = vld [vmem:[#allocation3 + $0x350] sm:$0xff]
      %v3383 = vld [vmem:[#allocation3 + $0x358] sm:$0xff]
      %v3384 = vld [vmem:[#allocation3 + $0x390] sm:$0xff]
      %v3385 = vld [vmem:[#allocation3 + $0x398] sm:$0xff]
      %v3386 = vld [vmem:[#allocation3 + $0x3a0] sm:$0xff]
      %v3387 = vld [vmem:[#allocation3 + $0x3d8] sm:$0xff]
      %v3388 = vld [vmem:[#allocation3 + $0x3e0] sm:$0xff]
      %v3389 = vld [vmem:[#allocation3 + $0x3e8] sm:$0xff]
      %v3390 = vld [vmem:[#allocation3 + $0x420] sm:$0xff]
      %v3391 = vld [vmem:[#allocation3 + $0x428] sm:$0xff]
      %v3392 = vld [vmem:[#allocation3 + $0x430] sm:$0xff]
      %v3393 = vld [vmem:[#allocation3 + $0x468] sm:$0xff]
      %v3394 = vld [vmem:[#allocation3 + $0x470] sm:$0xff]
      %v3395 = vld [vmem:[#allocation3 + $0x478] sm:$0xff]
      %v3396 = vld [vmem:[%s4 + $0x300] sm:$0xff]
      %v3397 = vld [vmem:[%s4 + $0x308] sm:$0xff]
      %v3398 = vld [vmem:[%s4 + $0x310] sm:$0xff]
      %v3399 = vld [vmem:[%s4 + $0x318] sm:$0xff]
      %v3400 = vld [vmem:[%s4 + $0x320] sm:$0xff]
      %v3401 = vld [vmem:[%s4 + $0x328] sm:$0xff]
      %v3402 = vld [vmem:[%s4 + $0x330] sm:$0xff]
      %v3403 = vld [vmem:[%s4 + $0x338] sm:$0xff]
      %v3404 = vld [vmem:[%s4 + $0x340] sm:$0xff]
      %v3405 = vld [vmem:[%s4 + $0x348] sm:$0xff]
      %v3406 = vld [vmem:[%s4 + $0x350] sm:$0xff]
      %v3407 = vld [vmem:[%s4 + $0x358] sm:$0xff]
      %v3408 = vld [vmem:[%s4 + $0x360] sm:$0xff]
      %v3409 = vld [vmem:[%s4 + $0x368] sm:$0xff]
      %v3410 = vld [vmem:[%s4 + $0x370] sm:$0xff]
      %v3411 = vld [vmem:[%s4 + $0x378] sm:$0xff]
      %v3412 = vld [vmem:[%s4 + $0x380] sm:$0xff]
      %v3413 = vld [vmem:[%s4 + $0x388] sm:$0xff]
      %v3414 = vld [vmem:[%s4 + $0x390] sm:$0xff]
      %v3415 = vld [vmem:[%s4 + $0x398] sm:$0xff]
      %v3416 = vld [vmem:[%s4 + $0x3a0] sm:$0xff]
      %v3417 = vld [vmem:[%s4 + $0x3a8] sm:$0xff]
      %v3418 = vld [vmem:[%s4 + $0x3b0] sm:$0xff]
      %v3419 = vld [vmem:[%s4 + $0x3b8] sm:$0xff]
      %v3420 = vld [vmem:[%s4 + $0x3c0] sm:$0xff]
      %v3421 = vld [vmem:[%s4 + $0x3c8] sm:$0xff]
      %v3422 = vld [vmem:[%s4 + $0x3d0] sm:$0xff]
      %v3423 = vld [vmem:[%s4 + $0x3d8] sm:$0xff]
      %v3424 = vld [vmem:[%s4 + $0x3e0] sm:$0xff]
      %v3425 = vld [vmem:[%s4 + $0x3e8] sm:$0xff]
      %v3426 = vld [vmem:[%s4 + $0x3f0] sm:$0xff]
      %v3427 = vld [vmem:[%s4 + $0x3f8] sm:$0xff]
      %v3428 = vld [vmem:[%s4 + $0x400] sm:$0xff]
      %v3429 = vld [vmem:[%s4 + $0x408] sm:$0xff]
      %v3430 = vld [vmem:[%s4 + $0x410] sm:$0xff]
      %v3431 = vld [vmem:[%s4 + $0x418] sm:$0xff]
      %v3432 = vld [vmem:[%s4 + $0x420] sm:$0xff]
      %v3433 = vld [vmem:[%s4 + $0x428] sm:$0xff]
      %v3434 = vld [vmem:[%s4 + $0x430] sm:$0xff]
      %v3435 = vld [vmem:[%s4 + $0x438] sm:$0xff]
      %v3436 = vld [vmem:[%s4 + $0x440] sm:$0xff]
      %v3437 = vld [vmem:[%s4 + $0x448] sm:$0xff]
      %v3438 = vld [vmem:[%s4 + $0x450] sm:$0xff]
      %v3439 = vld [vmem:[%s4 + $0x458] sm:$0xff]
      %v3440 = vld [vmem:[%s4 + $0x460] sm:$0xff]
      %v3441 = vld [vmem:[%s4 + $0x468] sm:$0xff]
      %v3442 = vld [vmem:[%s4 + $0x470] sm:$0xff]
      %v3443 = vld [vmem:[%s4 + $0x478] sm:$0xff]
      %3444 = vmatprep.subr.mxu0 0.0
      %3445 = vmatpush1.msra.mxu0 %v3411
      %3446 = vmatprep.subr.mxu0 0.0
      %3447 = vmatpush1.msra.mxu0 %v3410
      %3448 = vmatprep.subr.mxu0 0.0
      %3449 = vmatpush1.msra.mxu0 %v3409
      %3450 = vmatprep.subr.mxu0 0.0
      %3451 = vmatpush1.msra.mxu0 %v3408
      %3452 = vmatprep.subr.mxu0 0.0
      %3453 = vmatpush1.msra.mxu0 %v3407
      %3454 = vmatprep.subr.mxu0 0.0
      %3455 = vmatpush1.msra.mxu0 %v3406
      %3456 = vmatprep.subr.mxu0 0.0
      %3457 = vmatpush1.msra.mxu0 %v3405
      %3458 = vmatprep.subr.mxu0 0.0
      %3459 = vmatpush1.msra.mxu0 %v3404
      %3460 = vmatprep.subr.mxu0 0.0
      %3461 = vmatpush1.msra.mxu0 %v3403
      %3462 = vmatprep.subr.mxu0 0.0
      %3463 = vmatpush1.msra.mxu0 %v3402
      %3464 = vmatprep.subr.mxu0 0.0
      %3465 = vmatpush1.msra.mxu0 %v3401
      %3466 = vmatprep.subr.mxu0 0.0
      %3467 = vmatpush1.msra.mxu0 %v3400
      %3468 = vmatprep.subr.mxu0 0.0
      %3469 = vmatpush1.msra.mxu0 %v3399
      %3470 = vmatprep.subr.mxu0 0.0
      %3471 = vmatpush1.msra.mxu0 %v3398
      %3472 = vmatprep.subr.mxu0 0.0
      %3473 = vmatpush1.msra.mxu0 %v3397
      %3474 = vmatprep.subr.mxu0 0.0
      %3475 = vmatpush1.msra.mxu0 %v3396
      %3476 = vmatprep.subr.mxu0 0.0
      %3477 = vmatpush2.msra.mxu0 %v3427
      %3478 = vmatprep.subr.mxu0 0.0
      %3479 = vmatpush2.msra.mxu0 %v3426
      %3480 = vmatprep.subr.mxu0 0.0
      %3481 = vmatpush2.msra.mxu0 %v3425
      %3482 = vmatprep.subr.mxu0 0.0
      %3483 = vmatpush2.msra.mxu0 %v3424
      %3484 = vmatprep.subr.mxu0 0.0
      %3485 = vmatpush2.msra.mxu0 %v3423
      %3486 = vmatprep.subr.mxu0 0.0
      %3487 = vmatpush2.msra.mxu0 %v3422
      %3488 = vmatprep.subr.mxu0 0.0
      %3489 = vmatpush2.msra.mxu0 %v3421
      %3490 = vmatprep.subr.mxu0 0.0
      %3491 = vmatpush2.msra.mxu0 %v3420
      %3492 = vmatprep.subr.mxu0 0.0
      %3493 = vmatpush2.msra.mxu0 %v3419
      %3494 = vmatprep.subr.mxu0 0.0
      %3495 = vmatpush2.msra.mxu0 %v3418
      %3496 = vmatprep.subr.mxu0 0.0
      %3497 = vmatpush2.msra.mxu0 %v3417
      %3498 = vmatprep.subr.mxu0 0.0
      %3499 = vmatpush2.msra.mxu0 %v3416
      %3500 = vmatprep.subr.mxu0 0.0
      %3501 = vmatpush2.msra.mxu0 %v3415
      %3502 = vmatprep.subr.mxu0 0.0
      %3503 = vmatpush2.msra.mxu0 %v3414
      %3504 = vmatprep.subr.mxu0 0.0
      %3505 = vmatpush2.msra.mxu0 %v3413
      %3506 = vmatprep.subr.mxu0 0.0
      %3507 = vmatpush2.msra.mxu0 %v3412
      %3508 = vmatprep.mubr.f32.mxu0 %v3349
      %3509 = vmatmul.mubr.f32.gmra.mxu0 %v3348
      %v3510 = vpop.f32.mrf.mxu0
      %v3511 = vadd.f32 0.0, %v3510
      %v3512 = vpop.f32.mrf.mxu0
      %3513 = vmatprep.mubr.f32.mxu0 %v3352
      %3514 = vmatmul.mubr.f32.gmra.mxu0 %v3351
      %v3515 = vpop.f32.mrf.mxu0
      %v3516 = vadd.f32 0.0, %v3515
      %v3517 = vpop.f32.mrf.mxu0
      %3518 = vmatprep.mubr.f32.mxu0 %v3355
      %3519 = vmatmul.mubr.f32.gmra.mxu0 %v3354
      %v3520 = vpop.f32.mrf.mxu0
      %v3521 = vadd.f32 0.0, %v3520
      %v3522 = vpop.f32.mrf.mxu0
      %3523 = vmatprep.mubr.f32.mxu0 %v3358
      %3524 = vmatmul.mubr.f32.gmra.mxu0 %v3357
      %v3525 = vpop.f32.mrf.mxu0
      %v3526 = vadd.f32 0.0, %v3525
      %v3527 = vpop.f32.mrf.mxu0
      %3528 = vmatprep.mubr.f32.mxu0 %v3361
      %3529 = vmatmul.mubr.f32.gmra.mxu0 %v3360
      %v3530 = vpop.f32.mrf.mxu0
      %v3531 = vadd.f32 0.0, %v3530
      %v3532 = vpop.f32.mrf.mxu0
      %3533 = vmatprep.mubr.f32.mxu0 %v3364
      %3534 = vmatmul.mubr.f32.gmra.mxu0 %v3363
      %v3535 = vpop.f32.mrf.mxu0
      %v3536 = vadd.f32 0.0, %v3535
      %v3537 = vpop.f32.mrf.mxu0
      %3538 = vmatprep.mubr.f32.mxu0 %v3367
      %3539 = vmatmul.mubr.f32.gmra.mxu0 %v3366
      %v3540 = vpop.f32.mrf.mxu0
      %v3541 = vadd.f32 0.0, %v3540
      %v3542 = vpop.f32.mrf.mxu0
      %3543 = vmatprep.mubr.f32.mxu0 %v3370
      %3544 = vmatmul.mubr.f32.gmra.mxu0 %v3369
      %v3545 = vpop.f32.mrf.mxu0
      %v3546 = vadd.f32 0.0, %v3545
      %v3547 = vpop.f32.mrf.mxu0
      %3548 = vmatprep.mubr.f32.mxu0 %v3373
      %3549 = vmatmul.mubr.f32.gmra.mxu0 %v3372
      %v3550 = vpop.f32.mrf.mxu0
      %v3551 = vadd.f32 0.0, %v3550
      %v3552 = vpop.f32.mrf.mxu0
      %3553 = vmatprep.mubr.f32.mxu0 %v3376
      %3554 = vmatmul.mubr.f32.gmra.mxu0 %v3375
      %v3555 = vpop.f32.mrf.mxu0
      %v3556 = vadd.f32 0.0, %v3555
      %v3557 = vpop.f32.mrf.mxu0
      %3558 = vmatprep.mubr.f32.mxu0 %v3379
      %3559 = vmatmul.mubr.f32.gmra.mxu0 %v3378
      %v3560 = vpop.f32.mrf.mxu0
      %v3561 = vadd.f32 0.0, %v3560
      %v3562 = vpop.f32.mrf.mxu0
      %3563 = vmatprep.mubr.f32.mxu0 %v3382
      %3564 = vmatmul.mubr.f32.gmra.mxu0 %v3381
      %v3565 = vpop.f32.mrf.mxu0
      %v3566 = vadd.f32 0.0, %v3565
      %v3567 = vpop.f32.mrf.mxu0
      %3568 = vmatprep.mubr.f32.mxu0 %v3385
      %3569 = vmatmul.mubr.f32.gmra.mxu0 %v3384
      %v3570 = vpop.f32.mrf.mxu0
      %v3571 = vadd.f32 0.0, %v3570
      %v3572 = vpop.f32.mrf.mxu0
      %3573 = vmatprep.mubr.f32.mxu0 %v3388
      %3574 = vmatmul.mubr.f32.gmra.mxu0 %v3387
      %v3575 = vpop.f32.mrf.mxu0
      %v3576 = vadd.f32 0.0, %v3575
      %v3577 = vpop.f32.mrf.mxu0
      %3578 = vmatprep.mubr.f32.mxu0 %v3391
      %3579 = vmatmul.mubr.f32.gmra.mxu0 %v3390
      %v3580 = vpop.f32.mrf.mxu0
      %v3581 = vadd.f32 0.0, %v3580
      %v3582 = vpop.f32.mrf.mxu0
      %3583 = vmatprep.mubr.f32.mxu0 %v3394
      %3584 = vmatmul.mubr.f32.gmra.mxu0 %v3393
      %v3585 = vpop.f32.mrf.mxu0
      %v3586 = vadd.f32 0.0, %v3585
      %v3587 = vpop.f32.mrf.mxu0
      %3588 = vdwg.mxu0
      %3589 = vmatprep.subr.mxu0 0.0
      %3590 = vmatpush1.msra.mxu0 %v3443
      %3591 = vmatprep.subr.mxu0 0.0
      %3592 = vmatpush1.msra.mxu0 %v3442
      %3593 = vmatprep.subr.mxu0 0.0
      %3594 = vmatpush1.msra.mxu0 %v3441
      %3595 = vmatprep.subr.mxu0 0.0
      %3596 = vmatpush1.msra.mxu0 %v3440
      %3597 = vmatprep.subr.mxu0 0.0
      %3598 = vmatpush1.msra.mxu0 %v3439
      %3599 = vmatprep.subr.mxu0 0.0
      %3600 = vmatpush1.msra.mxu0 %v3438
      %3601 = vmatprep.subr.mxu0 0.0
      %3602 = vmatpush1.msra.mxu0 %v3437
      %3603 = vmatprep.subr.mxu0 0.0
      %3604 = vmatpush1.msra.mxu0 %v3436
      %3605 = vmatprep.subr.mxu0 0.0
      %3606 = vmatpush1.msra.mxu0 %v3435
      %3607 = vmatprep.subr.mxu0 0.0
      %3608 = vmatpush1.msra.mxu0 %v3434
      %3609 = vmatprep.subr.mxu0 0.0
      %3610 = vmatpush1.msra.mxu0 %v3433
      %3611 = vmatprep.subr.mxu0 0.0
      %3612 = vmatpush1.msra.mxu0 %v3432
      %3613 = vmatprep.subr.mxu0 0.0
      %3614 = vmatpush1.msra.mxu0 %v3431
      %3615 = vmatprep.subr.mxu0 0.0
      %3616 = vmatpush1.msra.mxu0 %v3430
      %3617 = vmatprep.subr.mxu0 0.0
      %3618 = vmatpush1.msra.mxu0 %v3429
      %3619 = vmatprep.subr.mxu0 0.0
      %3620 = vmatpush1.msra.mxu0 %v3428
      %3621 = vmatprep.subr.mxu0 0.0
      %3622 = vmatpush2.msra.mxu0 0.0
      %3623 = vmatprep.subr.mxu0 0.0
      %3624 = vmatpush2.msra.mxu0 0.0
      %3625 = vmatprep.subr.mxu0 0.0
      %3626 = vmatpush2.msra.mxu0 0.0
      %3627 = vmatprep.subr.mxu0 0.0
      %3628 = vmatpush2.msra.mxu0 0.0
      %3629 = vmatprep.subr.mxu0 0.0
      %3630 = vmatpush2.msra.mxu0 0.0
      %3631 = vmatprep.subr.mxu0 0.0
      %3632 = vmatpush2.msra.mxu0 0.0
      %3633 = vmatprep.subr.mxu0 0.0
      %3634 = vmatpush2.msra.mxu0 0.0
      %3635 = vmatprep.subr.mxu0 0.0
      %3636 = vmatpush2.msra.mxu0 0.0
      %3637 = vmatprep.subr.mxu0 0.0
      %3638 = vmatpush2.msra.mxu0 0.0
      %3639 = vmatprep.subr.mxu0 0.0
      %3640 = vmatpush2.msra.mxu0 0.0
      %3641 = vmatprep.subr.mxu0 0.0
      %3642 = vmatpush2.msra.mxu0 0.0
      %3643 = vmatprep.subr.mxu0 0.0
      %3644 = vmatpush2.msra.mxu0 0.0
      %3645 = vmatprep.subr.mxu0 0.0
      %3646 = vmatpush2.msra.mxu0 0.0
      %3647 = vmatprep.subr.mxu0 0.0
      %3648 = vmatpush2.msra.mxu0 0.0
      %3649 = vmatprep.subr.mxu0 0.0
      %3650 = vmatpush2.msra.mxu0 0.0
      %3651 = vmatprep.subr.mxu0 0.0
      %3652 = vmatpush2.msra.mxu0 0.0
      %3653 = vmatprep.mubr.f32.mxu0 0.0
      %3654 = vmatmul.mubr.f32.gmra.mxu0 %v3350
      %v3655 = vpop.f32.mrf.mxu0
      %v3656 = vadd.f32 %v3511, %v3655
      %v3657 = vpop.f32.mrf.mxu0
      %3658 = vmatprep.mubr.f32.mxu0 0.0
      %3659 = vmatmul.mubr.f32.gmra.mxu0 %v3353
      %v3660 = vpop.f32.mrf.mxu0
      %v3661 = vadd.f32 %v3516, %v3660
      %v3662 = vpop.f32.mrf.mxu0
      %3663 = vmatprep.mubr.f32.mxu0 0.0
      %3664 = vmatmul.mubr.f32.gmra.mxu0 %v3356
      %v3665 = vpop.f32.mrf.mxu0
      %v3666 = vadd.f32 %v3521, %v3665
      %v3667 = vpop.f32.mrf.mxu0
      %3668 = vmatprep.mubr.f32.mxu0 0.0
      %3669 = vmatmul.mubr.f32.gmra.mxu0 %v3359
      %v3670 = vpop.f32.mrf.mxu0
      %v3671 = vadd.f32 %v3526, %v3670
      %v3672 = vpop.f32.mrf.mxu0
      %3673 = vmatprep.mubr.f32.mxu0 0.0
      %3674 = vmatmul.mubr.f32.gmra.mxu0 %v3362
      %v3675 = vpop.f32.mrf.mxu0
      %v3676 = vadd.f32 %v3531, %v3675
      %v3677 = vpop.f32.mrf.mxu0
      %3678 = vmatprep.mubr.f32.mxu0 0.0
      %3679 = vmatmul.mubr.f32.gmra.mxu0 %v3365
      %v3680 = vpop.f32.mrf.mxu0
      %v3681 = vadd.f32 %v3536, %v3680
      %v3682 = vpop.f32.mrf.mxu0
      %3683 = vmatprep.mubr.f32.mxu0 0.0
      %3684 = vmatmul.mubr.f32.gmra.mxu0 %v3368
      %v3685 = vpop.f32.mrf.mxu0
      %v3686 = vadd.f32 %v3541, %v3685
      %v3687 = vpop.f32.mrf.mxu0
      %3688 = vmatprep.mubr.f32.mxu0 0.0
      %3689 = vmatmul.mubr.f32.gmra.mxu0 %v3371
      %v3690 = vpop.f32.mrf.mxu0
      %v3691 = vadd.f32 %v3546, %v3690
      %v3692 = vpop.f32.mrf.mxu0
      %3693 = vmatprep.mubr.f32.mxu0 0.0
      %3694 = vmatmul.mubr.f32.gmra.mxu0 %v3374
      %v3695 = vpop.f32.mrf.mxu0
      %v3696 = vadd.f32 %v3551, %v3695
      %v3697 = vpop.f32.mrf.mxu0
      %3698 = vmatprep.mubr.f32.mxu0 0.0
      %3699 = vmatmul.mubr.f32.gmra.mxu0 %v3377
      %v3700 = vpop.f32.mrf.mxu0
      %v3701 = vadd.f32 %v3556, %v3700
      %v3702 = vpop.f32.mrf.mxu0
      %3703 = vmatprep.mubr.f32.mxu0 0.0
      %3704 = vmatmul.mubr.f32.gmra.mxu0 %v3380
      %v3705 = vpop.f32.mrf.mxu0
      %v3706 = vadd.f32 %v3561, %v3705
      %v3707 = vpop.f32.mrf.mxu0
      %3708 = vmatprep.mubr.f32.mxu0 0.0
      %3709 = vmatmul.mubr.f32.gmra.mxu0 %v3383
      %v3710 = vpop.f32.mrf.mxu0
      %v3711 = vadd.f32 %v3566, %v3710
      %v3712 = vpop.f32.mrf.mxu0
      %3713 = vmatprep.mubr.f32.mxu0 0.0
      %3714 = vmatmul.mubr.f32.gmra.mxu0 %v3386
      %v3715 = vpop.f32.mrf.mxu0
      %v3716 = vadd.f32 %v3571, %v3715
      %v3717 = vpop.f32.mrf.mxu0
      %3718 = vmatprep.mubr.f32.mxu0 0.0
      %3719 = vmatmul.mubr.f32.gmra.mxu0 %v3389
      %v3720 = vpop.f32.mrf.mxu0
      %v3721 = vadd.f32 %v3576, %v3720
      %v3722 = vpop.f32.mrf.mxu0
      %3723 = vmatprep.mubr.f32.mxu0 0.0
      %3724 = vmatmul.mubr.f32.gmra.mxu0 %v3392
      %v3725 = vpop.f32.mrf.mxu0
      %v3726 = vadd.f32 %v3581, %v3725
      %v3727 = vpop.f32.mrf.mxu0
      %3728 = vmatprep.mubr.f32.mxu0 0.0
      %3729 = vmatmul.mubr.f32.gmra.mxu0 %v3395
      %v3730 = vpop.f32.mrf.mxu0
      %v3731 = vadd.f32 %v3586, %v3730
      %v3732 = vpop.f32.mrf.mxu0
      %3733 = vdwg.mxu0
      %v3734 = vadd.f32 %v3270, %v3656
      %v3735 = vadd.f32 %v3275, %v3661
      %v3736 = vadd.f32 %v3280, %v3666
      %v3737 = vadd.f32 %v3285, %v3671
      %v3738 = vadd.f32 %v3290, %v3676
      %v3739 = vadd.f32 %v3295, %v3681
      %v3740 = vadd.f32 %v3300, %v3686
      %v3741 = vadd.f32 %v3305, %v3691
      %v3742 = vadd.f32 %v3310, %v3696
      %v3743 = vadd.f32 %v3315, %v3701
      %v3744 = vadd.f32 %v3320, %v3706
      %v3745 = vadd.f32 %v3325, %v3711
      %v3746 = vadd.f32 %v3330, %v3716
      %v3747 = vadd.f32 %v3335, %v3721
      %v3748 = vadd.f32 %v3340, %v3726
      %v3749 = vadd.f32 %v3345, %v3731
      %v3750 = vld [vmem:[%s5] sm:$0x1]
      %v3752 = vlaneseq
      %v3753 = vshrl.u32 %v3752, 7
      %v3754 = vsub.s32 0, %v3753
      %v3755 = vrot.slane %v3750, %v3754
      %v3757 = vadd.f32 %v3734, %v3755
      %v3758 = vadd.f32 %v3735, %v3755
      %v3759 = vadd.f32 %v3736, %v3755
      %v3760 = vadd.f32 %v3737, %v3755
      %v3761 = vadd.f32 %v3738, %v3755
      %v3762 = vadd.f32 %v3739, %v3755
      %v3763 = vadd.f32 %v3740, %v3755
      %v3764 = vadd.f32 %v3741, %v3755
      %v3765 = vadd.f32 %v3742, %v3755
      %v3766 = vadd.f32 %v3743, %v3755
      %v3767 = vadd.f32 %v3744, %v3755
      %v3768 = vadd.f32 %v3745, %v3755
      %v3769 = vadd.f32 %v3746, %v3755
      %v3770 = vadd.f32 %v3747, %v3755
      %v3771 = vadd.f32 %v3748, %v3755
      %v3772 = vadd.f32 %v3749, %v3755
      %v3773 = vadd.f32 %v3757, %v731
      %v3774 = vadd.f32 %v3758, %v731
      %v3775 = vadd.f32 %v3759, %v736
      %v3776 = vadd.f32 %v3760, %v736
      %v3777 = vadd.f32 %v3761, %v741
      %v3778 = vadd.f32 %v3762, %v741
      %v3779 = vadd.f32 %v3763, %v746
      %v3780 = vadd.f32 %v3764, %v746
      %v3781 = vadd.f32 %v3765, %v751
      %v3782 = vadd.f32 %v3766, %v751
      %v3783 = vadd.f32 %v3767, %v756
      %v3784 = vadd.f32 %v3768, %v756
      %v3785 = vadd.f32 %v3769, %v761
      %v3786 = vadd.f32 %v3770, %v761
      %v3787 = vadd.f32 %v3771, %v766
      %v3788 = vadd.f32 %v3772, %v766
      %s3789 = scalar_lea.vmem %s352, 128
      %3790 = vst [vmem:[%s3789] sm:$0xff] %v3773
      %3791 = vst [vmem:[%s3789 + $0x8] sm:$0xff] %v3774
      %3792 = vst [vmem:[%s3789 + $0x10] sm:$0xff] %v3775
      %3793 = vst [vmem:[%s3789 + $0x18] sm:$0xff] %v3776
      %3794 = vst [vmem:[%s3789 + $0x20] sm:$0xff] %v3777
      %3795 = vst [vmem:[%s3789 + $0x28] sm:$0xff] %v3778
      %3796 = vst [vmem:[%s3789 + $0x30] sm:$0xff] %v3779
      %3797 = vst [vmem:[%s3789 + $0x38] sm:$0xff] %v3780
      %3798 = vst [vmem:[%s3789 + $0x40] sm:$0xff] %v3781
      %3799 = vst [vmem:[%s3789 + $0x48] sm:$0xff] %v3782
      %3800 = vst [vmem:[%s3789 + $0x50] sm:$0xff] %v3783
      %3801 = vst [vmem:[%s3789 + $0x58] sm:$0xff] %v3784
      %3802 = vst [vmem:[%s3789 + $0x60] sm:$0xff] %v3785
      %3803 = vst [vmem:[%s3789 + $0x68] sm:$0xff] %v3786
      %3804 = vst [vmem:[%s3789 + $0x70] sm:$0xff] %v3787
      %3805 = vst [vmem:[%s3789 + $0x78] sm:$0xff] %v3788
      %p3806 = scmp.lt.s32.totalorder %s20, 1
      %s3807 = scalar_select %p3806, %s20, 1
      %s3808 = smul.addr %s3807, 32
      %s3809 = smul.addr %s3808, 8
      %s3810 = scalar_lea.vmem %s9, %s3809
      // Predicated region
      $region57: #{base_gen_block.9} parent=55 // pred_check
        %p3811 = pneg %p237
      $region58: #{base_gen_block.9} parent=55 // pred_check_branch
        %3813 = sbr.rel (%p3811) target = $region60
      $region59: #{base_gen_block.9} parent=55 // pred_region
        _
      $region60: #{base_gen_block.9} parent=55 // pred_fallthru
        _
    $region56: #{base_gen_block.9} parent=5 // pred_fallthru
      _
    %p3814 = scmp.le.s32.totalorder 2, %s15
    // Predicated region
    $region61: #{base_gen_block.9} parent=5 // pred_check
      %p3815 = pneg %p3814
    $region62: #{base_gen_block.9} parent=5 // pred_check_branch
      %3817 = sbr.rel (%p3815) target = $region64
    $region63: #{base_gen_block.9} parent=5 // pred_region
      %s3818 = ssub.s32 %s15, 2
      // Predicated region
      $region65: #{base_gen_block.9} parent=63 // pred_check
        %p3819 = pneg %p243
      $region66: #{base_gen_block.9} parent=63 // pred_check_branch
        %3821 = sbr.rel (%p3819) target = $region68
      $region67: #{base_gen_block.9} parent=63 // pred_region
        %p3822 = scmp.lt.s32.totalorder %s21, 1
        %s3823 = scalar_select %p3822, %s21, 1
        %s3824 = smul.addr %s3823, 32
        %s3825 = smul.addr %s3824, 8
        %s3826 = scalar_lea.vmem %s9, %s3825
      $region68: #{base_gen_block.9} parent=63 // pred_fallthru
        _
    $region64: #{base_gen_block.9} parent=5 // pred_fallthru
      _
  $region6: #{base_gen_block.9} parent=0 // loop_footer
    %s19 = sadd.s32 1, %s15
  $region7: #{base_gen_block.9} parent=0 // loop_footer_branch
    %14 = sbr.rel target = $region3
  $region8: #{base_gen_block.9} parent=0 // loop_exit
    _

</llo_original>
